<compile_context>
chip_gen: v6e
topology: v6e:2x2x1
jax: 0.10.0
libtpu: 0.0.40
codegen_flags: <defaults>
</compile_context>

<pallas_src>
import functools

import jax
import jax.numpy as jnp
from jax.experimental import pallas as pl
from jax.experimental.pallas import tpu as pltpu


# ----------------------------------------------------------------------------
# helpers
# ----------------------------------------------------------------------------
def _round_up(x, m):
    return (x + m - 1) // m * m


def _bdot(a, w_bf16):
    """bf16 MXU matmul with f32 accumulation."""
    return jnp.dot(a.astype(jnp.bfloat16), w_bf16,
                   preferred_element_type=jnp.float32)


def _s2_tap_starts(Npp, Wpp):
    """Row offsets of the 9 stride-2 taps inside the per-example phase buffer."""
    starts = []
    for kh in range(3):
        for kw in range(3):
            p = 2 * (kh % 2) + (kw % 2)          # phase index = 2*row_par + col_par
            starts.append(p * Npp + (kh // 2) * Wpp + (kw // 2))
    return starts


# ----------------------------------------------------------------------------
# Pallas kernels
# ----------------------------------------------------------------------------
def _matmul_bias_kernel(x_ref, w_ref, b_ref, o_ref, *, relu):
    acc = _bdot(x_ref[...], w_ref[...]) + b_ref[...]
    if relu:
        acc = jnp.maximum(acc, 0.0)
    o_ref[...] = acc.astype(o_ref.dtype)


def _block_s1_kernel(x_ref, w1_ref, wd_ref, bd_ref, w2_ref, b2_ref,
                     o_ref, y_s, *, Wp, L):
    # x_ref : (R, Cb+1) bf16 per-example zero-padded flattened (Hp, Wp) rows of
    #         the second channel half with an appended interior-"ones" channel.
    # o_ref : (R, Cb) bf16; only rows [Wp+1, Wp+1+L) (the valid rows) are written.
    #
    # 1x1 conv + ReLU.  The BN bias is folded into the weight row of the ones
    # channel, so padding rows (data = 0, ones channel = 0) come out exactly 0
    # and the depthwise conv below sees zeros on the padding ring.
    y = jnp.maximum(_bdot(x_ref[...], w1_ref[...]), 0.0)
    y_s[...] = y                                              # f32 scratch
    # depthwise 3x3 / stride 1 via 9 shifted row-slices of the VMEM scratch.
    acc = None
    for kh in range(3):
        for kw in range(3):
            t = kh * 3 + kw
            tap = y_s[pl.ds(kh * Wp + kw, L), :]
            term = tap * wd_ref[pl.ds(t, 1), :]
            acc = term if acc is None else acc + term
    d = acc + bd_ref[...]
    # 1x1 conv + BN + ReLU
    z2 = jnp.maximum(_bdot(d, w2_ref[...]) + b2_ref[...], 0.0)
    o_ref[pl.ds(Wp + 1, L), :] = z2.astype(o_ref.dtype)


def _block_s2_kernel(ph_ref, wd1_ref, bd1_ref, wp1_ref, bp1_ref,
                     w21_ref, wd2_ref, bd2_ref, w22_ref, b22_ref,
                     o_ref, y_s, *, Npp, Wpp, Lq):
    # ph_ref : (R2, Cin+1) bf16 per-example phase-split (space-to-depth) padded
    #          input, last channel = interior-"ones" channel.
    # o_ref  : (Rq, 2*Cb) bf16; rows [0, Lq) hold [branch1 | branch2] lane-dense.
    starts = _s2_tap_starts(Npp, Wpp)

    # ---- branch 1: dw3x3/s2 + BN, then 1x1 conv + BN + ReLU ----
    acc1 = None
    for t in range(9):
        tap = ph_ref[pl.ds(starts[t], Lq), :].astype(jnp.float32)
        term = tap * wd1_ref[pl.ds(t, 1), :]
        acc1 = term if acc1 is None else acc1 + term
    d1 = acc1 + bd1_ref[...]
    o1 = jnp.maximum(_bdot(d1, wp1_ref[...]) + bp1_ref[...], 0.0)

    # ---- branch 2: 1x1 conv (+folded BN bias via ones channel) + ReLU,
    #                dw3x3/s2 + BN, 1x1 conv + BN + ReLU ----
    y = jnp.maximum(_bdot(ph_ref[...], w21_ref[...]), 0.0)   # padding rows -> 0
    y_s[...] = y                                             # f32 scratch
    acc2 = None
    for t in range(9):
        tap = y_s[pl.ds(starts[t], Lq), :]
        term = tap * wd2_ref[pl.ds(t, 1), :]
        acc2 = term if acc2 is None else acc2 + term
    d2 = acc2 + bd2_ref[...]
    o2 = jnp.maximum(_bdot(d2, w22_ref[...]) + b22_ref[...], 0.0)

    # lane-dense concatenated store (single wide vst instead of two narrow ones)
    o_ref[pl.ds(0, Lq), :] = jnp.concatenate([o1, o2], axis=-1).astype(o_ref.dtype)


def _maxpool_kernel(ph_ref, o_ref, *, Npp, Wpp, Lq):
    starts = _s2_tap_starts(Npp, Wpp)
    m = None
    for t in range(9):
        tap = ph_ref[pl.ds(starts[t], Lq), :].astype(jnp.float32)
        m = tap if m is None else jnp.maximum(m, tap)
    o_ref[pl.ds(0, Lq), :] = m.astype(o_ref.dtype)


def _head_kernel(x_ref, w5_ref, b5_ref, wf_ref, bf_ref, o_ref, *, n, hw):
    # conv5 (1x1) + BN + ReLU, in-kernel global average pool, FC.
    y = jnp.maximum(_bdot(x_ref[...], w5_ref[...]) + b5_ref[...], 0.0)
    pooled = jnp.mean(y.reshape(n, hw, y.shape[-1]), axis=1)
    o_ref[...] = (_bdot(pooled, wf_ref[...]) + bf_ref[...]).astype(o_ref.dtype)


# ----------------------------------------------------------------------------
# Pallas wrappers (XLA glue is limited to pad / crop / channel interleave)
# ----------------------------------------------------------------------------
def matmul_bias(x, w, b, relu, tile_m=512):
    M, K = x.shape
    N = w.shape[1]
    tm = min(tile_m, _round_up(M, 8))
    Mp = _round_up(M, tm)
    if Mp != M:
        x = jnp.pad(x, ((0, Mp - M), (0, 0)))
    out = pl.pallas_call(
        functools.partial(_matmul_bias_kernel, relu=relu),
        out_shape=jax.ShapeDtypeStruct((Mp, N), jnp.bfloat16),
        grid=(Mp // tm,),
        in_specs=[
            pl.BlockSpec((tm, K), lambda i: (i, 0)),
            pl.BlockSpec((K, N), lambda i: (0, 0)),
            pl.BlockSpec((1, N), lambda i: (0, 0)),
        ],
        out_specs=pl.BlockSpec((tm, N), lambda i: (i, 0)),
        compiler_params=pltpu.CompilerParams(
            dimension_semantics=("parallel",)),
    )(x.astype(jnp.bfloat16), w, b)
    return out[:M]


def _phase_split_rows(x):
    # x: (N, H, W, C) with even H, W -> (N*R2, C): per example, the four
    # stride-2 phases of the zero-padded map stacked, row-padded to R2 (mult 8).
    N, H, W, C = x.shape
    assert H % 2 == 0 and W % 2 == 0
    xp = jnp.pad(x, ((0, 0), (1, 1), (1, 1), (0, 0)))
    Hpp, Wpp = (H + 2) // 2, (W + 2) // 2
    phases = [xp[:, pr::2, pc::2, :] for pr in (0, 1) for pc in (0, 1)]
    ph = jnp.stack(phases, axis=1).reshape(N, 4 * Hpp * Wpp, C)
    R2 = _round_up(4 * Hpp * Wpp, 8)
    ph = jnp.pad(ph, ((0, 0), (0, R2 - 4 * Hpp * Wpp), (0, 0)))
    return ph.reshape(N * R2, C), Hpp, Wpp, R2


def block_stride1(x, p):
    N, H, W, C = x.shape
    Cb = C // 2
    x1 = x[..., :Cb]                           # skip path (chunk)
    x2 = x[..., Cb:]
    Hp, Wp = H + 2, W + 2
    R = _round_up(Hp * Wp, 8)
    L = Hp * Wp - 2 * (Wp + 1)
    # append interior-"ones" channel (carries the folded 1x1 BN bias)
    x2m = jnp.concatenate([x2, jnp.ones((N, H, W, 1), x.dtype)], axis=-1)
    x2p = jnp.pad(x2m, ((0, 0), (1, 1), (1, 1), (0, 0))).reshape(N, Hp * Wp, Cb + 1)
    x2p = jnp.pad(x2p, ((0, 0), (0, R - Hp * Wp), (0, 0))).reshape(N * R, Cb + 1)
    w1p = jnp.concatenate([p["b2_pw1_w"], p["b2_pw1_b"].astype(jnp.bfloat16)], axis=0)
    o2p = pl.pallas_call(
        functools.partial(_block_s1_kernel, Wp=Wp, L=L),
        out_shape=jax.ShapeDtypeStruct((N * R, Cb), jnp.bfloat16),
        grid=(N,),
        in_specs=[
            pl.BlockSpec((R, Cb + 1), lambda n: (n, 0)),
            pl.BlockSpec((Cb + 1, Cb), lambda n: (0, 0)),
            pl.BlockSpec((9, Cb), lambda n: (0, 0)),
            pl.BlockSpec((1, Cb), lambda n: (0, 0)),
            pl.BlockSpec((Cb, Cb), lambda n: (0, 0)),
            pl.BlockSpec((1, Cb), lambda n: (0, 0)),
        ],
        out_specs=pl.BlockSpec((R, Cb), lambda n: (n, 0)),
        scratch_shapes=[pltpu.VMEM((R, Cb), jnp.float32)],
        compiler_params=pltpu.CompilerParams(
            dimension_semantics=("parallel",)),
    )(x2p.astype(jnp.bfloat16), w1p, p["b2_dw_w"], p["b2_dw_b"],
      p["b2_pw2_w"], p["b2_pw2_b"])
    # drop alignment rows + padding ring (un-written rows are never consumed)
    o2 = o2p.reshape(N, R, Cb)[:, :Hp * Wp].reshape(N, Hp, Wp, Cb)[:, 1:-1, 1:-1, :]
    # concat + channel_shuffle(groups=2) == channel interleave of the halves
    return jnp.stack([x1, o2], axis=-1).reshape(N, H, W, C)


def block_stride2(x, p):
    N, H, W, Cin = x.shape
    Ho, Wo = H // 2, W // 2
    Cb = p["b2_pw2_w"].shape[1]
    ph, Hpp, Wpp, R2 = _phase_split_rows(
        jnp.concatenate([x, jnp.ones((N, H, W, 1), x.dtype)], axis=-1))
    Npp = Hpp * Wpp
    Lq = Npp - Wpp - 1
    Rq = _round_up(Npp, 8)
    # widen branch1 weights with a zero column/row for the appended ones channel;
    # fold branch2's first BN bias into the ones-channel row of its weight.
    wd1 = jnp.concatenate([p["b1_dw_w"], jnp.zeros((9, 1), jnp.float32)], axis=1)
    bd1 = jnp.concatenate([p["b1_dw_b"], jnp.zeros((1, 1), jnp.float32)], axis=1)
    wp1 = jnp.concatenate([p["b1_pw_w"], jnp.zeros((1, Cb), jnp.bfloat16)], axis=0)
    w21 = jnp.concatenate([p["b2_pw1_w"], p["b2_pw1_b"].astype(jnp.bfloat16)], axis=0)
    out = pl.pallas_call(
        functools.partial(_block_s2_kernel, Npp=Npp, Wpp=Wpp, Lq=Lq),
        out_shape=jax.ShapeDtypeStruct((N * Rq, 2 * Cb), jnp.bfloat16),
        grid=(N,),
        in_specs=[
            pl.BlockSpec((R2, Cin + 1), lambda n: (n, 0)),
            pl.BlockSpec((9, Cin + 1), lambda n: (0, 0)),
            pl.BlockSpec((1, Cin + 1), lambda n: (0, 0)),
            pl.BlockSpec((Cin + 1, Cb), lambda n: (0, 0)),
            pl.BlockSpec((1, Cb), lambda n: (0, 0)),
            pl.BlockSpec((Cin + 1, Cb), lambda n: (0, 0)),
            pl.BlockSpec((9, Cb), lambda n: (0, 0)),
            pl.BlockSpec((1, Cb), lambda n: (0, 0)),
            pl.BlockSpec((Cb, Cb), lambda n: (0, 0)),
            pl.BlockSpec((1, Cb), lambda n: (0, 0)),
        ],
        out_specs=pl.BlockSpec((Rq, 2 * Cb), lambda n: (n, 0)),
        scratch_shapes=[pltpu.VMEM((R2, Cb), jnp.float32)],
        compiler_params=pltpu.CompilerParams(
            dimension_semantics=("parallel",)),
    )(ph.astype(jnp.bfloat16), wd1, bd1, wp1, p["b1_pw_b"], w21,
      p["b2_dw_w"], p["b2_dw_b"], p["b2_pw2_w"], p["b2_pw2_b"])
    z = out.reshape(N, Rq, 2 * Cb)[:, :Npp].reshape(N, Hpp, Wpp, 2 * Cb)[:, :Ho, :Wo, :]
    # channel_shuffle(groups=2) of cat([branch1, branch2]) == interleave halves
    z = z.reshape(N, Ho, Wo, 2, Cb)
    return jnp.swapaxes(z, -1, -2).reshape(N, Ho, Wo, 2 * Cb)


def maxpool3x3_s2(x):
    # input is post-ReLU (>= 0), so zero padding is equivalent to -inf padding
    N, H, W, C = x.shape
    Ho, Wo = H // 2, W // 2
    ph, Hpp, Wpp, R2 = _phase_split_rows(x)
    Npp = Hpp * Wpp
    Lq = Npp - Wpp - 1
    Rq = _round_up(Npp, 8)
    out = pl.pallas_call(
        functools.partial(_maxpool_kernel, Npp=Npp, Wpp=Wpp, Lq=Lq),
        out_shape=jax.ShapeDtypeStruct((N * Rq, C), jnp.bfloat16),
        grid=(N,),
        in_specs=[pl.BlockSpec((R2, C), lambda n: (n, 0))],
        out_specs=pl.BlockSpec((Rq, C), lambda n: (n, 0)),
        compiler_params=pltpu.CompilerParams(
            dimension_semantics=("parallel",)),
    )(ph.astype(jnp.bfloat16))
    return out.reshape(N, Rq, C)[:, :Npp].reshape(N, Hpp, Wpp, C)[:, :Ho, :Wo, :]


def stem_conv(x_nhwc, w, b):
    # 3x3 conv, stride 2, pad 1, Cin = 1 -> im2col built directly as (M, 9)
    N, H, W, _ = x_nhwc.shape
    Ho, Wo = H // 2, W // 2
    xp = jnp.pad(x_nhwc[..., 0], ((0, 0), (1, 1), (1, 1)))
    taps = [xp[:, kh:kh + 2 * Ho - 1:2, kw:kw + 2 * Wo - 1:2]
            for kh in range(3) for kw in range(3)]
    patches = jnp.stack(taps, axis=-1).reshape(N * Ho * Wo, 9)
    out = matmul_bias(patches, w, b, relu=True)
    return out.reshape(N, Ho, Wo, -1)


def head(x, params):
    # conv5 (1x1) + BN + ReLU, in-kernel global average pool, FC -- one kernel
    N, H, W, C = x.shape
    HW = H * W
    M = N * HW
    xf = x.reshape(M, C)
    C5 = params["conv5_w"].shape[1]
    ncls = params["fc_w"].shape[1]
    return pl.pallas_call(
        functools.partial(_head_kernel, n=N, hw=HW),
        out_shape=jax.ShapeDtypeStruct((N, ncls), jnp.float32),
        grid=(1,),
        in_specs=[
            pl.BlockSpec((M, C), lambda i: (0, 0)),
            pl.BlockSpec((C, C5), lambda i: (0, 0)),
            pl.BlockSpec((1, C5), lambda i: (0, 0)),
            pl.BlockSpec((C5, ncls), lambda i: (0, 0)),
            pl.BlockSpec((1, ncls), lambda i: (0, 0)),
        ],
        out_specs=pl.BlockSpec((N, ncls), lambda i: (0, 0)),
    )(xf, params["conv5_w"], params["conv5_b"],
      params["fc_w"], params["fc_b"])


# ----------------------------------------------------------------------------
# Model forward
# ----------------------------------------------------------------------------
def shufflenet_v2_forward(x_nchw, params):
    x = jnp.transpose(x_nchw, (0, 2, 3, 1)).astype(jnp.float32)   # -> NHWC
    x = stem_conv(x, params["conv1_w"], params["conv1_b"])        # bf16 out
    x = maxpool3x3_s2(x)
    for name in ("stage2", "stage3", "stage4"):
        for blk in params[name]:
            x = block_stride2(x, blk) if blk["stride"] == 2 else block_stride1(x, blk)
    return head(x, params)


# ----------------------------------------------------------------------------
# Deterministic parameter construction (BN folded to inference-time affine)
# ----------------------------------------------------------------------------
class KeyGen:
    def __init__(self, key):
        self.key = key

    def __call__(self):
        self.key, sub = jax.random.split(self.key)
        return sub


def _fold_bn(kg, c):
    # TODO(synk): BatchNorm realized in inference mode with synthetic running
    # stats (train-mode batch statistics are not reproduced).
    gamma = jax.random.uniform(kg(), (c,), minval=0.5, maxval=1.5)
    beta = jax.random.normal(kg(), (c,)) * 0.1
    mean = jax.random.normal(kg(), (c,)) * 0.1
    var = jax.random.uniform(kg(), (c,), minval=0.5, maxval=1.5)
    scale = gamma / jnp.sqrt(var + 1e-5)
    bias = beta - mean * scale
    return scale.astype(jnp.float32), bias.astype(jnp.float32)


def _pw(kg, cin, cout):
    # 1x1 conv (or im2col'd conv) with BN scale folded in; bf16 MXU weight
    w = (jax.random.normal(kg(), (cin, cout)) * 0.1).astype(jnp.float32)
    s, b = _fold_bn(kg, cout)
    return (w * s[None, :]).astype(jnp.bfloat16), b.reshape(1, cout)


def _dw(kg, c):
    # depthwise 3x3 with BN scale folded in; stays f32 (VPU path)
    w = (jax.random.normal(kg(), (9, c)) * 0.1).astype(jnp.float32)
    s, b = _fold_bn(kg, c)
    return (w * s[None, :]).astype(jnp.float32), b.reshape(1, c)


def _make_block(kg, inp, oup, stride):
    bf = oup // 2
    p = {"stride": stride}
    if stride > 1:
        p["b1_dw_w"], p["b1_dw_b"] = _dw(kg, inp)
        p["b1_pw_w"], p["b1_pw_b"] = _pw(kg, inp, bf)
    in2 = inp if stride > 1 else bf
    p["b2_pw1_w"], p["b2_pw1_b"] = _pw(kg, in2, bf)
    p["b2_dw_w"], p["b2_dw_b"] = _dw(kg, bf)
    p["b2_pw2_w"], p["b2_pw2_b"] = _pw(kg, bf, bf)
    return p


def make_params(kg, stages_repeats, stages_out_channels, num_classes):
    params = {}
    oc = stages_out_channels[0]
    params["conv1_w"], params["conv1_b"] = _pw(kg, 9, oc)   # im2col stem (Cin=1)
    ic = oc
    for name, repeats, oc in zip(("stage2", "stage3", "stage4"),
                                 stages_repeats, stages_out_channels[1:4]):
        blocks = [_make_block(kg, ic, oc, 2)]
        for _ in range(repeats - 1):
            blocks.append(_make_block(kg, oc, oc, 1))
        params[name] = blocks
        ic = oc
    oc = stages_out_channels[-1]
    params["conv5_w"], params["conv5_b"] = _pw(kg, ic, oc)
    params["fc_w"] = (jax.random.normal(kg(), (oc, num_classes)) * 0.1
                      ).astype(jnp.bfloat16)
    params["fc_b"] = (jax.random.normal(kg(), (num_classes,)) * 0.1
                      ).astype(jnp.float32).reshape(1, num_classes)
    return params


# ----------------------------------------------------------------------------
if __name__ == "__main__":
    kg = KeyGen(jax.random.PRNGKey(0))
    stages_repeats = [2, 2, 2]
    stages_out_channels = [8, 16, 32, 64, 128]
    num_classes = 10

    params = make_params(kg, stages_repeats, stages_out_channels, num_classes)
    x = jax.random.normal(kg(), (2, 1, 32, 32), jnp.float32)  # NCHW, Cin=1

    fwd = jax.jit(lambda xx: shufflenet_v2_forward(xx, params))
    out = fwd(x)
    jax.block_until_ready(out)
    assert out.shape == (2, num_classes)
    assert bool(jnp.all(jnp.isfinite(out)))
    print("KERNEL_OK")
</pallas_src>

<mosaic_0001>
module attributes {stable_mosaic.version = 11 : i64} {
  func.func @_matmul_bias_kernel(%arg0: i32, %arg1: memref<512x9xbf16, #tpu.memory_space<vmem>>, %arg2: memref<9x8xbf16, #tpu.memory_space<vmem>>, %arg3: memref<1x8xf32, #tpu.memory_space<vmem>>, %arg4: memref<512x8xbf16, #tpu.memory_space<vmem>>) attributes {dimension_semantics = [#tpu.dimension_semantics<parallel>], iteration_bounds = array<i64: 1>, scalar_prefetch = 0 : i64, scratch_operands = 0 : i64, tpu.core_type = #tpu.core_type<tc>, window_params = [{transform_indices = @transform_0, window_bounds = array<i64: 512, 9>}, {pipeline_mode = #tpu.pipeline_mode<synchronous>, transform_indices = @transform_1, window_bounds = array<i64: 9, 8>}, {pipeline_mode = #tpu.pipeline_mode<synchronous>, transform_indices = @transform_2, window_bounds = array<i64: 1, 8>}, {transform_indices = @transform_3, window_bounds = array<i64: 512, 8>}]} {
    %c0 = arith.constant 0 : index
    %c0_0 = arith.constant 0 : index
    %0 = vector.load %arg1[%c0, %c0_0] : memref<512x9xbf16, #tpu.memory_space<vmem>>, vector<512x9xbf16>
    %c0_1 = arith.constant 0 : index
    %c0_2 = arith.constant 0 : index
    %1 = vector.load %arg2[%c0_1, %c0_2] : memref<9x8xbf16, #tpu.memory_space<vmem>>, vector<9x8xbf16>
    %cst = arith.constant dense<0.000000e+00> : vector<512x8xf32>
    %2 = tpu.matmul %0, %1, %cst {dimension_numbers = #tpu.dot_dimension_numbers<[1], [0], [0], [1], [0, 0, 1, 1], [], []>} : vector<512x9xbf16>, vector<9x8xbf16>, vector<512x8xf32> -> vector<512x8xf32>
    %c0_3 = arith.constant 0 : index
    %c0_4 = arith.constant 0 : index
    %3 = vector.load %arg3[%c0_3, %c0_4] : memref<1x8xf32, #tpu.memory_space<vmem>>, vector<1x8xf32>
    %4 = vector.broadcast %3 : vector<1x8xf32> to vector<512x8xf32>
    %5 = arith.addf %2, %4 : vector<512x8xf32>
    %cst_5 = arith.constant 0.000000e+00 : f32
    %6 = vector.broadcast %cst_5 : f32 to vector<512x8xf32>
    %7 = arith.maximumf %5, %6 : vector<512x8xf32>
    %8 = arith.truncf %7 : vector<512x8xf32> to vector<512x8xbf16>
    %c0_6 = arith.constant 0 : index
    %c0_7 = arith.constant 0 : index
    %9 = vector.load %arg4[%c0_6, %c0_7] : memref<512x8xbf16, #tpu.memory_space<vmem>>, vector<512x8xbf16>
    tpu.vector_store %arg4[%c0_6, %c0_7], %8 {strides = array<i32>} : memref<512x8xbf16, #tpu.memory_space<vmem>>, vector<512x8xbf16>,
    return
  }
  func.func @transform_0(%arg0: i32) -> (i32, i32) {
    %c0_i32 = arith.constant 0 : i32
    %c0_i32_0 = arith.constant 0 : i32
    return %arg0, %c0_i32 : i32, i32
  }
  func.func @transform_1(%arg0: i32) -> (i32, i32) {
    %c0_i32 = arith.constant 0 : i32
    %c0_i32_0 = arith.constant 0 : i32
    %c0_i32_1 = arith.constant 0 : i32
    return %c0_i32, %c0_i32_0 : i32, i32
  }
  func.func @transform_2(%arg0: i32) -> (i32, i32) {
    %c0_i32 = arith.constant 0 : i32
    %c0_i32_0 = arith.constant 0 : i32
    %c0_i32_1 = arith.constant 0 : i32
    return %c0_i32, %c0_i32_0 : i32, i32
  }
  func.func @transform_3(%arg0: i32) -> (i32, i32) {
    %c0_i32 = arith.constant 0 : i32
    %c0_i32_0 = arith.constant 0 : i32
    return %arg0, %c0_i32 : i32, i32
  }
}

module attributes {stable_mosaic.version = 11 : i64} {
  func.func @_maxpool_kernel(%arg0: i32, %arg1: memref<328x8xbf16, #tpu.memory_space<vmem>>, %arg2: memref<88x8xbf16, #tpu.memory_space<vmem>>) attributes {dimension_semantics = [#tpu.dimension_semantics<parallel>], iteration_bounds = array<i64: 2>, scalar_prefetch = 0 : i64, scratch_operands = 0 : i64, tpu.core_type = #tpu.core_type<tc>, window_params = [{transform_indices = @transform_0, window_bounds = array<i64: 328, 8>}, {transform_indices = @transform_1, window_bounds = array<i64: 88, 8>}]} {
    %c0 = arith.constant 0 : index
    %c0_0 = arith.constant 0 : index
    %0 = vector.load %arg1[%c0, %c0_0] : memref<328x8xbf16, #tpu.memory_space<vmem>>, vector<71x8xbf16>
    %1 = arith.extf %0 : vector<71x8xbf16> to vector<71x8xf32>
    %c81 = arith.constant 81 : index
    %c0_1 = arith.constant 0 : index
    %2 = vector.load %arg1[%c81, %c0_1] : memref<328x8xbf16, #tpu.memory_space<vmem>>, vector<71x8xbf16>
    %3 = arith.extf %2 : vector<71x8xbf16> to vector<71x8xf32>
    %4 = arith.maximumf %1, %3 : vector<71x8xf32>
    %c1 = arith.constant 1 : index
    %c0_2 = arith.constant 0 : index
    %5 = vector.load %arg1[%c1, %c0_2] : memref<328x8xbf16, #tpu.memory_space<vmem>>, vector<71x8xbf16>
    %6 = arith.extf %5 : vector<71x8xbf16> to vector<71x8xf32>
    %7 = arith.maximumf %4, %6 : vector<71x8xf32>
    %c162 = arith.constant 162 : index
    %c0_3 = arith.constant 0 : index
    %8 = vector.load %arg1[%c162, %c0_3] : memref<328x8xbf16, #tpu.memory_space<vmem>>, vector<71x8xbf16>
    %9 = arith.extf %8 : vector<71x8xbf16> to vector<71x8xf32>
    %10 = arith.maximumf %7, %9 : vector<71x8xf32>
    %c243 = arith.constant 243 : index
    %c0_4 = arith.constant 0 : index
    %11 = vector.load %arg1[%c243, %c0_4] : memref<328x8xbf16, #tpu.memory_space<vmem>>, vector<71x8xbf16>
    %12 = arith.extf %11 : vector<71x8xbf16> to vector<71x8xf32>
    %13 = arith.maximumf %10, %12 : vector<71x8xf32>
    %c163 = arith.constant 163 : index
    %c0_5 = arith.constant 0 : index
    %14 = vector.load %arg1[%c163, %c0_5] : memref<328x8xbf16, #tpu.memory_space<vmem>>, vector<71x8xbf16>
    %15 = arith.extf %14 : vector<71x8xbf16> to vector<71x8xf32>
    %16 = arith.maximumf %13, %15 : vector<71x8xf32>
    %c9 = arith.constant 9 : index
    %c0_6 = arith.constant 0 : index
    %17 = vector.load %arg1[%c9, %c0_6] : memref<328x8xbf16, #tpu.memory_space<vmem>>, vector<71x8xbf16>
    %18 = arith.extf %17 : vector<71x8xbf16> to vector<71x8xf32>
    %19 = arith.maximumf %16, %18 : vector<71x8xf32>
    %c90 = arith.constant 90 : index
    %c0_7 = arith.constant 0 : index
    %20 = vector.load %arg1[%c90, %c0_7] : memref<328x8xbf16, #tpu.memory_space<vmem>>, vector<71x8xbf16>
    %21 = arith.extf %20 : vector<71x8xbf16> to vector<71x8xf32>
    %22 = arith.maximumf %19, %21 : vector<71x8xf32>
    %c10 = arith.constant 10 : index
    %c0_8 = arith.constant 0 : index
    %23 = vector.load %arg1[%c10, %c0_8] : memref<328x8xbf16, #tpu.memory_space<vmem>>, vector<71x8xbf16>
    %24 = arith.extf %23 : vector<71x8xbf16> to vector<71x8xf32>
    %25 = arith.maximumf %22, %24 : vector<71x8xf32>
    %26 = arith.truncf %25 : vector<71x8xf32> to vector<71x8xbf16>
    %c0_9 = arith.constant 0 : index
    %c0_10 = arith.constant 0 : index
    %27 = vector.load %arg2[%c0_9, %c0_10] : memref<88x8xbf16, #tpu.memory_space<vmem>>, vector<71x8xbf16>
    tpu.vector_store %arg2[%c0_9, %c0_10], %26 {strides = array<i32>} : memref<88x8xbf16, #tpu.memory_space<vmem>>, vector<71x8xbf16>,
    return
  }
  func.func @transform_0(%arg0: i32) -> (i32, i32) {
    %c0_i32 = arith.constant 0 : i32
    %c0_i32_0 = arith.constant 0 : i32
    return %arg0, %c0_i32 : i32, i32
  }
  func.func @transform_1(%arg0: i32) -> (i32, i32) {
    %c0_i32 = arith.constant 0 : i32
    %c0_i32_0 = arith.constant 0 : i32
    return %arg0, %c0_i32 : i32, i32
  }
}

module attributes {stable_mosaic.version = 11 : i64} {
  func.func @_block_s2_kernel(%arg0: i32, %arg1: memref<104x9xbf16, #tpu.memory_space<vmem>>, %arg2: memref<9x9xf32, #tpu.memory_space<vmem>>, %arg3: memref<1x9xf32, #tpu.memory_space<vmem>>, %arg4: memref<9x8xbf16, #tpu.memory_space<vmem>>, %arg5: memref<1x8xf32, #tpu.memory_space<vmem>>, %arg6: memref<9x8xbf16, #tpu.memory_space<vmem>>, %arg7: memref<9x8xf32, #tpu.memory_space<vmem>>, %arg8: memref<1x8xf32, #tpu.memory_space<vmem>>, %arg9: memref<8x8xbf16, #tpu.memory_space<vmem>>, %arg10: memref<1x8xf32, #tpu.memory_space<vmem>>, %arg11: memref<32x16xbf16, #tpu.memory_space<vmem>>, %arg12: memref<104x8xf32, #tpu.memory_space<vmem>>) attributes {dimension_semantics = [#tpu.dimension_semantics<parallel>], iteration_bounds = array<i64: 2>, scalar_prefetch = 0 : i64, scratch_operands = 1 : i64, tpu.core_type = #tpu.core_type<tc>, window_params = [{transform_indices = @transform_0, window_bounds = array<i64: 104, 9>}, {pipeline_mode = #tpu.pipeline_mode<synchronous>, transform_indices = @transform_1, window_bounds = array<i64: 9, 9>}, {pipeline_mode = #tpu.pipeline_mode<synchronous>, transform_indices = @transform_2, window_bounds = array<i64: 1, 9>}, {pipeline_mode = #tpu.pipeline_mode<synchronous>, transform_indices = @transform_3, window_bounds = array<i64: 9, 8>}, {pipeline_mode = #tpu.pipeline_mode<synchronous>, transform_indices = @transform_4, window_bounds = array<i64: 1, 8>}, {pipeline_mode = #tpu.pipeline_mode<synchronous>, transform_indices = @transform_5, window_bounds = array<i64: 9, 8>}, {pipeline_mode = #tpu.pipeline_mode<synchronous>, transform_indices = @transform_6, window_bounds = array<i64: 9, 8>}, {pipeline_mode = #tpu.pipeline_mode<synchronous>, transform_indices = @transform_7, window_bounds = array<i64: 1, 8>}, {pipeline_mode = #tpu.pipeline_mode<synchronous>, transform_indices = @transform_8, window_bounds = array<i64: 8, 8>}, {pipeline_mode = #tpu.pipeline_mode<synchronous>, transform_indices = @transform_9, window_bounds = array<i64: 1, 8>}, {transform_indices = @transform_10, window_bounds = array<i64: 32, 16>}]} {
    %c0 = arith.constant 0 : index
    %c0_0 = arith.constant 0 : index
    %0 = vector.load %arg1[%c0, %c0_0] : memref<104x9xbf16, #tpu.memory_space<vmem>>, vector<19x9xbf16>
    %1 = arith.extf %0 : vector<19x9xbf16> to vector<19x9xf32>
    %c0_1 = arith.constant 0 : index
    %c0_2 = arith.constant 0 : index
    %2 = vector.load %arg2[%c0_1, %c0_2] : memref<9x9xf32, #tpu.memory_space<vmem>>, vector<1x9xf32>
    %3 = vector.broadcast %2 : vector<1x9xf32> to vector<19x9xf32>
    %4 = arith.mulf %1, %3 : vector<19x9xf32>
    %c25 = arith.constant 25 : index
    %c0_3 = arith.constant 0 : index
    %5 = vector.load %arg1[%c25, %c0_3] : memref<104x9xbf16, #tpu.memory_space<vmem>>, vector<19x9xbf16>
    %6 = arith.extf %5 : vector<19x9xbf16> to vector<19x9xf32>
    %c1 = arith.constant 1 : index
    %c0_4 = arith.constant 0 : index
    %7 = vector.load %arg2[%c1, %c0_4] : memref<9x9xf32, #tpu.memory_space<vmem>>, vector<1x9xf32>
    %8 = vector.broadcast %7 : vector<1x9xf32> to vector<19x9xf32>
    %9 = arith.mulf %6, %8 : vector<19x9xf32>
    %10 = arith.addf %4, %9 : vector<19x9xf32>
    %c1_5 = arith.constant 1 : index
    %c0_6 = arith.constant 0 : index
    %11 = vector.load %arg1[%c1_5, %c0_6] : memref<104x9xbf16, #tpu.memory_space<vmem>>, vector<19x9xbf16>
    %12 = arith.extf %11 : vector<19x9xbf16> to vector<19x9xf32>
    %c2 = arith.constant 2 : index
    %c0_7 = arith.constant 0 : index
    %13 = vector.load %arg2[%c2, %c0_7] : memref<9x9xf32, #tpu.memory_space<vmem>>, vector<1x9xf32>
    %14 = vector.broadcast %13 : vector<1x9xf32> to vector<19x9xf32>
    %15 = arith.mulf %12, %14 : vector<19x9xf32>
    %16 = arith.addf %10, %15 : vector<19x9xf32>
    %c50 = arith.constant 50 : index
    %c0_8 = arith.constant 0 : index
    %17 = vector.load %arg1[%c50, %c0_8] : memref<104x9xbf16, #tpu.memory_space<vmem>>, vector<19x9xbf16>
    %18 = arith.extf %17 : vector<19x9xbf16> to vector<19x9xf32>
    %c3 = arith.constant 3 : index
    %c0_9 = arith.constant 0 : index
    %19 = vector.load %arg2[%c3, %c0_9] : memref<9x9xf32, #tpu.memory_space<vmem>>, vector<1x9xf32>
    %20 = vector.broadcast %19 : vector<1x9xf32> to vector<19x9xf32>
    %21 = arith.mulf %18, %20 : vector<19x9xf32>
    %22 = arith.addf %16, %21 : vector<19x9xf32>
    %c75 = arith.constant 75 : index
    %c0_10 = arith.constant 0 : index
    %23 = vector.load %arg1[%c75, %c0_10] : memref<104x9xbf16, #tpu.memory_space<vmem>>, vector<19x9xbf16>
    %24 = arith.extf %23 : vector<19x9xbf16> to vector<19x9xf32>
    %c4 = arith.constant 4 : index
    %c0_11 = arith.constant 0 : index
    %25 = vector.load %arg2[%c4, %c0_11] : memref<9x9xf32, #tpu.memory_space<vmem>>, vector<1x9xf32>
    %26 = vector.broadcast %25 : vector<1x9xf32> to vector<19x9xf32>
    %27 = arith.mulf %24, %26 : vector<19x9xf32>
    %28 = arith.addf %22, %27 : vector<19x9xf32>
    %c51 = arith.constant 51 : index
    %c0_12 = arith.constant 0 : index
    %29 = vector.load %arg1[%c51, %c0_12] : memref<104x9xbf16, #tpu.memory_space<vmem>>, vector<19x9xbf16>
    %30 = arith.extf %29 : vector<19x9xbf16> to vector<19x9xf32>
    %c5 = arith.constant 5 : index
    %c0_13 = arith.constant 0 : index
    %31 = vector.load %arg2[%c5, %c0_13] : memref<9x9xf32, #tpu.memory_space<vmem>>, vector<1x9xf32>
    %32 = vector.broadcast %31 : vector<1x9xf32> to vector<19x9xf32>
    %33 = arith.mulf %30, %32 : vector<19x9xf32>
    %34 = arith.addf %28, %33 : vector<19x9xf32>
    %c5_14 = arith.constant 5 : index
    %c0_15 = arith.constant 0 : index
    %35 = vector.load %arg1[%c5_14, %c0_15] : memref<104x9xbf16, #tpu.memory_space<vmem>>, vector<19x9xbf16>
    %36 = arith.extf %35 : vector<19x9xbf16> to vector<19x9xf32>
    %c6 = arith.constant 6 : index
    %c0_16 = arith.constant 0 : index
    %37 = vector.load %arg2[%c6, %c0_16] : memref<9x9xf32, #tpu.memory_space<vmem>>, vector<1x9xf32>
    %38 = vector.broadcast %37 : vector<1x9xf32> to vector<19x9xf32>
    %39 = arith.mulf %36, %38 : vector<19x9xf32>
    %40 = arith.addf %34, %39 : vector<19x9xf32>
    %c30 = arith.constant 30 : index
    %c0_17 = arith.constant 0 : index
    %41 = vector.load %arg1[%c30, %c0_17] : memref<104x9xbf16, #tpu.memory_space<vmem>>, vector<19x9xbf16>
    %42 = arith.extf %41 : vector<19x9xbf16> to vector<19x9xf32>
    %c7 = arith.constant 7 : index
    %c0_18 = arith.constant 0 : index
    %43 = vector.load %arg2[%c7, %c0_18] : memref<9x9xf32, #tpu.memory_space<vmem>>, vector<1x9xf32>
    %44 = vector.broadcast %43 : vector<1x9xf32> to vector<19x9xf32>
    %45 = arith.mulf %42, %44 : vector<19x9xf32>
    %46 = arith.addf %40, %45 : vector<19x9xf32>
    %c6_19 = arith.constant 6 : index
    %c0_20 = arith.constant 0 : index
    %47 = vector.load %arg1[%c6_19, %c0_20] : memref<104x9xbf16, #tpu.memory_space<vmem>>, vector<19x9xbf16>
    %48 = arith.extf %47 : vector<19x9xbf16> to vector<19x9xf32>
    %c8 = arith.constant 8 : index
    %c0_21 = arith.constant 0 : index
    %49 = vector.load %arg2[%c8, %c0_21] : memref<9x9xf32, #tpu.memory_space<vmem>>, vector<1x9xf32>
    %50 = vector.broadcast %49 : vector<1x9xf32> to vector<19x9xf32>
    %51 = arith.mulf %48, %50 : vector<19x9xf32>
    %52 = arith.addf %46, %51 : vector<19x9xf32>
    %c0_22 = arith.constant 0 : index
    %c0_23 = arith.constant 0 : index
    %53 = vector.load %arg3[%c0_22, %c0_23] : memref<1x9xf32, #tpu.memory_space<vmem>>, vector<1x9xf32>
    %54 = vector.broadcast %53 : vector<1x9xf32> to vector<19x9xf32>
    %55 = arith.addf %52, %54 : vector<19x9xf32>
    %c0_24 = arith.constant 0 : index
    %c0_25 = arith.constant 0 : index
    %56 = vector.load %arg4[%c0_24, %c0_25] : memref<9x8xbf16, #tpu.memory_space<vmem>>, vector<9x8xbf16>
    %57 = arith.truncf %55 : vector<19x9xf32> to vector<19x9xbf16>
    %cst = arith.constant dense<0.000000e+00> : vector<19x8xf32>
    %58 = tpu.matmul %57, %56, %cst {dimension_numbers = #tpu.dot_dimension_numbers<[1], [0], [0], [1], [0, 0, 1, 1], [], []>} : vector<19x9xbf16>, vector<9x8xbf16>, vector<19x8xf32> -> vector<19x8xf32>
    %c0_26 = arith.constant 0 : index
    %c0_27 = arith.constant 0 : index
    %59 = vector.load %arg5[%c0_26, %c0_27] : memref<1x8xf32, #tpu.memory_space<vmem>>, vector<1x8xf32>
    %60 = vector.broadcast %59 : vector<1x8xf32> to vector<19x8xf32>
    %61 = arith.addf %58, %60 : vector<19x8xf32>
    %cst_28 = arith.constant 0.000000e+00 : f32
    %62 = vector.broadcast %cst_28 : f32 to vector<19x8xf32>
    %63 = arith.maximumf %61, %62 : vector<19x8xf32>
    %c0_29 = arith.constant 0 : index
    %c0_30 = arith.constant 0 : index
    %64 = vector.load %arg1[%c0_29, %c0_30] : memref<104x9xbf16, #tpu.memory_space<vmem>>, vector<104x9xbf16>
    %c0_31 = arith.constant 0 : index
    %c0_32 = arith.constant 0 : index
    %65 = vector.load %arg6[%c0_31, %c0_32] : memref<9x8xbf16, #tpu.memory_space<vmem>>, vector<9x8xbf16>
    %cst_33 = arith.constant dense<0.000000e+00> : vector<104x8xf32>
    %66 = tpu.matmul %64, %65, %cst_33 {dimension_numbers = #tpu.dot_dimension_numbers<[1], [0], [0], [1], [0, 0, 1, 1], [], []>} : vector<104x9xbf16>, vector<9x8xbf16>, vector<104x8xf32> -> vector<104x8xf32>
    %cst_34 = arith.constant 0.000000e+00 : f32
    %67 = vector.broadcast %cst_34 : f32 to vector<104x8xf32>
    %68 = arith.maximumf %66, %67 : vector<104x8xf32>
    %c0_35 = arith.constant 0 : index
    %c0_36 = arith.constant 0 : index
    %69 = vector.load %arg12[%c0_35, %c0_36] : memref<104x8xf32, #tpu.memory_space<vmem>>, vector<104x8xf32>
    tpu.vector_store %arg12[%c0_35, %c0_36], %68 {strides = array<i32>} : memref<104x8xf32, #tpu.memory_space<vmem>>, vector<104x8xf32>,
    %c0_37 = arith.constant 0 : index
    %c0_38 = arith.constant 0 : index
    %70 = vector.load %arg12[%c0_37, %c0_38] : memref<104x8xf32, #tpu.memory_space<vmem>>, vector<19x8xf32>
    %c0_39 = arith.constant 0 : index
    %c0_40 = arith.constant 0 : index
    %71 = vector.load %arg7[%c0_39, %c0_40] : memref<9x8xf32, #tpu.memory_space<vmem>>, vector<1x8xf32>
    %72 = vector.broadcast %71 : vector<1x8xf32> to vector<19x8xf32>
    %73 = arith.mulf %70, %72 : vector<19x8xf32>
    %c25_41 = arith.constant 25 : index
    %c0_42 = arith.constant 0 : index
    %74 = vector.load %arg12[%c25_41, %c0_42] : memref<104x8xf32, #tpu.memory_space<vmem>>, vector<19x8xf32>
    %c1_43 = arith.constant 1 : index
    %c0_44 = arith.constant 0 : index
    %75 = vector.load %arg7[%c1_43, %c0_44] : memref<9x8xf32, #tpu.memory_space<vmem>>, vector<1x8xf32>
    %76 = vector.broadcast %75 : vector<1x8xf32> to vector<19x8xf32>
    %77 = arith.mulf %74, %76 : vector<19x8xf32>
    %78 = arith.addf %73, %77 : vector<19x8xf32>
    %c1_45 = arith.constant 1 : index
    %c0_46 = arith.constant 0 : index
    %79 = vector.load %arg12[%c1_45, %c0_46] : memref<104x8xf32, #tpu.memory_space<vmem>>, vector<19x8xf32>
    %c2_47 = arith.constant 2 : index
    %c0_48 = arith.constant 0 : index
    %80 = vector.load %arg7[%c2_47, %c0_48] : memref<9x8xf32, #tpu.memory_space<vmem>>, vector<1x8xf32>
    %81 = vector.broadcast %80 : vector<1x8xf32> to vector<19x8xf32>
    %82 = arith.mulf %79, %81 : vector<19x8xf32>
    %83 = arith.addf %78, %82 : vector<19x8xf32>
    %c50_49 = arith.constant 50 : index
    %c0_50 = arith.constant 0 : index
    %84 = vector.load %arg12[%c50_49, %c0_50] : memref<104x8xf32, #tpu.memory_space<vmem>>, vector<19x8xf32>
    %c3_51 = arith.constant 3 : index
    %c0_52 = arith.constant 0 : index
    %85 = vector.load %arg7[%c3_51, %c0_52] : memref<9x8xf32, #tpu.memory_space<vmem>>, vector<1x8xf32>
    %86 = vector.broadcast %85 : vector<1x8xf32> to vector<19x8xf32>
    %87 = arith.mulf %84, %86 : vector<19x8xf32>
    %88 = arith.addf %83, %87 : vector<19x8xf32>
    %c75_53 = arith.constant 75 : index
    %c0_54 = arith.constant 0 : index
    %89 = vector.load %arg12[%c75_53, %c0_54] : memref<104x8xf32, #tpu.memory_space<vmem>>, vector<19x8xf32>
    %c4_55 = arith.constant 4 : index
    %c0_56 = arith.constant 0 : index
    %90 = vector.load %arg7[%c4_55, %c0_56] : memref<9x8xf32, #tpu.memory_space<vmem>>, vector<1x8xf32>
    %91 = vector.broadcast %90 : vector<1x8xf32> to vector<19x8xf32>
    %92 = arith.mulf %89, %91 : vector<19x8xf32>
    %93 = arith.addf %88, %92 : vector<19x8xf32>
    %c51_57 = arith.constant 51 : index
    %c0_58 = arith.constant 0 : index
    %94 = vector.load %arg12[%c51_57, %c0_58] : memref<104x8xf32, #tpu.memory_space<vmem>>, vector<19x8xf32>
    %c5_59 = arith.constant 5 : index
    %c0_60 = arith.constant 0 : index
    %95 = vector.load %arg7[%c5_59, %c0_60] : memref<9x8xf32, #tpu.memory_space<vmem>>, vector<1x8xf32>
    %96 = vector.broadcast %95 : vector<1x8xf32> to vector<19x8xf32>
    %97 = arith.mulf %94, %96 : vector<19x8xf32>
    %98 = arith.addf %93, %97 : vector<19x8xf32>
    %c5_61 = arith.constant 5 : index
    %c0_62 = arith.constant 0 : index
    %99 = vector.load %arg12[%c5_61, %c0_62] : memref<104x8xf32, #tpu.memory_space<vmem>>, vector<19x8xf32>
    %c6_63 = arith.constant 6 : index
    %c0_64 = arith.constant 0 : index
    %100 = vector.load %arg7[%c6_63, %c0_64] : memref<9x8xf32, #tpu.memory_space<vmem>>, vector<1x8xf32>
    %101 = vector.broadcast %100 : vector<1x8xf32> to vector<19x8xf32>
    %102 = arith.mulf %99, %101 : vector<19x8xf32>
    %103 = arith.addf %98, %102 : vector<19x8xf32>
    %c30_65 = arith.constant 30 : index
    %c0_66 = arith.constant 0 : index
    %104 = vector.load %arg12[%c30_65, %c0_66] : memref<104x8xf32, #tpu.memory_space<vmem>>, vector<19x8xf32>
    %c7_67 = arith.constant 7 : index
    %c0_68 = arith.constant 0 : index
    %105 = vector.load %arg7[%c7_67, %c0_68] : memref<9x8xf32, #tpu.memory_space<vmem>>, vector<1x8xf32>
    %106 = vector.broadcast %105 : vector<1x8xf32> to vector<19x8xf32>
    %107 = arith.mulf %104, %106 : vector<19x8xf32>
    %108 = arith.addf %103, %107 : vector<19x8xf32>
    %c6_69 = arith.constant 6 : index
    %c0_70 = arith.constant 0 : index
    %109 = vector.load %arg12[%c6_69, %c0_70] : memref<104x8xf32, #tpu.memory_space<vmem>>, vector<19x8xf32>
    %c8_71 = arith.constant 8 : index
    %c0_72 = arith.constant 0 : index
    %110 = vector.load %arg7[%c8_71, %c0_72] : memref<9x8xf32, #tpu.memory_space<vmem>>, vector<1x8xf32>
    %111 = vector.broadcast %110 : vector<1x8xf32> to vector<19x8xf32>
    %112 = arith.mulf %109, %111 : vector<19x8xf32>
    %113 = arith.addf %108, %112 : vector<19x8xf32>
    %c0_73 = arith.constant 0 : index
    %c0_74 = arith.constant 0 : index
    %114 = vector.load %arg8[%c0_73, %c0_74] : memref<1x8xf32, #tpu.memory_space<vmem>>, vector<1x8xf32>
    %115 = vector.broadcast %114 : vector<1x8xf32> to vector<19x8xf32>
    %116 = arith.addf %113, %115 : vector<19x8xf32>
    %c0_75 = arith.constant 0 : index
    %c0_76 = arith.constant 0 : index
    %117 = vector.load %arg9[%c0_75, %c0_76] : memref<8x8xbf16, #tpu.memory_space<vmem>>, vector<8x8xbf16>
    %118 = arith.truncf %116 : vector<19x8xf32> to vector<19x8xbf16>
    %cst_77 = arith.constant dense<0.000000e+00> : vector<19x8xf32>
    %119 = tpu.matmul %118, %117, %cst_77 {dimension_numbers = #tpu.dot_dimension_numbers<[1], [0], [0], [1], [0, 0, 1, 1], [], []>} : vector<19x8xbf16>, vector<8x8xbf16>, vector<19x8xf32> -> vector<19x8xf32>
    %c0_78 = arith.constant 0 : index
    %c0_79 = arith.constant 0 : index
    %120 = vector.load %arg10[%c0_78, %c0_79] : memref<1x8xf32, #tpu.memory_space<vmem>>, vector<1x8xf32>
    %121 = vector.broadcast %120 : vector<1x8xf32> to vector<19x8xf32>
    %122 = arith.addf %119, %121 : vector<19x8xf32>
    %cst_80 = arith.constant 0.000000e+00 : f32
    %123 = vector.broadcast %cst_80 : f32 to vector<19x8xf32>
    %124 = arith.maximumf %122, %123 : vector<19x8xf32>
    %125 = tpu.concatenate %63, %124 in 1 : vector<19x8xf32>, vector<19x8xf32> -> vector<19x16xf32>
    %126 = arith.truncf %125 : vector<19x16xf32> to vector<19x16xbf16>
    %c0_81 = arith.constant 0 : index
    %c0_82 = arith.constant 0 : index
    %127 = vector.load %arg11[%c0_81, %c0_82] : memref<32x16xbf16, #tpu.memory_space<vmem>>, vector<19x16xbf16>
    tpu.vector_store %arg11[%c0_81, %c0_82], %126 {strides = array<i32>} : memref<32x16xbf16, #tpu.memory_space<vmem>>, vector<19x16xbf16>,
    return
  }
  func.func @transform_0(%arg0: i32) -> (i32, i32) {
    %c0_i32 = arith.constant 0 : i32
    %c0_i32_0 = arith.constant 0 : i32
    return %arg0, %c0_i32 : i32, i32
  }
  func.func @transform_1(%arg0: i32) -> (i32, i32) {
    %c0_i32 = arith.constant 0 : i32
    %c0_i32_0 = arith.constant 0 : i32
    %c0_i32_1 = arith.constant 0 : i32
    return %c0_i32, %c0_i32_0 : i32, i32
  }
  func.func @transform_2(%arg0: i32) -> (i32, i32) {
    %c0_i32 = arith.constant 0 : i32
    %c0_i32_0 = arith.constant 0 : i32
    %c0_i32_1 = arith.constant 0 : i32
    return %c0_i32, %c0_i32_0 : i32, i32
  }
  func.func @transform_3(%arg0: i32) -> (i32, i32) {
    %c0_i32 = arith.constant 0 : i32
    %c0_i32_0 = arith.constant 0 : i32
    %c0_i32_1 = arith.constant 0 : i32
    return %c0_i32, %c0_i32_0 : i32, i32
  }
  func.func @transform_4(%arg0: i32) -> (i32, i32) {
    %c0_i32 = arith.constant 0 : i32
    %c0_i32_0 = arith.constant 0 : i32
    %c0_i32_1 = arith.constant 0 : i32
    return %c0_i32, %c0_i32_0 : i32, i32
  }
  func.func @transform_5(%arg0: i32) -> (i32, i32) {
    %c0_i32 = arith.constant 0 : i32
    %c0_i32_0 = arith.constant 0 : i32
    %c0_i32_1 = arith.constant 0 : i32
    return %c0_i32, %c0_i32_0 : i32, i32
  }
  func.func @transform_6(%arg0: i32) -> (i32, i32) {
    %c0_i32 = arith.constant 0 : i32
    %c0_i32_0 = arith.constant 0 : i32
    %c0_i32_1 = arith.constant 0 : i32
    return %c0_i32, %c0_i32_0 : i32, i32
  }
  func.func @transform_7(%arg0: i32) -> (i32, i32) {
    %c0_i32 = arith.constant 0 : i32
    %c0_i32_0 = arith.constant 0 : i32
    %c0_i32_1 = arith.constant 0 : i32
    return %c0_i32, %c0_i32_0 : i32, i32
  }
  func.func @transform_8(%arg0: i32) -> (i32, i32) {
    %c0_i32 = arith.constant 0 : i32
    %c0_i32_0 = arith.constant 0 : i32
    %c0_i32_1 = arith.constant 0 : i32
    return %c0_i32, %c0_i32_0 : i32, i32
  }
  func.func @transform_9(%arg0: i32) -> (i32, i32) {
    %c0_i32 = arith.constant 0 : i32
    %c0_i32_0 = arith.constant 0 : i32
    %c0_i32_1 = arith.constant 0 : i32
    return %c0_i32, %c0_i32_0 : i32, i32
  }
  func.func @transform_10(%arg0: i32) -> (i32, i32) {
    %c0_i32 = arith.constant 0 : i32
    %c0_i32_0 = arith.constant 0 : i32
    return %arg0, %c0_i32 : i32, i32
  }
}

module attributes {stable_mosaic.version = 11 : i64} {
  func.func @_block_s1_kernel(%arg0: i32, %arg1: memref<40x9xbf16, #tpu.memory_space<vmem>>, %arg2: memref<9x8xbf16, #tpu.memory_space<vmem>>, %arg3: memref<9x8xf32, #tpu.memory_space<vmem>>, %arg4: memref<1x8xf32, #tpu.memory_space<vmem>>, %arg5: memref<8x8xbf16, #tpu.memory_space<vmem>>, %arg6: memref<1x8xf32, #tpu.memory_space<vmem>>, %arg7: memref<40x8xbf16, #tpu.memory_space<vmem>>, %arg8: memref<40x8xf32, #tpu.memory_space<vmem>>) attributes {dimension_semantics = [#tpu.dimension_semantics<parallel>], iteration_bounds = array<i64: 2>, scalar_prefetch = 0 : i64, scratch_operands = 1 : i64, tpu.core_type = #tpu.core_type<tc>, window_params = [{transform_indices = @transform_0, window_bounds = array<i64: 40, 9>}, {pipeline_mode = #tpu.pipeline_mode<synchronous>, transform_indices = @transform_1, window_bounds = array<i64: 9, 8>}, {pipeline_mode = #tpu.pipeline_mode<synchronous>, transform_indices = @transform_2, window_bounds = array<i64: 9, 8>}, {pipeline_mode = #tpu.pipeline_mode<synchronous>, transform_indices = @transform_3, window_bounds = array<i64: 1, 8>}, {pipeline_mode = #tpu.pipeline_mode<synchronous>, transform_indices = @transform_4, window_bounds = array<i64: 8, 8>}, {pipeline_mode = #tpu.pipeline_mode<synchronous>, transform_indices = @transform_5, window_bounds = array<i64: 1, 8>}, {transform_indices = @transform_6, window_bounds = array<i64: 40, 8>}]} {
    %c0 = arith.constant 0 : index
    %c0_0 = arith.constant 0 : index
    %0 = vector.load %arg1[%c0, %c0_0] : memref<40x9xbf16, #tpu.memory_space<vmem>>, vector<40x9xbf16>
    %c0_1 = arith.constant 0 : index
    %c0_2 = arith.constant 0 : index
    %1 = vector.load %arg2[%c0_1, %c0_2] : memref<9x8xbf16, #tpu.memory_space<vmem>>, vector<9x8xbf16>
    %cst = arith.constant dense<0.000000e+00> : vector<40x8xf32>
    %2 = tpu.matmul %0, %1, %cst {dimension_numbers = #tpu.dot_dimension_numbers<[1], [0], [0], [1], [0, 0, 1, 1], [], []>} : vector<40x9xbf16>, vector<9x8xbf16>, vector<40x8xf32> -> vector<40x8xf32>
    %cst_3 = arith.constant 0.000000e+00 : f32
    %3 = vector.broadcast %cst_3 : f32 to vector<40x8xf32>
    %4 = arith.maximumf %2, %3 : vector<40x8xf32>
    %c0_4 = arith.constant 0 : index
    %c0_5 = arith.constant 0 : index
    %5 = vector.load %arg8[%c0_4, %c0_5] : memref<40x8xf32, #tpu.memory_space<vmem>>, vector<40x8xf32>
    tpu.vector_store %arg8[%c0_4, %c0_5], %4 {strides = array<i32>} : memref<40x8xf32, #tpu.memory_space<vmem>>, vector<40x8xf32>,
    %c0_6 = arith.constant 0 : index
    %c0_7 = arith.constant 0 : index
    %6 = vector.load %arg8[%c0_6, %c0_7] : memref<40x8xf32, #tpu.memory_space<vmem>>, vector<22x8xf32>
    %c0_8 = arith.constant 0 : index
    %c0_9 = arith.constant 0 : index
    %7 = vector.load %arg3[%c0_8, %c0_9] : memref<9x8xf32, #tpu.memory_space<vmem>>, vector<1x8xf32>
    %8 = vector.broadcast %7 : vector<1x8xf32> to vector<22x8xf32>
    %9 = arith.mulf %6, %8 : vector<22x8xf32>
    %c1 = arith.constant 1 : index
    %c0_10 = arith.constant 0 : index
    %10 = vector.load %arg8[%c1, %c0_10] : memref<40x8xf32, #tpu.memory_space<vmem>>, vector<22x8xf32>
    %c1_11 = arith.constant 1 : index
    %c0_12 = arith.constant 0 : index
    %11 = vector.load %arg3[%c1_11, %c0_12] : memref<9x8xf32, #tpu.memory_space<vmem>>, vector<1x8xf32>
    %12 = vector.broadcast %11 : vector<1x8xf32> to vector<22x8xf32>
    %13 = arith.mulf %10, %12 : vector<22x8xf32>
    %14 = arith.addf %9, %13 : vector<22x8xf32>
    %c2 = arith.constant 2 : index
    %c0_13 = arith.constant 0 : index
    %15 = vector.load %arg8[%c2, %c0_13] : memref<40x8xf32, #tpu.memory_space<vmem>>, vector<22x8xf32>
    %c2_14 = arith.constant 2 : index
    %c0_15 = arith.constant 0 : index
    %16 = vector.load %arg3[%c2_14, %c0_15] : memref<9x8xf32, #tpu.memory_space<vmem>>, vector<1x8xf32>
    %17 = vector.broadcast %16 : vector<1x8xf32> to vector<22x8xf32>
    %18 = arith.mulf %15, %17 : vector<22x8xf32>
    %19 = arith.addf %14, %18 : vector<22x8xf32>
    %c6 = arith.constant 6 : index
    %c0_16 = arith.constant 0 : index
    %20 = vector.load %arg8[%c6, %c0_16] : memref<40x8xf32, #tpu.memory_space<vmem>>, vector<22x8xf32>
    %c3 = arith.constant 3 : index
    %c0_17 = arith.constant 0 : index
    %21 = vector.load %arg3[%c3, %c0_17] : memref<9x8xf32, #tpu.memory_space<vmem>>, vector<1x8xf32>
    %22 = vector.broadcast %21 : vector<1x8xf32> to vector<22x8xf32>
    %23 = arith.mulf %20, %22 : vector<22x8xf32>
    %24 = arith.addf %19, %23 : vector<22x8xf32>
    %c7 = arith.constant 7 : index
    %c0_18 = arith.constant 0 : index
    %25 = vector.load %arg8[%c7, %c0_18] : memref<40x8xf32, #tpu.memory_space<vmem>>, vector<22x8xf32>
    %c4 = arith.constant 4 : index
    %c0_19 = arith.constant 0 : index
    %26 = vector.load %arg3[%c4, %c0_19] : memref<9x8xf32, #tpu.memory_space<vmem>>, vector<1x8xf32>
    %27 = vector.broadcast %26 : vector<1x8xf32> to vector<22x8xf32>
    %28 = arith.mulf %25, %27 : vector<22x8xf32>
    %29 = arith.addf %24, %28 : vector<22x8xf32>
    %c8 = arith.constant 8 : index
    %c0_20 = arith.constant 0 : index
    %30 = vector.load %arg8[%c8, %c0_20] : memref<40x8xf32, #tpu.memory_space<vmem>>, vector<22x8xf32>
    %c5 = arith.constant 5 : index
    %c0_21 = arith.constant 0 : index
    %31 = vector.load %arg3[%c5, %c0_21] : memref<9x8xf32, #tpu.memory_space<vmem>>, vector<1x8xf32>
    %32 = vector.broadcast %31 : vector<1x8xf32> to vector<22x8xf32>
    %33 = arith.mulf %30, %32 : vector<22x8xf32>
    %34 = arith.addf %29, %33 : vector<22x8xf32>
    %c12 = arith.constant 12 : index
    %c0_22 = arith.constant 0 : index
    %35 = vector.load %arg8[%c12, %c0_22] : memref<40x8xf32, #tpu.memory_space<vmem>>, vector<22x8xf32>
    %c6_23 = arith.constant 6 : index
    %c0_24 = arith.constant 0 : index
    %36 = vector.load %arg3[%c6_23, %c0_24] : memref<9x8xf32, #tpu.memory_space<vmem>>, vector<1x8xf32>
    %37 = vector.broadcast %36 : vector<1x8xf32> to vector<22x8xf32>
    %38 = arith.mulf %35, %37 : vector<22x8xf32>
    %39 = arith.addf %34, %38 : vector<22x8xf32>
    %c13 = arith.constant 13 : index
    %c0_25 = arith.constant 0 : index
    %40 = vector.load %arg8[%c13, %c0_25] : memref<40x8xf32, #tpu.memory_space<vmem>>, vector<22x8xf32>
    %c7_26 = arith.constant 7 : index
    %c0_27 = arith.constant 0 : index
    %41 = vector.load %arg3[%c7_26, %c0_27] : memref<9x8xf32, #tpu.memory_space<vmem>>, vector<1x8xf32>
    %42 = vector.broadcast %41 : vector<1x8xf32> to vector<22x8xf32>
    %43 = arith.mulf %40, %42 : vector<22x8xf32>
    %44 = arith.addf %39, %43 : vector<22x8xf32>
    %c14 = arith.constant 14 : index
    %c0_28 = arith.constant 0 : index
    %45 = vector.load %arg8[%c14, %c0_28] : memref<40x8xf32, #tpu.memory_space<vmem>>, vector<22x8xf32>
    %c8_29 = arith.constant 8 : index
    %c0_30 = arith.constant 0 : index
    %46 = vector.load %arg3[%c8_29, %c0_30] : memref<9x8xf32, #tpu.memory_space<vmem>>, vector<1x8xf32>
    %47 = vector.broadcast %46 : vector<1x8xf32> to vector<22x8xf32>
    %48 = arith.mulf %45, %47 : vector<22x8xf32>
    %49 = arith.addf %44, %48 : vector<22x8xf32>
    %c0_31 = arith.constant 0 : index
    %c0_32 = arith.constant 0 : index
    %50 = vector.load %arg4[%c0_31, %c0_32] : memref<1x8xf32, #tpu.memory_space<vmem>>, vector<1x8xf32>
    %51 = vector.broadcast %50 : vector<1x8xf32> to vector<22x8xf32>
    %52 = arith.addf %49, %51 : vector<22x8xf32>
    %c0_33 = arith.constant 0 : index
    %c0_34 = arith.constant 0 : index
    %53 = vector.load %arg5[%c0_33, %c0_34] : memref<8x8xbf16, #tpu.memory_space<vmem>>, vector<8x8xbf16>
    %54 = arith.truncf %52 : vector<22x8xf32> to vector<22x8xbf16>
    %cst_35 = arith.constant dense<0.000000e+00> : vector<22x8xf32>
    %55 = tpu.matmul %54, %53, %cst_35 {dimension_numbers = #tpu.dot_dimension_numbers<[1], [0], [0], [1], [0, 0, 1, 1], [], []>} : vector<22x8xbf16>, vector<8x8xbf16>, vector<22x8xf32> -> vector<22x8xf32>
    %c0_36 = arith.constant 0 : index
    %c0_37 = arith.constant 0 : index
    %56 = vector.load %arg6[%c0_36, %c0_37] : memref<1x8xf32, #tpu.memory_space<vmem>>, vector<1x8xf32>
    %57 = vector.broadcast %56 : vector<1x8xf32> to vector<22x8xf32>
    %58 = arith.addf %55, %57 : vector<22x8xf32>
    %cst_38 = arith.constant 0.000000e+00 : f32
    %59 = vector.broadcast %cst_38 : f32 to vector<22x8xf32>
    %60 = arith.maximumf %58, %59 : vector<22x8xf32>
    %61 = arith.truncf %60 : vector<22x8xf32> to vector<22x8xbf16>
    %c7_39 = arith.constant 7 : index
    %c0_40 = arith.constant 0 : index
    %62 = vector.load %arg7[%c7_39, %c0_40] : memref<40x8xbf16, #tpu.memory_space<vmem>>, vector<22x8xbf16>
    tpu.vector_store %arg7[%c7_39, %c0_40], %61 {strides = array<i32>} : memref<40x8xbf16, #tpu.memory_space<vmem>>, vector<22x8xbf16>,
    return
  }
  func.func @transform_0(%arg0: i32) -> (i32, i32) {
    %c0_i32 = arith.constant 0 : i32
    %c0_i32_0 = arith.constant 0 : i32
    return %arg0, %c0_i32 : i32, i32
  }
  func.func @transform_1(%arg0: i32) -> (i32, i32) {
    %c0_i32 = arith.constant 0 : i32
    %c0_i32_0 = arith.constant 0 : i32
    %c0_i32_1 = arith.constant 0 : i32
    return %c0_i32, %c0_i32_0 : i32, i32
  }
  func.func @transform_2(%arg0: i32) -> (i32, i32) {
    %c0_i32 = arith.constant 0 : i32
    %c0_i32_0 = arith.constant 0 : i32
    %c0_i32_1 = arith.constant 0 : i32
    return %c0_i32, %c0_i32_0 : i32, i32
  }
  func.func @transform_3(%arg0: i32) -> (i32, i32) {
    %c0_i32 = arith.constant 0 : i32
    %c0_i32_0 = arith.constant 0 : i32
    %c0_i32_1 = arith.constant 0 : i32
    return %c0_i32, %c0_i32_0 : i32, i32
  }
  func.func @transform_4(%arg0: i32) -> (i32, i32) {
    %c0_i32 = arith.constant 0 : i32
    %c0_i32_0 = arith.constant 0 : i32
    %c0_i32_1 = arith.constant 0 : i32
    return %c0_i32, %c0_i32_0 : i32, i32
  }
  func.func @transform_5(%arg0: i32) -> (i32, i32) {
    %c0_i32 = arith.constant 0 : i32
    %c0_i32_0 = arith.constant 0 : i32
    %c0_i32_1 = arith.constant 0 : i32
    return %c0_i32, %c0_i32_0 : i32, i32
  }
  func.func @transform_6(%arg0: i32) -> (i32, i32) {
    %c0_i32 = arith.constant 0 : i32
    %c0_i32_0 = arith.constant 0 : i32
    return %arg0, %c0_i32 : i32, i32
  }
}

module attributes {stable_mosaic.version = 11 : i64} {
  func.func @_block_s2_kernel(%arg0: i32, %arg1: memref<40x17xbf16, #tpu.memory_space<vmem>>, %arg2: memref<9x17xf32, #tpu.memory_space<vmem>>, %arg3: memref<1x17xf32, #tpu.memory_space<vmem>>, %arg4: memref<17x16xbf16, #tpu.memory_space<vmem>>, %arg5: memref<1x16xf32, #tpu.memory_space<vmem>>, %arg6: memref<17x16xbf16, #tpu.memory_space<vmem>>, %arg7: memref<9x16xf32, #tpu.memory_space<vmem>>, %arg8: memref<1x16xf32, #tpu.memory_space<vmem>>, %arg9: memref<16x16xbf16, #tpu.memory_space<vmem>>, %arg10: memref<1x16xf32, #tpu.memory_space<vmem>>, %arg11: memref<16x32xbf16, #tpu.memory_space<vmem>>, %arg12: memref<40x16xf32, #tpu.memory_space<vmem>>) attributes {dimension_semantics = [#tpu.dimension_semantics<parallel>], iteration_bounds = array<i64: 2>, scalar_prefetch = 0 : i64, scratch_operands = 1 : i64, tpu.core_type = #tpu.core_type<tc>, window_params = [{transform_indices = @transform_0, window_bounds = array<i64: 40, 17>}, {pipeline_mode = #tpu.pipeline_mode<synchronous>, transform_indices = @transform_1, window_bounds = array<i64: 9, 17>}, {pipeline_mode = #tpu.pipeline_mode<synchronous>, transform_indices = @transform_2, window_bounds = array<i64: 1, 17>}, {pipeline_mode = #tpu.pipeline_mode<synchronous>, transform_indices = @transform_3, window_bounds = array<i64: 17, 16>}, {pipeline_mode = #tpu.pipeline_mode<synchronous>, transform_indices = @transform_4, window_bounds = array<i64: 1, 16>}, {pipeline_mode = #tpu.pipeline_mode<synchronous>, transform_indices = @transform_5, window_bounds = array<i64: 17, 16>}, {pipeline_mode = #tpu.pipeline_mode<synchronous>, transform_indices = @transform_6, window_bounds = array<i64: 9, 16>}, {pipeline_mode = #tpu.pipeline_mode<synchronous>, transform_indices = @transform_7, window_bounds = array<i64: 1, 16>}, {pipeline_mode = #tpu.pipeline_mode<synchronous>, transform_indices = @transform_8, window_bounds = array<i64: 16, 16>}, {pipeline_mode = #tpu.pipeline_mode<synchronous>, transform_indices = @transform_9, window_bounds = array<i64: 1, 16>}, {transform_indices = @transform_10, window_bounds = array<i64: 16, 32>}]} {
    %c0 = arith.constant 0 : index
    %c0_0 = arith.constant 0 : index
    %0 = vector.load %arg1[%c0, %c0_0] : memref<40x17xbf16, #tpu.memory_space<vmem>>, vector<5x17xbf16>
    %1 = arith.extf %0 : vector<5x17xbf16> to vector<5x17xf32>
    %c0_1 = arith.constant 0 : index
    %c0_2 = arith.constant 0 : index
    %2 = vector.load %arg2[%c0_1, %c0_2] : memref<9x17xf32, #tpu.memory_space<vmem>>, vector<1x17xf32>
    %3 = vector.broadcast %2 : vector<1x17xf32> to vector<5x17xf32>
    %4 = arith.mulf %1, %3 : vector<5x17xf32>
    %c9 = arith.constant 9 : index
    %c0_3 = arith.constant 0 : index
    %5 = vector.load %arg1[%c9, %c0_3] : memref<40x17xbf16, #tpu.memory_space<vmem>>, vector<5x17xbf16>
    %6 = arith.extf %5 : vector<5x17xbf16> to vector<5x17xf32>
    %c1 = arith.constant 1 : index
    %c0_4 = arith.constant 0 : index
    %7 = vector.load %arg2[%c1, %c0_4] : memref<9x17xf32, #tpu.memory_space<vmem>>, vector<1x17xf32>
    %8 = vector.broadcast %7 : vector<1x17xf32> to vector<5x17xf32>
    %9 = arith.mulf %6, %8 : vector<5x17xf32>
    %10 = arith.addf %4, %9 : vector<5x17xf32>
    %c1_5 = arith.constant 1 : index
    %c0_6 = arith.constant 0 : index
    %11 = vector.load %arg1[%c1_5, %c0_6] : memref<40x17xbf16, #tpu.memory_space<vmem>>, vector<5x17xbf16>
    %12 = arith.extf %11 : vector<5x17xbf16> to vector<5x17xf32>
    %c2 = arith.constant 2 : index
    %c0_7 = arith.constant 0 : index
    %13 = vector.load %arg2[%c2, %c0_7] : memref<9x17xf32, #tpu.memory_space<vmem>>, vector<1x17xf32>
    %14 = vector.broadcast %13 : vector<1x17xf32> to vector<5x17xf32>
    %15 = arith.mulf %12, %14 : vector<5x17xf32>
    %16 = arith.addf %10, %15 : vector<5x17xf32>
    %c18 = arith.constant 18 : index
    %c0_8 = arith.constant 0 : index
    %17 = vector.load %arg1[%c18, %c0_8] : memref<40x17xbf16, #tpu.memory_space<vmem>>, vector<5x17xbf16>
    %18 = arith.extf %17 : vector<5x17xbf16> to vector<5x17xf32>
    %c3 = arith.constant 3 : index
    %c0_9 = arith.constant 0 : index
    %19 = vector.load %arg2[%c3, %c0_9] : memref<9x17xf32, #tpu.memory_space<vmem>>, vector<1x17xf32>
    %20 = vector.broadcast %19 : vector<1x17xf32> to vector<5x17xf32>
    %21 = arith.mulf %18, %20 : vector<5x17xf32>
    %22 = arith.addf %16, %21 : vector<5x17xf32>
    %c27 = arith.constant 27 : index
    %c0_10 = arith.constant 0 : index
    %23 = vector.load %arg1[%c27, %c0_10] : memref<40x17xbf16, #tpu.memory_space<vmem>>, vector<5x17xbf16>
    %24 = arith.extf %23 : vector<5x17xbf16> to vector<5x17xf32>
    %c4 = arith.constant 4 : index
    %c0_11 = arith.constant 0 : index
    %25 = vector.load %arg2[%c4, %c0_11] : memref<9x17xf32, #tpu.memory_space<vmem>>, vector<1x17xf32>
    %26 = vector.broadcast %25 : vector<1x17xf32> to vector<5x17xf32>
    %27 = arith.mulf %24, %26 : vector<5x17xf32>
    %28 = arith.addf %22, %27 : vector<5x17xf32>
    %c19 = arith.constant 19 : index
    %c0_12 = arith.constant 0 : index
    %29 = vector.load %arg1[%c19, %c0_12] : memref<40x17xbf16, #tpu.memory_space<vmem>>, vector<5x17xbf16>
    %30 = arith.extf %29 : vector<5x17xbf16> to vector<5x17xf32>
    %c5 = arith.constant 5 : index
    %c0_13 = arith.constant 0 : index
    %31 = vector.load %arg2[%c5, %c0_13] : memref<9x17xf32, #tpu.memory_space<vmem>>, vector<1x17xf32>
    %32 = vector.broadcast %31 : vector<1x17xf32> to vector<5x17xf32>
    %33 = arith.mulf %30, %32 : vector<5x17xf32>
    %34 = arith.addf %28, %33 : vector<5x17xf32>
    %c3_14 = arith.constant 3 : index
    %c0_15 = arith.constant 0 : index
    %35 = vector.load %arg1[%c3_14, %c0_15] : memref<40x17xbf16, #tpu.memory_space<vmem>>, vector<5x17xbf16>
    %36 = arith.extf %35 : vector<5x17xbf16> to vector<5x17xf32>
    %c6 = arith.constant 6 : index
    %c0_16 = arith.constant 0 : index
    %37 = vector.load %arg2[%c6, %c0_16] : memref<9x17xf32, #tpu.memory_space<vmem>>, vector<1x17xf32>
    %38 = vector.broadcast %37 : vector<1x17xf32> to vector<5x17xf32>
    %39 = arith.mulf %36, %38 : vector<5x17xf32>
    %40 = arith.addf %34, %39 : vector<5x17xf32>
    %c12 = arith.constant 12 : index
    %c0_17 = arith.constant 0 : index
    %41 = vector.load %arg1[%c12, %c0_17] : memref<40x17xbf16, #tpu.memory_space<vmem>>, vector<5x17xbf16>
    %42 = arith.extf %41 : vector<5x17xbf16> to vector<5x17xf32>
    %c7 = arith.constant 7 : index
    %c0_18 = arith.constant 0 : index
    %43 = vector.load %arg2[%c7, %c0_18] : memref<9x17xf32, #tpu.memory_space<vmem>>, vector<1x17xf32>
    %44 = vector.broadcast %43 : vector<1x17xf32> to vector<5x17xf32>
    %45 = arith.mulf %42, %44 : vector<5x17xf32>
    %46 = arith.addf %40, %45 : vector<5x17xf32>
    %c4_19 = arith.constant 4 : index
    %c0_20 = arith.constant 0 : index
    %47 = vector.load %arg1[%c4_19, %c0_20] : memref<40x17xbf16, #tpu.memory_space<vmem>>, vector<5x17xbf16>
    %48 = arith.extf %47 : vector<5x17xbf16> to vector<5x17xf32>
    %c8 = arith.constant 8 : index
    %c0_21 = arith.constant 0 : index
    %49 = vector.load %arg2[%c8, %c0_21] : memref<9x17xf32, #tpu.memory_space<vmem>>, vector<1x17xf32>
    %50 = vector.broadcast %49 : vector<1x17xf32> to vector<5x17xf32>
    %51 = arith.mulf %48, %50 : vector<5x17xf32>
    %52 = arith.addf %46, %51 : vector<5x17xf32>
    %c0_22 = arith.constant 0 : index
    %c0_23 = arith.constant 0 : index
    %53 = vector.load %arg3[%c0_22, %c0_23] : memref<1x17xf32, #tpu.memory_space<vmem>>, vector<1x17xf32>
    %54 = vector.broadcast %53 : vector<1x17xf32> to vector<5x17xf32>
    %55 = arith.addf %52, %54 : vector<5x17xf32>
    %c0_24 = arith.constant 0 : index
    %c0_25 = arith.constant 0 : index
    %56 = vector.load %arg4[%c0_24, %c0_25] : memref<17x16xbf16, #tpu.memory_space<vmem>>, vector<17x16xbf16>
    %57 = arith.truncf %55 : vector<5x17xf32> to vector<5x17xbf16>
    %cst = arith.constant dense<0.000000e+00> : vector<5x16xf32>
    %58 = tpu.matmul %57, %56, %cst {dimension_numbers = #tpu.dot_dimension_numbers<[1], [0], [0], [1], [0, 0, 1, 1], [], []>} : vector<5x17xbf16>, vector<17x16xbf16>, vector<5x16xf32> -> vector<5x16xf32>
    %c0_26 = arith.constant 0 : index
    %c0_27 = arith.constant 0 : index
    %59 = vector.load %arg5[%c0_26, %c0_27] : memref<1x16xf32, #tpu.memory_space<vmem>>, vector<1x16xf32>
    %60 = vector.broadcast %59 : vector<1x16xf32> to vector<5x16xf32>
    %61 = arith.addf %58, %60 : vector<5x16xf32>
    %cst_28 = arith.constant 0.000000e+00 : f32
    %62 = vector.broadcast %cst_28 : f32 to vector<5x16xf32>
    %63 = arith.maximumf %61, %62 : vector<5x16xf32>
    %c0_29 = arith.constant 0 : index
    %c0_30 = arith.constant 0 : index
    %64 = vector.load %arg1[%c0_29, %c0_30] : memref<40x17xbf16, #tpu.memory_space<vmem>>, vector<40x17xbf16>
    %c0_31 = arith.constant 0 : index
    %c0_32 = arith.constant 0 : index
    %65 = vector.load %arg6[%c0_31, %c0_32] : memref<17x16xbf16, #tpu.memory_space<vmem>>, vector<17x16xbf16>
    %cst_33 = arith.constant dense<0.000000e+00> : vector<40x16xf32>
    %66 = tpu.matmul %64, %65, %cst_33 {dimension_numbers = #tpu.dot_dimension_numbers<[1], [0], [0], [1], [0, 0, 1, 1], [], []>} : vector<40x17xbf16>, vector<17x16xbf16>, vector<40x16xf32> -> vector<40x16xf32>
    %cst_34 = arith.constant 0.000000e+00 : f32
    %67 = vector.broadcast %cst_34 : f32 to vector<40x16xf32>
    %68 = arith.maximumf %66, %67 : vector<40x16xf32>
    %c0_35 = arith.constant 0 : index
    %c0_36 = arith.constant 0 : index
    %69 = vector.load %arg12[%c0_35, %c0_36] : memref<40x16xf32, #tpu.memory_space<vmem>>, vector<40x16xf32>
    tpu.vector_store %arg12[%c0_35, %c0_36], %68 {strides = array<i32>} : memref<40x16xf32, #tpu.memory_space<vmem>>, vector<40x16xf32>,
    %c0_37 = arith.constant 0 : index
    %c0_38 = arith.constant 0 : index
    %70 = vector.load %arg12[%c0_37, %c0_38] : memref<40x16xf32, #tpu.memory_space<vmem>>, vector<5x16xf32>
    %c0_39 = arith.constant 0 : index
    %c0_40 = arith.constant 0 : index
    %71 = vector.load %arg7[%c0_39, %c0_40] : memref<9x16xf32, #tpu.memory_space<vmem>>, vector<1x16xf32>
    %72 = vector.broadcast %71 : vector<1x16xf32> to vector<5x16xf32>
    %73 = arith.mulf %70, %72 : vector<5x16xf32>
    %c9_41 = arith.constant 9 : index
    %c0_42 = arith.constant 0 : index
    %74 = vector.load %arg12[%c9_41, %c0_42] : memref<40x16xf32, #tpu.memory_space<vmem>>, vector<5x16xf32>
    %c1_43 = arith.constant 1 : index
    %c0_44 = arith.constant 0 : index
    %75 = vector.load %arg7[%c1_43, %c0_44] : memref<9x16xf32, #tpu.memory_space<vmem>>, vector<1x16xf32>
    %76 = vector.broadcast %75 : vector<1x16xf32> to vector<5x16xf32>
    %77 = arith.mulf %74, %76 : vector<5x16xf32>
    %78 = arith.addf %73, %77 : vector<5x16xf32>
    %c1_45 = arith.constant 1 : index
    %c0_46 = arith.constant 0 : index
    %79 = vector.load %arg12[%c1_45, %c0_46] : memref<40x16xf32, #tpu.memory_space<vmem>>, vector<5x16xf32>
    %c2_47 = arith.constant 2 : index
    %c0_48 = arith.constant 0 : index
    %80 = vector.load %arg7[%c2_47, %c0_48] : memref<9x16xf32, #tpu.memory_space<vmem>>, vector<1x16xf32>
    %81 = vector.broadcast %80 : vector<1x16xf32> to vector<5x16xf32>
    %82 = arith.mulf %79, %81 : vector<5x16xf32>
    %83 = arith.addf %78, %82 : vector<5x16xf32>
    %c18_49 = arith.constant 18 : index
    %c0_50 = arith.constant 0 : index
    %84 = vector.load %arg12[%c18_49, %c0_50] : memref<40x16xf32, #tpu.memory_space<vmem>>, vector<5x16xf32>
    %c3_51 = arith.constant 3 : index
    %c0_52 = arith.constant 0 : index
    %85 = vector.load %arg7[%c3_51, %c0_52] : memref<9x16xf32, #tpu.memory_space<vmem>>, vector<1x16xf32>
    %86 = vector.broadcast %85 : vector<1x16xf32> to vector<5x16xf32>
    %87 = arith.mulf %84, %86 : vector<5x16xf32>
    %88 = arith.addf %83, %87 : vector<5x16xf32>
    %c27_53 = arith.constant 27 : index
    %c0_54 = arith.constant 0 : index
    %89 = vector.load %arg12[%c27_53, %c0_54] : memref<40x16xf32, #tpu.memory_space<vmem>>, vector<5x16xf32>
    %c4_55 = arith.constant 4 : index
    %c0_56 = arith.constant 0 : index
    %90 = vector.load %arg7[%c4_55, %c0_56] : memref<9x16xf32, #tpu.memory_space<vmem>>, vector<1x16xf32>
    %91 = vector.broadcast %90 : vector<1x16xf32> to vector<5x16xf32>
    %92 = arith.mulf %89, %91 : vector<5x16xf32>
    %93 = arith.addf %88, %92 : vector<5x16xf32>
    %c19_57 = arith.constant 19 : index
    %c0_58 = arith.constant 0 : index
    %94 = vector.load %arg12[%c19_57, %c0_58] : memref<40x16xf32, #tpu.memory_space<vmem>>, vector<5x16xf32>
    %c5_59 = arith.constant 5 : index
    %c0_60 = arith.constant 0 : index
    %95 = vector.load %arg7[%c5_59, %c0_60] : memref<9x16xf32, #tpu.memory_space<vmem>>, vector<1x16xf32>
    %96 = vector.broadcast %95 : vector<1x16xf32> to vector<5x16xf32>
    %97 = arith.mulf %94, %96 : vector<5x16xf32>
    %98 = arith.addf %93, %97 : vector<5x16xf32>
    %c3_61 = arith.constant 3 : index
    %c0_62 = arith.constant 0 : index
    %99 = vector.load %arg12[%c3_61, %c0_62] : memref<40x16xf32, #tpu.memory_space<vmem>>, vector<5x16xf32>
    %c6_63 = arith.constant 6 : index
    %c0_64 = arith.constant 0 : index
    %100 = vector.load %arg7[%c6_63, %c0_64] : memref<9x16xf32, #tpu.memory_space<vmem>>, vector<1x16xf32>
    %101 = vector.broadcast %100 : vector<1x16xf32> to vector<5x16xf32>
    %102 = arith.mulf %99, %101 : vector<5x16xf32>
    %103 = arith.addf %98, %102 : vector<5x16xf32>
    %c12_65 = arith.constant 12 : index
    %c0_66 = arith.constant 0 : index
    %104 = vector.load %arg12[%c12_65, %c0_66] : memref<40x16xf32, #tpu.memory_space<vmem>>, vector<5x16xf32>
    %c7_67 = arith.constant 7 : index
    %c0_68 = arith.constant 0 : index
    %105 = vector.load %arg7[%c7_67, %c0_68] : memref<9x16xf32, #tpu.memory_space<vmem>>, vector<1x16xf32>
    %106 = vector.broadcast %105 : vector<1x16xf32> to vector<5x16xf32>
    %107 = arith.mulf %104, %106 : vector<5x16xf32>
    %108 = arith.addf %103, %107 : vector<5x16xf32>
    %c4_69 = arith.constant 4 : index
    %c0_70 = arith.constant 0 : index
    %109 = vector.load %arg12[%c4_69, %c0_70] : memref<40x16xf32, #tpu.memory_space<vmem>>, vector<5x16xf32>
    %c8_71 = arith.constant 8 : index
    %c0_72 = arith.constant 0 : index
    %110 = vector.load %arg7[%c8_71, %c0_72] : memref<9x16xf32, #tpu.memory_space<vmem>>, vector<1x16xf32>
    %111 = vector.broadcast %110 : vector<1x16xf32> to vector<5x16xf32>
    %112 = arith.mulf %109, %111 : vector<5x16xf32>
    %113 = arith.addf %108, %112 : vector<5x16xf32>
    %c0_73 = arith.constant 0 : index
    %c0_74 = arith.constant 0 : index
    %114 = vector.load %arg8[%c0_73, %c0_74] : memref<1x16xf32, #tpu.memory_space<vmem>>, vector<1x16xf32>
    %115 = vector.broadcast %114 : vector<1x16xf32> to vector<5x16xf32>
    %116 = arith.addf %113, %115 : vector<5x16xf32>
    %c0_75 = arith.constant 0 : index
    %c0_76 = arith.constant 0 : index
    %117 = vector.load %arg9[%c0_75, %c0_76] : memref<16x16xbf16, #tpu.memory_space<vmem>>, vector<16x16xbf16>
    %118 = arith.truncf %116 : vector<5x16xf32> to vector<5x16xbf16>
    %cst_77 = arith.constant dense<0.000000e+00> : vector<5x16xf32>
    %119 = tpu.matmul %118, %117, %cst_77 {dimension_numbers = #tpu.dot_dimension_numbers<[1], [0], [0], [1], [0, 0, 1, 1], [], []>} : vector<5x16xbf16>, vector<16x16xbf16>, vector<5x16xf32> -> vector<5x16xf32>
    %c0_78 = arith.constant 0 : index
    %c0_79 = arith.constant 0 : index
    %120 = vector.load %arg10[%c0_78, %c0_79] : memref<1x16xf32, #tpu.memory_space<vmem>>, vector<1x16xf32>
    %121 = vector.broadcast %120 : vector<1x16xf32> to vector<5x16xf32>
    %122 = arith.addf %119, %121 : vector<5x16xf32>
    %cst_80 = arith.constant 0.000000e+00 : f32
    %123 = vector.broadcast %cst_80 : f32 to vector<5x16xf32>
    %124 = arith.maximumf %122, %123 : vector<5x16xf32>
    %125 = tpu.concatenate %63, %124 in 1 : vector<5x16xf32>, vector<5x16xf32> -> vector<5x32xf32>
    %126 = arith.truncf %125 : vector<5x32xf32> to vector<5x32xbf16>
    %c0_81 = arith.constant 0 : index
    %c0_82 = arith.constant 0 : index
    %127 = vector.load %arg11[%c0_81, %c0_82] : memref<16x32xbf16, #tpu.memory_space<vmem>>, vector<5x32xbf16>
    tpu.vector_store %arg11[%c0_81, %c0_82], %126 {strides = array<i32>} : memref<16x32xbf16, #tpu.memory_space<vmem>>, vector<5x32xbf16>,
    return
  }
  func.func @transform_0(%arg0: i32) -> (i32, i32) {
    %c0_i32 = arith.constant 0 : i32
    %c0_i32_0 = arith.constant 0 : i32
    return %arg0, %c0_i32 : i32, i32
  }
  func.func @transform_1(%arg0: i32) -> (i32, i32) {
    %c0_i32 = arith.constant 0 : i32
    %c0_i32_0 = arith.constant 0 : i32
    %c0_i32_1 = arith.constant 0 : i32
    return %c0_i32, %c0_i32_0 : i32, i32
  }
  func.func @transform_2(%arg0: i32) -> (i32, i32) {
    %c0_i32 = arith.constant 0 : i32
    %c0_i32_0 = arith.constant 0 : i32
    %c0_i32_1 = arith.constant 0 : i32
    return %c0_i32, %c0_i32_0 : i32, i32
  }
  func.func @transform_3(%arg0: i32) -> (i32, i32) {
    %c0_i32 = arith.constant 0 : i32
    %c0_i32_0 = arith.constant 0 : i32
    %c0_i32_1 = arith.constant 0 : i32
    return %c0_i32, %c0_i32_0 : i32, i32
  }
  func.func @transform_4(%arg0: i32) -> (i32, i32) {
    %c0_i32 = arith.constant 0 : i32
    %c0_i32_0 = arith.constant 0 : i32
    %c0_i32_1 = arith.constant 0 : i32
    return %c0_i32, %c0_i32_0 : i32, i32
  }
  func.func @transform_5(%arg0: i32) -> (i32, i32) {
    %c0_i32 = arith.constant 0 : i32
    %c0_i32_0 = arith.constant 0 : i32
    %c0_i32_1 = arith.constant 0 : i32
    return %c0_i32, %c0_i32_0 : i32, i32
  }
  func.func @transform_6(%arg0: i32) -> (i32, i32) {
    %c0_i32 = arith.constant 0 : i32
    %c0_i32_0 = arith.constant 0 : i32
    %c0_i32_1 = arith.constant 0 : i32
    return %c0_i32, %c0_i32_0 : i32, i32
  }
  func.func @transform_7(%arg0: i32) -> (i32, i32) {
    %c0_i32 = arith.constant 0 : i32
    %c0_i32_0 = arith.constant 0 : i32
    %c0_i32_1 = arith.constant 0 : i32
    return %c0_i32, %c0_i32_0 : i32, i32
  }
  func.func @transform_8(%arg0: i32) -> (i32, i32) {
    %c0_i32 = arith.constant 0 : i32
    %c0_i32_0 = arith.constant 0 : i32
    %c0_i32_1 = arith.constant 0 : i32
    return %c0_i32, %c0_i32_0 : i32, i32
  }
  func.func @transform_9(%arg0: i32) -> (i32, i32) {
    %c0_i32 = arith.constant 0 : i32
    %c0_i32_0 = arith.constant 0 : i32
    %c0_i32_1 = arith.constant 0 : i32
    return %c0_i32, %c0_i32_0 : i32, i32
  }
  func.func @transform_10(%arg0: i32) -> (i32, i32) {
    %c0_i32 = arith.constant 0 : i32
    %c0_i32_0 = arith.constant 0 : i32
    return %arg0, %c0_i32 : i32, i32
  }
}

module attributes {stable_mosaic.version = 11 : i64} {
  func.func @_block_s1_kernel(%arg0: i32, %arg1: memref<16x17xbf16, #tpu.memory_space<vmem>>, %arg2: memref<17x16xbf16, #tpu.memory_space<vmem>>, %arg3: memref<9x16xf32, #tpu.memory_space<vmem>>, %arg4: memref<1x16xf32, #tpu.memory_space<vmem>>, %arg5: memref<16x16xbf16, #tpu.memory_space<vmem>>, %arg6: memref<1x16xf32, #tpu.memory_space<vmem>>, %arg7: memref<16x16xbf16, #tpu.memory_space<vmem>>, %arg8: memref<16x16xf32, #tpu.memory_space<vmem>>) attributes {dimension_semantics = [#tpu.dimension_semantics<parallel>], iteration_bounds = array<i64: 2>, scalar_prefetch = 0 : i64, scratch_operands = 1 : i64, tpu.core_type = #tpu.core_type<tc>, window_params = [{transform_indices = @transform_0, window_bounds = array<i64: 16, 17>}, {pipeline_mode = #tpu.pipeline_mode<synchronous>, transform_indices = @transform_1, window_bounds = array<i64: 17, 16>}, {pipeline_mode = #tpu.pipeline_mode<synchronous>, transform_indices = @transform_2, window_bounds = array<i64: 9, 16>}, {pipeline_mode = #tpu.pipeline_mode<synchronous>, transform_indices = @transform_3, window_bounds = array<i64: 1, 16>}, {pipeline_mode = #tpu.pipeline_mode<synchronous>, transform_indices = @transform_4, window_bounds = array<i64: 16, 16>}, {pipeline_mode = #tpu.pipeline_mode<synchronous>, transform_indices = @transform_5, window_bounds = array<i64: 1, 16>}, {transform_indices = @transform_6, window_bounds = array<i64: 16, 16>}]} {
    %c0 = arith.constant 0 : index
    %c0_0 = arith.constant 0 : index
    %0 = vector.load %arg1[%c0, %c0_0] : memref<16x17xbf16, #tpu.memory_space<vmem>>, vector<16x17xbf16>
    %c0_1 = arith.constant 0 : index
    %c0_2 = arith.constant 0 : index
    %1 = vector.load %arg2[%c0_1, %c0_2] : memref<17x16xbf16, #tpu.memory_space<vmem>>, vector<17x16xbf16>
    %cst = arith.constant dense<0.000000e+00> : vector<16x16xf32>
    %2 = tpu.matmul %0, %1, %cst {dimension_numbers = #tpu.dot_dimension_numbers<[1], [0], [0], [1], [0, 0, 1, 1], [], []>} : vector<16x17xbf16>, vector<17x16xbf16>, vector<16x16xf32> -> vector<16x16xf32>
    %cst_3 = arith.constant 0.000000e+00 : f32
    %3 = vector.broadcast %cst_3 : f32 to vector<16x16xf32>
    %4 = arith.maximumf %2, %3 : vector<16x16xf32>
    %c0_4 = arith.constant 0 : index
    %c0_5 = arith.constant 0 : index
    %5 = vector.load %arg8[%c0_4, %c0_5] : memref<16x16xf32, #tpu.memory_space<vmem>>, vector<16x16xf32>
    tpu.vector_store %arg8[%c0_4, %c0_5], %4 {strides = array<i32>} : memref<16x16xf32, #tpu.memory_space<vmem>>, vector<16x16xf32>,
    %c0_6 = arith.constant 0 : index
    %c0_7 = arith.constant 0 : index
    %6 = vector.load %arg8[%c0_6, %c0_7] : memref<16x16xf32, #tpu.memory_space<vmem>>, vector<6x16xf32>
    %c0_8 = arith.constant 0 : index
    %c0_9 = arith.constant 0 : index
    %7 = vector.load %arg3[%c0_8, %c0_9] : memref<9x16xf32, #tpu.memory_space<vmem>>, vector<1x16xf32>
    %8 = vector.broadcast %7 : vector<1x16xf32> to vector<6x16xf32>
    %9 = arith.mulf %6, %8 : vector<6x16xf32>
    %c1 = arith.constant 1 : index
    %c0_10 = arith.constant 0 : index
    %10 = vector.load %arg8[%c1, %c0_10] : memref<16x16xf32, #tpu.memory_space<vmem>>, vector<6x16xf32>
    %c1_11 = arith.constant 1 : index
    %c0_12 = arith.constant 0 : index
    %11 = vector.load %arg3[%c1_11, %c0_12] : memref<9x16xf32, #tpu.memory_space<vmem>>, vector<1x16xf32>
    %12 = vector.broadcast %11 : vector<1x16xf32> to vector<6x16xf32>
    %13 = arith.mulf %10, %12 : vector<6x16xf32>
    %14 = arith.addf %9, %13 : vector<6x16xf32>
    %c2 = arith.constant 2 : index
    %c0_13 = arith.constant 0 : index
    %15 = vector.load %arg8[%c2, %c0_13] : memref<16x16xf32, #tpu.memory_space<vmem>>, vector<6x16xf32>
    %c2_14 = arith.constant 2 : index
    %c0_15 = arith.constant 0 : index
    %16 = vector.load %arg3[%c2_14, %c0_15] : memref<9x16xf32, #tpu.memory_space<vmem>>, vector<1x16xf32>
    %17 = vector.broadcast %16 : vector<1x16xf32> to vector<6x16xf32>
    %18 = arith.mulf %15, %17 : vector<6x16xf32>
    %19 = arith.addf %14, %18 : vector<6x16xf32>
    %c4 = arith.constant 4 : index
    %c0_16 = arith.constant 0 : index
    %20 = vector.load %arg8[%c4, %c0_16] : memref<16x16xf32, #tpu.memory_space<vmem>>, vector<6x16xf32>
    %c3 = arith.constant 3 : index
    %c0_17 = arith.constant 0 : index
    %21 = vector.load %arg3[%c3, %c0_17] : memref<9x16xf32, #tpu.memory_space<vmem>>, vector<1x16xf32>
    %22 = vector.broadcast %21 : vector<1x16xf32> to vector<6x16xf32>
    %23 = arith.mulf %20, %22 : vector<6x16xf32>
    %24 = arith.addf %19, %23 : vector<6x16xf32>
    %c5 = arith.constant 5 : index
    %c0_18 = arith.constant 0 : index
    %25 = vector.load %arg8[%c5, %c0_18] : memref<16x16xf32, #tpu.memory_space<vmem>>, vector<6x16xf32>
    %c4_19 = arith.constant 4 : index
    %c0_20 = arith.constant 0 : index
    %26 = vector.load %arg3[%c4_19, %c0_20] : memref<9x16xf32, #tpu.memory_space<vmem>>, vector<1x16xf32>
    %27 = vector.broadcast %26 : vector<1x16xf32> to vector<6x16xf32>
    %28 = arith.mulf %25, %27 : vector<6x16xf32>
    %29 = arith.addf %24, %28 : vector<6x16xf32>
    %c6 = arith.constant 6 : index
    %c0_21 = arith.constant 0 : index
    %30 = vector.load %arg8[%c6, %c0_21] : memref<16x16xf32, #tpu.memory_space<vmem>>, vector<6x16xf32>
    %c5_22 = arith.constant 5 : index
    %c0_23 = arith.constant 0 : index
    %31 = vector.load %arg3[%c5_22, %c0_23] : memref<9x16xf32, #tpu.memory_space<vmem>>, vector<1x16xf32>
    %32 = vector.broadcast %31 : vector<1x16xf32> to vector<6x16xf32>
    %33 = arith.mulf %30, %32 : vector<6x16xf32>
    %34 = arith.addf %29, %33 : vector<6x16xf32>
    %c8 = arith.constant 8 : index
    %c0_24 = arith.constant 0 : index
    %35 = vector.load %arg8[%c8, %c0_24] : memref<16x16xf32, #tpu.memory_space<vmem>>, vector<6x16xf32>
    %c6_25 = arith.constant 6 : index
    %c0_26 = arith.constant 0 : index
    %36 = vector.load %arg3[%c6_25, %c0_26] : memref<9x16xf32, #tpu.memory_space<vmem>>, vector<1x16xf32>
    %37 = vector.broadcast %36 : vector<1x16xf32> to vector<6x16xf32>
    %38 = arith.mulf %35, %37 : vector<6x16xf32>
    %39 = arith.addf %34, %38 : vector<6x16xf32>
    %c9 = arith.constant 9 : index
    %c0_27 = arith.constant 0 : index
    %40 = vector.load %arg8[%c9, %c0_27] : memref<16x16xf32, #tpu.memory_space<vmem>>, vector<6x16xf32>
    %c7 = arith.constant 7 : index
    %c0_28 = arith.constant 0 : index
    %41 = vector.load %arg3[%c7, %c0_28] : memref<9x16xf32, #tpu.memory_space<vmem>>, vector<1x16xf32>
    %42 = vector.broadcast %41 : vector<1x16xf32> to vector<6x16xf32>
    %43 = arith.mulf %40, %42 : vector<6x16xf32>
    %44 = arith.addf %39, %43 : vector<6x16xf32>
    %c10 = arith.constant 10 : index
    %c0_29 = arith.constant 0 : index
    %45 = vector.load %arg8[%c10, %c0_29] : memref<16x16xf32, #tpu.memory_space<vmem>>, vector<6x16xf32>
    %c8_30 = arith.constant 8 : index
    %c0_31 = arith.constant 0 : index
    %46 = vector.load %arg3[%c8_30, %c0_31] : memref<9x16xf32, #tpu.memory_space<vmem>>, vector<1x16xf32>
    %47 = vector.broadcast %46 : vector<1x16xf32> to vector<6x16xf32>
    %48 = arith.mulf %45, %47 : vector<6x16xf32>
    %49 = arith.addf %44, %48 : vector<6x16xf32>
    %c0_32 = arith.constant 0 : index
    %c0_33 = arith.constant 0 : index
    %50 = vector.load %arg4[%c0_32, %c0_33] : memref<1x16xf32, #tpu.memory_space<vmem>>, vector<1x16xf32>
    %51 = vector.broadcast %50 : vector<1x16xf32> to vector<6x16xf32>
    %52 = arith.addf %49, %51 : vector<6x16xf32>
    %c0_34 = arith.constant 0 : index
    %c0_35 = arith.constant 0 : index
    %53 = vector.load %arg5[%c0_34, %c0_35] : memref<16x16xbf16, #tpu.memory_space<vmem>>, vector<16x16xbf16>
    %54 = arith.truncf %52 : vector<6x16xf32> to vector<6x16xbf16>
    %cst_36 = arith.constant dense<0.000000e+00> : vector<6x16xf32>
    %55 = tpu.matmul %54, %53, %cst_36 {dimension_numbers = #tpu.dot_dimension_numbers<[1], [0], [0], [1], [0, 0, 1, 1], [], []>} : vector<6x16xbf16>, vector<16x16xbf16>, vector<6x16xf32> -> vector<6x16xf32>
    %c0_37 = arith.constant 0 : index
    %c0_38 = arith.constant 0 : index
    %56 = vector.load %arg6[%c0_37, %c0_38] : memref<1x16xf32, #tpu.memory_space<vmem>>, vector<1x16xf32>
    %57 = vector.broadcast %56 : vector<1x16xf32> to vector<6x16xf32>
    %58 = arith.addf %55, %57 : vector<6x16xf32>
    %cst_39 = arith.constant 0.000000e+00 : f32
    %59 = vector.broadcast %cst_39 : f32 to vector<6x16xf32>
    %60 = arith.maximumf %58, %59 : vector<6x16xf32>
    %61 = arith.truncf %60 : vector<6x16xf32> to vector<6x16xbf16>
    %c5_40 = arith.constant 5 : index
    %c0_41 = arith.constant 0 : index
    %62 = vector.load %arg7[%c5_40, %c0_41] : memref<16x16xbf16, #tpu.memory_space<vmem>>, vector<6x16xbf16>
    tpu.vector_store %arg7[%c5_40, %c0_41], %61 {strides = array<i32>} : memref<16x16xbf16, #tpu.memory_space<vmem>>, vector<6x16xbf16>,
    return
  }
  func.func @transform_0(%arg0: i32) -> (i32, i32) {
    %c0_i32 = arith.constant 0 : i32
    %c0_i32_0 = arith.constant 0 : i32
    return %arg0, %c0_i32 : i32, i32
  }
  func.func @transform_1(%arg0: i32) -> (i32, i32) {
    %c0_i32 = arith.constant 0 : i32
    %c0_i32_0 = arith.constant 0 : i32
    %c0_i32_1 = arith.constant 0 : i32
    return %c0_i32, %c0_i32_0 : i32, i32
  }
  func.func @transform_2(%arg0: i32) -> (i32, i32) {
    %c0_i32 = arith.constant 0 : i32
    %c0_i32_0 = arith.constant 0 : i32
    %c0_i32_1 = arith.constant 0 : i32
    return %c0_i32, %c0_i32_0 : i32, i32
  }
  func.func @transform_3(%arg0: i32) -> (i32, i32) {
    %c0_i32 = arith.constant 0 : i32
    %c0_i32_0 = arith.constant 0 : i32
    %c0_i32_1 = arith.constant 0 : i32
    return %c0_i32, %c0_i32_0 : i32, i32
  }
  func.func @transform_4(%arg0: i32) -> (i32, i32) {
    %c0_i32 = arith.constant 0 : i32
    %c0_i32_0 = arith.constant 0 : i32
    %c0_i32_1 = arith.constant 0 : i32
    return %c0_i32, %c0_i32_0 : i32, i32
  }
  func.func @transform_5(%arg0: i32) -> (i32, i32) {
    %c0_i32 = arith.constant 0 : i32
    %c0_i32_0 = arith.constant 0 : i32
    %c0_i32_1 = arith.constant 0 : i32
    return %c0_i32, %c0_i32_0 : i32, i32
  }
  func.func @transform_6(%arg0: i32) -> (i32, i32) {
    %c0_i32 = arith.constant 0 : i32
    %c0_i32_0 = arith.constant 0 : i32
    return %arg0, %c0_i32 : i32, i32
  }
}

module attributes {stable_mosaic.version = 11 : i64} {
  func.func @_block_s2_kernel(%arg0: i32, %arg1: memref<16x33xbf16, #tpu.memory_space<vmem>>, %arg2: memref<9x33xf32, #tpu.memory_space<vmem>>, %arg3: memref<1x33xf32, #tpu.memory_space<vmem>>, %arg4: memref<33x32xbf16, #tpu.memory_space<vmem>>, %arg5: memref<1x32xf32, #tpu.memory_space<vmem>>, %arg6: memref<33x32xbf16, #tpu.memory_space<vmem>>, %arg7: memref<9x32xf32, #tpu.memory_space<vmem>>, %arg8: memref<1x32xf32, #tpu.memory_space<vmem>>, %arg9: memref<32x32xbf16, #tpu.memory_space<vmem>>, %arg10: memref<1x32xf32, #tpu.memory_space<vmem>>, %arg11: memref<8x64xbf16, #tpu.memory_space<vmem>>, %arg12: memref<16x32xf32, #tpu.memory_space<vmem>>) attributes {dimension_semantics = [#tpu.dimension_semantics<parallel>], iteration_bounds = array<i64: 2>, scalar_prefetch = 0 : i64, scratch_operands = 1 : i64, tpu.core_type = #tpu.core_type<tc>, window_params = [{transform_indices = @transform_0, window_bounds = array<i64: 16, 33>}, {pipeline_mode = #tpu.pipeline_mode<synchronous>, transform_indices = @transform_1, window_bounds = array<i64: 9, 33>}, {pipeline_mode = #tpu.pipeline_mode<synchronous>, transform_indices = @transform_2, window_bounds = array<i64: 1, 33>}, {pipeline_mode = #tpu.pipeline_mode<synchronous>, transform_indices = @transform_3, window_bounds = array<i64: 33, 32>}, {pipeline_mode = #tpu.pipeline_mode<synchronous>, transform_indices = @transform_4, window_bounds = array<i64: 1, 32>}, {pipeline_mode = #tpu.pipeline_mode<synchronous>, transform_indices = @transform_5, window_bounds = array<i64: 33, 32>}, {pipeline_mode = #tpu.pipeline_mode<synchronous>, transform_indices = @transform_6, window_bounds = array<i64: 9, 32>}, {pipeline_mode = #tpu.pipeline_mode<synchronous>, transform_indices = @transform_7, window_bounds = array<i64: 1, 32>}, {pipeline_mode = #tpu.pipeline_mode<synchronous>, transform_indices = @transform_8, window_bounds = array<i64: 32, 32>}, {pipeline_mode = #tpu.pipeline_mode<synchronous>, transform_indices = @transform_9, window_bounds = array<i64: 1, 32>}, {transform_indices = @transform_10, window_bounds = array<i64: 8, 64>}]} {
    %c0 = arith.constant 0 : index
    %c0_0 = arith.constant 0 : index
    %0 = vector.load %arg1[%c0, %c0_0] : memref<16x33xbf16, #tpu.memory_space<vmem>>, vector<1x33xbf16>
    %1 = arith.extf %0 : vector<1x33xbf16> to vector<1x33xf32>
    %c0_1 = arith.constant 0 : index
    %c0_2 = arith.constant 0 : index
    %2 = vector.load %arg2[%c0_1, %c0_2] : memref<9x33xf32, #tpu.memory_space<vmem>>, vector<1x33xf32>
    %3 = arith.mulf %1, %2 : vector<1x33xf32>
    %c4 = arith.constant 4 : index
    %c0_3 = arith.constant 0 : index
    %4 = vector.load %arg1[%c4, %c0_3] : memref<16x33xbf16, #tpu.memory_space<vmem>>, vector<1x33xbf16>
    %5 = arith.extf %4 : vector<1x33xbf16> to vector<1x33xf32>
    %c1 = arith.constant 1 : index
    %c0_4 = arith.constant 0 : index
    %6 = vector.load %arg2[%c1, %c0_4] : memref<9x33xf32, #tpu.memory_space<vmem>>, vector<1x33xf32>
    %7 = arith.mulf %5, %6 : vector<1x33xf32>
    %8 = arith.addf %3, %7 : vector<1x33xf32>
    %c1_5 = arith.constant 1 : index
    %c0_6 = arith.constant 0 : index
    %9 = vector.load %arg1[%c1_5, %c0_6] : memref<16x33xbf16, #tpu.memory_space<vmem>>, vector<1x33xbf16>
    %10 = arith.extf %9 : vector<1x33xbf16> to vector<1x33xf32>
    %c2 = arith.constant 2 : index
    %c0_7 = arith.constant 0 : index
    %11 = vector.load %arg2[%c2, %c0_7] : memref<9x33xf32, #tpu.memory_space<vmem>>, vector<1x33xf32>
    %12 = arith.mulf %10, %11 : vector<1x33xf32>
    %13 = arith.addf %8, %12 : vector<1x33xf32>
    %c8 = arith.constant 8 : index
    %c0_8 = arith.constant 0 : index
    %14 = vector.load %arg1[%c8, %c0_8] : memref<16x33xbf16, #tpu.memory_space<vmem>>, vector<1x33xbf16>
    %15 = arith.extf %14 : vector<1x33xbf16> to vector<1x33xf32>
    %c3 = arith.constant 3 : index
    %c0_9 = arith.constant 0 : index
    %16 = vector.load %arg2[%c3, %c0_9] : memref<9x33xf32, #tpu.memory_space<vmem>>, vector<1x33xf32>
    %17 = arith.mulf %15, %16 : vector<1x33xf32>
    %18 = arith.addf %13, %17 : vector<1x33xf32>
    %c12 = arith.constant 12 : index
    %c0_10 = arith.constant 0 : index
    %19 = vector.load %arg1[%c12, %c0_10] : memref<16x33xbf16, #tpu.memory_space<vmem>>, vector<1x33xbf16>
    %20 = arith.extf %19 : vector<1x33xbf16> to vector<1x33xf32>
    %c4_11 = arith.constant 4 : index
    %c0_12 = arith.constant 0 : index
    %21 = vector.load %arg2[%c4_11, %c0_12] : memref<9x33xf32, #tpu.memory_space<vmem>>, vector<1x33xf32>
    %22 = arith.mulf %20, %21 : vector<1x33xf32>
    %23 = arith.addf %18, %22 : vector<1x33xf32>
    %c9 = arith.constant 9 : index
    %c0_13 = arith.constant 0 : index
    %24 = vector.load %arg1[%c9, %c0_13] : memref<16x33xbf16, #tpu.memory_space<vmem>>, vector<1x33xbf16>
    %25 = arith.extf %24 : vector<1x33xbf16> to vector<1x33xf32>
    %c5 = arith.constant 5 : index
    %c0_14 = arith.constant 0 : index
    %26 = vector.load %arg2[%c5, %c0_14] : memref<9x33xf32, #tpu.memory_space<vmem>>, vector<1x33xf32>
    %27 = arith.mulf %25, %26 : vector<1x33xf32>
    %28 = arith.addf %23, %27 : vector<1x33xf32>
    %c2_15 = arith.constant 2 : index
    %c0_16 = arith.constant 0 : index
    %29 = vector.load %arg1[%c2_15, %c0_16] : memref<16x33xbf16, #tpu.memory_space<vmem>>, vector<1x33xbf16>
    %30 = arith.extf %29 : vector<1x33xbf16> to vector<1x33xf32>
    %c6 = arith.constant 6 : index
    %c0_17 = arith.constant 0 : index
    %31 = vector.load %arg2[%c6, %c0_17] : memref<9x33xf32, #tpu.memory_space<vmem>>, vector<1x33xf32>
    %32 = arith.mulf %30, %31 : vector<1x33xf32>
    %33 = arith.addf %28, %32 : vector<1x33xf32>
    %c6_18 = arith.constant 6 : index
    %c0_19 = arith.constant 0 : index
    %34 = vector.load %arg1[%c6_18, %c0_19] : memref<16x33xbf16, #tpu.memory_space<vmem>>, vector<1x33xbf16>
    %35 = arith.extf %34 : vector<1x33xbf16> to vector<1x33xf32>
    %c7 = arith.constant 7 : index
    %c0_20 = arith.constant 0 : index
    %36 = vector.load %arg2[%c7, %c0_20] : memref<9x33xf32, #tpu.memory_space<vmem>>, vector<1x33xf32>
    %37 = arith.mulf %35, %36 : vector<1x33xf32>
    %38 = arith.addf %33, %37 : vector<1x33xf32>
    %c3_21 = arith.constant 3 : index
    %c0_22 = arith.constant 0 : index
    %39 = vector.load %arg1[%c3_21, %c0_22] : memref<16x33xbf16, #tpu.memory_space<vmem>>, vector<1x33xbf16>
    %40 = arith.extf %39 : vector<1x33xbf16> to vector<1x33xf32>
    %c8_23 = arith.constant 8 : index
    %c0_24 = arith.constant 0 : index
    %41 = vector.load %arg2[%c8_23, %c0_24] : memref<9x33xf32, #tpu.memory_space<vmem>>, vector<1x33xf32>
    %42 = arith.mulf %40, %41 : vector<1x33xf32>
    %43 = arith.addf %38, %42 : vector<1x33xf32>
    %c0_25 = arith.constant 0 : index
    %c0_26 = arith.constant 0 : index
    %44 = vector.load %arg3[%c0_25, %c0_26] : memref<1x33xf32, #tpu.memory_space<vmem>>, vector<1x33xf32>
    %45 = arith.addf %43, %44 : vector<1x33xf32>
    %c0_27 = arith.constant 0 : index
    %c0_28 = arith.constant 0 : index
    %46 = vector.load %arg4[%c0_27, %c0_28] : memref<33x32xbf16, #tpu.memory_space<vmem>>, vector<33x32xbf16>
    %47 = arith.truncf %45 : vector<1x33xf32> to vector<1x33xbf16>
    %cst = arith.constant dense<0.000000e+00> : vector<1x32xf32>
    %48 = tpu.matmul %47, %46, %cst {dimension_numbers = #tpu.dot_dimension_numbers<[1], [0], [0], [1], [0, 0, 1, 1], [], []>} : vector<1x33xbf16>, vector<33x32xbf16>, vector<1x32xf32> -> vector<1x32xf32>
    %c0_29 = arith.constant 0 : index
    %c0_30 = arith.constant 0 : index
    %49 = vector.load %arg5[%c0_29, %c0_30] : memref<1x32xf32, #tpu.memory_space<vmem>>, vector<1x32xf32>
    %50 = arith.addf %48, %49 : vector<1x32xf32>
    %cst_31 = arith.constant 0.000000e+00 : f32
    %51 = vector.broadcast %cst_31 : f32 to vector<1x32xf32>
    %52 = arith.maximumf %50, %51 : vector<1x32xf32>
    %c0_32 = arith.constant 0 : index
    %c0_33 = arith.constant 0 : index
    %53 = vector.load %arg1[%c0_32, %c0_33] : memref<16x33xbf16, #tpu.memory_space<vmem>>, vector<16x33xbf16>
    %c0_34 = arith.constant 0 : index
    %c0_35 = arith.constant 0 : index
    %54 = vector.load %arg6[%c0_34, %c0_35] : memref<33x32xbf16, #tpu.memory_space<vmem>>, vector<33x32xbf16>
    %cst_36 = arith.constant dense<0.000000e+00> : vector<16x32xf32>
    %55 = tpu.matmul %53, %54, %cst_36 {dimension_numbers = #tpu.dot_dimension_numbers<[1], [0], [0], [1], [0, 0, 1, 1], [], []>} : vector<16x33xbf16>, vector<33x32xbf16>, vector<16x32xf32> -> vector<16x32xf32>
    %cst_37 = arith.constant 0.000000e+00 : f32
    %56 = vector.broadcast %cst_37 : f32 to vector<16x32xf32>
    %57 = arith.maximumf %55, %56 : vector<16x32xf32>
    %c0_38 = arith.constant 0 : index
    %c0_39 = arith.constant 0 : index
    %58 = vector.load %arg12[%c0_38, %c0_39] : memref<16x32xf32, #tpu.memory_space<vmem>>, vector<16x32xf32>
    tpu.vector_store %arg12[%c0_38, %c0_39], %57 {strides = array<i32>} : memref<16x32xf32, #tpu.memory_space<vmem>>, vector<16x32xf32>,
    %c0_40 = arith.constant 0 : index
    %c0_41 = arith.constant 0 : index
    %59 = vector.load %arg12[%c0_40, %c0_41] : memref<16x32xf32, #tpu.memory_space<vmem>>, vector<1x32xf32>
    %c0_42 = arith.constant 0 : index
    %c0_43 = arith.constant 0 : index
    %60 = vector.load %arg7[%c0_42, %c0_43] : memref<9x32xf32, #tpu.memory_space<vmem>>, vector<1x32xf32>
    %61 = arith.mulf %59, %60 : vector<1x32xf32>
    %c4_44 = arith.constant 4 : index
    %c0_45 = arith.constant 0 : index
    %62 = vector.load %arg12[%c4_44, %c0_45] : memref<16x32xf32, #tpu.memory_space<vmem>>, vector<1x32xf32>
    %c1_46 = arith.constant 1 : index
    %c0_47 = arith.constant 0 : index
    %63 = vector.load %arg7[%c1_46, %c0_47] : memref<9x32xf32, #tpu.memory_space<vmem>>, vector<1x32xf32>
    %64 = arith.mulf %62, %63 : vector<1x32xf32>
    %65 = arith.addf %61, %64 : vector<1x32xf32>
    %c1_48 = arith.constant 1 : index
    %c0_49 = arith.constant 0 : index
    %66 = vector.load %arg12[%c1_48, %c0_49] : memref<16x32xf32, #tpu.memory_space<vmem>>, vector<1x32xf32>
    %c2_50 = arith.constant 2 : index
    %c0_51 = arith.constant 0 : index
    %67 = vector.load %arg7[%c2_50, %c0_51] : memref<9x32xf32, #tpu.memory_space<vmem>>, vector<1x32xf32>
    %68 = arith.mulf %66, %67 : vector<1x32xf32>
    %69 = arith.addf %65, %68 : vector<1x32xf32>
    %c8_52 = arith.constant 8 : index
    %c0_53 = arith.constant 0 : index
    %70 = vector.load %arg12[%c8_52, %c0_53] : memref<16x32xf32, #tpu.memory_space<vmem>>, vector<1x32xf32>
    %c3_54 = arith.constant 3 : index
    %c0_55 = arith.constant 0 : index
    %71 = vector.load %arg7[%c3_54, %c0_55] : memref<9x32xf32, #tpu.memory_space<vmem>>, vector<1x32xf32>
    %72 = arith.mulf %70, %71 : vector<1x32xf32>
    %73 = arith.addf %69, %72 : vector<1x32xf32>
    %c12_56 = arith.constant 12 : index
    %c0_57 = arith.constant 0 : index
    %74 = vector.load %arg12[%c12_56, %c0_57] : memref<16x32xf32, #tpu.memory_space<vmem>>, vector<1x32xf32>
    %c4_58 = arith.constant 4 : index
    %c0_59 = arith.constant 0 : index
    %75 = vector.load %arg7[%c4_58, %c0_59] : memref<9x32xf32, #tpu.memory_space<vmem>>, vector<1x32xf32>
    %76 = arith.mulf %74, %75 : vector<1x32xf32>
    %77 = arith.addf %73, %76 : vector<1x32xf32>
    %c9_60 = arith.constant 9 : index
    %c0_61 = arith.constant 0 : index
    %78 = vector.load %arg12[%c9_60, %c0_61] : memref<16x32xf32, #tpu.memory_space<vmem>>, vector<1x32xf32>
    %c5_62 = arith.constant 5 : index
    %c0_63 = arith.constant 0 : index
    %79 = vector.load %arg7[%c5_62, %c0_63] : memref<9x32xf32, #tpu.memory_space<vmem>>, vector<1x32xf32>
    %80 = arith.mulf %78, %79 : vector<1x32xf32>
    %81 = arith.addf %77, %80 : vector<1x32xf32>
    %c2_64 = arith.constant 2 : index
    %c0_65 = arith.constant 0 : index
    %82 = vector.load %arg12[%c2_64, %c0_65] : memref<16x32xf32, #tpu.memory_space<vmem>>, vector<1x32xf32>
    %c6_66 = arith.constant 6 : index
    %c0_67 = arith.constant 0 : index
    %83 = vector.load %arg7[%c6_66, %c0_67] : memref<9x32xf32, #tpu.memory_space<vmem>>, vector<1x32xf32>
    %84 = arith.mulf %82, %83 : vector<1x32xf32>
    %85 = arith.addf %81, %84 : vector<1x32xf32>
    %c6_68 = arith.constant 6 : index
    %c0_69 = arith.constant 0 : index
    %86 = vector.load %arg12[%c6_68, %c0_69] : memref<16x32xf32, #tpu.memory_space<vmem>>, vector<1x32xf32>
    %c7_70 = arith.constant 7 : index
    %c0_71 = arith.constant 0 : index
    %87 = vector.load %arg7[%c7_70, %c0_71] : memref<9x32xf32, #tpu.memory_space<vmem>>, vector<1x32xf32>
    %88 = arith.mulf %86, %87 : vector<1x32xf32>
    %89 = arith.addf %85, %88 : vector<1x32xf32>
    %c3_72 = arith.constant 3 : index
    %c0_73 = arith.constant 0 : index
    %90 = vector.load %arg12[%c3_72, %c0_73] : memref<16x32xf32, #tpu.memory_space<vmem>>, vector<1x32xf32>
    %c8_74 = arith.constant 8 : index
    %c0_75 = arith.constant 0 : index
    %91 = vector.load %arg7[%c8_74, %c0_75] : memref<9x32xf32, #tpu.memory_space<vmem>>, vector<1x32xf32>
    %92 = arith.mulf %90, %91 : vector<1x32xf32>
    %93 = arith.addf %89, %92 : vector<1x32xf32>
    %c0_76 = arith.constant 0 : index
    %c0_77 = arith.constant 0 : index
    %94 = vector.load %arg8[%c0_76, %c0_77] : memref<1x32xf32, #tpu.memory_space<vmem>>, vector<1x32xf32>
    %95 = arith.addf %93, %94 : vector<1x32xf32>
    %c0_78 = arith.constant 0 : index
    %c0_79 = arith.constant 0 : index
    %96 = vector.load %arg9[%c0_78, %c0_79] : memref<32x32xbf16, #tpu.memory_space<vmem>>, vector<32x32xbf16>
    %97 = arith.truncf %95 : vector<1x32xf32> to vector<1x32xbf16>
    %cst_80 = arith.constant dense<0.000000e+00> : vector<1x32xf32>
    %98 = tpu.matmul %97, %96, %cst_80 {dimension_numbers = #tpu.dot_dimension_numbers<[1], [0], [0], [1], [0, 0, 1, 1], [], []>} : vector<1x32xbf16>, vector<32x32xbf16>, vector<1x32xf32> -> vector<1x32xf32>
    %c0_81 = arith.constant 0 : index
    %c0_82 = arith.constant 0 : index
    %99 = vector.load %arg10[%c0_81, %c0_82] : memref<1x32xf32, #tpu.memory_space<vmem>>, vector<1x32xf32>
    %100 = arith.addf %98, %99 : vector<1x32xf32>
    %cst_83 = arith.constant 0.000000e+00 : f32
    %101 = vector.broadcast %cst_83 : f32 to vector<1x32xf32>
    %102 = arith.maximumf %100, %101 : vector<1x32xf32>
    %103 = tpu.concatenate %52, %102 in 1 : vector<1x32xf32>, vector<1x32xf32> -> vector<1x64xf32>
    %104 = arith.truncf %103 : vector<1x64xf32> to vector<1x64xbf16>
    %c0_84 = arith.constant 0 : index
    %c0_85 = arith.constant 0 : index
    %105 = vector.load %arg11[%c0_84, %c0_85] : memref<8x64xbf16, #tpu.memory_space<vmem>>, vector<1x64xbf16>
    tpu.vector_store %arg11[%c0_84, %c0_85], %104 {strides = array<i32>} : memref<8x64xbf16, #tpu.memory_space<vmem>>, vector<1x64xbf16>,
    return
  }
  func.func @transform_0(%arg0: i32) -> (i32, i32) {
    %c0_i32 = arith.constant 0 : i32
    %c0_i32_0 = arith.constant 0 : i32
    return %arg0, %c0_i32 : i32, i32
  }
  func.func @transform_1(%arg0: i32) -> (i32, i32) {
    %c0_i32 = arith.constant 0 : i32
    %c0_i32_0 = arith.constant 0 : i32
    %c0_i32_1 = arith.constant 0 : i32
    return %c0_i32, %c0_i32_0 : i32, i32
  }
  func.func @transform_2(%arg0: i32) -> (i32, i32) {
    %c0_i32 = arith.constant 0 : i32
    %c0_i32_0 = arith.constant 0 : i32
    %c0_i32_1 = arith.constant 0 : i32
    return %c0_i32, %c0_i32_0 : i32, i32
  }
  func.func @transform_3(%arg0: i32) -> (i32, i32) {
    %c0_i32 = arith.constant 0 : i32
    %c0_i32_0 = arith.constant 0 : i32
    %c0_i32_1 = arith.constant 0 : i32
    return %c0_i32, %c0_i32_0 : i32, i32
  }
  func.func @transform_4(%arg0: i32) -> (i32, i32) {
    %c0_i32 = arith.constant 0 : i32
    %c0_i32_0 = arith.constant 0 : i32
    %c0_i32_1 = arith.constant 0 : i32
    return %c0_i32, %c0_i32_0 : i32, i32
  }
  func.func @transform_5(%arg0: i32) -> (i32, i32) {
    %c0_i32 = arith.constant 0 : i32
    %c0_i32_0 = arith.constant 0 : i32
    %c0_i32_1 = arith.constant 0 : i32
    return %c0_i32, %c0_i32_0 : i32, i32
  }
  func.func @transform_6(%arg0: i32) -> (i32, i32) {
    %c0_i32 = arith.constant 0 : i32
    %c0_i32_0 = arith.constant 0 : i32
    %c0_i32_1 = arith.constant 0 : i32
    return %c0_i32, %c0_i32_0 : i32, i32
  }
  func.func @transform_7(%arg0: i32) -> (i32, i32) {
    %c0_i32 = arith.constant 0 : i32
    %c0_i32_0 = arith.constant 0 : i32
    %c0_i32_1 = arith.constant 0 : i32
    return %c0_i32, %c0_i32_0 : i32, i32
  }
  func.func @transform_8(%arg0: i32) -> (i32, i32) {
    %c0_i32 = arith.constant 0 : i32
    %c0_i32_0 = arith.constant 0 : i32
    %c0_i32_1 = arith.constant 0 : i32
    return %c0_i32, %c0_i32_0 : i32, i32
  }
  func.func @transform_9(%arg0: i32) -> (i32, i32) {
    %c0_i32 = arith.constant 0 : i32
    %c0_i32_0 = arith.constant 0 : i32
    %c0_i32_1 = arith.constant 0 : i32
    return %c0_i32, %c0_i32_0 : i32, i32
  }
  func.func @transform_10(%arg0: i32) -> (i32, i32) {
    %c0_i32 = arith.constant 0 : i32
    %c0_i32_0 = arith.constant 0 : i32
    return %arg0, %c0_i32 : i32, i32
  }
}

module attributes {stable_mosaic.version = 11 : i64} {
  func.func @_block_s1_kernel(%arg0: i32, %arg1: memref<16x33xbf16, #tpu.memory_space<vmem>>, %arg2: memref<33x32xbf16, #tpu.memory_space<vmem>>, %arg3: memref<9x32xf32, #tpu.memory_space<vmem>>, %arg4: memref<1x32xf32, #tpu.memory_space<vmem>>, %arg5: memref<32x32xbf16, #tpu.memory_space<vmem>>, %arg6: memref<1x32xf32, #tpu.memory_space<vmem>>, %arg7: memref<16x32xbf16, #tpu.memory_space<vmem>>, %arg8: memref<16x32xf32, #tpu.memory_space<vmem>>) attributes {dimension_semantics = [#tpu.dimension_semantics<parallel>], iteration_bounds = array<i64: 2>, scalar_prefetch = 0 : i64, scratch_operands = 1 : i64, tpu.core_type = #tpu.core_type<tc>, window_params = [{transform_indices = @transform_0, window_bounds = array<i64: 16, 33>}, {pipeline_mode = #tpu.pipeline_mode<synchronous>, transform_indices = @transform_1, window_bounds = array<i64: 33, 32>}, {pipeline_mode = #tpu.pipeline_mode<synchronous>, transform_indices = @transform_2, window_bounds = array<i64: 9, 32>}, {pipeline_mode = #tpu.pipeline_mode<synchronous>, transform_indices = @transform_3, window_bounds = array<i64: 1, 32>}, {pipeline_mode = #tpu.pipeline_mode<synchronous>, transform_indices = @transform_4, window_bounds = array<i64: 32, 32>}, {pipeline_mode = #tpu.pipeline_mode<synchronous>, transform_indices = @transform_5, window_bounds = array<i64: 1, 32>}, {transform_indices = @transform_6, window_bounds = array<i64: 16, 32>}]} {
    %c0 = arith.constant 0 : index
    %c0_0 = arith.constant 0 : index
    %0 = vector.load %arg1[%c0, %c0_0] : memref<16x33xbf16, #tpu.memory_space<vmem>>, vector<16x33xbf16>
    %c0_1 = arith.constant 0 : index
    %c0_2 = arith.constant 0 : index
    %1 = vector.load %arg2[%c0_1, %c0_2] : memref<33x32xbf16, #tpu.memory_space<vmem>>, vector<33x32xbf16>
    %cst = arith.constant dense<0.000000e+00> : vector<16x32xf32>
    %2 = tpu.matmul %0, %1, %cst {dimension_numbers = #tpu.dot_dimension_numbers<[1], [0], [0], [1], [0, 0, 1, 1], [], []>} : vector<16x33xbf16>, vector<33x32xbf16>, vector<16x32xf32> -> vector<16x32xf32>
    %cst_3 = arith.constant 0.000000e+00 : f32
    %3 = vector.broadcast %cst_3 : f32 to vector<16x32xf32>
    %4 = arith.maximumf %2, %3 : vector<16x32xf32>
    %c0_4 = arith.constant 0 : index
    %c0_5 = arith.constant 0 : index
    %5 = vector.load %arg8[%c0_4, %c0_5] : memref<16x32xf32, #tpu.memory_space<vmem>>, vector<16x32xf32>
    tpu.vector_store %arg8[%c0_4, %c0_5], %4 {strides = array<i32>} : memref<16x32xf32, #tpu.memory_space<vmem>>, vector<16x32xf32>,
    %c0_6 = arith.constant 0 : index
    %c0_7 = arith.constant 0 : index
    %6 = vector.load %arg8[%c0_6, %c0_7] : memref<16x32xf32, #tpu.memory_space<vmem>>, vector<1x32xf32>
    %c0_8 = arith.constant 0 : index
    %c0_9 = arith.constant 0 : index
    %7 = vector.load %arg3[%c0_8, %c0_9] : memref<9x32xf32, #tpu.memory_space<vmem>>, vector<1x32xf32>
    %8 = arith.mulf %6, %7 : vector<1x32xf32>
    %c1 = arith.constant 1 : index
    %c0_10 = arith.constant 0 : index
    %9 = vector.load %arg8[%c1, %c0_10] : memref<16x32xf32, #tpu.memory_space<vmem>>, vector<1x32xf32>
    %c1_11 = arith.constant 1 : index
    %c0_12 = arith.constant 0 : index
    %10 = vector.load %arg3[%c1_11, %c0_12] : memref<9x32xf32, #tpu.memory_space<vmem>>, vector<1x32xf32>
    %11 = arith.mulf %9, %10 : vector<1x32xf32>
    %12 = arith.addf %8, %11 : vector<1x32xf32>
    %c2 = arith.constant 2 : index
    %c0_13 = arith.constant 0 : index
    %13 = vector.load %arg8[%c2, %c0_13] : memref<16x32xf32, #tpu.memory_space<vmem>>, vector<1x32xf32>
    %c2_14 = arith.constant 2 : index
    %c0_15 = arith.constant 0 : index
    %14 = vector.load %arg3[%c2_14, %c0_15] : memref<9x32xf32, #tpu.memory_space<vmem>>, vector<1x32xf32>
    %15 = arith.mulf %13, %14 : vector<1x32xf32>
    %16 = arith.addf %12, %15 : vector<1x32xf32>
    %c3 = arith.constant 3 : index
    %c0_16 = arith.constant 0 : index
    %17 = vector.load %arg8[%c3, %c0_16] : memref<16x32xf32, #tpu.memory_space<vmem>>, vector<1x32xf32>
    %c3_17 = arith.constant 3 : index
    %c0_18 = arith.constant 0 : index
    %18 = vector.load %arg3[%c3_17, %c0_18] : memref<9x32xf32, #tpu.memory_space<vmem>>, vector<1x32xf32>
    %19 = arith.mulf %17, %18 : vector<1x32xf32>
    %20 = arith.addf %16, %19 : vector<1x32xf32>
    %c4 = arith.constant 4 : index
    %c0_19 = arith.constant 0 : index
    %21 = vector.load %arg8[%c4, %c0_19] : memref<16x32xf32, #tpu.memory_space<vmem>>, vector<1x32xf32>
    %c4_20 = arith.constant 4 : index
    %c0_21 = arith.constant 0 : index
    %22 = vector.load %arg3[%c4_20, %c0_21] : memref<9x32xf32, #tpu.memory_space<vmem>>, vector<1x32xf32>
    %23 = arith.mulf %21, %22 : vector<1x32xf32>
    %24 = arith.addf %20, %23 : vector<1x32xf32>
    %c5 = arith.constant 5 : index
    %c0_22 = arith.constant 0 : index
    %25 = vector.load %arg8[%c5, %c0_22] : memref<16x32xf32, #tpu.memory_space<vmem>>, vector<1x32xf32>
    %c5_23 = arith.constant 5 : index
    %c0_24 = arith.constant 0 : index
    %26 = vector.load %arg3[%c5_23, %c0_24] : memref<9x32xf32, #tpu.memory_space<vmem>>, vector<1x32xf32>
    %27 = arith.mulf %25, %26 : vector<1x32xf32>
    %28 = arith.addf %24, %27 : vector<1x32xf32>
    %c6 = arith.constant 6 : index
    %c0_25 = arith.constant 0 : index
    %29 = vector.load %arg8[%c6, %c0_25] : memref<16x32xf32, #tpu.memory_space<vmem>>, vector<1x32xf32>
    %c6_26 = arith.constant 6 : index
    %c0_27 = arith.constant 0 : index
    %30 = vector.load %arg3[%c6_26, %c0_27] : memref<9x32xf32, #tpu.memory_space<vmem>>, vector<1x32xf32>
    %31 = arith.mulf %29, %30 : vector<1x32xf32>
    %32 = arith.addf %28, %31 : vector<1x32xf32>
    %c7 = arith.constant 7 : index
    %c0_28 = arith.constant 0 : index
    %33 = vector.load %arg8[%c7, %c0_28] : memref<16x32xf32, #tpu.memory_space<vmem>>, vector<1x32xf32>
    %c7_29 = arith.constant 7 : index
    %c0_30 = arith.constant 0 : index
    %34 = vector.load %arg3[%c7_29, %c0_30] : memref<9x32xf32, #tpu.memory_space<vmem>>, vector<1x32xf32>
    %35 = arith.mulf %33, %34 : vector<1x32xf32>
    %36 = arith.addf %32, %35 : vector<1x32xf32>
    %c8 = arith.constant 8 : index
    %c0_31 = arith.constant 0 : index
    %37 = vector.load %arg8[%c8, %c0_31] : memref<16x32xf32, #tpu.memory_space<vmem>>, vector<1x32xf32>
    %c8_32 = arith.constant 8 : index
    %c0_33 = arith.constant 0 : index
    %38 = vector.load %arg3[%c8_32, %c0_33] : memref<9x32xf32, #tpu.memory_space<vmem>>, vector<1x32xf32>
    %39 = arith.mulf %37, %38 : vector<1x32xf32>
    %40 = arith.addf %36, %39 : vector<1x32xf32>
    %c0_34 = arith.constant 0 : index
    %c0_35 = arith.constant 0 : index
    %41 = vector.load %arg4[%c0_34, %c0_35] : memref<1x32xf32, #tpu.memory_space<vmem>>, vector<1x32xf32>
    %42 = arith.addf %40, %41 : vector<1x32xf32>
    %c0_36 = arith.constant 0 : index
    %c0_37 = arith.constant 0 : index
    %43 = vector.load %arg5[%c0_36, %c0_37] : memref<32x32xbf16, #tpu.memory_space<vmem>>, vector<32x32xbf16>
    %44 = arith.truncf %42 : vector<1x32xf32> to vector<1x32xbf16>
    %cst_38 = arith.constant dense<0.000000e+00> : vector<1x32xf32>
    %45 = tpu.matmul %44, %43, %cst_38 {dimension_numbers = #tpu.dot_dimension_numbers<[1], [0], [0], [1], [0, 0, 1, 1], [], []>} : vector<1x32xbf16>, vector<32x32xbf16>, vector<1x32xf32> -> vector<1x32xf32>
    %c0_39 = arith.constant 0 : index
    %c0_40 = arith.constant 0 : index
    %46 = vector.load %arg6[%c0_39, %c0_40] : memref<1x32xf32, #tpu.memory_space<vmem>>, vector<1x32xf32>
    %47 = arith.addf %45, %46 : vector<1x32xf32>
    %cst_41 = arith.constant 0.000000e+00 : f32
    %48 = vector.broadcast %cst_41 : f32 to vector<1x32xf32>
    %49 = arith.maximumf %47, %48 : vector<1x32xf32>
    %50 = arith.truncf %49 : vector<1x32xf32> to vector<1x32xbf16>
    %c4_42 = arith.constant 4 : index
    %c0_43 = arith.constant 0 : index
    %51 = vector.load %arg7[%c4_42, %c0_43] : memref<16x32xbf16, #tpu.memory_space<vmem>>, vector<1x32xbf16>
    tpu.vector_store %arg7[%c4_42, %c0_43], %50 {strides = array<i32>} : memref<16x32xbf16, #tpu.memory_space<vmem>>, vector<1x32xbf16>,
    return
  }
  func.func @transform_0(%arg0: i32) -> (i32, i32) {
    %c0_i32 = arith.constant 0 : i32
    %c0_i32_0 = arith.constant 0 : i32
    return %arg0, %c0_i32 : i32, i32
  }
  func.func @transform_1(%arg0: i32) -> (i32, i32) {
    %c0_i32 = arith.constant 0 : i32
    %c0_i32_0 = arith.constant 0 : i32
    %c0_i32_1 = arith.constant 0 : i32
    return %c0_i32, %c0_i32_0 : i32, i32
  }
  func.func @transform_2(%arg0: i32) -> (i32, i32) {
    %c0_i32 = arith.constant 0 : i32
    %c0_i32_0 = arith.constant 0 : i32
    %c0_i32_1 = arith.constant 0 : i32
    return %c0_i32, %c0_i32_0 : i32, i32
  }
  func.func @transform_3(%arg0: i32) -> (i32, i32) {
    %c0_i32 = arith.constant 0 : i32
    %c0_i32_0 = arith.constant 0 : i32
    %c0_i32_1 = arith.constant 0 : i32
    return %c0_i32, %c0_i32_0 : i32, i32
  }
  func.func @transform_4(%arg0: i32) -> (i32, i32) {
    %c0_i32 = arith.constant 0 : i32
    %c0_i32_0 = arith.constant 0 : i32
    %c0_i32_1 = arith.constant 0 : i32
    return %c0_i32, %c0_i32_0 : i32, i32
  }
  func.func @transform_5(%arg0: i32) -> (i32, i32) {
    %c0_i32 = arith.constant 0 : i32
    %c0_i32_0 = arith.constant 0 : i32
    %c0_i32_1 = arith.constant 0 : i32
    return %c0_i32, %c0_i32_0 : i32, i32
  }
  func.func @transform_6(%arg0: i32) -> (i32, i32) {
    %c0_i32 = arith.constant 0 : i32
    %c0_i32_0 = arith.constant 0 : i32
    return %arg0, %c0_i32 : i32, i32
  }
}

module attributes {stable_mosaic.version = 11 : i64} {
  func.func @_head_kernel(%arg0: i32, %arg1: memref<2x64xbf16, #tpu.memory_space<vmem>>, %arg2: memref<64x128xbf16, #tpu.memory_space<vmem>>, %arg3: memref<1x128xf32, #tpu.memory_space<vmem>>, %arg4: memref<128x10xbf16, #tpu.memory_space<vmem>>, %arg5: memref<1x10xf32, #tpu.memory_space<vmem>>, %arg6: memref<2x10xf32, #tpu.memory_space<vmem>>) attributes {dimension_semantics = [#tpu.dimension_semantics<arbitrary>], iteration_bounds = array<i64: 1>, scalar_prefetch = 0 : i64, scratch_operands = 0 : i64, tpu.core_type = #tpu.core_type<tc>, window_params = [{pipeline_mode = #tpu.pipeline_mode<synchronous>, transform_indices = @transform_0, window_bounds = array<i64: 2, 64>}, {pipeline_mode = #tpu.pipeline_mode<synchronous>, transform_indices = @transform_1, window_bounds = array<i64: 64, 128>}, {pipeline_mode = #tpu.pipeline_mode<synchronous>, transform_indices = @transform_2, window_bounds = array<i64: 1, 128>}, {pipeline_mode = #tpu.pipeline_mode<synchronous>, transform_indices = @transform_3, window_bounds = array<i64: 128, 10>}, {pipeline_mode = #tpu.pipeline_mode<synchronous>, transform_indices = @transform_4, window_bounds = array<i64: 1, 10>}, {pipeline_mode = #tpu.pipeline_mode<synchronous>, transform_indices = @transform_5, window_bounds = array<i64: 2, 10>}]} {
    %c0 = arith.constant 0 : index
    %c0_0 = arith.constant 0 : index
    %0 = vector.load %arg1[%c0, %c0_0] : memref<2x64xbf16, #tpu.memory_space<vmem>>, vector<2x64xbf16>
    %c0_1 = arith.constant 0 : index
    %c0_2 = arith.constant 0 : index
    %1 = vector.load %arg2[%c0_1, %c0_2] : memref<64x128xbf16, #tpu.memory_space<vmem>>, vector<64x128xbf16>
    %cst = arith.constant dense<0.000000e+00> : vector<2x128xf32>
    %2 = tpu.matmul %0, %1, %cst {dimension_numbers = #tpu.dot_dimension_numbers<[1], [0], [0], [1], [0, 0, 1, 1], [], []>} : vector<2x64xbf16>, vector<64x128xbf16>, vector<2x128xf32> -> vector<2x128xf32>
    %c0_3 = arith.constant 0 : index
    %c0_4 = arith.constant 0 : index
    %3 = vector.load %arg3[%c0_3, %c0_4] : memref<1x128xf32, #tpu.memory_space<vmem>>, vector<1x128xf32>
    %4 = vector.broadcast %3 : vector<1x128xf32> to vector<2x128xf32>
    %5 = arith.addf %2, %4 : vector<2x128xf32>
    %cst_5 = arith.constant 0.000000e+00 : f32
    %6 = vector.broadcast %cst_5 : f32 to vector<2x128xf32>
    %7 = arith.maximumf %5, %6 : vector<2x128xf32>
    %8 = vector.shape_cast %7 : vector<2x128xf32> to vector<2x1x128xf32>
    %cst_6 = arith.constant dense<0.000000e+00> : vector<2x128xf32>
    %9 = vector.multi_reduction <add>, %8, %cst_6 [1] : vector<2x1x128xf32> to vector<2x128xf32>
    %cst_7 = arith.constant 1.000000e+00 : f32
    %10 = vector.broadcast %cst_7 : f32 to vector<2x128xf32>
    %11 = arith.divf %9, %10 : vector<2x128xf32>
    %c0_8 = arith.constant 0 : index
    %c0_9 = arith.constant 0 : index
    %12 = vector.load %arg4[%c0_8, %c0_9] : memref<128x10xbf16, #tpu.memory_space<vmem>>, vector<128x10xbf16>
    %13 = arith.truncf %11 : vector<2x128xf32> to vector<2x128xbf16>
    %cst_10 = arith.constant dense<0.000000e+00> : vector<2x10xf32>
    %14 = tpu.matmul %13, %12, %cst_10 {dimension_numbers = #tpu.dot_dimension_numbers<[1], [0], [0], [1], [0, 0, 1, 1], [], []>} : vector<2x128xbf16>, vector<128x10xbf16>, vector<2x10xf32> -> vector<2x10xf32>
    %c0_11 = arith.constant 0 : index
    %c0_12 = arith.constant 0 : index
    %15 = vector.load %arg5[%c0_11, %c0_12] : memref<1x10xf32, #tpu.memory_space<vmem>>, vector<1x10xf32>
    %16 = vector.broadcast %15 : vector<1x10xf32> to vector<2x10xf32>
    %17 = arith.addf %14, %16 : vector<2x10xf32>
    %c0_13 = arith.constant 0 : index
    %c0_14 = arith.constant 0 : index
    %18 = vector.load %arg6[%c0_13, %c0_14] : memref<2x10xf32, #tpu.memory_space<vmem>>, vector<2x10xf32>
    tpu.vector_store %arg6[%c0_13, %c0_14], %17 {strides = array<i32>} : memref<2x10xf32, #tpu.memory_space<vmem>>, vector<2x10xf32>,
    return
  }
  func.func @transform_0(%arg0: i32) -> (i32, i32) {
    %c0_i32 = arith.constant 0 : i32
    %c0_i32_0 = arith.constant 0 : i32
    %c0_i32_1 = arith.constant 0 : i32
    return %c0_i32, %c0_i32_0 : i32, i32
  }
  func.func @transform_1(%arg0: i32) -> (i32, i32) {
    %c0_i32 = arith.constant 0 : i32
    %c0_i32_0 = arith.constant 0 : i32
    %c0_i32_1 = arith.constant 0 : i32
    return %c0_i32, %c0_i32_0 : i32, i32
  }
  func.func @transform_2(%arg0: i32) -> (i32, i32) {
    %c0_i32 = arith.constant 0 : i32
    %c0_i32_0 = arith.constant 0 : i32
    %c0_i32_1 = arith.constant 0 : i32
    return %c0_i32, %c0_i32_0 : i32, i32
  }
  func.func @transform_3(%arg0: i32) -> (i32, i32) {
    %c0_i32 = arith.constant 0 : i32
    %c0_i32_0 = arith.constant 0 : i32
    %c0_i32_1 = arith.constant 0 : i32
    return %c0_i32, %c0_i32_0 : i32, i32
  }
  func.func @transform_4(%arg0: i32) -> (i32, i32) {
    %c0_i32 = arith.constant 0 : i32
    %c0_i32_0 = arith.constant 0 : i32
    %c0_i32_1 = arith.constant 0 : i32
    return %c0_i32, %c0_i32_0 : i32, i32
  }
  func.func @transform_5(%arg0: i32) -> (i32, i32) {
    %c0_i32 = arith.constant 0 : i32
    %c0_i32_0 = arith.constant 0 : i32
    %c0_i32_1 = arith.constant 0 : i32
    return %c0_i32, %c0_i32_0 : i32, i32
  }
}

</mosaic_0001>

<llo_original>
// kernel: _lambda_.9
$region0: #{_lambda_.9}
  #allocation0 [shape = 'u32[]', space=smem, size = 0x4, offset = 0x4, fixed_abs, tag = 'smem constant byte address 0x4 - core index']
  #allocation1 [shape = 'u32[144,128]{1,0:T(1,128)}', space=vmem, size = 0x12000, scoped, tag = 'internal scratch']
  %s0 = inlined_call_operand.vmem [shape: bf16[512,9], index: 0, kind: input, shape index: {}]
  %s1 = inlined_call_operand.vmem [shape: bf16[9,8], index: 1, kind: input, shape index: {}]
  %s2 = inlined_call_operand.vmem [shape: f32[1,8], index: 2, kind: input, shape index: {}]
  %s3 = inlined_call_operand.vmem [shape: bf16[512,8], index: 3, kind: output, shape index: {}]
  %s4 = sld [smem:[#allocation0]]
  $region22: #{_lambda_.9} parent=0
    _
  %s6 = ssub.s32 1, %s4
  %s7 = scalar_select 0, %s6, %s4
  // Predicated region
  $region2: #{_lambda_.9} parent=0 // pred_check
    _
  $region3: #{_lambda_.9} parent=0 // pred_check_branch
    %9 = sbr.rel (0) target = $region5
  $region4: #{_lambda_.9} parent=0 // pred_region
    _
  $region5: #{_lambda_.9} parent=0 // pred_fallthru
    _
  // Predicated region
  $region6: #{_lambda_.9} parent=0 // pred_check
    _
  $region7: #{_lambda_.9} parent=0 // pred_check_branch
    %11 = sbr.rel (0) target = $region9
  $region8: #{_lambda_.9} parent=0 // pred_region
    _
  $region9: #{_lambda_.9} parent=0 // pred_fallthru
    _
  // Predicated region
  $region10: #{_lambda_.9} parent=0 // pred_check
    _
  $region11: #{_lambda_.9} parent=0 // pred_check_branch
    %13 = sbr.rel (0) target = $region13
  $region12: #{_lambda_.9} parent=0 // pred_region
    _
  $region13: #{_lambda_.9} parent=0 // pred_fallthru
    _
  %v15 = vld [vmem:[%s0] sm:$0xf]
  %v16 = vld [vmem:[%s0 + $0x4] sm:$0xf]
  %v17 = vld [vmem:[%s0 + $0x8] sm:$0xf]
  %v18 = vld [vmem:[%s0 + $0xc] sm:$0xf]
  %v19 = vld [vmem:[%s0 + $0x10] sm:$0xf]
  %v20 = vld [vmem:[%s0 + $0x14] sm:$0xf]
  %v21 = vld [vmem:[%s0 + $0x18] sm:$0xf]
  %v22 = vld [vmem:[%s0 + $0x1c] sm:$0xf]
  %v23 = vld [vmem:[%s0 + $0x20] sm:$0xf]
  %v24 = vld [vmem:[%s0 + $0x24] sm:$0xf]
  %v25 = vld [vmem:[%s0 + $0x28] sm:$0xf]
  %v26 = vld [vmem:[%s0 + $0x2c] sm:$0xf]
  %v27 = vld [vmem:[%s0 + $0x30] sm:$0xf]
  %v28 = vld [vmem:[%s0 + $0x34] sm:$0xf]
  %v29 = vld [vmem:[%s0 + $0x38] sm:$0xf]
  %v30 = vld [vmem:[%s0 + $0x3c] sm:$0xf]
  %v31 = vld [vmem:[%s0 + $0x40] sm:$0xf]
  %v32 = vld [vmem:[%s0 + $0x44] sm:$0xf]
  %v33 = vld [vmem:[%s0 + $0x48] sm:$0xf]
  %v34 = vld [vmem:[%s0 + $0x4c] sm:$0xf]
  %v35 = vld [vmem:[%s0 + $0x50] sm:$0xf]
  %v36 = vld [vmem:[%s0 + $0x54] sm:$0xf]
  %v37 = vld [vmem:[%s0 + $0x58] sm:$0xf]
  %v38 = vld [vmem:[%s0 + $0x5c] sm:$0xf]
  %v39 = vld [vmem:[%s0 + $0x60] sm:$0xf]
  %v40 = vld [vmem:[%s0 + $0x64] sm:$0xf]
  %v41 = vld [vmem:[%s0 + $0x68] sm:$0xf]
  %v42 = vld [vmem:[%s0 + $0x6c] sm:$0xf]
  %v43 = vld [vmem:[%s0 + $0x70] sm:$0xf]
  %v44 = vld [vmem:[%s0 + $0x74] sm:$0xf]
  %v45 = vld [vmem:[%s0 + $0x78] sm:$0xf]
  %v46 = vld [vmem:[%s0 + $0x7c] sm:$0xf]
  %v47 = vld [vmem:[%s0 + $0x80] sm:$0xf]
  %v48 = vld [vmem:[%s0 + $0x84] sm:$0xf]
  %v49 = vld [vmem:[%s0 + $0x88] sm:$0xf]
  %v50 = vld [vmem:[%s0 + $0x8c] sm:$0xf]
  %v51 = vld [vmem:[%s0 + $0x90] sm:$0xf]
  %v52 = vld [vmem:[%s0 + $0x94] sm:$0xf]
  %v53 = vld [vmem:[%s0 + $0x98] sm:$0xf]
  %v54 = vld [vmem:[%s0 + $0x9c] sm:$0xf]
  %v55 = vld [vmem:[%s0 + $0xa0] sm:$0xf]
  %v56 = vld [vmem:[%s0 + $0xa4] sm:$0xf]
  %v57 = vld [vmem:[%s0 + $0xa8] sm:$0xf]
  %v58 = vld [vmem:[%s0 + $0xac] sm:$0xf]
  %v59 = vld [vmem:[%s0 + $0xb0] sm:$0xf]
  %v60 = vld [vmem:[%s0 + $0xb4] sm:$0xf]
  %v61 = vld [vmem:[%s0 + $0xb8] sm:$0xf]
  %v62 = vld [vmem:[%s0 + $0xbc] sm:$0xf]
  %v63 = vld [vmem:[%s0 + $0xc0] sm:$0xf]
  %v64 = vld [vmem:[%s0 + $0xc4] sm:$0xf]
  %v65 = vld [vmem:[%s0 + $0xc8] sm:$0xf]
  %v66 = vld [vmem:[%s0 + $0xcc] sm:$0xf]
  %v67 = vld [vmem:[%s0 + $0xd0] sm:$0xf]
  %v68 = vld [vmem:[%s0 + $0xd4] sm:$0xf]
  %v69 = vld [vmem:[%s0 + $0xd8] sm:$0xf]
  %v70 = vld [vmem:[%s0 + $0xdc] sm:$0xf]
  %v71 = vld [vmem:[%s0 + $0xe0] sm:$0xf]
  %v72 = vld [vmem:[%s0 + $0xe4] sm:$0xf]
  %v73 = vld [vmem:[%s0 + $0xe8] sm:$0xf]
  %v74 = vld [vmem:[%s0 + $0xec] sm:$0xf]
  %v75 = vld [vmem:[%s0 + $0xf0] sm:$0xf]
  %v76 = vld [vmem:[%s0 + $0xf4] sm:$0xf]
  %v77 = vld [vmem:[%s0 + $0xf8] sm:$0xf]
  %v78 = vld [vmem:[%s0 + $0xfc] sm:$0xf]
  %v79 = vld [vmem:[%s1] sm:$0xf]
  %v80 = vld [vmem:[%s1 + $0x4] sm:$0x1]
  %v81 = vld [vmem:[%s2] sm:$0x1]
  %v83 = vlaneseq
  %v84 = vshrl.u32 %v83, 7
  %v85 = vsub.s32 0, %v84
  %v86 = vrot.slane %v81, %v85
  %v152 = vunpack.c.l.b16 %v15
  %v153 = vunpack.c.l.b16 %v16
  %v154 = vunpack.c.l.b16 %v17
  %v155 = vunpack.c.l.b16 %v18
  %v156 = vunpack.c.l.b16 %v19
  %v157 = vunpack.c.l.b16 %v20
  %v158 = vunpack.c.l.b16 %v21
  %v159 = vunpack.c.l.b16 %v22
  %v160 = vunpack.c.l.b16 %v23
  %v161 = vunpack.c.l.b16 %v24
  %v162 = vunpack.c.l.b16 %v25
  %v163 = vunpack.c.l.b16 %v26
  %v164 = vunpack.c.l.b16 %v27
  %v165 = vunpack.c.l.b16 %v28
  %v166 = vunpack.c.l.b16 %v29
  %v167 = vunpack.c.l.b16 %v30
  %v168 = vunpack.c.l.b16 %v31
  %v169 = vunpack.c.l.b16 %v32
  %v170 = vunpack.c.l.b16 %v33
  %v171 = vunpack.c.l.b16 %v34
  %v172 = vunpack.c.l.b16 %v35
  %v173 = vunpack.c.l.b16 %v36
  %v174 = vunpack.c.l.b16 %v37
  %v175 = vunpack.c.l.b16 %v38
  %v176 = vunpack.c.l.b16 %v39
  %v177 = vunpack.c.l.b16 %v40
  %v178 = vunpack.c.l.b16 %v41
  %v179 = vunpack.c.l.b16 %v42
  %v180 = vunpack.c.l.b16 %v43
  %v181 = vunpack.c.l.b16 %v44
  %v182 = vunpack.c.l.b16 %v45
  %v183 = vunpack.c.l.b16 %v46
  %v184 = vunpack.c.l.b16 %v47
  %v185 = vunpack.c.l.b16 %v48
  %v186 = vunpack.c.l.b16 %v49
  %v187 = vunpack.c.l.b16 %v50
  %v188 = vunpack.c.l.b16 %v51
  %v189 = vunpack.c.l.b16 %v52
  %v190 = vunpack.c.l.b16 %v53
  %v191 = vunpack.c.l.b16 %v54
  %v192 = vunpack.c.l.b16 %v55
  %v193 = vunpack.c.l.b16 %v56
  %v194 = vunpack.c.l.b16 %v57
  %v195 = vunpack.c.l.b16 %v58
  %v196 = vunpack.c.l.b16 %v59
  %v197 = vunpack.c.l.b16 %v60
  %v198 = vunpack.c.l.b16 %v61
  %v199 = vunpack.c.l.b16 %v62
  %v200 = vunpack.c.l.b16 %v63
  %v201 = vunpack.c.l.b16 %v64
  %v202 = vunpack.c.l.b16 %v65
  %v203 = vunpack.c.l.b16 %v66
  %v204 = vunpack.c.l.b16 %v67
  %v205 = vunpack.c.l.b16 %v68
  %v206 = vunpack.c.l.b16 %v69
  %v207 = vunpack.c.l.b16 %v70
  %v208 = vunpack.c.l.b16 %v71
  %v209 = vunpack.c.l.b16 %v72
  %v210 = vunpack.c.l.b16 %v73
  %v211 = vunpack.c.l.b16 %v74
  %v212 = vunpack.c.l.b16 %v75
  %v213 = vunpack.c.l.b16 %v76
  %v214 = vunpack.c.l.b16 %v77
  %v215 = vunpack.c.l.b16 %v78
  %v216 = vpack.c.b16 %v153, %v152
  %v217 = vpack.c.b16 %v155, %v154
  %v218 = vpack.c.b16 %v157, %v156
  %v219 = vpack.c.b16 %v159, %v158
  %v220 = vpack.c.b16 %v161, %v160
  %v221 = vpack.c.b16 %v163, %v162
  %v222 = vpack.c.b16 %v165, %v164
  %v223 = vpack.c.b16 %v167, %v166
  %v224 = vpack.c.b16 %v169, %v168
  %v225 = vpack.c.b16 %v171, %v170
  %v226 = vpack.c.b16 %v173, %v172
  %v227 = vpack.c.b16 %v175, %v174
  %v228 = vpack.c.b16 %v177, %v176
  %v229 = vpack.c.b16 %v179, %v178
  %v230 = vpack.c.b16 %v181, %v180
  %v231 = vpack.c.b16 %v183, %v182
  %v232 = vpack.c.b16 %v185, %v184
  %v233 = vpack.c.b16 %v187, %v186
  %v234 = vpack.c.b16 %v189, %v188
  %v235 = vpack.c.b16 %v191, %v190
  %v236 = vpack.c.b16 %v193, %v192
  %v237 = vpack.c.b16 %v195, %v194
  %v238 = vpack.c.b16 %v197, %v196
  %v239 = vpack.c.b16 %v199, %v198
  %v240 = vpack.c.b16 %v201, %v200
  %v241 = vpack.c.b16 %v203, %v202
  %v242 = vpack.c.b16 %v205, %v204
  %v243 = vpack.c.b16 %v207, %v206
  %v244 = vpack.c.b16 %v209, %v208
  %v245 = vpack.c.b16 %v211, %v210
  %v246 = vpack.c.b16 %v213, %v212
  %v247 = vpack.c.b16 %v215, %v214
  %v250 = vunpack.c.l.b16 %v79
  %v251 = vunpack.c.l.b16 %v80
  %v252 = vpack.c.b16 %v251, %v250
  %vm253 = vcmask 72704
  %v255 = vsel %vm253, %v216, 0
  %v258 = vsel %vm253, %v217, 0
  %v261 = vsel %vm253, %v218, 0
  %v264 = vsel %vm253, %v219, 0
  %v267 = vsel %vm253, %v220, 0
  %v270 = vsel %vm253, %v221, 0
  %v273 = vsel %vm253, %v222, 0
  %v276 = vsel %vm253, %v223, 0
  %v279 = vsel %vm253, %v224, 0
  %v282 = vsel %vm253, %v225, 0
  %v285 = vsel %vm253, %v226, 0
  %v288 = vsel %vm253, %v227, 0
  %v291 = vsel %vm253, %v228, 0
  %v294 = vsel %vm253, %v229, 0
  %v297 = vsel %vm253, %v230, 0
  %v300 = vsel %vm253, %v231, 0
  %v303 = vsel %vm253, %v232, 0
  %v306 = vsel %vm253, %v233, 0
  %v309 = vsel %vm253, %v234, 0
  %v312 = vsel %vm253, %v235, 0
  %v315 = vsel %vm253, %v236, 0
  %v318 = vsel %vm253, %v237, 0
  %v321 = vsel %vm253, %v238, 0
  %v324 = vsel %vm253, %v239, 0
  %v327 = vsel %vm253, %v240, 0
  %v330 = vsel %vm253, %v241, 0
  %v333 = vsel %vm253, %v242, 0
  %v336 = vsel %vm253, %v243, 0
  %v339 = vsel %vm253, %v244, 0
  %v342 = vsel %vm253, %v245, 0
  %v345 = vsel %vm253, %v246, 0
  %v348 = vsel %vm253, %v247, 0
  %vm350 = vcmask 1043456
  %vm351 = vcmask 1044480
  %v352 = vsel %vm350, 4294967295, 65535
  %v353 = vsel %vm351, %v352, 0
  %v355 = vand.u32 %v252, %v353
  %357 = vmatprep.subr.bf16.mxu0 0
  %358 = vmatpush1.bf16.msra.mxu0 0
  %359 = vmatprep.subr.bf16.mxu0 0
  %360 = vmatpush1.bf16.msra.mxu0 0
  %361 = vmatprep.subr.bf16.mxu0 0
  %362 = vmatpush1.bf16.msra.mxu0 0
  %363 = vmatprep.subr.bf16.mxu0 0
  %364 = vmatpush1.bf16.msra.mxu0 0
  %365 = vmatprep.subr.bf16.mxu0 0
  %366 = vmatpush1.bf16.msra.mxu0 0
  %367 = vmatprep.subr.bf16.mxu0 0
  %368 = vmatpush1.bf16.msra.mxu0 0
  %369 = vmatprep.subr.bf16.mxu0 0
  %370 = vmatpush1.bf16.msra.mxu0 0
  %371 = vmatprep.subr.bf16.mxu0 0
  %372 = vmatpush1.bf16.msra.mxu0 %v355
  %373 = vmatprep.subr.bf16.mxu0 0
  %374 = vmatpush2.bf16.msra.mxu0 0
  %375 = vmatprep.subr.bf16.mxu0 0
  %376 = vmatpush2.bf16.msra.mxu0 0
  %377 = vmatprep.subr.bf16.mxu0 0
  %378 = vmatpush2.bf16.msra.mxu0 0
  %379 = vmatprep.subr.bf16.mxu0 0
  %380 = vmatpush2.bf16.msra.mxu0 0
  %381 = vmatprep.subr.bf16.mxu0 0
  %382 = vmatpush2.bf16.msra.mxu0 0
  %383 = vmatprep.subr.bf16.mxu0 0
  %384 = vmatpush2.bf16.msra.mxu0 0
  %385 = vmatprep.subr.bf16.mxu0 0
  %386 = vmatpush2.bf16.msra.mxu0 0
  %387 = vmatprep.subr.bf16.mxu0 0
  %388 = vmatpush2.bf16.msra.mxu0 0
  %389 = vmatprep.mubr.bf16.mxu0 0
  %390 = vmatmul.mubr.bf16.gmra.mxu0 %v255
  %v391 = vpop.f32.mrf.mxu0
  %v392 = vadd.f32 %v86, %v391
  %v393 = vpop.f32.mrf.mxu0
  %v394 = vpop.f32.mrf.mxu0
  %v395 = vadd.f32 %v86, %v394
  %v396 = vpop.f32.mrf.mxu0
  %397 = vmatprep.mubr.bf16.mxu0 0
  %398 = vmatmul.mubr.bf16.gmra.mxu0 %v258
  %v399 = vpop.f32.mrf.mxu0
  %v400 = vadd.f32 %v86, %v399
  %v401 = vpop.f32.mrf.mxu0
  %v402 = vpop.f32.mrf.mxu0
  %v403 = vadd.f32 %v86, %v402
  %v404 = vpop.f32.mrf.mxu0
  %405 = vmatprep.mubr.bf16.mxu0 0
  %406 = vmatmul.mubr.bf16.gmra.mxu0 %v261
  %v407 = vpop.f32.mrf.mxu0
  %v408 = vadd.f32 %v86, %v407
  %v409 = vpop.f32.mrf.mxu0
  %v410 = vpop.f32.mrf.mxu0
  %v411 = vadd.f32 %v86, %v410
  %v412 = vpop.f32.mrf.mxu0
  %413 = vmatprep.mubr.bf16.mxu0 0
  %414 = vmatmul.mubr.bf16.gmra.mxu0 %v264
  %v415 = vpop.f32.mrf.mxu0
  %v416 = vadd.f32 %v86, %v415
  %v417 = vpop.f32.mrf.mxu0
  %v418 = vpop.f32.mrf.mxu0
  %v419 = vadd.f32 %v86, %v418
  %v420 = vpop.f32.mrf.mxu0
  %421 = vmatprep.mubr.bf16.mxu0 0
  %422 = vmatmul.mubr.bf16.gmra.mxu0 %v267
  %v423 = vpop.f32.mrf.mxu0
  %v424 = vadd.f32 %v86, %v423
  %v425 = vpop.f32.mrf.mxu0
  %v426 = vpop.f32.mrf.mxu0
  %v427 = vadd.f32 %v86, %v426
  %v428 = vpop.f32.mrf.mxu0
  %429 = vmatprep.mubr.bf16.mxu0 0
  %430 = vmatmul.mubr.bf16.gmra.mxu0 %v270
  %v431 = vpop.f32.mrf.mxu0
  %v432 = vadd.f32 %v86, %v431
  %v433 = vpop.f32.mrf.mxu0
  %v434 = vpop.f32.mrf.mxu0
  %v435 = vadd.f32 %v86, %v434
  %v436 = vpop.f32.mrf.mxu0
  %437 = vmatprep.mubr.bf16.mxu0 0
  %438 = vmatmul.mubr.bf16.gmra.mxu0 %v273
  %v439 = vpop.f32.mrf.mxu0
  %v440 = vadd.f32 %v86, %v439
  %v441 = vpop.f32.mrf.mxu0
  %v442 = vpop.f32.mrf.mxu0
  %v443 = vadd.f32 %v86, %v442
  %v444 = vpop.f32.mrf.mxu0
  %445 = vmatprep.mubr.bf16.mxu0 0
  %446 = vmatmul.mubr.bf16.gmra.mxu0 %v276
  %v447 = vpop.f32.mrf.mxu0
  %v448 = vadd.f32 %v86, %v447
  %v449 = vpop.f32.mrf.mxu0
  %v450 = vpop.f32.mrf.mxu0
  %v451 = vadd.f32 %v86, %v450
  %v452 = vpop.f32.mrf.mxu0
  %453 = vmatprep.mubr.bf16.mxu0 0
  %454 = vmatmul.mubr.bf16.gmra.mxu0 %v279
  %v455 = vpop.f32.mrf.mxu0
  %v456 = vadd.f32 %v86, %v455
  %v457 = vpop.f32.mrf.mxu0
  %v458 = vpop.f32.mrf.mxu0
  %v459 = vadd.f32 %v86, %v458
  %v460 = vpop.f32.mrf.mxu0
  %461 = vmatprep.mubr.bf16.mxu0 0
  %462 = vmatmul.mubr.bf16.gmra.mxu0 %v282
  %v463 = vpop.f32.mrf.mxu0
  %v464 = vadd.f32 %v86, %v463
  %v465 = vpop.f32.mrf.mxu0
  %v466 = vpop.f32.mrf.mxu0
  %v467 = vadd.f32 %v86, %v466
  %v468 = vpop.f32.mrf.mxu0
  %469 = vmatprep.mubr.bf16.mxu0 0
  %470 = vmatmul.mubr.bf16.gmra.mxu0 %v285
  %v471 = vpop.f32.mrf.mxu0
  %v472 = vadd.f32 %v86, %v471
  %v473 = vpop.f32.mrf.mxu0
  %v474 = vpop.f32.mrf.mxu0
  %v475 = vadd.f32 %v86, %v474
  %v476 = vpop.f32.mrf.mxu0
  %477 = vmatprep.mubr.bf16.mxu0 0
  %478 = vmatmul.mubr.bf16.gmra.mxu0 %v288
  %v479 = vpop.f32.mrf.mxu0
  %v480 = vadd.f32 %v86, %v479
  %v481 = vpop.f32.mrf.mxu0
  %v482 = vpop.f32.mrf.mxu0
  %v483 = vadd.f32 %v86, %v482
  %v484 = vpop.f32.mrf.mxu0
  %485 = vmatprep.mubr.bf16.mxu0 0
  %486 = vmatmul.mubr.bf16.gmra.mxu0 %v291
  %v487 = vpop.f32.mrf.mxu0
  %v488 = vadd.f32 %v86, %v487
  %v489 = vpop.f32.mrf.mxu0
  %v490 = vpop.f32.mrf.mxu0
  %v491 = vadd.f32 %v86, %v490
  %v492 = vpop.f32.mrf.mxu0
  %493 = vmatprep.mubr.bf16.mxu0 0
  %494 = vmatmul.mubr.bf16.gmra.mxu0 %v294
  %v495 = vpop.f32.mrf.mxu0
  %v496 = vadd.f32 %v86, %v495
  %v497 = vpop.f32.mrf.mxu0
  %v498 = vpop.f32.mrf.mxu0
  %v499 = vadd.f32 %v86, %v498
  %v500 = vpop.f32.mrf.mxu0
  %501 = vmatprep.mubr.bf16.mxu0 0
  %502 = vmatmul.mubr.bf16.gmra.mxu0 %v297
  %v503 = vpop.f32.mrf.mxu0
  %v504 = vadd.f32 %v86, %v503
  %v505 = vpop.f32.mrf.mxu0
  %v506 = vpop.f32.mrf.mxu0
  %v507 = vadd.f32 %v86, %v506
  %v508 = vpop.f32.mrf.mxu0
  %509 = vmatprep.mubr.bf16.mxu0 0
  %510 = vmatmul.mubr.bf16.gmra.mxu0 %v300
  %v511 = vpop.f32.mrf.mxu0
  %v512 = vadd.f32 %v86, %v511
  %v513 = vpop.f32.mrf.mxu0
  %v514 = vpop.f32.mrf.mxu0
  %v515 = vadd.f32 %v86, %v514
  %v516 = vpop.f32.mrf.mxu0
  %517 = vmatprep.mubr.bf16.mxu0 0
  %518 = vmatmul.mubr.bf16.gmra.mxu0 %v303
  %v519 = vpop.f32.mrf.mxu0
  %v520 = vadd.f32 %v86, %v519
  %v521 = vpop.f32.mrf.mxu0
  %v522 = vpop.f32.mrf.mxu0
  %v523 = vadd.f32 %v86, %v522
  %v524 = vpop.f32.mrf.mxu0
  %525 = vmatprep.mubr.bf16.mxu0 0
  %526 = vmatmul.mubr.bf16.gmra.mxu0 %v306
  %v527 = vpop.f32.mrf.mxu0
  %v528 = vadd.f32 %v86, %v527
  %v529 = vpop.f32.mrf.mxu0
  %v530 = vpop.f32.mrf.mxu0
  %v531 = vadd.f32 %v86, %v530
  %v532 = vpop.f32.mrf.mxu0
  %533 = vmatprep.mubr.bf16.mxu0 0
  %534 = vmatmul.mubr.bf16.gmra.mxu0 %v309
  %v535 = vpop.f32.mrf.mxu0
  %v536 = vadd.f32 %v86, %v535
  %v537 = vpop.f32.mrf.mxu0
  %v538 = vpop.f32.mrf.mxu0
  %v539 = vadd.f32 %v86, %v538
  %v540 = vpop.f32.mrf.mxu0
  %541 = vmatprep.mubr.bf16.mxu0 0
  %542 = vmatmul.mubr.bf16.gmra.mxu0 %v312
  %v543 = vpop.f32.mrf.mxu0
  %v544 = vadd.f32 %v86, %v543
  %v545 = vpop.f32.mrf.mxu0
  %v546 = vpop.f32.mrf.mxu0
  %v547 = vadd.f32 %v86, %v546
  %v548 = vpop.f32.mrf.mxu0
  %549 = vmatprep.mubr.bf16.mxu0 0
  %550 = vmatmul.mubr.bf16.gmra.mxu0 %v315
  %v551 = vpop.f32.mrf.mxu0
  %v552 = vadd.f32 %v86, %v551
  %v553 = vpop.f32.mrf.mxu0
  %v554 = vpop.f32.mrf.mxu0
  %v555 = vadd.f32 %v86, %v554
  %v556 = vpop.f32.mrf.mxu0
  %557 = vmatprep.mubr.bf16.mxu0 0
  %558 = vmatmul.mubr.bf16.gmra.mxu0 %v318
  %v559 = vpop.f32.mrf.mxu0
  %v560 = vadd.f32 %v86, %v559
  %v561 = vpop.f32.mrf.mxu0
  %v562 = vpop.f32.mrf.mxu0
  %v563 = vadd.f32 %v86, %v562
  %v564 = vpop.f32.mrf.mxu0
  %565 = vmatprep.mubr.bf16.mxu0 0
  %566 = vmatmul.mubr.bf16.gmra.mxu0 %v321
  %v567 = vpop.f32.mrf.mxu0
  %v568 = vadd.f32 %v86, %v567
  %v569 = vpop.f32.mrf.mxu0
  %v570 = vpop.f32.mrf.mxu0
  %v571 = vadd.f32 %v86, %v570
  %v572 = vpop.f32.mrf.mxu0
  %573 = vmatprep.mubr.bf16.mxu0 0
  %574 = vmatmul.mubr.bf16.gmra.mxu0 %v324
  %v575 = vpop.f32.mrf.mxu0
  %v576 = vadd.f32 %v86, %v575
  %v577 = vpop.f32.mrf.mxu0
  %v578 = vpop.f32.mrf.mxu0
  %v579 = vadd.f32 %v86, %v578
  %v580 = vpop.f32.mrf.mxu0
  %581 = vmatprep.mubr.bf16.mxu0 0
  %582 = vmatmul.mubr.bf16.gmra.mxu0 %v327
  %v583 = vpop.f32.mrf.mxu0
  %v584 = vadd.f32 %v86, %v583
  %v585 = vpop.f32.mrf.mxu0
  %v586 = vpop.f32.mrf.mxu0
  %v587 = vadd.f32 %v86, %v586
  %v588 = vpop.f32.mrf.mxu0
  %589 = vmatprep.mubr.bf16.mxu0 0
  %590 = vmatmul.mubr.bf16.gmra.mxu0 %v330
  %v591 = vpop.f32.mrf.mxu0
  %v592 = vadd.f32 %v86, %v591
  %v593 = vpop.f32.mrf.mxu0
  %v594 = vpop.f32.mrf.mxu0
  %v595 = vadd.f32 %v86, %v594
  %v596 = vpop.f32.mrf.mxu0
  %597 = vmatprep.mubr.bf16.mxu0 0
  %598 = vmatmul.mubr.bf16.gmra.mxu0 %v333
  %v599 = vpop.f32.mrf.mxu0
  %v600 = vadd.f32 %v86, %v599
  %v601 = vpop.f32.mrf.mxu0
  %v602 = vpop.f32.mrf.mxu0
  %v603 = vadd.f32 %v86, %v602
  %v604 = vpop.f32.mrf.mxu0
  %605 = vmatprep.mubr.bf16.mxu0 0
  %606 = vmatmul.mubr.bf16.gmra.mxu0 %v336
  %v607 = vpop.f32.mrf.mxu0
  %v608 = vadd.f32 %v86, %v607
  %v609 = vpop.f32.mrf.mxu0
  %v610 = vpop.f32.mrf.mxu0
  %v611 = vadd.f32 %v86, %v610
  %v612 = vpop.f32.mrf.mxu0
  %613 = vmatprep.mubr.bf16.mxu0 0
  %614 = vmatmul.mubr.bf16.gmra.mxu0 %v339
  %v615 = vpop.f32.mrf.mxu0
  %v616 = vadd.f32 %v86, %v615
  %v617 = vpop.f32.mrf.mxu0
  %v618 = vpop.f32.mrf.mxu0
  %v619 = vadd.f32 %v86, %v618
  %v620 = vpop.f32.mrf.mxu0
  %621 = vmatprep.mubr.bf16.mxu0 0
  %622 = vmatmul.mubr.bf16.gmra.mxu0 %v342
  %v623 = vpop.f32.mrf.mxu0
  %v624 = vadd.f32 %v86, %v623
  %v625 = vpop.f32.mrf.mxu0
  %v626 = vpop.f32.mrf.mxu0
  %v627 = vadd.f32 %v86, %v626
  %v628 = vpop.f32.mrf.mxu0
  %629 = vmatprep.mubr.bf16.mxu0 0
  %630 = vmatmul.mubr.bf16.gmra.mxu0 %v345
  %v631 = vpop.f32.mrf.mxu0
  %v632 = vadd.f32 %v86, %v631
  %v633 = vpop.f32.mrf.mxu0
  %v634 = vpop.f32.mrf.mxu0
  %v635 = vadd.f32 %v86, %v634
  %v636 = vpop.f32.mrf.mxu0
  %637 = vmatprep.mubr.bf16.mxu0 0
  %638 = vmatmul.mubr.bf16.gmra.mxu0 %v348
  %v639 = vpop.f32.mrf.mxu0
  %v640 = vadd.f32 %v86, %v639
  %v641 = vpop.f32.mrf.mxu0
  %v642 = vpop.f32.mrf.mxu0
  %v643 = vadd.f32 %v86, %v642
  %v644 = vpop.f32.mrf.mxu0
  %645 = vdwg.mxu0
  %v646 = vmax.f32 %v392, 0.0
  %v647 = vmax.f32 %v395, 0.0
  %v648 = vmax.f32 %v400, 0.0
  %v649 = vmax.f32 %v403, 0.0
  %v650 = vmax.f32 %v408, 0.0
  %v651 = vmax.f32 %v411, 0.0
  %v652 = vmax.f32 %v416, 0.0
  %v653 = vmax.f32 %v419, 0.0
  %v654 = vmax.f32 %v424, 0.0
  %v655 = vmax.f32 %v427, 0.0
  %v656 = vmax.f32 %v432, 0.0
  %v657 = vmax.f32 %v435, 0.0
  %v658 = vmax.f32 %v440, 0.0
  %v659 = vmax.f32 %v443, 0.0
  %v660 = vmax.f32 %v448, 0.0
  %v661 = vmax.f32 %v451, 0.0
  %v662 = vmax.f32 %v456, 0.0
  %v663 = vmax.f32 %v459, 0.0
  %v664 = vmax.f32 %v464, 0.0
  %v665 = vmax.f32 %v467, 0.0
  %v666 = vmax.f32 %v472, 0.0
  %v667 = vmax.f32 %v475, 0.0
  %v668 = vmax.f32 %v480, 0.0
  %v669 = vmax.f32 %v483, 0.0
  %v670 = vmax.f32 %v488, 0.0
  %v671 = vmax.f32 %v491, 0.0
  %v672 = vmax.f32 %v496, 0.0
  %v673 = vmax.f32 %v499, 0.0
  %v674 = vmax.f32 %v504, 0.0
  %v675 = vmax.f32 %v507, 0.0
  %v676 = vmax.f32 %v512, 0.0
  %v677 = vmax.f32 %v515, 0.0
  %v678 = vmax.f32 %v520, 0.0
  %v679 = vmax.f32 %v523, 0.0
  %v680 = vmax.f32 %v528, 0.0
  %v681 = vmax.f32 %v531, 0.0
  %v682 = vmax.f32 %v536, 0.0
  %v683 = vmax.f32 %v539, 0.0
  %v684 = vmax.f32 %v544, 0.0
  %v685 = vmax.f32 %v547, 0.0
  %v686 = vmax.f32 %v552, 0.0
  %v687 = vmax.f32 %v555, 0.0
  %v688 = vmax.f32 %v560, 0.0
  %v689 = vmax.f32 %v563, 0.0
  %v690 = vmax.f32 %v568, 0.0
  %v691 = vmax.f32 %v571, 0.0
  %v692 = vmax.f32 %v576, 0.0
  %v693 = vmax.f32 %v579, 0.0
  %v694 = vmax.f32 %v584, 0.0
  %v695 = vmax.f32 %v587, 0.0
  %v696 = vmax.f32 %v592, 0.0
  %v697 = vmax.f32 %v595, 0.0
  %v698 = vmax.f32 %v600, 0.0
  %v699 = vmax.f32 %v603, 0.0
  %v700 = vmax.f32 %v608, 0.0
  %v701 = vmax.f32 %v611, 0.0
  %v702 = vmax.f32 %v616, 0.0
  %v703 = vmax.f32 %v619, 0.0
  %v704 = vmax.f32 %v624, 0.0
  %v705 = vmax.f32 %v627, 0.0
  %v706 = vmax.f32 %v632, 0.0
  %v707 = vmax.f32 %v635, 0.0
  %v708 = vmax.f32 %v640, 0.0
  %v709 = vmax.f32 %v643, 0.0
  %v710 = vpack.c.bf16 %v647, %v646
  %v711 = vpack.c.bf16 %v649, %v648
  %v712 = vpack.c.bf16 %v651, %v650
  %v713 = vpack.c.bf16 %v653, %v652
  %v714 = vpack.c.bf16 %v655, %v654
  %v715 = vpack.c.bf16 %v657, %v656
  %v716 = vpack.c.bf16 %v659, %v658
  %v717 = vpack.c.bf16 %v661, %v660
  %v718 = vpack.c.bf16 %v663, %v662
  %v719 = vpack.c.bf16 %v665, %v664
  %v720 = vpack.c.bf16 %v667, %v666
  %v721 = vpack.c.bf16 %v669, %v668
  %v722 = vpack.c.bf16 %v671, %v670
  %v723 = vpack.c.bf16 %v673, %v672
  %v724 = vpack.c.bf16 %v675, %v674
  %v725 = vpack.c.bf16 %v677, %v676
  %v726 = vpack.c.bf16 %v679, %v678
  %v727 = vpack.c.bf16 %v681, %v680
  %v728 = vpack.c.bf16 %v683, %v682
  %v729 = vpack.c.bf16 %v685, %v684
  %v730 = vpack.c.bf16 %v687, %v686
  %v731 = vpack.c.bf16 %v689, %v688
  %v732 = vpack.c.bf16 %v691, %v690
  %v733 = vpack.c.bf16 %v693, %v692
  %v734 = vpack.c.bf16 %v695, %v694
  %v735 = vpack.c.bf16 %v697, %v696
  %v736 = vpack.c.bf16 %v699, %v698
  %v737 = vpack.c.bf16 %v701, %v700
  %v738 = vpack.c.bf16 %v703, %v702
  %v739 = vpack.c.bf16 %v705, %v704
  %v740 = vpack.c.bf16 %v707, %v706
  %v741 = vpack.c.bf16 %v709, %v708
  %v774 = vunpack.c.l.b16 %v710
  %v775 = vunpack.c.h.b16 %v710
  %v776 = vunpack.c.l.b16 %v711
  %v777 = vunpack.c.h.b16 %v711
  %v778 = vunpack.c.l.b16 %v712
  %v779 = vunpack.c.h.b16 %v712
  %v780 = vunpack.c.l.b16 %v713
  %v781 = vunpack.c.h.b16 %v713
  %v782 = vunpack.c.l.b16 %v714
  %v783 = vunpack.c.h.b16 %v714
  %v784 = vunpack.c.l.b16 %v715
  %v785 = vunpack.c.h.b16 %v715
  %v786 = vunpack.c.l.b16 %v716
  %v787 = vunpack.c.h.b16 %v716
  %v788 = vunpack.c.l.b16 %v717
  %v789 = vunpack.c.h.b16 %v717
  %v790 = vunpack.c.l.b16 %v718
  %v791 = vunpack.c.h.b16 %v718
  %v792 = vunpack.c.l.b16 %v719
  %v793 = vunpack.c.h.b16 %v719
  %v794 = vunpack.c.l.b16 %v720
  %v795 = vunpack.c.h.b16 %v720
  %v796 = vunpack.c.l.b16 %v721
  %v797 = vunpack.c.h.b16 %v721
  %v798 = vunpack.c.l.b16 %v722
  %v799 = vunpack.c.h.b16 %v722
  %v800 = vunpack.c.l.b16 %v723
  %v801 = vunpack.c.h.b16 %v723
  %v802 = vunpack.c.l.b16 %v724
  %v803 = vunpack.c.h.b16 %v724
  %v804 = vunpack.c.l.b16 %v725
  %v805 = vunpack.c.h.b16 %v725
  %v806 = vunpack.c.l.b16 %v726
  %v807 = vunpack.c.h.b16 %v726
  %v808 = vunpack.c.l.b16 %v727
  %v809 = vunpack.c.h.b16 %v727
  %v810 = vunpack.c.l.b16 %v728
  %v811 = vunpack.c.h.b16 %v728
  %v812 = vunpack.c.l.b16 %v729
  %v813 = vunpack.c.h.b16 %v729
  %v814 = vunpack.c.l.b16 %v730
  %v815 = vunpack.c.h.b16 %v730
  %v816 = vunpack.c.l.b16 %v731
  %v817 = vunpack.c.h.b16 %v731
  %v818 = vunpack.c.l.b16 %v732
  %v819 = vunpack.c.h.b16 %v732
  %v820 = vunpack.c.l.b16 %v733
  %v821 = vunpack.c.h.b16 %v733
  %v822 = vunpack.c.l.b16 %v734
  %v823 = vunpack.c.h.b16 %v734
  %v824 = vunpack.c.l.b16 %v735
  %v825 = vunpack.c.h.b16 %v735
  %v826 = vunpack.c.l.b16 %v736
  %v827 = vunpack.c.h.b16 %v736
  %v828 = vunpack.c.l.b16 %v737
  %v829 = vunpack.c.h.b16 %v737
  %v830 = vunpack.c.l.b16 %v738
  %v831 = vunpack.c.h.b16 %v738
  %v832 = vunpack.c.l.b16 %v739
  %v833 = vunpack.c.h.b16 %v739
  %v834 = vunpack.c.l.b16 %v740
  %v835 = vunpack.c.h.b16 %v740
  %v836 = vunpack.c.l.b16 %v741
  %v837 = vunpack.c.h.b16 %v741
  %v838 = vpack.c.b16 %v774, %v774
  %v839 = vpack.c.b16 %v775, %v775
  %v840 = vpack.c.b16 %v776, %v776
  %v841 = vpack.c.b16 %v777, %v777
  %v842 = vpack.c.b16 %v778, %v778
  %v843 = vpack.c.b16 %v779, %v779
  %v844 = vpack.c.b16 %v780, %v780
  %v845 = vpack.c.b16 %v781, %v781
  %v846 = vpack.c.b16 %v782, %v782
  %v847 = vpack.c.b16 %v783, %v783
  %v848 = vpack.c.b16 %v784, %v784
  %v849 = vpack.c.b16 %v785, %v785
  %v850 = vpack.c.b16 %v786, %v786
  %v851 = vpack.c.b16 %v787, %v787
  %v852 = vpack.c.b16 %v788, %v788
  %v853 = vpack.c.b16 %v789, %v789
  %v854 = vpack.c.b16 %v790, %v790
  %v855 = vpack.c.b16 %v791, %v791
  %v856 = vpack.c.b16 %v792, %v792
  %v857 = vpack.c.b16 %v793, %v793
  %v858 = vpack.c.b16 %v794, %v794
  %v859 = vpack.c.b16 %v795, %v795
  %v860 = vpack.c.b16 %v796, %v796
  %v861 = vpack.c.b16 %v797, %v797
  %v862 = vpack.c.b16 %v798, %v798
  %v863 = vpack.c.b16 %v799, %v799
  %v864 = vpack.c.b16 %v800, %v800
  %v865 = vpack.c.b16 %v801, %v801
  %v866 = vpack.c.b16 %v802, %v802
  %v867 = vpack.c.b16 %v803, %v803
  %v868 = vpack.c.b16 %v804, %v804
  %v869 = vpack.c.b16 %v805, %v805
  %v870 = vpack.c.b16 %v806, %v806
  %v871 = vpack.c.b16 %v807, %v807
  %v872 = vpack.c.b16 %v808, %v808
  %v873 = vpack.c.b16 %v809, %v809
  %v874 = vpack.c.b16 %v810, %v810
  %v875 = vpack.c.b16 %v811, %v811
  %v876 = vpack.c.b16 %v812, %v812
  %v877 = vpack.c.b16 %v813, %v813
  %v878 = vpack.c.b16 %v814, %v814
  %v879 = vpack.c.b16 %v815, %v815
  %v880 = vpack.c.b16 %v816, %v816
  %v881 = vpack.c.b16 %v817, %v817
  %v882 = vpack.c.b16 %v818, %v818
  %v883 = vpack.c.b16 %v819, %v819
  %v884 = vpack.c.b16 %v820, %v820
  %v885 = vpack.c.b16 %v821, %v821
  %v886 = vpack.c.b16 %v822, %v822
  %v887 = vpack.c.b16 %v823, %v823
  %v888 = vpack.c.b16 %v824, %v824
  %v889 = vpack.c.b16 %v825, %v825
  %v890 = vpack.c.b16 %v826, %v826
  %v891 = vpack.c.b16 %v827, %v827
  %v892 = vpack.c.b16 %v828, %v828
  %v893 = vpack.c.b16 %v829, %v829
  %v894 = vpack.c.b16 %v830, %v830
  %v895 = vpack.c.b16 %v831, %v831
  %v896 = vpack.c.b16 %v832, %v832
  %v897 = vpack.c.b16 %v833, %v833
  %v898 = vpack.c.b16 %v834, %v834
  %v899 = vpack.c.b16 %v835, %v835
  %v900 = vpack.c.b16 %v836, %v836
  %v901 = vpack.c.b16 %v837, %v837
  %vm966 = vcmask 60416
  %967 = vst.msk [vmem:[%s3] sm:$0xf] %vm966, %v838
  %968 = vst.msk [vmem:[%s3 + $0x4] sm:$0xf] %vm966, %v839
  %969 = vst.msk [vmem:[%s3 + $0x8] sm:$0xf] %vm966, %v840
  %970 = vst.msk [vmem:[%s3 + $0xc] sm:$0xf] %vm966, %v841
  %971 = vst.msk [vmem:[%s3 + $0x10] sm:$0xf] %vm966, %v842
  %972 = vst.msk [vmem:[%s3 + $0x14] sm:$0xf] %vm966, %v843
  %973 = vst.msk [vmem:[%s3 + $0x18] sm:$0xf] %vm966, %v844
  %974 = vst.msk [vmem:[%s3 + $0x1c] sm:$0xf] %vm966, %v845
  %975 = vst.msk [vmem:[%s3 + $0x20] sm:$0xf] %vm966, %v846
  %976 = vst.msk [vmem:[%s3 + $0x24] sm:$0xf] %vm966, %v847
  %977 = vst.msk [vmem:[%s3 + $0x28] sm:$0xf] %vm966, %v848
  %978 = vst.msk [vmem:[%s3 + $0x2c] sm:$0xf] %vm966, %v849
  %979 = vst.msk [vmem:[%s3 + $0x30] sm:$0xf] %vm966, %v850
  %980 = vst.msk [vmem:[%s3 + $0x34] sm:$0xf] %vm966, %v851
  %981 = vst.msk [vmem:[%s3 + $0x38] sm:$0xf] %vm966, %v852
  %982 = vst.msk [vmem:[%s3 + $0x3c] sm:$0xf] %vm966, %v853
  %983 = vst.msk [vmem:[%s3 + $0x40] sm:$0xf] %vm966, %v854
  %984 = vst.msk [vmem:[%s3 + $0x44] sm:$0xf] %vm966, %v855
  %985 = vst.msk [vmem:[%s3 + $0x48] sm:$0xf] %vm966, %v856
  %986 = vst.msk [vmem:[%s3 + $0x4c] sm:$0xf] %vm966, %v857
  %987 = vst.msk [vmem:[%s3 + $0x50] sm:$0xf] %vm966, %v858
  %988 = vst.msk [vmem:[%s3 + $0x54] sm:$0xf] %vm966, %v859
  %989 = vst.msk [vmem:[%s3 + $0x58] sm:$0xf] %vm966, %v860
  %990 = vst.msk [vmem:[%s3 + $0x5c] sm:$0xf] %vm966, %v861
  %991 = vst.msk [vmem:[%s3 + $0x60] sm:$0xf] %vm966, %v862
  %992 = vst.msk [vmem:[%s3 + $0x64] sm:$0xf] %vm966, %v863
  %993 = vst.msk [vmem:[%s3 + $0x68] sm:$0xf] %vm966, %v864
  %994 = vst.msk [vmem:[%s3 + $0x6c] sm:$0xf] %vm966, %v865
  %995 = vst.msk [vmem:[%s3 + $0x70] sm:$0xf] %vm966, %v866
  %996 = vst.msk [vmem:[%s3 + $0x74] sm:$0xf] %vm966, %v867
  %997 = vst.msk [vmem:[%s3 + $0x78] sm:$0xf] %vm966, %v868
  %998 = vst.msk [vmem:[%s3 + $0x7c] sm:$0xf] %vm966, %v869
  %999 = vst.msk [vmem:[%s3 + $0x80] sm:$0xf] %vm966, %v870
  %1000 = vst.msk [vmem:[%s3 + $0x84] sm:$0xf] %vm966, %v871
  %1001 = vst.msk [vmem:[%s3 + $0x88] sm:$0xf] %vm966, %v872
  %1002 = vst.msk [vmem:[%s3 + $0x8c] sm:$0xf] %vm966, %v873
  %1003 = vst.msk [vmem:[%s3 + $0x90] sm:$0xf] %vm966, %v874
  %1004 = vst.msk [vmem:[%s3 + $0x94] sm:$0xf] %vm966, %v875
  %1005 = vst.msk [vmem:[%s3 + $0x98] sm:$0xf] %vm966, %v876
  %1006 = vst.msk [vmem:[%s3 + $0x9c] sm:$0xf] %vm966, %v877
  %1007 = vst.msk [vmem:[%s3 + $0xa0] sm:$0xf] %vm966, %v878
  %1008 = vst.msk [vmem:[%s3 + $0xa4] sm:$0xf] %vm966, %v879
  %1009 = vst.msk [vmem:[%s3 + $0xa8] sm:$0xf] %vm966, %v880
  %1010 = vst.msk [vmem:[%s3 + $0xac] sm:$0xf] %vm966, %v881
  %1011 = vst.msk [vmem:[%s3 + $0xb0] sm:$0xf] %vm966, %v882
  %1012 = vst.msk [vmem:[%s3 + $0xb4] sm:$0xf] %vm966, %v883
  %1013 = vst.msk [vmem:[%s3 + $0xb8] sm:$0xf] %vm966, %v884
  %1014 = vst.msk [vmem:[%s3 + $0xbc] sm:$0xf] %vm966, %v885
  %1015 = vst.msk [vmem:[%s3 + $0xc0] sm:$0xf] %vm966, %v886
  %1016 = vst.msk [vmem:[%s3 + $0xc4] sm:$0xf] %vm966, %v887
  %1017 = vst.msk [vmem:[%s3 + $0xc8] sm:$0xf] %vm966, %v888
  %1018 = vst.msk [vmem:[%s3 + $0xcc] sm:$0xf] %vm966, %v889
  %1019 = vst.msk [vmem:[%s3 + $0xd0] sm:$0xf] %vm966, %v890
  %1020 = vst.msk [vmem:[%s3 + $0xd4] sm:$0xf] %vm966, %v891
  %1021 = vst.msk [vmem:[%s3 + $0xd8] sm:$0xf] %vm966, %v892
  %1022 = vst.msk [vmem:[%s3 + $0xdc] sm:$0xf] %vm966, %v893
  %1023 = vst.msk [vmem:[%s3 + $0xe0] sm:$0xf] %vm966, %v894
  %1024 = vst.msk [vmem:[%s3 + $0xe4] sm:$0xf] %vm966, %v895
  %1025 = vst.msk [vmem:[%s3 + $0xe8] sm:$0xf] %vm966, %v896
  %1026 = vst.msk [vmem:[%s3 + $0xec] sm:$0xf] %vm966, %v897
  %1027 = vst.msk [vmem:[%s3 + $0xf0] sm:$0xf] %vm966, %v898
  %1028 = vst.msk [vmem:[%s3 + $0xf4] sm:$0xf] %vm966, %v899
  %1029 = vst.msk [vmem:[%s3 + $0xf8] sm:$0xf] %vm966, %v900
  %1030 = vst.msk [vmem:[%s3 + $0xfc] sm:$0xf] %vm966, %v901
  // Predicated region
  $region14: #{_lambda_.9} parent=0 // pred_check
    _
  $region15: #{_lambda_.9} parent=0 // pred_check_branch
    %1032 = sbr.rel (0) target = $region17
  $region16: #{_lambda_.9} parent=0 // pred_region
    _
  $region17: #{_lambda_.9} parent=0 // pred_fallthru
    _
  // Predicated region
  $region18: #{_lambda_.9} parent=0 // pred_check
    _
  $region19: #{_lambda_.9} parent=0 // pred_check_branch
    %1034 = sbr.rel (0) target = $region21
  $region20: #{_lambda_.9} parent=0 // pred_region
    _
  $region21: #{_lambda_.9} parent=0 // pred_fallthru
    _

// kernel: _lambda_.10
$region0: #{_lambda_.10}
  #allocation0 [shape = 'u32[]', space=smem, size = 0x4, offset = 0x4, fixed_abs, tag = 'smem constant byte address 0x4 - core index']
  #allocation1 [shape = 'u32[144,128]{1,0:T(1,128)}', space=vmem, size = 0x12000, scoped, tag = 'internal scratch']
  %s0 = inlined_call_operand.vmem [shape: bf16[656,8], index: 0, kind: input, shape index: {}]
  %s1 = inlined_call_operand.vmem [shape: bf16[176,8], index: 1, kind: output, shape index: {}]
  %s2 = sld [smem:[#allocation0]]
  $region37: #{_lambda_.10} parent=0
    _
  %s4 = ssub.s32 1, %s2
  %s5 = scalar_select 0, %s4, %s2
  loop: start=0, step=1, limit=4
  $region2: #{_lambda_.10} parent=0 // loop_pre_header
    _
  $region3: #{_lambda_.10} parent=0 // loop_header
    %s7 = sphi 0, %s11
    %p8 = scmp.ge.s32.totalorder %s7, 4
    %s17 = sphi 0, %s19
    %s20 = sphi 0, %s17
    %s21 = sphi 0, %s20
    %s37 = sphi 0, %s21
    %s43 = sphi 0, %s45
    %s46 = sphi 0, %s43
    %s47 = sphi 0, %s46
    %s63 = sphi 0, %s47
  $region4: #{_lambda_.10} parent=0 // loop_header_branch
    %10 = sbr.rel (%p8) target = $region8
  $region5: #{_lambda_.10} parent=0 // loop_body
    %s12 = ssub.s32 %s7, 1
    %s13 = ssub.s32 %s7, 2
    %s14 = sadd.s32 %s7, 1
    %s15 = ssub.s32 %s7, %s14
    %p16 = scmp.eq.s32.totalorder %s15, 0
    %s18 = sadd.s32 %s17, 1
    %s19 = scalar_select %p16, %s17, %s18
    %p22 = pneg %p16
    %p23 = scmp.eq.s32.totalorder %s7, 1
    %p24 = por %p22, %p23
    %p25 = scmp.ne.s32.totalorder %s17, %s20
    %p26 = scmp.eq.s32.totalorder %s7, 0
    %p27 = por %p25, %p26
    %p28 = scmp.ne.s32.totalorder %s17, %s20
    %p29 = scmp.eq.s32.totalorder %s12, 1
    %p30 = por %p28, %p29
    %p31 = scmp.ne.s32.totalorder %s20, %s21
    %p32 = scmp.eq.s32.totalorder %s12, 0
    %p33 = por %p31, %p32
    %p34 = scmp.ne.s32.totalorder %s20, %s21
    %p35 = scmp.eq.s32.totalorder %s13, 1
    %p36 = por %p34, %p35
    %p38 = scmp.ne.s32.totalorder %s21, %s37
    %p39 = scmp.eq.s32.totalorder %s13, 0
    %p40 = por %p38, %p39
    %s41 = ssub.s32 %s7, %s14
    %p42 = scmp.eq.s32.totalorder %s41, 0
    %s44 = sadd.s32 %s43, 1
    %s45 = scalar_select %p42, %s43, %s44
    %p48 = pneg %p42
    %p49 = scmp.eq.s32.totalorder %s7, 1
    %p50 = por %p48, %p49
    %p51 = scmp.ne.s32.totalorder %s43, %s46
    %p52 = scmp.eq.s32.totalorder %s7, 0
    %p53 = por %p51, %p52
    %p54 = scmp.ne.s32.totalorder %s43, %s46
    %p55 = scmp.eq.s32.totalorder %s12, 1
    %p56 = por %p54, %p55
    %p57 = scmp.ne.s32.totalorder %s46, %s47
    %p58 = scmp.eq.s32.totalorder %s12, 0
    %p59 = por %p57, %p58
    %p60 = scmp.ne.s32.totalorder %s46, %s47
    %p61 = scmp.eq.s32.totalorder %s13, 1
    %p62 = por %p60, %p61
    %p64 = scmp.ne.s32.totalorder %s47, %s63
    %p65 = scmp.eq.s32.totalorder %s13, 0
    %p66 = por %p64, %p65
    %p67 = scmp.le.s32.totalorder 1, %s7
    %p68 = scmp.lt.s32.totalorder %s7, 3
    %p69 = pnand %p67, %p68
    %p70 = pneg %p69
    // Predicated region
    $region9: #{_lambda_.10} parent=5 // pred_check
      _
    $region10: #{_lambda_.10} parent=5 // pred_check_branch
      %72 = sbr.rel (%p69) target = $region12
    $region11: #{_lambda_.10} parent=5 // pred_region
      %s73 = ssub.s32 %s7, 1
    $region12: #{_lambda_.10} parent=5 // pred_fallthru
      _
    %p74 = scmp.lt.s32.totalorder %s7, 2
    // Predicated region
    $region13: #{_lambda_.10} parent=5 // pred_check
      %p75 = pneg %p74
    $region14: #{_lambda_.10} parent=5 // pred_check_branch
      %77 = sbr.rel (%p75) target = $region16
    $region15: #{_lambda_.10} parent=5 // pred_region
      // Predicated region
      $region17: #{_lambda_.10} parent=15 // pred_check
        %p78 = pneg %p27
      $region18: #{_lambda_.10} parent=15 // pred_check_branch
        %80 = sbr.rel (%p78) target = $region20
      $region19: #{_lambda_.10} parent=15 // pred_region
        %s81 = smul.u32 41, %s7
        %p82 = scmp.lt.s32.totalorder %s81, 81
        %s83 = scalar_select %p82, %s81, 81
        %s84 = smul.addr %s83, 4
        %s85 = scalar_lea.vmem %s0, %s84
        %s86 = smul.u32 41, %s7
      $region20: #{_lambda_.10} parent=15 // pred_fallthru
        _
    $region16: #{_lambda_.10} parent=5 // pred_fallthru
      _
    %p87 = scmp.le.s32.totalorder 1, %s7
    %p88 = scmp.lt.s32.totalorder %s7, 3
    %p89 = pnand %p87, %p88
    %p90 = pneg %p89
    // Predicated region
    $region21: #{_lambda_.10} parent=5 // pred_check
      _
    $region22: #{_lambda_.10} parent=5 // pred_check_branch
      %92 = sbr.rel (%p89) target = $region24
    $region23: #{_lambda_.10} parent=5 // pred_region
      %s93 = ssub.s32 %s7, 1
      %s94 = smul.u32 41, %s12
      %p95 = scmp.lt.s32.totalorder %s94, 81
      %s96 = scalar_select %p95, %s94, 81
      %s97 = smul.addr %s96, 4
      %s98 = scalar_lea.vmem %s0, %s97
      %p99 = pneg %p33
      %p100 = pneg %p30
      %p101 = pneg %p59
      %p102 = pneg %p56
      %s103 = smul.u32 11, %s12
      %p104 = scmp.lt.s32.totalorder %s103, 21
      %s105 = scalar_select %p104, %s103, 21
      %s106 = smul.addr %s105, 4
      %s107 = scalar_lea.vmem %s1, %s106
      %s108 = smul.u32 41, %s12
      %p109 = scmp.lt.s32.totalorder %s108, 81
      %s110 = scalar_select %p109, %s108, 81
      %s111 = smul.addr %s110, 4
      %s112 = scalar_lea.vmem %s0, %s111
      %s113 = smul.u32 41, %s12
      %s114 = smul.u32 11, %s12
      %p115 = scmp.lt.s32.totalorder %s114, 21
      %s116 = scalar_select %p115, %s114, 21
      %s117 = smul.addr %s116, 4
      %s118 = scalar_lea.vmem %s1, %s117
      %s119 = smul.u32 11, %s12
      %v120 = vld [vmem:[%s112] sm:$0xf]
      %v121 = vld [vmem:[%s112 + $0x4] sm:$0xf]
      %v122 = vld [vmem:[%s112 + $0x8] sm:$0xf]
      %v123 = vld [vmem:[%s112 + $0xc] sm:$0xf]
      %v124 = vld [vmem:[%s112 + $0x10] sm:$0xf]
      %v125 = vld [vmem:[%s112 + $0x14] sm:$0xf]
      %v126 = vld [vmem:[%s112 + $0x18] sm:$0xf]
      %v127 = vld [vmem:[%s112 + $0x1c] sm:$0xf]
      %v128 = vld [vmem:[%s112 + $0x20] sm:$0xf]
      %v129 = vunpack.c.l.bf16 %v120
      %v130 = vunpack.c.l.bf16 %v121
      %v131 = vunpack.c.l.bf16 %v122
      %v132 = vunpack.c.l.bf16 %v123
      %v133 = vunpack.c.l.bf16 %v124
      %v134 = vunpack.c.l.bf16 %v125
      %v135 = vunpack.c.l.bf16 %v126
      %v136 = vunpack.c.l.bf16 %v127
      %v137 = vunpack.c.l.bf16 %v128
      %v138 = vld [vmem:[%s112 + $0x28] sm:$0xf]
      %v139 = vld [vmem:[%s112 + $0x2c] sm:$0xf]
      %v140 = vld [vmem:[%s112 + $0x30] sm:$0xf]
      %v141 = vld [vmem:[%s112 + $0x34] sm:$0xf]
      %v142 = vld [vmem:[%s112 + $0x38] sm:$0xf]
      %v143 = vld [vmem:[%s112 + $0x3c] sm:$0xf]
      %v144 = vld [vmem:[%s112 + $0x40] sm:$0xf]
      %v145 = vld [vmem:[%s112 + $0x44] sm:$0xf]
      %v146 = vld [vmem:[%s112 + $0x48] sm:$0xf]
      %v147 = vunpack.c.l.bf16 %v138
      %v148 = vunpack.c.l.bf16 %v139
      %v149 = vunpack.c.l.bf16 %v140
      %v150 = vunpack.c.l.bf16 %v141
      %v151 = vunpack.c.l.bf16 %v142
      %v152 = vunpack.c.l.bf16 %v143
      %v153 = vunpack.c.l.bf16 %v144
      %v154 = vunpack.c.l.bf16 %v145
      %v155 = vunpack.c.l.bf16 %v146
      %vm165 = vcmask 1046528
      %v166 = vrot.slane %v147, 1
      %v167 = vrot.slane %v148, 1
      %v168 = vsel %vm165, %v166, %v167
      %v169 = vrot.slane %v149, 1
      %v170 = vsel %vm165, %v167, %v169
      %v171 = vrot.slane %v150, 1
      %v172 = vsel %vm165, %v169, %v171
      %v173 = vrot.slane %v151, 1
      %v174 = vsel %vm165, %v171, %v173
      %v175 = vrot.slane %v152, 1
      %v176 = vsel %vm165, %v173, %v175
      %v177 = vrot.slane %v153, 1
      %v178 = vsel %vm165, %v175, %v177
      %v179 = vrot.slane %v154, 1
      %v180 = vsel %vm165, %v177, %v179
      %v181 = vrot.slane %v155, 1
      %v182 = vsel %vm165, %v179, %v181
      %v192 = vmax.f32 %v129, %v168
      %v193 = vmax.f32 %v130, %v170
      %v194 = vmax.f32 %v131, %v172
      %v195 = vmax.f32 %v132, %v174
      %v196 = vmax.f32 %v133, %v176
      %v197 = vmax.f32 %v134, %v178
      %v198 = vmax.f32 %v135, %v180
      %v199 = vmax.f32 %v136, %v182
      %v200 = vmax.f32 %v137, %v181
      %v210 = vrot.slane %v129, 1
      %v211 = vrot.slane %v130, 1
      %v212 = vsel %vm165, %v210, %v211
      %v213 = vrot.slane %v131, 1
      %v214 = vsel %vm165, %v211, %v213
      %v215 = vrot.slane %v132, 1
      %v216 = vsel %vm165, %v213, %v215
      %v217 = vrot.slane %v133, 1
      %v218 = vsel %vm165, %v215, %v217
      %v219 = vrot.slane %v134, 1
      %v220 = vsel %vm165, %v217, %v219
      %v221 = vrot.slane %v135, 1
      %v222 = vsel %vm165, %v219, %v221
      %v223 = vrot.slane %v136, 1
      %v224 = vsel %vm165, %v221, %v223
      %v225 = vrot.slane %v137, 1
      %v226 = vsel %vm165, %v223, %v225
      %v236 = vmax.f32 %v192, %v212
      %v237 = vmax.f32 %v193, %v214
      %v238 = vmax.f32 %v194, %v216
      %v239 = vmax.f32 %v195, %v218
      %v240 = vmax.f32 %v196, %v220
      %v241 = vmax.f32 %v197, %v222
      %v242 = vmax.f32 %v198, %v224
      %v243 = vmax.f32 %v199, %v226
      %v244 = vmax.f32 %v200, %v225
      %v245 = vld [vmem:[%s112 + $0x50] sm:$0xe]
      %v246 = vld [vmem:[%s112 + $0x54] sm:$0xf]
      %v247 = vld [vmem:[%s112 + $0x58] sm:$0xf]
      %v248 = vld [vmem:[%s112 + $0x5c] sm:$0xf]
      %v249 = vld [vmem:[%s112 + $0x60] sm:$0xf]
      %v250 = vld [vmem:[%s112 + $0x64] sm:$0xf]
      %v251 = vld [vmem:[%s112 + $0x68] sm:$0xf]
      %v252 = vld [vmem:[%s112 + $0x6c] sm:$0xf]
      %v253 = vld [vmem:[%s112 + $0x70] sm:$0xf]
      %v254 = vld [vmem:[%s112 + $0x74] sm:$0x1]
      %v255 = vunpack.c.l.bf16 %v245
      %v256 = vunpack.c.l.bf16 %v246
      %v257 = vunpack.c.l.bf16 %v247
      %v258 = vunpack.c.l.bf16 %v248
      %v259 = vunpack.c.l.bf16 %v249
      %v260 = vunpack.c.l.bf16 %v250
      %v261 = vunpack.c.l.bf16 %v251
      %v262 = vunpack.c.l.bf16 %v252
      %v263 = vunpack.c.l.bf16 %v253
      %v264 = vunpack.c.l.bf16 %v254
      %vm275 = vcmask 1045504
      %v276 = vrot.slane %v255, 2
      %v277 = vrot.slane %v256, 2
      %v278 = vsel %vm275, %v276, %v277
      %v279 = vrot.slane %v257, 2
      %v280 = vsel %vm275, %v277, %v279
      %v281 = vrot.slane %v258, 2
      %v282 = vsel %vm275, %v279, %v281
      %v283 = vrot.slane %v259, 2
      %v284 = vsel %vm275, %v281, %v283
      %v285 = vrot.slane %v260, 2
      %v286 = vsel %vm275, %v283, %v285
      %v287 = vrot.slane %v261, 2
      %v288 = vsel %vm275, %v285, %v287
      %v289 = vrot.slane %v262, 2
      %v290 = vsel %vm275, %v287, %v289
      %v291 = vrot.slane %v263, 2
      %v292 = vsel %vm275, %v289, %v291
      %v293 = vrot.slane %v264, 2
      %v294 = vsel %vm275, %v291, %v293
      %v304 = vmax.f32 %v236, %v278
      %v305 = vmax.f32 %v237, %v280
      %v306 = vmax.f32 %v238, %v282
      %v307 = vmax.f32 %v239, %v284
      %v308 = vmax.f32 %v240, %v286
      %v309 = vmax.f32 %v241, %v288
      %v310 = vmax.f32 %v242, %v290
      %v311 = vmax.f32 %v243, %v292
      %v312 = vmax.f32 %v244, %v294
      %v313 = vld [vmem:[%s112 + $0x78] sm:$0xe]
      %v314 = vld [vmem:[%s112 + $0x7c] sm:$0xf]
      %v315 = vld [vmem:[%s112 + $0x80] sm:$0xf]
      %v316 = vld [vmem:[%s112 + $0x84] sm:$0xf]
      %v317 = vld [vmem:[%s112 + $0x88] sm:$0xf]
      %v318 = vld [vmem:[%s112 + $0x8c] sm:$0xf]
      %v319 = vld [vmem:[%s112 + $0x90] sm:$0xf]
      %v320 = vld [vmem:[%s112 + $0x94] sm:$0xf]
      %v321 = vld [vmem:[%s112 + $0x98] sm:$0xf]
      %v322 = vld [vmem:[%s112 + $0x9c] sm:$0x1]
      %v323 = vunpack.c.l.bf16 %v313
      %v324 = vunpack.c.l.bf16 %v314
      %v325 = vunpack.c.l.bf16 %v315
      %v326 = vunpack.c.l.bf16 %v316
      %v327 = vunpack.c.l.bf16 %v317
      %v328 = vunpack.c.l.bf16 %v318
      %v329 = vunpack.c.l.bf16 %v319
      %v330 = vunpack.c.l.bf16 %v320
      %v331 = vunpack.c.l.bf16 %v321
      %v332 = vunpack.c.l.bf16 %v322
      %vm343 = vcmask 1044480
      %v344 = vrot.slane %v323, 3
      %v345 = vrot.slane %v324, 3
      %v346 = vsel %vm343, %v344, %v345
      %v347 = vrot.slane %v325, 3
      %v348 = vsel %vm343, %v345, %v347
      %v349 = vrot.slane %v326, 3
      %v350 = vsel %vm343, %v347, %v349
      %v351 = vrot.slane %v327, 3
      %v352 = vsel %vm343, %v349, %v351
      %v353 = vrot.slane %v328, 3
      %v354 = vsel %vm343, %v351, %v353
      %v355 = vrot.slane %v329, 3
      %v356 = vsel %vm343, %v353, %v355
      %v357 = vrot.slane %v330, 3
      %v358 = vsel %vm343, %v355, %v357
      %v359 = vrot.slane %v331, 3
      %v360 = vsel %vm343, %v357, %v359
      %v361 = vrot.slane %v332, 3
      %v362 = vsel %vm343, %v359, %v361
      %v372 = vmax.f32 %v304, %v346
      %v373 = vmax.f32 %v305, %v348
      %v374 = vmax.f32 %v306, %v350
      %v375 = vmax.f32 %v307, %v352
      %v376 = vmax.f32 %v308, %v354
      %v377 = vmax.f32 %v309, %v356
      %v378 = vmax.f32 %v310, %v358
      %v379 = vmax.f32 %v311, %v360
      %v380 = vmax.f32 %v312, %v362
      %v381 = vrot.slane %v255, 3
      %v382 = vrot.slane %v256, 3
      %v383 = vsel %vm343, %v381, %v382
      %v384 = vrot.slane %v257, 3
      %v385 = vsel %vm343, %v382, %v384
      %v386 = vrot.slane %v258, 3
      %v387 = vsel %vm343, %v384, %v386
      %v388 = vrot.slane %v259, 3
      %v389 = vsel %vm343, %v386, %v388
      %v390 = vrot.slane %v260, 3
      %v391 = vsel %vm343, %v388, %v390
      %v392 = vrot.slane %v261, 3
      %v393 = vsel %vm343, %v390, %v392
      %v394 = vrot.slane %v262, 3
      %v395 = vsel %vm343, %v392, %v394
      %v396 = vrot.slane %v263, 3
      %v397 = vsel %vm343, %v394, %v396
      %v398 = vrot.slane %v264, 3
      %v399 = vsel %vm343, %v396, %v398
      %v409 = vmax.f32 %v372, %v383
      %v410 = vmax.f32 %v373, %v385
      %v411 = vmax.f32 %v374, %v387
      %v412 = vmax.f32 %v375, %v389
      %v413 = vmax.f32 %v376, %v391
      %v414 = vmax.f32 %v377, %v393
      %v415 = vmax.f32 %v378, %v395
      %v416 = vmax.f32 %v379, %v397
      %v417 = vmax.f32 %v380, %v399
      %v418 = vld [vmem:[%s112 + $0x24] sm:$0xf]
      %v419 = vunpack.c.l.bf16 %v418
      %v421 = vrot.slane %v419, 1
      %v422 = vsel %vm165, %v225, %v421
      %v425 = vmax.f32 %v409, %v214
      %v426 = vmax.f32 %v410, %v216
      %v427 = vmax.f32 %v411, %v218
      %v428 = vmax.f32 %v412, %v220
      %v429 = vmax.f32 %v413, %v222
      %v430 = vmax.f32 %v414, %v224
      %v431 = vmax.f32 %v415, %v226
      %v432 = vmax.f32 %v416, %v422
      %v433 = vmax.f32 %v417, %v421
      %v434 = vld [vmem:[%s112 + $0x2c] sm:$0xe]
      %v435 = vld [vmem:[%s112 + $0x4c] sm:$0xf]
      %v436 = vld [vmem:[%s112 + $0x50] sm:$0x1]
      %v437 = vunpack.c.l.bf16 %v434
      %v438 = vunpack.c.l.bf16 %v435
      %v439 = vunpack.c.l.bf16 %v436
      %v443 = vrot.slane %v437, 2
      %v444 = vrot.slane %v149, 2
      %v445 = vsel %vm275, %v443, %v444
      %v446 = vrot.slane %v150, 2
      %v447 = vsel %vm275, %v444, %v446
      %v448 = vrot.slane %v151, 2
      %v449 = vsel %vm275, %v446, %v448
      %v450 = vrot.slane %v152, 2
      %v451 = vsel %vm275, %v448, %v450
      %v452 = vrot.slane %v153, 2
      %v453 = vsel %vm275, %v450, %v452
      %v454 = vrot.slane %v154, 2
      %v455 = vsel %vm275, %v452, %v454
      %v456 = vrot.slane %v155, 2
      %v457 = vsel %vm275, %v454, %v456
      %v458 = vrot.slane %v438, 2
      %v459 = vsel %vm275, %v456, %v458
      %v460 = vrot.slane %v439, 2
      %v461 = vsel %vm275, %v458, %v460
      %v471 = vmax.f32 %v425, %v445
      %v472 = vmax.f32 %v426, %v447
      %v473 = vmax.f32 %v427, %v449
      %v474 = vmax.f32 %v428, %v451
      %v475 = vmax.f32 %v429, %v453
      %v476 = vmax.f32 %v430, %v455
      %v477 = vmax.f32 %v431, %v457
      %v478 = vmax.f32 %v432, %v459
      %v479 = vmax.f32 %v433, %v461
      %v480 = vld [vmem:[%s112 + $0x4] sm:$0xe]
      %v481 = vld [vmem:[%s112 + $0x28] sm:$0x1]
      %v482 = vunpack.c.l.bf16 %v480
      %v483 = vunpack.c.l.bf16 %v481
      %v486 = vrot.slane %v482, 2
      %v487 = vrot.slane %v131, 2
      %v488 = vsel %vm275, %v486, %v487
      %v489 = vrot.slane %v132, 2
      %v490 = vsel %vm275, %v487, %v489
      %v491 = vrot.slane %v133, 2
      %v492 = vsel %vm275, %v489, %v491
      %v493 = vrot.slane %v134, 2
      %v494 = vsel %vm275, %v491, %v493
      %v495 = vrot.slane %v135, 2
      %v496 = vsel %vm275, %v493, %v495
      %v497 = vrot.slane %v136, 2
      %v498 = vsel %vm275, %v495, %v497
      %v499 = vrot.slane %v137, 2
      %v500 = vsel %vm275, %v497, %v499
      %v501 = vrot.slane %v419, 2
      %v502 = vsel %vm275, %v499, %v501
      %v503 = vrot.slane %v483, 2
      %v504 = vsel %vm275, %v501, %v503
      %v514 = vmax.f32 %v471, %v488
      %v515 = vmax.f32 %v472, %v490
      %v516 = vmax.f32 %v473, %v492
      %v517 = vmax.f32 %v474, %v494
      %v518 = vmax.f32 %v475, %v496
      %v519 = vmax.f32 %v476, %v498
      %v520 = vmax.f32 %v477, %v500
      %v521 = vmax.f32 %v478, %v502
      %v522 = vmax.f32 %v479, %v504
      %v523 = vpack.c.bf16 %v515, %v514
      %v524 = vpack.c.bf16 %v517, %v516
      %v525 = vpack.c.bf16 %v519, %v518
      %v526 = vpack.c.bf16 %v521, %v520
      %v527 = vpack.c.bf16 %v522, %v522
      %v533 = vunpack.c.l.b16 %v523
      %v534 = vunpack.c.h.b16 %v523
      %v535 = vunpack.c.l.b16 %v524
      %v536 = vunpack.c.h.b16 %v524
      %v537 = vunpack.c.l.b16 %v525
      %v538 = vunpack.c.h.b16 %v525
      %v539 = vunpack.c.l.b16 %v526
      %v540 = vunpack.c.h.b16 %v526
      %v541 = vunpack.c.l.b16 %v527
      %v542 = vpack.c.b16 %v533, %v533
      %v543 = vpack.c.b16 %v534, %v534
      %v544 = vpack.c.b16 %v535, %v535
      %v545 = vpack.c.b16 %v536, %v536
      %v546 = vpack.c.b16 %v537, %v537
      %v547 = vpack.c.b16 %v538, %v538
      %v548 = vpack.c.b16 %v539, %v539
      %v549 = vpack.c.b16 %v540, %v540
      %v550 = vpack.c.b16 %v541, %v541
      %vm560 = vcmask 60416
      %561 = vst.msk [vmem:[%s118] sm:$0xf] %vm560, %v542
      %562 = vst.msk [vmem:[%s118 + $0x4] sm:$0xf] %vm560, %v543
      %563 = vst.msk [vmem:[%s118 + $0x8] sm:$0xf] %vm560, %v544
      %564 = vst.msk [vmem:[%s118 + $0xc] sm:$0xf] %vm560, %v545
      %565 = vst.msk [vmem:[%s118 + $0x10] sm:$0xf] %vm560, %v546
      %566 = vst.msk [vmem:[%s118 + $0x14] sm:$0xf] %vm560, %v547
      %567 = vst.msk [vmem:[%s118 + $0x18] sm:$0xf] %vm560, %v548
      %568 = vst.msk [vmem:[%s118 + $0x1c] sm:$0xf] %vm560, %v549
      %vm569 = vcmask 60416
      %vm570 = vsmask.f32 3328
      %vm571 = vmand %vm569, %vm570
      %v572 = vld [vmem:[%s118 + $0x20] sm:$0xf]
      %v573 = vsel %vm571, %v550, %v572
      %574 = vst [vmem:[%s118 + $0x20] sm:$0xf] %v573
      %s575 = smul.u32 11, %s12
      %p576 = scmp.lt.s32.totalorder %s575, 21
      %s577 = scalar_select %p576, %s575, 21
      %s578 = smul.addr %s577, 4
      %s579 = scalar_lea.vmem %s1, %s578
      // Predicated region
      $region25: #{_lambda_.10} parent=23 // pred_check
        %p580 = pneg %p56
      $region26: #{_lambda_.10} parent=23 // pred_check_branch
        %582 = sbr.rel (%p580) target = $region28
      $region27: #{_lambda_.10} parent=23 // pred_region
        %s583 = smul.u32 11, %s12
      $region28: #{_lambda_.10} parent=23 // pred_fallthru
        _
    $region24: #{_lambda_.10} parent=5 // pred_fallthru
      _
    %p584 = scmp.le.s32.totalorder 2, %s7
    // Predicated region
    $region29: #{_lambda_.10} parent=5 // pred_check
      %p585 = pneg %p584
    $region30: #{_lambda_.10} parent=5 // pred_check_branch
      %587 = sbr.rel (%p585) target = $region32
    $region31: #{_lambda_.10} parent=5 // pred_region
      %s588 = ssub.s32 %s7, 2
      // Predicated region
      $region33: #{_lambda_.10} parent=31 // pred_check
        %p589 = pneg %p62
      $region34: #{_lambda_.10} parent=31 // pred_check_branch
        %591 = sbr.rel (%p589) target = $region36
      $region35: #{_lambda_.10} parent=31 // pred_region
        %s592 = smul.u32 11, %s13
        %p593 = scmp.lt.s32.totalorder %s592, 21
        %s594 = scalar_select %p593, %s592, 21
        %s595 = smul.addr %s594, 4
        %s596 = scalar_lea.vmem %s1, %s595
      $region36: #{_lambda_.10} parent=31 // pred_fallthru
        _
    $region32: #{_lambda_.10} parent=5 // pred_fallthru
      _
  $region6: #{_lambda_.10} parent=0 // loop_footer
    %s11 = sadd.s32 1, %s7
  $region7: #{_lambda_.10} parent=0 // loop_footer_branch
    %6 = sbr.rel target = $region3
  $region8: #{_lambda_.10} parent=0 // loop_exit
    _

// kernel: _lambda_.11
$region0: #{_lambda_.11}
  #allocation0 [shape = 'u32[]', space=smem, size = 0x4, offset = 0x4, fixed_abs, tag = 'smem constant byte address 0x4 - core index']
  #allocation1 [shape = 'u32[144,128]{1,0:T(1,128)}', space=vmem, size = 0x12000, scoped, tag = 'internal scratch']
  #allocation2 [shape = 'f32[104,8]{1,0:T(8,128)}', space=vmem, size = 0xd000, scoped, tag = 'scratch operand']
  %s0 = inlined_call_operand.vmem [shape: bf16[208,9], index: 0, kind: input, shape index: {}]
  %s1 = inlined_call_operand.vmem [shape: f32[9,9], index: 1, kind: input, shape index: {}]
  %s2 = inlined_call_operand.vmem [shape: f32[1,9], index: 2, kind: input, shape index: {}]
  %s3 = inlined_call_operand.vmem [shape: bf16[9,8], index: 3, kind: input, shape index: {}]
  %s4 = inlined_call_operand.vmem [shape: f32[1,8], index: 4, kind: input, shape index: {}]
  %s5 = inlined_call_operand.vmem [shape: bf16[9,8], index: 5, kind: input, shape index: {}]
  %s6 = inlined_call_operand.vmem [shape: f32[9,8], index: 6, kind: input, shape index: {}]
  %s7 = inlined_call_operand.vmem [shape: f32[1,8], index: 7, kind: input, shape index: {}]
  %s8 = inlined_call_operand.vmem [shape: bf16[8,8], index: 8, kind: input, shape index: {}]
  %s9 = inlined_call_operand.vmem [shape: f32[1,8], index: 9, kind: input, shape index: {}]
  %s10 = inlined_call_operand.vmem [shape: bf16[64,16], index: 10, kind: output, shape index: {}]
  %s11 = sld [smem:[#allocation0]]
  $region73: #{_lambda_.11} parent=0
    _
  %s13 = ssub.s32 1, %s11
  %s14 = scalar_select 0, %s13, %s11
  loop: start=0, step=1, limit=4
  $region2: #{_lambda_.11} parent=0 // loop_pre_header
    _
  $region3: #{_lambda_.11} parent=0 // loop_header
    %s16 = sphi 0, %s20
    %p17 = scmp.ge.s32.totalorder %s16, 4
    %s26 = sphi 0, %s28
    %s29 = sphi 0, %s26
    %s30 = sphi 0, %s29
    %s46 = sphi 0, %s30
    %s50 = sphi 0, %s50
    %s52 = sphi 0, %s50
    %s53 = sphi 0, %s52
    %s67 = sphi 0, %s53
    %s71 = sphi 0, %s71
    %s73 = sphi 0, %s71
    %s74 = sphi 0, %s73
    %s88 = sphi 0, %s74
    %s92 = sphi 0, %s92
    %s94 = sphi 0, %s92
    %s95 = sphi 0, %s94
    %s109 = sphi 0, %s95
    %s113 = sphi 0, %s113
    %s115 = sphi 0, %s113
    %s116 = sphi 0, %s115
    %s130 = sphi 0, %s116
    %s134 = sphi 0, %s134
    %s136 = sphi 0, %s134
    %s137 = sphi 0, %s136
    %s151 = sphi 0, %s137
    %s155 = sphi 0, %s155
    %s157 = sphi 0, %s155
    %s158 = sphi 0, %s157
    %s172 = sphi 0, %s158
    %s176 = sphi 0, %s176
    %s178 = sphi 0, %s176
    %s179 = sphi 0, %s178
    %s193 = sphi 0, %s179
    %s197 = sphi 0, %s197
    %s199 = sphi 0, %s197
    %s200 = sphi 0, %s199
    %s214 = sphi 0, %s200
    %s218 = sphi 0, %s218
    %s220 = sphi 0, %s218
    %s221 = sphi 0, %s220
    %s235 = sphi 0, %s221
    %s241 = sphi 0, %s243
    %s244 = sphi 0, %s241
    %s245 = sphi 0, %s244
    %s261 = sphi 0, %s245
  $region4: #{_lambda_.11} parent=0 // loop_header_branch
    %19 = sbr.rel (%p17) target = $region8
  $region5: #{_lambda_.11} parent=0 // loop_body
    %s21 = ssub.s32 %s16, 1
    %s22 = ssub.s32 %s16, 2
    %s23 = sadd.s32 %s16, 1
    %s24 = ssub.s32 %s16, %s23
    %p25 = scmp.eq.s32.totalorder %s24, 0
    %s27 = sadd.s32 %s26, 1
    %s28 = scalar_select %p25, %s26, %s27
    %p31 = pneg %p25
    %p32 = scmp.eq.s32.totalorder %s16, 1
    %p33 = por %p31, %p32
    %p34 = scmp.ne.s32.totalorder %s26, %s29
    %p35 = scmp.eq.s32.totalorder %s16, 0
    %p36 = por %p34, %p35
    %p37 = scmp.ne.s32.totalorder %s26, %s29
    %p38 = scmp.eq.s32.totalorder %s21, 1
    %p39 = por %p37, %p38
    %p40 = scmp.ne.s32.totalorder %s29, %s30
    %p41 = scmp.eq.s32.totalorder %s21, 0
    %p42 = por %p40, %p41
    %p43 = scmp.ne.s32.totalorder %s29, %s30
    %p44 = scmp.eq.s32.totalorder %s22, 1
    %p45 = por %p43, %p44
    %p47 = scmp.ne.s32.totalorder %s30, %s46
    %p48 = scmp.eq.s32.totalorder %s22, 0
    %p49 = por %p47, %p48
    %s51 = sadd.s32 %s50, 1
    %p54 = scmp.eq.s32.totalorder %s16, 1
    %p55 = scmp.ne.s32.totalorder %s50, %s52
    %p56 = scmp.eq.s32.totalorder %s16, 0
    %p57 = por %p55, %p56
    %p58 = scmp.ne.s32.totalorder %s50, %s52
    %p59 = scmp.eq.s32.totalorder %s21, 1
    %p60 = por %p58, %p59
    %p61 = scmp.ne.s32.totalorder %s52, %s53
    %p62 = scmp.eq.s32.totalorder %s21, 0
    %p63 = por %p61, %p62
    %p64 = scmp.ne.s32.totalorder %s52, %s53
    %p65 = scmp.eq.s32.totalorder %s22, 1
    %p66 = por %p64, %p65
    %p68 = scmp.ne.s32.totalorder %s53, %s67
    %p69 = scmp.eq.s32.totalorder %s22, 0
    %p70 = por %p68, %p69
    %s72 = sadd.s32 %s71, 1
    %p75 = scmp.eq.s32.totalorder %s16, 1
    %p76 = scmp.ne.s32.totalorder %s71, %s73
    %p77 = scmp.eq.s32.totalorder %s16, 0
    %p78 = por %p76, %p77
    %p79 = scmp.ne.s32.totalorder %s71, %s73
    %p80 = scmp.eq.s32.totalorder %s21, 1
    %p81 = por %p79, %p80
    %p82 = scmp.ne.s32.totalorder %s73, %s74
    %p83 = scmp.eq.s32.totalorder %s21, 0
    %p84 = por %p82, %p83
    %p85 = scmp.ne.s32.totalorder %s73, %s74
    %p86 = scmp.eq.s32.totalorder %s22, 1
    %p87 = por %p85, %p86
    %p89 = scmp.ne.s32.totalorder %s74, %s88
    %p90 = scmp.eq.s32.totalorder %s22, 0
    %p91 = por %p89, %p90
    %s93 = sadd.s32 %s92, 1
    %p96 = scmp.eq.s32.totalorder %s16, 1
    %p97 = scmp.ne.s32.totalorder %s92, %s94
    %p98 = scmp.eq.s32.totalorder %s16, 0
    %p99 = por %p97, %p98
    %p100 = scmp.ne.s32.totalorder %s92, %s94
    %p101 = scmp.eq.s32.totalorder %s21, 1
    %p102 = por %p100, %p101
    %p103 = scmp.ne.s32.totalorder %s94, %s95
    %p104 = scmp.eq.s32.totalorder %s21, 0
    %p105 = por %p103, %p104
    %p106 = scmp.ne.s32.totalorder %s94, %s95
    %p107 = scmp.eq.s32.totalorder %s22, 1
    %p108 = por %p106, %p107
    %p110 = scmp.ne.s32.totalorder %s95, %s109
    %p111 = scmp.eq.s32.totalorder %s22, 0
    %p112 = por %p110, %p111
    %s114 = sadd.s32 %s113, 1
    %p117 = scmp.eq.s32.totalorder %s16, 1
    %p118 = scmp.ne.s32.totalorder %s113, %s115
    %p119 = scmp.eq.s32.totalorder %s16, 0
    %p120 = por %p118, %p119
    %p121 = scmp.ne.s32.totalorder %s113, %s115
    %p122 = scmp.eq.s32.totalorder %s21, 1
    %p123 = por %p121, %p122
    %p124 = scmp.ne.s32.totalorder %s115, %s116
    %p125 = scmp.eq.s32.totalorder %s21, 0
    %p126 = por %p124, %p125
    %p127 = scmp.ne.s32.totalorder %s115, %s116
    %p128 = scmp.eq.s32.totalorder %s22, 1
    %p129 = por %p127, %p128
    %p131 = scmp.ne.s32.totalorder %s116, %s130
    %p132 = scmp.eq.s32.totalorder %s22, 0
    %p133 = por %p131, %p132
    %s135 = sadd.s32 %s134, 1
    %p138 = scmp.eq.s32.totalorder %s16, 1
    %p139 = scmp.ne.s32.totalorder %s134, %s136
    %p140 = scmp.eq.s32.totalorder %s16, 0
    %p141 = por %p139, %p140
    %p142 = scmp.ne.s32.totalorder %s134, %s136
    %p143 = scmp.eq.s32.totalorder %s21, 1
    %p144 = por %p142, %p143
    %p145 = scmp.ne.s32.totalorder %s136, %s137
    %p146 = scmp.eq.s32.totalorder %s21, 0
    %p147 = por %p145, %p146
    %p148 = scmp.ne.s32.totalorder %s136, %s137
    %p149 = scmp.eq.s32.totalorder %s22, 1
    %p150 = por %p148, %p149
    %p152 = scmp.ne.s32.totalorder %s137, %s151
    %p153 = scmp.eq.s32.totalorder %s22, 0
    %p154 = por %p152, %p153
    %s156 = sadd.s32 %s155, 1
    %p159 = scmp.eq.s32.totalorder %s16, 1
    %p160 = scmp.ne.s32.totalorder %s155, %s157
    %p161 = scmp.eq.s32.totalorder %s16, 0
    %p162 = por %p160, %p161
    %p163 = scmp.ne.s32.totalorder %s155, %s157
    %p164 = scmp.eq.s32.totalorder %s21, 1
    %p165 = por %p163, %p164
    %p166 = scmp.ne.s32.totalorder %s157, %s158
    %p167 = scmp.eq.s32.totalorder %s21, 0
    %p168 = por %p166, %p167
    %p169 = scmp.ne.s32.totalorder %s157, %s158
    %p170 = scmp.eq.s32.totalorder %s22, 1
    %p171 = por %p169, %p170
    %p173 = scmp.ne.s32.totalorder %s158, %s172
    %p174 = scmp.eq.s32.totalorder %s22, 0
    %p175 = por %p173, %p174
    %s177 = sadd.s32 %s176, 1
    %p180 = scmp.eq.s32.totalorder %s16, 1
    %p181 = scmp.ne.s32.totalorder %s176, %s178
    %p182 = scmp.eq.s32.totalorder %s16, 0
    %p183 = por %p181, %p182
    %p184 = scmp.ne.s32.totalorder %s176, %s178
    %p185 = scmp.eq.s32.totalorder %s21, 1
    %p186 = por %p184, %p185
    %p187 = scmp.ne.s32.totalorder %s178, %s179
    %p188 = scmp.eq.s32.totalorder %s21, 0
    %p189 = por %p187, %p188
    %p190 = scmp.ne.s32.totalorder %s178, %s179
    %p191 = scmp.eq.s32.totalorder %s22, 1
    %p192 = por %p190, %p191
    %p194 = scmp.ne.s32.totalorder %s179, %s193
    %p195 = scmp.eq.s32.totalorder %s22, 0
    %p196 = por %p194, %p195
    %s198 = sadd.s32 %s197, 1
    %p201 = scmp.eq.s32.totalorder %s16, 1
    %p202 = scmp.ne.s32.totalorder %s197, %s199
    %p203 = scmp.eq.s32.totalorder %s16, 0
    %p204 = por %p202, %p203
    %p205 = scmp.ne.s32.totalorder %s197, %s199
    %p206 = scmp.eq.s32.totalorder %s21, 1
    %p207 = por %p205, %p206
    %p208 = scmp.ne.s32.totalorder %s199, %s200
    %p209 = scmp.eq.s32.totalorder %s21, 0
    %p210 = por %p208, %p209
    %p211 = scmp.ne.s32.totalorder %s199, %s200
    %p212 = scmp.eq.s32.totalorder %s22, 1
    %p213 = por %p211, %p212
    %p215 = scmp.ne.s32.totalorder %s200, %s214
    %p216 = scmp.eq.s32.totalorder %s22, 0
    %p217 = por %p215, %p216
    %s219 = sadd.s32 %s218, 1
    %p222 = scmp.eq.s32.totalorder %s16, 1
    %p223 = scmp.ne.s32.totalorder %s218, %s220
    %p224 = scmp.eq.s32.totalorder %s16, 0
    %p225 = por %p223, %p224
    %p226 = scmp.ne.s32.totalorder %s218, %s220
    %p227 = scmp.eq.s32.totalorder %s21, 1
    %p228 = por %p226, %p227
    %p229 = scmp.ne.s32.totalorder %s220, %s221
    %p230 = scmp.eq.s32.totalorder %s21, 0
    %p231 = por %p229, %p230
    %p232 = scmp.ne.s32.totalorder %s220, %s221
    %p233 = scmp.eq.s32.totalorder %s22, 1
    %p234 = por %p232, %p233
    %p236 = scmp.ne.s32.totalorder %s221, %s235
    %p237 = scmp.eq.s32.totalorder %s22, 0
    %p238 = por %p236, %p237
    %s239 = ssub.s32 %s16, %s23
    %p240 = scmp.eq.s32.totalorder %s239, 0
    %s242 = sadd.s32 %s241, 1
    %s243 = scalar_select %p240, %s241, %s242
    %p246 = pneg %p240
    %p247 = scmp.eq.s32.totalorder %s16, 1
    %p248 = por %p246, %p247
    %p249 = scmp.ne.s32.totalorder %s241, %s244
    %p250 = scmp.eq.s32.totalorder %s16, 0
    %p251 = por %p249, %p250
    %p252 = scmp.ne.s32.totalorder %s241, %s244
    %p253 = scmp.eq.s32.totalorder %s21, 1
    %p254 = por %p252, %p253
    %p255 = scmp.ne.s32.totalorder %s244, %s245
    %p256 = scmp.eq.s32.totalorder %s21, 0
    %p257 = por %p255, %p256
    %p258 = scmp.ne.s32.totalorder %s244, %s245
    %p259 = scmp.eq.s32.totalorder %s22, 1
    %p260 = por %p258, %p259
    %p262 = scmp.ne.s32.totalorder %s245, %s261
    %p263 = scmp.eq.s32.totalorder %s22, 0
    %p264 = por %p262, %p263
    %p265 = scmp.le.s32.totalorder 1, %s16
    %p266 = scmp.lt.s32.totalorder %s16, 3
    %p267 = pnand %p265, %p266
    %p268 = pneg %p267
    // Predicated region
    $region9: #{_lambda_.11} parent=5 // pred_check
      _
    $region10: #{_lambda_.11} parent=5 // pred_check_branch
      %270 = sbr.rel (%p267) target = $region12
    $region11: #{_lambda_.11} parent=5 // pred_region
      %s271 = ssub.s32 %s16, 1
      // Predicated region
      $region13: #{_lambda_.11} parent=11 // pred_check
        %p272 = pneg %p63
      $region14: #{_lambda_.11} parent=11 // pred_check_branch
        %274 = sbr.rel (%p272) target = $region16
      $region15: #{_lambda_.11} parent=11 // pred_region
        _
      $region16: #{_lambda_.11} parent=11 // pred_fallthru
        _
      // Predicated region
      $region17: #{_lambda_.11} parent=11 // pred_check
        %p275 = pneg %p84
      $region18: #{_lambda_.11} parent=11 // pred_check_branch
        %277 = sbr.rel (%p275) target = $region20
      $region19: #{_lambda_.11} parent=11 // pred_region
        _
      $region20: #{_lambda_.11} parent=11 // pred_fallthru
        _
      // Predicated region
      $region21: #{_lambda_.11} parent=11 // pred_check
        %p278 = pneg %p105
      $region22: #{_lambda_.11} parent=11 // pred_check_branch
        %280 = sbr.rel (%p278) target = $region24
      $region23: #{_lambda_.11} parent=11 // pred_region
        _
      $region24: #{_lambda_.11} parent=11 // pred_fallthru
        _
      // Predicated region
      $region25: #{_lambda_.11} parent=11 // pred_check
        %p281 = pneg %p126
      $region26: #{_lambda_.11} parent=11 // pred_check_branch
        %283 = sbr.rel (%p281) target = $region28
      $region27: #{_lambda_.11} parent=11 // pred_region
        _
      $region28: #{_lambda_.11} parent=11 // pred_fallthru
        _
      // Predicated region
      $region29: #{_lambda_.11} parent=11 // pred_check
        %p284 = pneg %p147
      $region30: #{_lambda_.11} parent=11 // pred_check_branch
        %286 = sbr.rel (%p284) target = $region32
      $region31: #{_lambda_.11} parent=11 // pred_region
        _
      $region32: #{_lambda_.11} parent=11 // pred_fallthru
        _
      // Predicated region
      $region33: #{_lambda_.11} parent=11 // pred_check
        %p287 = pneg %p168
      $region34: #{_lambda_.11} parent=11 // pred_check_branch
        %289 = sbr.rel (%p287) target = $region36
      $region35: #{_lambda_.11} parent=11 // pred_region
        _
      $region36: #{_lambda_.11} parent=11 // pred_fallthru
        _
      // Predicated region
      $region37: #{_lambda_.11} parent=11 // pred_check
        %p290 = pneg %p189
      $region38: #{_lambda_.11} parent=11 // pred_check_branch
        %292 = sbr.rel (%p290) target = $region40
      $region39: #{_lambda_.11} parent=11 // pred_region
        _
      $region40: #{_lambda_.11} parent=11 // pred_fallthru
        _
      // Predicated region
      $region41: #{_lambda_.11} parent=11 // pred_check
        %p293 = pneg %p210
      $region42: #{_lambda_.11} parent=11 // pred_check_branch
        %295 = sbr.rel (%p293) target = $region44
      $region43: #{_lambda_.11} parent=11 // pred_region
        _
      $region44: #{_lambda_.11} parent=11 // pred_fallthru
        _
      // Predicated region
      $region45: #{_lambda_.11} parent=11 // pred_check
        %p296 = pneg %p231
      $region46: #{_lambda_.11} parent=11 // pred_check_branch
        %298 = sbr.rel (%p296) target = $region48
      $region47: #{_lambda_.11} parent=11 // pred_region
        _
      $region48: #{_lambda_.11} parent=11 // pred_fallthru
        _
    $region12: #{_lambda_.11} parent=5 // pred_fallthru
      _
    %p299 = scmp.lt.s32.totalorder %s16, 2
    // Predicated region
    $region49: #{_lambda_.11} parent=5 // pred_check
      %p300 = pneg %p299
    $region50: #{_lambda_.11} parent=5 // pred_check_branch
      %302 = sbr.rel (%p300) target = $region52
    $region51: #{_lambda_.11} parent=5 // pred_region
      // Predicated region
      $region53: #{_lambda_.11} parent=51 // pred_check
        %p303 = pneg %p36
      $region54: #{_lambda_.11} parent=51 // pred_check_branch
        %305 = sbr.rel (%p303) target = $region56
      $region55: #{_lambda_.11} parent=51 // pred_region
        %s306 = smul.u32 13, %s16
        %p307 = scmp.lt.s32.totalorder %s306, 25
        %s308 = scalar_select %p307, %s306, 25
        %s309 = smul.addr %s308, 4
        %s310 = scalar_lea.vmem %s0, %s309
        %s311 = smul.u32 13, %s16
      $region56: #{_lambda_.11} parent=51 // pred_fallthru
        _
    $region52: #{_lambda_.11} parent=5 // pred_fallthru
      _
    %p312 = scmp.le.s32.totalorder 1, %s16
    %p313 = scmp.lt.s32.totalorder %s16, 3
    %p314 = pnand %p312, %p313
    %p315 = pneg %p314
    // Predicated region
    $region57: #{_lambda_.11} parent=5 // pred_check
      _
    $region58: #{_lambda_.11} parent=5 // pred_check_branch
      %317 = sbr.rel (%p314) target = $region60
    $region59: #{_lambda_.11} parent=5 // pred_region
      %s318 = ssub.s32 %s16, 1
      %s319 = smul.u32 13, %s21
      %p320 = scmp.lt.s32.totalorder %s319, 25
      %s321 = scalar_select %p320, %s319, 25
      %s322 = smul.addr %s321, 4
      %s323 = scalar_lea.vmem %s0, %s322
      %p324 = pneg %p42
      %p325 = pneg %p39
      %p326 = pneg %p63
      %p327 = pneg %p60
      %p328 = pneg %p84
      %p329 = pneg %p81
      %p330 = pneg %p105
      %p331 = pneg %p102
      %p332 = pneg %p126
      %p333 = pneg %p123
      %p334 = pneg %p147
      %p335 = pneg %p144
      %p336 = pneg %p168
      %p337 = pneg %p165
      %p338 = pneg %p189
      %p339 = pneg %p186
      %p340 = pneg %p210
      %p341 = pneg %p207
      %p342 = pneg %p231
      %p343 = pneg %p228
      %p344 = pneg %p257
      %p345 = pneg %p254
      %s346 = smul.u32 4, %s21
      %p347 = scmp.lt.s32.totalorder %s346, 7
      %s348 = scalar_select %p347, %s346, 7
      %s349 = smul.addr %s348, 4
      %s350 = scalar_lea.vmem %s10, %s349
      %s351 = smul.u32 13, %s21
      %p352 = scmp.lt.s32.totalorder %s351, 25
      %s353 = scalar_select %p352, %s351, 25
      %s354 = smul.addr %s353, 4
      %s355 = scalar_lea.vmem %s0, %s354
      %s356 = smul.u32 13, %s21
      %s357 = smul.u32 4, %s21
      %p358 = scmp.lt.s32.totalorder %s357, 7
      %s359 = scalar_select %p358, %s357, 7
      %s360 = smul.addr %s359, 4
      %s361 = scalar_lea.vmem %s10, %s360
      %s362 = smul.u32 4, %s21
      %v364 = vld [vmem:[%s355] sm:$0xf]
      %v365 = vld [vmem:[%s355 + $0x4] sm:$0xf]
      %v366 = vld [vmem:[%s355 + $0x8] sm:$0x3]
      %v367 = vunpack.c.l.bf16 %v364
      %v368 = vunpack.c.l.bf16 %v365
      %v369 = vunpack.c.l.bf16 %v366
      %v370 = vld [vmem:[%s1] sm:$0x1]
      %v371 = vlaneseq
      %v372 = vshrl.u32 %v371, 7
      %v373 = vsub.s32 0, %v372
      %v374 = vrot.slane %v370, %v373
      %v375 = vmul.f32 %v367, %v374
      %v376 = vmul.f32 %v368, %v374
      %v377 = vmul.f32 %v369, %v374
      %v378 = vld [vmem:[%s355 + $0xc] sm:$0xf]
      %v379 = vld [vmem:[%s355 + $0x10] sm:$0xf]
      %v380 = vld [vmem:[%s355 + $0x14] sm:$0x3]
      %v381 = vunpack.c.l.bf16 %v378
      %v382 = vunpack.c.l.bf16 %v379
      %v383 = vunpack.c.l.bf16 %v380
      %v384 = vld [vmem:[%s1 + $0x1] sm:$0x1]
      %v385 = vlaneseq
      %v386 = vshrl.u32 %v385, 7
      %v387 = vsub.s32 0, %v386
      %v388 = vrot.slane %v384, %v387
      %v389 = vmul.f32 %v381, %v388
      %v390 = vmul.f32 %v382, %v388
      %v391 = vmul.f32 %v383, %v388
      %vm395 = vcmask 1046528
      %v396 = vrot.slane %v389, 1
      %v397 = vrot.slane %v390, 1
      %v398 = vsel %vm395, %v396, %v397
      %v399 = vrot.slane %v391, 1
      %v400 = vsel %vm395, %v397, %v399
      %v404 = vadd.f32 %v375, %v398
      %v405 = vadd.f32 %v376, %v400
      %v406 = vadd.f32 %v377, %v399
      %v407 = vld [vmem:[%s1 + $0x2] sm:$0x1]
      %v408 = vlaneseq
      %v409 = vshrl.u32 %v408, 7
      %v410 = vsub.s32 0, %v409
      %v411 = vrot.slane %v407, %v410
      %v412 = vmul.f32 %v367, %v411
      %v413 = vmul.f32 %v368, %v411
      %v414 = vmul.f32 %v369, %v411
      %v418 = vrot.slane %v412, 1
      %v419 = vrot.slane %v413, 1
      %v420 = vsel %vm395, %v418, %v419
      %v421 = vrot.slane %v414, 1
      %v422 = vsel %vm395, %v419, %v421
      %v426 = vadd.f32 %v404, %v420
      %v427 = vadd.f32 %v405, %v422
      %v428 = vadd.f32 %v406, %v421
      %v429 = vld [vmem:[%s355 + $0x18] sm:$0xe]
      %v430 = vld [vmem:[%s355 + $0x1c] sm:$0xf]
      %v431 = vld [vmem:[%s355 + $0x20] sm:$0x7]
      %v432 = vunpack.c.l.bf16 %v429
      %v433 = vunpack.c.l.bf16 %v430
      %v434 = vunpack.c.l.bf16 %v431
      %v435 = vld [vmem:[%s1 + $0x3] sm:$0x1]
      %v436 = vlaneseq
      %v437 = vshrl.u32 %v436, 7
      %v438 = vsub.s32 0, %v437
      %v439 = vrot.slane %v435, %v438
      %v440 = vmul.f32 %v432, %v439
      %v441 = vmul.f32 %v433, %v439
      %v442 = vmul.f32 %v434, %v439
      %vm446 = vcmask 1045504
      %v447 = vrot.slane %v440, 2
      %v448 = vrot.slane %v441, 2
      %v449 = vsel %vm446, %v447, %v448
      %v450 = vrot.slane %v442, 2
      %v451 = vsel %vm446, %v448, %v450
      %v455 = vadd.f32 %v426, %v449
      %v456 = vadd.f32 %v427, %v451
      %v457 = vadd.f32 %v428, %v450
      %v458 = vld [vmem:[%s355 + $0x24] sm:$0xe]
      %v459 = vld [vmem:[%s355 + $0x28] sm:$0xf]
      %v460 = vld [vmem:[%s355 + $0x2c] sm:$0x7]
      %v461 = vunpack.c.l.bf16 %v458
      %v462 = vunpack.c.l.bf16 %v459
      %v463 = vunpack.c.l.bf16 %v460
      %v464 = vld [vmem:[%s1 + $0x4] sm:$0x1]
      %v465 = vlaneseq
      %v466 = vshrl.u32 %v465, 7
      %v467 = vsub.s32 0, %v466
      %v468 = vrot.slane %v464, %v467
      %v469 = vmul.f32 %v461, %v468
      %v470 = vmul.f32 %v462, %v468
      %v471 = vmul.f32 %v463, %v468
      %vm475 = vcmask 1044480
      %v476 = vrot.slane %v469, 3
      %v477 = vrot.slane %v470, 3
      %v478 = vsel %vm475, %v476, %v477
      %v479 = vrot.slane %v471, 3
      %v480 = vsel %vm475, %v477, %v479
      %v484 = vadd.f32 %v455, %v478
      %v485 = vadd.f32 %v456, %v480
      %v486 = vadd.f32 %v457, %v479
      %v487 = vld [vmem:[%s1 + $0x5] sm:$0x1]
      %v488 = vlaneseq
      %v489 = vshrl.u32 %v488, 7
      %v490 = vsub.s32 0, %v489
      %v491 = vrot.slane %v487, %v490
      %v492 = vmul.f32 %v432, %v491
      %v493 = vmul.f32 %v433, %v491
      %v494 = vmul.f32 %v434, %v491
      %v498 = vrot.slane %v492, 3
      %v499 = vrot.slane %v493, 3
      %v500 = vsel %vm475, %v498, %v499
      %v501 = vrot.slane %v494, 3
      %v502 = vsel %vm475, %v499, %v501
      %v506 = vadd.f32 %v484, %v500
      %v507 = vadd.f32 %v485, %v502
      %v508 = vadd.f32 %v486, %v501
      %v509 = vld [vmem:[%s355] sm:$0xc]
      %v510 = vld [vmem:[%s355 + $0x8] sm:$0xf]
      %v511 = vunpack.c.l.bf16 %v509
      %v512 = vunpack.c.l.bf16 %v510
      %v513 = vld [vmem:[%s1 + $0x6] sm:$0x1]
      %v514 = vlaneseq
      %v515 = vshrl.u32 %v514, 7
      %v516 = vsub.s32 0, %v515
      %v517 = vrot.slane %v513, %v516
      %v518 = vmul.f32 %v511, %v517
      %v519 = vmul.f32 %v368, %v517
      %v520 = vmul.f32 %v512, %v517
      %vm524 = vcmask 1042432
      %v525 = vrot.slane %v518, 5
      %v526 = vrot.slane %v519, 5
      %v527 = vsel %vm524, %v525, %v526
      %v528 = vrot.slane %v520, 5
      %v529 = vsel %vm524, %v526, %v528
      %v533 = vadd.f32 %v506, %v527
      %v534 = vadd.f32 %v507, %v529
      %v535 = vadd.f32 %v508, %v528
      %v536 = vld [vmem:[%s355 + $0xc] sm:$0x8]
      %v537 = vld [vmem:[%s355 + $0x14] sm:$0xf]
      %v538 = vld [vmem:[%s355 + $0x18] sm:$0x1]
      %v539 = vunpack.c.l.bf16 %v536
      %v540 = vunpack.c.l.bf16 %v537
      %v541 = vunpack.c.l.bf16 %v538
      %v542 = vld [vmem:[%s1 + $0x7] sm:$0x1]
      %v543 = vlaneseq
      %v544 = vshrl.u32 %v543, 7
      %v545 = vsub.s32 0, %v544
      %v546 = vrot.slane %v542, %v545
      %v547 = vmul.f32 %v539, %v546
      %v548 = vmul.f32 %v382, %v546
      %v549 = vmul.f32 %v540, %v546
      %v550 = vmul.f32 %v541, %v546
      %vm555 = vcmask 1041408
      %v556 = vrot.slane %v547, 6
      %v557 = vrot.slane %v548, 6
      %v558 = vsel %vm555, %v556, %v557
      %v559 = vrot.slane %v549, 6
      %v560 = vsel %vm555, %v557, %v559
      %v561 = vrot.slane %v550, 6
      %v562 = vsel %vm555, %v559, %v561
      %v566 = vadd.f32 %v533, %v558
      %v567 = vadd.f32 %v534, %v560
      %v568 = vadd.f32 %v535, %v562
      %v569 = vld [vmem:[%s355] sm:$0x8]
      %v570 = vld [vmem:[%s355 + $0xc] sm:$0x1]
      %v571 = vunpack.c.l.bf16 %v569
      %v572 = vunpack.c.l.bf16 %v570
      %v573 = vld [vmem:[%s1 + $0x8] sm:$0x1]
      %v574 = vlaneseq
      %v575 = vshrl.u32 %v574, 7
      %v576 = vsub.s32 0, %v575
      %v577 = vrot.slane %v573, %v576
      %v578 = vmul.f32 %v571, %v577
      %v579 = vmul.f32 %v368, %v577
      %v580 = vmul.f32 %v512, %v577
      %v581 = vmul.f32 %v572, %v577
      %v586 = vrot.slane %v578, 6
      %v587 = vrot.slane %v579, 6
      %v588 = vsel %vm555, %v586, %v587
      %v589 = vrot.slane %v580, 6
      %v590 = vsel %vm555, %v587, %v589
      %v591 = vrot.slane %v581, 6
      %v592 = vsel %vm555, %v589, %v591
      %v596 = vadd.f32 %v566, %v588
      %v597 = vadd.f32 %v567, %v590
      %v598 = vadd.f32 %v568, %v592
      %v599 = vld [vmem:[%s2] sm:$0x1]
      %v601 = vlaneseq
      %v602 = vshrl.u32 %v601, 7
      %v603 = vsub.s32 0, %v602
      %v604 = vrot.slane %v599, %v603
      %v606 = vadd.f32 %v596, %v604
      %v607 = vadd.f32 %v597, %v604
      %v608 = vadd.f32 %v598, %v604
      %v609 = vld [vmem:[%s3] sm:$0xf]
      %v610 = vld [vmem:[%s3 + $0x4] sm:$0x1]
      %v611 = vpack.c.bf16 %v607, %v606
      %v612 = vpack.c.bf16 %v608, %v608
      %v613 = vld [vmem:[%s4] sm:$0x1]
      %v615 = vlaneseq
      %v616 = vshrl.u32 %v615, 7
      %v617 = vsub.s32 0, %v616
      %v618 = vrot.slane %v613, %v617
      %v622 = vunpack.c.l.b16 %v609
      %v623 = vunpack.c.l.b16 %v610
      %v624 = vpack.c.b16 %v623, %v622
      %vm625 = vcmask 72704
      %v627 = vsel %vm625, %v611, 0
      %v630 = vsel %vm625, %v612, 0
      %vm632 = vcmask 1043456
      %v633 = vsel %vm632, 4294967295, 65535
      %v634 = vsel %vm475, %v633, 0
      %v636 = vand.u32 %v624, %v634
      %638 = vmatprep.subr.bf16.mxu0 0
      %639 = vmatpush1.bf16.msra.mxu0 0
      %640 = vmatprep.subr.bf16.mxu0 0
      %641 = vmatpush1.bf16.msra.mxu0 0
      %642 = vmatprep.subr.bf16.mxu0 0
      %643 = vmatpush1.bf16.msra.mxu0 0
      %644 = vmatprep.subr.bf16.mxu0 0
      %645 = vmatpush1.bf16.msra.mxu0 0
      %646 = vmatprep.subr.bf16.mxu0 0
      %647 = vmatpush1.bf16.msra.mxu0 0
      %648 = vmatprep.subr.bf16.mxu0 0
      %649 = vmatpush1.bf16.msra.mxu0 0
      %650 = vmatprep.subr.bf16.mxu0 0
      %651 = vmatpush1.bf16.msra.mxu0 0
      %652 = vmatprep.subr.bf16.mxu0 0
      %653 = vmatpush1.bf16.msra.mxu0 %v636
      %654 = vmatprep.subr.bf16.mxu0 0
      %655 = vmatpush2.bf16.msra.mxu0 0
      %656 = vmatprep.subr.bf16.mxu0 0
      %657 = vmatpush2.bf16.msra.mxu0 0
      %658 = vmatprep.subr.bf16.mxu0 0
      %659 = vmatpush2.bf16.msra.mxu0 0
      %660 = vmatprep.subr.bf16.mxu0 0
      %661 = vmatpush2.bf16.msra.mxu0 0
      %662 = vmatprep.subr.bf16.mxu0 0
      %663 = vmatpush2.bf16.msra.mxu0 0
      %664 = vmatprep.subr.bf16.mxu0 0
      %665 = vmatpush2.bf16.msra.mxu0 0
      %666 = vmatprep.subr.bf16.mxu0 0
      %667 = vmatpush2.bf16.msra.mxu0 0
      %668 = vmatprep.subr.bf16.mxu0 0
      %669 = vmatpush2.bf16.msra.mxu0 0
      %670 = vmatprep.mubr.bf16.mxu0 0
      %671 = vmatmul.mubr.bf16.gmra.mxu0 %v627
      %v672 = vpop.f32.mrf.mxu0
      %v673 = vadd.f32 %v618, %v672
      %v674 = vpop.f32.mrf.mxu0
      %v675 = vpop.f32.mrf.mxu0
      %v676 = vadd.f32 %v618, %v675
      %v677 = vpop.f32.mrf.mxu0
      %678 = vmatprep.mubr.bf16.mxu0 0
      %679 = vmatmul.mubr.bf16.gmra.mxu0 %v630
      %v680 = vpop.f32.mrf.mxu0
      %v681 = vadd.f32 %v618, %v680
      %v682 = vpop.f32.mrf.mxu0
      %v683 = vpop.f32.mrf.mxu0
      %v684 = vpop.f32.mrf.mxu0
      %685 = vdwg.mxu0
      %v686 = vmax.f32 %v673, 0.0
      %v687 = vmax.f32 %v676, 0.0
      %v688 = vmax.f32 %v681, 0.0
      %v689 = vld [vmem:[%s355] sm:$0xf]
      %v690 = vld [vmem:[%s355 + $0x4] sm:$0xf]
      %v691 = vld [vmem:[%s355 + $0x8] sm:$0xf]
      %v692 = vld [vmem:[%s355 + $0xc] sm:$0xf]
      %v693 = vld [vmem:[%s355 + $0x10] sm:$0xf]
      %v694 = vld [vmem:[%s355 + $0x14] sm:$0xf]
      %v695 = vld [vmem:[%s355 + $0x18] sm:$0xf]
      %v696 = vld [vmem:[%s355 + $0x1c] sm:$0xf]
      %v697 = vld [vmem:[%s355 + $0x20] sm:$0xf]
      %v698 = vld [vmem:[%s355 + $0x24] sm:$0xf]
      %v699 = vld [vmem:[%s355 + $0x28] sm:$0xf]
      %v700 = vld [vmem:[%s355 + $0x2c] sm:$0xf]
      %v701 = vld [vmem:[%s355 + $0x30] sm:$0xf]
      %v702 = vld [vmem:[%s5] sm:$0xf]
      %v703 = vld [vmem:[%s5 + $0x4] sm:$0x1]
      %v717 = vunpack.c.l.b16 %v689
      %v718 = vunpack.c.l.b16 %v690
      %v719 = vunpack.c.l.b16 %v691
      %v720 = vunpack.c.l.b16 %v692
      %v721 = vunpack.c.l.b16 %v693
      %v722 = vunpack.c.l.b16 %v694
      %v723 = vunpack.c.l.b16 %v695
      %v724 = vunpack.c.l.b16 %v696
      %v725 = vunpack.c.l.b16 %v697
      %v726 = vunpack.c.l.b16 %v698
      %v727 = vunpack.c.l.b16 %v699
      %v728 = vunpack.c.l.b16 %v700
      %v729 = vunpack.c.l.b16 %v701
      %v730 = vpack.c.b16 %v718, %v717
      %v731 = vpack.c.b16 %v720, %v719
      %v732 = vpack.c.b16 %v722, %v721
      %v733 = vpack.c.b16 %v724, %v723
      %v734 = vpack.c.b16 %v726, %v725
      %v735 = vpack.c.b16 %v728, %v727
      %v736 = vpack.c.b16 %v729, %v729
      %v739 = vunpack.c.l.b16 %v702
      %v740 = vunpack.c.l.b16 %v703
      %v741 = vpack.c.b16 %v740, %v739
      %v743 = vsel %vm625, %v730, 0
      %v746 = vsel %vm625, %v731, 0
      %v749 = vsel %vm625, %v732, 0
      %v752 = vsel %vm625, %v733, 0
      %v755 = vsel %vm625, %v734, 0
      %v758 = vsel %vm625, %v735, 0
      %v761 = vsel %vm625, %v736, 0
      %v764 = vand.u32 %v741, %v634
      %766 = vmatprep.subr.bf16.mxu0 0
      %767 = vmatpush1.bf16.msra.mxu0 0
      %768 = vmatprep.subr.bf16.mxu0 0
      %769 = vmatpush1.bf16.msra.mxu0 0
      %770 = vmatprep.subr.bf16.mxu0 0
      %771 = vmatpush1.bf16.msra.mxu0 0
      %772 = vmatprep.subr.bf16.mxu0 0
      %773 = vmatpush1.bf16.msra.mxu0 0
      %774 = vmatprep.subr.bf16.mxu0 0
      %775 = vmatpush1.bf16.msra.mxu0 0
      %776 = vmatprep.subr.bf16.mxu0 0
      %777 = vmatpush1.bf16.msra.mxu0 0
      %778 = vmatprep.subr.bf16.mxu0 0
      %779 = vmatpush1.bf16.msra.mxu0 0
      %780 = vmatprep.subr.bf16.mxu0 0
      %781 = vmatpush1.bf16.msra.mxu0 %v764
      %782 = vmatprep.subr.bf16.mxu0 0
      %783 = vmatpush2.bf16.msra.mxu0 0
      %784 = vmatprep.subr.bf16.mxu0 0
      %785 = vmatpush2.bf16.msra.mxu0 0
      %786 = vmatprep.subr.bf16.mxu0 0
      %787 = vmatpush2.bf16.msra.mxu0 0
      %788 = vmatprep.subr.bf16.mxu0 0
      %789 = vmatpush2.bf16.msra.mxu0 0
      %790 = vmatprep.subr.bf16.mxu0 0
      %791 = vmatpush2.bf16.msra.mxu0 0
      %792 = vmatprep.subr.bf16.mxu0 0
      %793 = vmatpush2.bf16.msra.mxu0 0
      %794 = vmatprep.subr.bf16.mxu0 0
      %795 = vmatpush2.bf16.msra.mxu0 0
      %796 = vmatprep.subr.bf16.mxu0 0
      %797 = vmatpush2.bf16.msra.mxu0 0
      %798 = vmatprep.mubr.bf16.mxu0 0
      %799 = vmatmul.mubr.bf16.gmra.mxu0 %v743
      %v800 = vpop.f32.mrf.mxu0
      %v801 = vadd.f32 0.0, %v800
      %v802 = vpop.f32.mrf.mxu0
      %v803 = vpop.f32.mrf.mxu0
      %v804 = vadd.f32 0.0, %v803
      %v805 = vpop.f32.mrf.mxu0
      %806 = vmatprep.mubr.bf16.mxu0 0
      %807 = vmatmul.mubr.bf16.gmra.mxu0 %v746
      %v808 = vpop.f32.mrf.mxu0
      %v809 = vadd.f32 0.0, %v808
      %v810 = vpop.f32.mrf.mxu0
      %v811 = vpop.f32.mrf.mxu0
      %v812 = vadd.f32 0.0, %v811
      %v813 = vpop.f32.mrf.mxu0
      %814 = vmatprep.mubr.bf16.mxu0 0
      %815 = vmatmul.mubr.bf16.gmra.mxu0 %v749
      %v816 = vpop.f32.mrf.mxu0
      %v817 = vadd.f32 0.0, %v816
      %v818 = vpop.f32.mrf.mxu0
      %v819 = vpop.f32.mrf.mxu0
      %v820 = vadd.f32 0.0, %v819
      %v821 = vpop.f32.mrf.mxu0
      %822 = vmatprep.mubr.bf16.mxu0 0
      %823 = vmatmul.mubr.bf16.gmra.mxu0 %v752
      %v824 = vpop.f32.mrf.mxu0
      %v825 = vadd.f32 0.0, %v824
      %v826 = vpop.f32.mrf.mxu0
      %v827 = vpop.f32.mrf.mxu0
      %v828 = vadd.f32 0.0, %v827
      %v829 = vpop.f32.mrf.mxu0
      %830 = vmatprep.mubr.bf16.mxu0 0
      %831 = vmatmul.mubr.bf16.gmra.mxu0 %v755
      %v832 = vpop.f32.mrf.mxu0
      %v833 = vadd.f32 0.0, %v832
      %v834 = vpop.f32.mrf.mxu0
      %v835 = vpop.f32.mrf.mxu0
      %v836 = vadd.f32 0.0, %v835
      %v837 = vpop.f32.mrf.mxu0
      %838 = vmatprep.mubr.bf16.mxu0 0
      %839 = vmatmul.mubr.bf16.gmra.mxu0 %v758
      %v840 = vpop.f32.mrf.mxu0
      %v841 = vadd.f32 0.0, %v840
      %v842 = vpop.f32.mrf.mxu0
      %v843 = vpop.f32.mrf.mxu0
      %v844 = vadd.f32 0.0, %v843
      %v845 = vpop.f32.mrf.mxu0
      %846 = vmatprep.mubr.bf16.mxu0 0
      %847 = vmatmul.mubr.bf16.gmra.mxu0 %v761
      %v848 = vpop.f32.mrf.mxu0
      %v849 = vadd.f32 0.0, %v848
      %v850 = vpop.f32.mrf.mxu0
      %v851 = vpop.f32.mrf.mxu0
      %v852 = vpop.f32.mrf.mxu0
      %853 = vdwg.mxu0
      %v854 = vmax.f32 %v801, 0.0
      %v855 = vmax.f32 %v804, 0.0
      %v856 = vmax.f32 %v809, 0.0
      %v857 = vmax.f32 %v812, 0.0
      %v858 = vmax.f32 %v817, 0.0
      %v859 = vmax.f32 %v820, 0.0
      %v860 = vmax.f32 %v825, 0.0
      %v861 = vmax.f32 %v828, 0.0
      %v862 = vmax.f32 %v833, 0.0
      %v863 = vmax.f32 %v836, 0.0
      %v864 = vmax.f32 %v841, 0.0
      %v865 = vmax.f32 %v844, 0.0
      %v866 = vmax.f32 %v849, 0.0
      %vm867 = vcmask 64512
      %868 = vst.msk [vmem:[#allocation2] sm:$0xff] %vm867, %v854
      %869 = vst.msk [vmem:[#allocation2 + $0x8] sm:$0xff] %vm867, %v855
      %870 = vst.msk [vmem:[#allocation2 + $0x10] sm:$0xff] %vm867, %v856
      %871 = vst.msk [vmem:[#allocation2 + $0x18] sm:$0xff] %vm867, %v857
      %872 = vst.msk [vmem:[#allocation2 + $0x20] sm:$0xff] %vm867, %v858
      %873 = vst.msk [vmem:[#allocation2 + $0x28] sm:$0xff] %vm867, %v859
      %874 = vst.msk [vmem:[#allocation2 + $0x30] sm:$0xff] %vm867, %v860
      %875 = vst.msk [vmem:[#allocation2 + $0x38] sm:$0xff] %vm867, %v861
      %876 = vst.msk [vmem:[#allocation2 + $0x40] sm:$0xff] %vm867, %v862
      %877 = vst.msk [vmem:[#allocation2 + $0x48] sm:$0xff] %vm867, %v863
      %878 = vst.msk [vmem:[#allocation2 + $0x50] sm:$0xff] %vm867, %v864
      %879 = vst.msk [vmem:[#allocation2 + $0x58] sm:$0xff] %vm867, %v865
      %880 = vst.msk [vmem:[#allocation2 + $0x60] sm:$0xff] %vm867, %v866
      %v881 = vld [vmem:[#allocation2] sm:$0xff]
      %v882 = vld [vmem:[#allocation2 + $0x8] sm:$0xff]
      %v883 = vld [vmem:[#allocation2 + $0x10] sm:$0x7]
      %v884 = vld [vmem:[%s6] sm:$0x1]
      %v885 = vlaneseq
      %v886 = vshrl.u32 %v885, 7
      %v887 = vsub.s32 0, %v886
      %v888 = vrot.slane %v884, %v887
      %v889 = vmul.f32 %v881, %v888
      %v890 = vmul.f32 %v882, %v888
      %v891 = vmul.f32 %v883, %v888
      %v892 = vld [vmem:[#allocation2 + $0x19] sm:$0xff]
      %v893 = vld [vmem:[#allocation2 + $0x21] sm:$0xff]
      %v894 = vld [vmem:[#allocation2 + $0x29] sm:$0x7]
      %v895 = vld [vmem:[%s6 + $0x1] sm:$0x1]
      %v896 = vlaneseq
      %v897 = vshrl.u32 %v896, 7
      %v898 = vsub.s32 0, %v897
      %v899 = vrot.slane %v895, %v898
      %v900 = vmul.f32 %v892, %v899
      %v901 = vmul.f32 %v893, %v899
      %v902 = vmul.f32 %v894, %v899
      %v903 = vadd.f32 %v889, %v900
      %v904 = vadd.f32 %v890, %v901
      %v905 = vadd.f32 %v891, %v902
      %v906 = vld [vmem:[#allocation2 + $0x1] sm:$0xff]
      %v907 = vld [vmem:[#allocation2 + $0x9] sm:$0xff]
      %v908 = vld [vmem:[#allocation2 + $0x11] sm:$0x7]
      %v909 = vld [vmem:[%s6 + $0x2] sm:$0x1]
      %v910 = vlaneseq
      %v911 = vshrl.u32 %v910, 7
      %v912 = vsub.s32 0, %v911
      %v913 = vrot.slane %v909, %v912
      %v914 = vmul.f32 %v906, %v913
      %v915 = vmul.f32 %v907, %v913
      %v916 = vmul.f32 %v908, %v913
      %v917 = vadd.f32 %v903, %v914
      %v918 = vadd.f32 %v904, %v915
      %v919 = vadd.f32 %v905, %v916
      %v920 = vld [vmem:[#allocation2 + $0x32] sm:$0xff]
      %v921 = vld [vmem:[#allocation2 + $0x3a] sm:$0xff]
      %v922 = vld [vmem:[#allocation2 + $0x42] sm:$0x7]
      %v923 = vld [vmem:[%s6 + $0x3] sm:$0x1]
      %v924 = vlaneseq
      %v925 = vshrl.u32 %v924, 7
      %v926 = vsub.s32 0, %v925
      %v927 = vrot.slane %v923, %v926
      %v928 = vmul.f32 %v920, %v927
      %v929 = vmul.f32 %v921, %v927
      %v930 = vmul.f32 %v922, %v927
      %v931 = vadd.f32 %v917, %v928
      %v932 = vadd.f32 %v918, %v929
      %v933 = vadd.f32 %v919, %v930
      %v934 = vld [vmem:[#allocation2 + $0x4b] sm:$0xff]
      %v935 = vld [vmem:[#allocation2 + $0x53] sm:$0xff]
      %v936 = vld [vmem:[#allocation2 + $0x5b] sm:$0x7]
      %v937 = vld [vmem:[%s6 + $0x4] sm:$0x1]
      %v938 = vlaneseq
      %v939 = vshrl.u32 %v938, 7
      %v940 = vsub.s32 0, %v939
      %v941 = vrot.slane %v937, %v940
      %v942 = vmul.f32 %v934, %v941
      %v943 = vmul.f32 %v935, %v941
      %v944 = vmul.f32 %v936, %v941
      %v945 = vadd.f32 %v931, %v942
      %v946 = vadd.f32 %v932, %v943
      %v947 = vadd.f32 %v933, %v944
      %v948 = vld [vmem:[#allocation2 + $0x33] sm:$0xff]
      %v949 = vld [vmem:[#allocation2 + $0x3b] sm:$0xff]
      %v950 = vld [vmem:[#allocation2 + $0x43] sm:$0x7]
      %v951 = vld [vmem:[%s6 + $0x5] sm:$0x1]
      %v952 = vlaneseq
      %v953 = vshrl.u32 %v952, 7
      %v954 = vsub.s32 0, %v953
      %v955 = vrot.slane %v951, %v954
      %v956 = vmul.f32 %v948, %v955
      %v957 = vmul.f32 %v949, %v955
      %v958 = vmul.f32 %v950, %v955
      %v959 = vadd.f32 %v945, %v956
      %v960 = vadd.f32 %v946, %v957
      %v961 = vadd.f32 %v947, %v958
      %v962 = vld [vmem:[#allocation2 + $0x5] sm:$0xff]
      %v963 = vld [vmem:[#allocation2 + $0xd] sm:$0xff]
      %v964 = vld [vmem:[#allocation2 + $0x15] sm:$0x7]
      %v965 = vld [vmem:[%s6 + $0x6] sm:$0x1]
      %v966 = vlaneseq
      %v967 = vshrl.u32 %v966, 7
      %v968 = vsub.s32 0, %v967
      %v969 = vrot.slane %v965, %v968
      %v970 = vmul.f32 %v962, %v969
      %v971 = vmul.f32 %v963, %v969
      %v972 = vmul.f32 %v964, %v969
      %v973 = vadd.f32 %v959, %v970
      %v974 = vadd.f32 %v960, %v971
      %v975 = vadd.f32 %v961, %v972
      %v976 = vld [vmem:[#allocation2 + $0x1e] sm:$0xff]
      %v977 = vld [vmem:[#allocation2 + $0x26] sm:$0xff]
      %v978 = vld [vmem:[#allocation2 + $0x2e] sm:$0x7]
      %v979 = vld [vmem:[%s6 + $0x7] sm:$0x1]
      %v980 = vlaneseq
      %v981 = vshrl.u32 %v980, 7
      %v982 = vsub.s32 0, %v981
      %v983 = vrot.slane %v979, %v982
      %v984 = vmul.f32 %v976, %v983
      %v985 = vmul.f32 %v977, %v983
      %v986 = vmul.f32 %v978, %v983
      %v987 = vadd.f32 %v973, %v984
      %v988 = vadd.f32 %v974, %v985
      %v989 = vadd.f32 %v975, %v986
      %v990 = vld [vmem:[#allocation2 + $0x6] sm:$0xff]
      %v991 = vld [vmem:[#allocation2 + $0xe] sm:$0xff]
      %v992 = vld [vmem:[#allocation2 + $0x16] sm:$0x7]
      %v993 = vld [vmem:[%s6 + $0x8] sm:$0x1]
      %v994 = vlaneseq
      %v995 = vshrl.u32 %v994, 7
      %v996 = vsub.s32 0, %v995
      %v997 = vrot.slane %v993, %v996
      %v998 = vmul.f32 %v990, %v997
      %v999 = vmul.f32 %v991, %v997
      %v1000 = vmul.f32 %v992, %v997
      %v1001 = vadd.f32 %v987, %v998
      %v1002 = vadd.f32 %v988, %v999
      %v1003 = vadd.f32 %v989, %v1000
      %v1004 = vld [vmem:[%s7] sm:$0x1]
      %v1006 = vlaneseq
      %v1007 = vshrl.u32 %v1006, 7
      %v1008 = vsub.s32 0, %v1007
      %v1009 = vrot.slane %v1004, %v1008
      %v1011 = vadd.f32 %v1001, %v1009
      %v1012 = vadd.f32 %v1002, %v1009
      %v1013 = vadd.f32 %v1003, %v1009
      %v1014 = vld [vmem:[%s8] sm:$0xf]
      %v1015 = vpack.c.bf16 %v1012, %v1011
      %v1016 = vpack.c.bf16 %v1013, %v1013
      %v1017 = vld [vmem:[%s9] sm:$0x1]
      %v1019 = vlaneseq
      %v1020 = vshrl.u32 %v1019, 7
      %v1021 = vsub.s32 0, %v1020
      %v1022 = vrot.slane %v1017, %v1021
      %v1025 = vsel %vm867, %v1015, 0
      %v1028 = vsel %vm867, %v1016, 0
      %v1031 = vsel %vm632, %v1014, 0
      %1033 = vmatprep.subr.bf16.mxu0 0
      %1034 = vmatpush1.bf16.msra.mxu0 0
      %1035 = vmatprep.subr.bf16.mxu0 0
      %1036 = vmatpush1.bf16.msra.mxu0 0
      %1037 = vmatprep.subr.bf16.mxu0 0
      %1038 = vmatpush1.bf16.msra.mxu0 0
      %1039 = vmatprep.subr.bf16.mxu0 0
      %1040 = vmatpush1.bf16.msra.mxu0 0
      %1041 = vmatprep.subr.bf16.mxu0 0
      %1042 = vmatpush1.bf16.msra.mxu0 0
      %1043 = vmatprep.subr.bf16.mxu0 0
      %1044 = vmatpush1.bf16.msra.mxu0 0
      %1045 = vmatprep.subr.bf16.mxu0 0
      %1046 = vmatpush1.bf16.msra.mxu0 0
      %1047 = vmatprep.subr.bf16.mxu0 0
      %1048 = vmatpush1.bf16.msra.mxu0 %v1031
      %1049 = vmatprep.subr.bf16.mxu0 0
      %1050 = vmatpush2.bf16.msra.mxu0 0
      %1051 = vmatprep.subr.bf16.mxu0 0
      %1052 = vmatpush2.bf16.msra.mxu0 0
      %1053 = vmatprep.subr.bf16.mxu0 0
      %1054 = vmatpush2.bf16.msra.mxu0 0
      %1055 = vmatprep.subr.bf16.mxu0 0
      %1056 = vmatpush2.bf16.msra.mxu0 0
      %1057 = vmatprep.subr.bf16.mxu0 0
      %1058 = vmatpush2.bf16.msra.mxu0 0
      %1059 = vmatprep.subr.bf16.mxu0 0
      %1060 = vmatpush2.bf16.msra.mxu0 0
      %1061 = vmatprep.subr.bf16.mxu0 0
      %1062 = vmatpush2.bf16.msra.mxu0 0
      %1063 = vmatprep.subr.bf16.mxu0 0
      %1064 = vmatpush2.bf16.msra.mxu0 0
      %1065 = vmatprep.mubr.bf16.mxu0 0
      %1066 = vmatmul.mubr.bf16.gmra.mxu0 %v1025
      %v1067 = vpop.f32.mrf.mxu0
      %v1068 = vadd.f32 %v1022, %v1067
      %v1069 = vpop.f32.mrf.mxu0
      %v1070 = vpop.f32.mrf.mxu0
      %v1071 = vadd.f32 %v1022, %v1070
      %v1072 = vpop.f32.mrf.mxu0
      %1073 = vmatprep.mubr.bf16.mxu0 0
      %1074 = vmatmul.mubr.bf16.gmra.mxu0 %v1028
      %v1075 = vpop.f32.mrf.mxu0
      %v1076 = vadd.f32 %v1022, %v1075
      %v1077 = vpop.f32.mrf.mxu0
      %v1078 = vpop.f32.mrf.mxu0
      %v1079 = vpop.f32.mrf.mxu0
      %1080 = vdwg.mxu0
      %v1081 = vmax.f32 %v1068, 0.0
      %v1082 = vmax.f32 %v1071, 0.0
      %v1083 = vmax.f32 %v1076, 0.0
      %1087 = vrot.lane.b32.xlu0 %v1081, 8
      %v1088 = vpop.permute.xlu0 %1087
      %1089 = vrot.lane.b32.xlu0 %v1082, 8
      %v1090 = vpop.permute.xlu0 %1089
      %1091 = vrot.lane.b32.xlu0 %v1083, 8
      %v1092 = vpop.permute.xlu0 %1091
      %v1096 = vsel %vm867, %v686, %v1088
      %v1097 = vsel %vm867, %v687, %v1090
      %v1098 = vsel %vm867, %v688, %v1092
      %v1099 = vpack.c.bf16 %v1097, %v1096
      %v1100 = vpack.c.bf16 %v1098, %v1098
      %v1103 = vunpack.c.l.b16 %v1099
      %v1104 = vunpack.c.h.b16 %v1099
      %v1105 = vunpack.c.l.b16 %v1100
      %v1106 = vpack.c.b16 %v1103, %v1103
      %v1107 = vpack.c.b16 %v1104, %v1104
      %v1108 = vpack.c.b16 %v1105, %v1105
      %vm1112 = vcmask 125952
      %1113 = vst.msk [vmem:[%s361] sm:$0xf] %vm1112, %v1106
      %1114 = vst.msk [vmem:[%s361 + $0x4] sm:$0xf] %vm1112, %v1107
      %vm1115 = vcmask 123904
      %vm1116 = vsmask.f32 1280
      %vm1117 = vmand %vm1115, %vm1116
      %v1118 = vld [vmem:[%s361 + $0x8] sm:$0x3]
      %v1119 = vsel %vm1117, %v1108, %v1118
      %1120 = vst [vmem:[%s361 + $0x8] sm:$0x3] %v1119
      %s1121 = smul.u32 4, %s21
      %p1122 = scmp.lt.s32.totalorder %s1121, 7
      %s1123 = scalar_select %p1122, %s1121, 7
      %s1124 = smul.addr %s1123, 4
      %s1125 = scalar_lea.vmem %s10, %s1124
      // Predicated region
      $region61: #{_lambda_.11} parent=59 // pred_check
        %p1126 = pneg %p254
      $region62: #{_lambda_.11} parent=59 // pred_check_branch
        %1128 = sbr.rel (%p1126) target = $region64
      $region63: #{_lambda_.11} parent=59 // pred_region
        %s1129 = smul.u32 4, %s21
      $region64: #{_lambda_.11} parent=59 // pred_fallthru
        _
    $region60: #{_lambda_.11} parent=5 // pred_fallthru
      _
    %p1130 = scmp.le.s32.totalorder 2, %s16
    // Predicated region
    $region65: #{_lambda_.11} parent=5 // pred_check
      %p1131 = pneg %p1130
    $region66: #{_lambda_.11} parent=5 // pred_check_branch
      %1133 = sbr.rel (%p1131) target = $region68
    $region67: #{_lambda_.11} parent=5 // pred_region
      %s1134 = ssub.s32 %s16, 2
      // Predicated region
      $region69: #{_lambda_.11} parent=67 // pred_check
        %p1135 = pneg %p260
      $region70: #{_lambda_.11} parent=67 // pred_check_branch
        %1137 = sbr.rel (%p1135) target = $region72
      $region71: #{_lambda_.11} parent=67 // pred_region
        %s1138 = smul.u32 4, %s22
        %p1139 = scmp.lt.s32.totalorder %s1138, 7
        %s1140 = scalar_select %p1139, %s1138, 7
        %s1141 = smul.addr %s1140, 4
        %s1142 = scalar_lea.vmem %s10, %s1141
      $region72: #{_lambda_.11} parent=67 // pred_fallthru
        _
    $region68: #{_lambda_.11} parent=5 // pred_fallthru
      _
  $region6: #{_lambda_.11} parent=0 // loop_footer
    %s20 = sadd.s32 1, %s16
  $region7: #{_lambda_.11} parent=0 // loop_footer_branch
    %15 = sbr.rel target = $region3
  $region8: #{_lambda_.11} parent=0 // loop_exit
    _

// kernel: _lambda_.12
$region0: #{_lambda_.12}
  #allocation0 [shape = 'u32[]', space=smem, size = 0x4, offset = 0x4, fixed_abs, tag = 'smem constant byte address 0x4 - core index']
  #allocation1 [shape = 'u32[144,128]{1,0:T(1,128)}', space=vmem, size = 0x12000, scoped, tag = 'internal scratch']
  #allocation2 [shape = 'f32[40,8]{1,0:T(8,128)}', space=vmem, size = 0x5000, scoped, tag = 'scratch operand']
  %s0 = inlined_call_operand.vmem [shape: bf16[80,9], index: 0, kind: input, shape index: {}]
  %s1 = inlined_call_operand.vmem [shape: bf16[9,8], index: 1, kind: input, shape index: {}]
  %s2 = inlined_call_operand.vmem [shape: f32[9,8], index: 2, kind: input, shape index: {}]
  %s3 = inlined_call_operand.vmem [shape: f32[1,8], index: 3, kind: input, shape index: {}]
  %s4 = inlined_call_operand.vmem [shape: bf16[8,8], index: 4, kind: input, shape index: {}]
  %s5 = inlined_call_operand.vmem [shape: f32[1,8], index: 5, kind: input, shape index: {}]
  %s6 = inlined_call_operand.vmem [shape: bf16[80,8], index: 6, kind: output, shape index: {}]
  %s7 = sld [smem:[#allocation0]]
  $region57: #{_lambda_.12} parent=0
    _
  %s9 = ssub.s32 1, %s7
  %s10 = scalar_select 0, %s9, %s7
  loop: start=0, step=1, limit=4
  $region2: #{_lambda_.12} parent=0 // loop_pre_header
    _
  $region3: #{_lambda_.12} parent=0 // loop_header
    %s12 = sphi 0, %s16
    %p13 = scmp.ge.s32.totalorder %s12, 4
    %s22 = sphi 0, %s24
    %s25 = sphi 0, %s22
    %s26 = sphi 0, %s25
    %s42 = sphi 0, %s26
    %s46 = sphi 0, %s46
    %s48 = sphi 0, %s46
    %s49 = sphi 0, %s48
    %s63 = sphi 0, %s49
    %s67 = sphi 0, %s67
    %s69 = sphi 0, %s67
    %s70 = sphi 0, %s69
    %s84 = sphi 0, %s70
    %s88 = sphi 0, %s88
    %s90 = sphi 0, %s88
    %s91 = sphi 0, %s90
    %s105 = sphi 0, %s91
    %s109 = sphi 0, %s109
    %s111 = sphi 0, %s109
    %s112 = sphi 0, %s111
    %s126 = sphi 0, %s112
    %s130 = sphi 0, %s130
    %s132 = sphi 0, %s130
    %s133 = sphi 0, %s132
    %s147 = sphi 0, %s133
    %s153 = sphi 0, %s155
    %s156 = sphi 0, %s153
    %s157 = sphi 0, %s156
    %s173 = sphi 0, %s157
  $region4: #{_lambda_.12} parent=0 // loop_header_branch
    %15 = sbr.rel (%p13) target = $region8
  $region5: #{_lambda_.12} parent=0 // loop_body
    %s17 = ssub.s32 %s12, 1
    %s18 = ssub.s32 %s12, 2
    %s19 = sadd.s32 %s12, 1
    %s20 = ssub.s32 %s12, %s19
    %p21 = scmp.eq.s32.totalorder %s20, 0
    %s23 = sadd.s32 %s22, 1
    %s24 = scalar_select %p21, %s22, %s23
    %p27 = pneg %p21
    %p28 = scmp.eq.s32.totalorder %s12, 1
    %p29 = por %p27, %p28
    %p30 = scmp.ne.s32.totalorder %s22, %s25
    %p31 = scmp.eq.s32.totalorder %s12, 0
    %p32 = por %p30, %p31
    %p33 = scmp.ne.s32.totalorder %s22, %s25
    %p34 = scmp.eq.s32.totalorder %s17, 1
    %p35 = por %p33, %p34
    %p36 = scmp.ne.s32.totalorder %s25, %s26
    %p37 = scmp.eq.s32.totalorder %s17, 0
    %p38 = por %p36, %p37
    %p39 = scmp.ne.s32.totalorder %s25, %s26
    %p40 = scmp.eq.s32.totalorder %s18, 1
    %p41 = por %p39, %p40
    %p43 = scmp.ne.s32.totalorder %s26, %s42
    %p44 = scmp.eq.s32.totalorder %s18, 0
    %p45 = por %p43, %p44
    %s47 = sadd.s32 %s46, 1
    %p50 = scmp.eq.s32.totalorder %s12, 1
    %p51 = scmp.ne.s32.totalorder %s46, %s48
    %p52 = scmp.eq.s32.totalorder %s12, 0
    %p53 = por %p51, %p52
    %p54 = scmp.ne.s32.totalorder %s46, %s48
    %p55 = scmp.eq.s32.totalorder %s17, 1
    %p56 = por %p54, %p55
    %p57 = scmp.ne.s32.totalorder %s48, %s49
    %p58 = scmp.eq.s32.totalorder %s17, 0
    %p59 = por %p57, %p58
    %p60 = scmp.ne.s32.totalorder %s48, %s49
    %p61 = scmp.eq.s32.totalorder %s18, 1
    %p62 = por %p60, %p61
    %p64 = scmp.ne.s32.totalorder %s49, %s63
    %p65 = scmp.eq.s32.totalorder %s18, 0
    %p66 = por %p64, %p65
    %s68 = sadd.s32 %s67, 1
    %p71 = scmp.eq.s32.totalorder %s12, 1
    %p72 = scmp.ne.s32.totalorder %s67, %s69
    %p73 = scmp.eq.s32.totalorder %s12, 0
    %p74 = por %p72, %p73
    %p75 = scmp.ne.s32.totalorder %s67, %s69
    %p76 = scmp.eq.s32.totalorder %s17, 1
    %p77 = por %p75, %p76
    %p78 = scmp.ne.s32.totalorder %s69, %s70
    %p79 = scmp.eq.s32.totalorder %s17, 0
    %p80 = por %p78, %p79
    %p81 = scmp.ne.s32.totalorder %s69, %s70
    %p82 = scmp.eq.s32.totalorder %s18, 1
    %p83 = por %p81, %p82
    %p85 = scmp.ne.s32.totalorder %s70, %s84
    %p86 = scmp.eq.s32.totalorder %s18, 0
    %p87 = por %p85, %p86
    %s89 = sadd.s32 %s88, 1
    %p92 = scmp.eq.s32.totalorder %s12, 1
    %p93 = scmp.ne.s32.totalorder %s88, %s90
    %p94 = scmp.eq.s32.totalorder %s12, 0
    %p95 = por %p93, %p94
    %p96 = scmp.ne.s32.totalorder %s88, %s90
    %p97 = scmp.eq.s32.totalorder %s17, 1
    %p98 = por %p96, %p97
    %p99 = scmp.ne.s32.totalorder %s90, %s91
    %p100 = scmp.eq.s32.totalorder %s17, 0
    %p101 = por %p99, %p100
    %p102 = scmp.ne.s32.totalorder %s90, %s91
    %p103 = scmp.eq.s32.totalorder %s18, 1
    %p104 = por %p102, %p103
    %p106 = scmp.ne.s32.totalorder %s91, %s105
    %p107 = scmp.eq.s32.totalorder %s18, 0
    %p108 = por %p106, %p107
    %s110 = sadd.s32 %s109, 1
    %p113 = scmp.eq.s32.totalorder %s12, 1
    %p114 = scmp.ne.s32.totalorder %s109, %s111
    %p115 = scmp.eq.s32.totalorder %s12, 0
    %p116 = por %p114, %p115
    %p117 = scmp.ne.s32.totalorder %s109, %s111
    %p118 = scmp.eq.s32.totalorder %s17, 1
    %p119 = por %p117, %p118
    %p120 = scmp.ne.s32.totalorder %s111, %s112
    %p121 = scmp.eq.s32.totalorder %s17, 0
    %p122 = por %p120, %p121
    %p123 = scmp.ne.s32.totalorder %s111, %s112
    %p124 = scmp.eq.s32.totalorder %s18, 1
    %p125 = por %p123, %p124
    %p127 = scmp.ne.s32.totalorder %s112, %s126
    %p128 = scmp.eq.s32.totalorder %s18, 0
    %p129 = por %p127, %p128
    %s131 = sadd.s32 %s130, 1
    %p134 = scmp.eq.s32.totalorder %s12, 1
    %p135 = scmp.ne.s32.totalorder %s130, %s132
    %p136 = scmp.eq.s32.totalorder %s12, 0
    %p137 = por %p135, %p136
    %p138 = scmp.ne.s32.totalorder %s130, %s132
    %p139 = scmp.eq.s32.totalorder %s17, 1
    %p140 = por %p138, %p139
    %p141 = scmp.ne.s32.totalorder %s132, %s133
    %p142 = scmp.eq.s32.totalorder %s17, 0
    %p143 = por %p141, %p142
    %p144 = scmp.ne.s32.totalorder %s132, %s133
    %p145 = scmp.eq.s32.totalorder %s18, 1
    %p146 = por %p144, %p145
    %p148 = scmp.ne.s32.totalorder %s133, %s147
    %p149 = scmp.eq.s32.totalorder %s18, 0
    %p150 = por %p148, %p149
    %s151 = ssub.s32 %s12, %s19
    %p152 = scmp.eq.s32.totalorder %s151, 0
    %s154 = sadd.s32 %s153, 1
    %s155 = scalar_select %p152, %s153, %s154
    %p158 = pneg %p152
    %p159 = scmp.eq.s32.totalorder %s12, 1
    %p160 = por %p158, %p159
    %p161 = scmp.ne.s32.totalorder %s153, %s156
    %p162 = scmp.eq.s32.totalorder %s12, 0
    %p163 = por %p161, %p162
    %p164 = scmp.ne.s32.totalorder %s153, %s156
    %p165 = scmp.eq.s32.totalorder %s17, 1
    %p166 = por %p164, %p165
    %p167 = scmp.ne.s32.totalorder %s156, %s157
    %p168 = scmp.eq.s32.totalorder %s17, 0
    %p169 = por %p167, %p168
    %p170 = scmp.ne.s32.totalorder %s156, %s157
    %p171 = scmp.eq.s32.totalorder %s18, 1
    %p172 = por %p170, %p171
    %p174 = scmp.ne.s32.totalorder %s157, %s173
    %p175 = scmp.eq.s32.totalorder %s18, 0
    %p176 = por %p174, %p175
    %p177 = scmp.le.s32.totalorder 1, %s12
    %p178 = scmp.lt.s32.totalorder %s12, 3
    %p179 = pnand %p177, %p178
    %p180 = pneg %p179
    // Predicated region
    $region9: #{_lambda_.12} parent=5 // pred_check
      _
    $region10: #{_lambda_.12} parent=5 // pred_check_branch
      %182 = sbr.rel (%p179) target = $region12
    $region11: #{_lambda_.12} parent=5 // pred_region
      %s183 = ssub.s32 %s12, 1
      // Predicated region
      $region13: #{_lambda_.12} parent=11 // pred_check
        %p184 = pneg %p59
      $region14: #{_lambda_.12} parent=11 // pred_check_branch
        %186 = sbr.rel (%p184) target = $region16
      $region15: #{_lambda_.12} parent=11 // pred_region
        _
      $region16: #{_lambda_.12} parent=11 // pred_fallthru
        _
      // Predicated region
      $region17: #{_lambda_.12} parent=11 // pred_check
        %p187 = pneg %p80
      $region18: #{_lambda_.12} parent=11 // pred_check_branch
        %189 = sbr.rel (%p187) target = $region20
      $region19: #{_lambda_.12} parent=11 // pred_region
        _
      $region20: #{_lambda_.12} parent=11 // pred_fallthru
        _
      // Predicated region
      $region21: #{_lambda_.12} parent=11 // pred_check
        %p190 = pneg %p101
      $region22: #{_lambda_.12} parent=11 // pred_check_branch
        %192 = sbr.rel (%p190) target = $region24
      $region23: #{_lambda_.12} parent=11 // pred_region
        _
      $region24: #{_lambda_.12} parent=11 // pred_fallthru
        _
      // Predicated region
      $region25: #{_lambda_.12} parent=11 // pred_check
        %p193 = pneg %p122
      $region26: #{_lambda_.12} parent=11 // pred_check_branch
        %195 = sbr.rel (%p193) target = $region28
      $region27: #{_lambda_.12} parent=11 // pred_region
        _
      $region28: #{_lambda_.12} parent=11 // pred_fallthru
        _
      // Predicated region
      $region29: #{_lambda_.12} parent=11 // pred_check
        %p196 = pneg %p143
      $region30: #{_lambda_.12} parent=11 // pred_check_branch
        %198 = sbr.rel (%p196) target = $region32
      $region31: #{_lambda_.12} parent=11 // pred_region
        _
      $region32: #{_lambda_.12} parent=11 // pred_fallthru
        _
    $region12: #{_lambda_.12} parent=5 // pred_fallthru
      _
    %p199 = scmp.lt.s32.totalorder %s12, 2
    // Predicated region
    $region33: #{_lambda_.12} parent=5 // pred_check
      %p200 = pneg %p199
    $region34: #{_lambda_.12} parent=5 // pred_check_branch
      %202 = sbr.rel (%p200) target = $region36
    $region35: #{_lambda_.12} parent=5 // pred_region
      // Predicated region
      $region37: #{_lambda_.12} parent=35 // pred_check
        %p203 = pneg %p32
      $region38: #{_lambda_.12} parent=35 // pred_check_branch
        %205 = sbr.rel (%p203) target = $region40
      $region39: #{_lambda_.12} parent=35 // pred_region
        %s206 = smul.u32 5, %s12
        %p207 = scmp.lt.s32.totalorder %s206, 9
        %s208 = scalar_select %p207, %s206, 9
        %s209 = smul.addr %s208, 4
        %s210 = scalar_lea.vmem %s0, %s209
        %s211 = smul.u32 5, %s12
      $region40: #{_lambda_.12} parent=35 // pred_fallthru
        _
    $region36: #{_lambda_.12} parent=5 // pred_fallthru
      _
    %p212 = scmp.le.s32.totalorder 1, %s12
    %p213 = scmp.lt.s32.totalorder %s12, 3
    %p214 = pnand %p212, %p213
    %p215 = pneg %p214
    // Predicated region
    $region41: #{_lambda_.12} parent=5 // pred_check
      _
    $region42: #{_lambda_.12} parent=5 // pred_check_branch
      %217 = sbr.rel (%p214) target = $region44
    $region43: #{_lambda_.12} parent=5 // pred_region
      %s218 = ssub.s32 %s12, 1
      %s219 = smul.u32 5, %s17
      %p220 = scmp.lt.s32.totalorder %s219, 9
      %s221 = scalar_select %p220, %s219, 9
      %s222 = smul.addr %s221, 4
      %s223 = scalar_lea.vmem %s0, %s222
      %p224 = pneg %p38
      %p225 = pneg %p35
      %p226 = pneg %p59
      %p227 = pneg %p56
      %p228 = pneg %p80
      %p229 = pneg %p77
      %p230 = pneg %p101
      %p231 = pneg %p98
      %p232 = pneg %p122
      %p233 = pneg %p119
      %p234 = pneg %p143
      %p235 = pneg %p140
      %p236 = pneg %p169
      %p237 = pneg %p166
      %s238 = smul.u32 5, %s17
      %p239 = scmp.lt.s32.totalorder %s238, 9
      %s240 = scalar_select %p239, %s238, 9
      %s241 = smul.addr %s240, 4
      %s242 = scalar_lea.vmem %s6, %s241
      %s243 = smul.u32 5, %s17
      %p244 = scmp.lt.s32.totalorder %s243, 9
      %s245 = scalar_select %p244, %s243, 9
      %s246 = smul.addr %s245, 4
      %s247 = scalar_lea.vmem %s0, %s246
      %s248 = smul.u32 5, %s17
      %s249 = smul.u32 5, %s17
      %p250 = scmp.lt.s32.totalorder %s249, 9
      %s251 = scalar_select %p250, %s249, 9
      %s252 = smul.addr %s251, 4
      %s253 = scalar_lea.vmem %s6, %s252
      %s254 = smul.u32 5, %s17
      %v256 = vld [vmem:[%s247] sm:$0xf]
      %v257 = vld [vmem:[%s247 + $0x4] sm:$0xf]
      %v258 = vld [vmem:[%s247 + $0x8] sm:$0xf]
      %v259 = vld [vmem:[%s247 + $0xc] sm:$0xf]
      %v260 = vld [vmem:[%s247 + $0x10] sm:$0xf]
      %v261 = vld [vmem:[%s1] sm:$0xf]
      %v262 = vld [vmem:[%s1 + $0x4] sm:$0x1]
      %v268 = vunpack.c.l.b16 %v256
      %v269 = vunpack.c.l.b16 %v257
      %v270 = vunpack.c.l.b16 %v258
      %v271 = vunpack.c.l.b16 %v259
      %v272 = vunpack.c.l.b16 %v260
      %v273 = vpack.c.b16 %v269, %v268
      %v274 = vpack.c.b16 %v271, %v270
      %v275 = vpack.c.b16 %v272, %v272
      %v278 = vunpack.c.l.b16 %v261
      %v279 = vunpack.c.l.b16 %v262
      %v280 = vpack.c.b16 %v279, %v278
      %vm281 = vcmask 72704
      %v283 = vsel %vm281, %v273, 0
      %v286 = vsel %vm281, %v274, 0
      %v289 = vsel %vm281, %v275, 0
      %vm291 = vcmask 1043456
      %vm292 = vcmask 1044480
      %v293 = vsel %vm291, 4294967295, 65535
      %v294 = vsel %vm292, %v293, 0
      %v296 = vand.u32 %v280, %v294
      %298 = vmatprep.subr.bf16.mxu0 0
      %299 = vmatpush1.bf16.msra.mxu0 0
      %300 = vmatprep.subr.bf16.mxu0 0
      %301 = vmatpush1.bf16.msra.mxu0 0
      %302 = vmatprep.subr.bf16.mxu0 0
      %303 = vmatpush1.bf16.msra.mxu0 0
      %304 = vmatprep.subr.bf16.mxu0 0
      %305 = vmatpush1.bf16.msra.mxu0 0
      %306 = vmatprep.subr.bf16.mxu0 0
      %307 = vmatpush1.bf16.msra.mxu0 0
      %308 = vmatprep.subr.bf16.mxu0 0
      %309 = vmatpush1.bf16.msra.mxu0 0
      %310 = vmatprep.subr.bf16.mxu0 0
      %311 = vmatpush1.bf16.msra.mxu0 0
      %312 = vmatprep.subr.bf16.mxu0 0
      %313 = vmatpush1.bf16.msra.mxu0 %v296
      %314 = vmatprep.subr.bf16.mxu0 0
      %315 = vmatpush2.bf16.msra.mxu0 0
      %316 = vmatprep.subr.bf16.mxu0 0
      %317 = vmatpush2.bf16.msra.mxu0 0
      %318 = vmatprep.subr.bf16.mxu0 0
      %319 = vmatpush2.bf16.msra.mxu0 0
      %320 = vmatprep.subr.bf16.mxu0 0
      %321 = vmatpush2.bf16.msra.mxu0 0
      %322 = vmatprep.subr.bf16.mxu0 0
      %323 = vmatpush2.bf16.msra.mxu0 0
      %324 = vmatprep.subr.bf16.mxu0 0
      %325 = vmatpush2.bf16.msra.mxu0 0
      %326 = vmatprep.subr.bf16.mxu0 0
      %327 = vmatpush2.bf16.msra.mxu0 0
      %328 = vmatprep.subr.bf16.mxu0 0
      %329 = vmatpush2.bf16.msra.mxu0 0
      %330 = vmatprep.mubr.bf16.mxu0 0
      %331 = vmatmul.mubr.bf16.gmra.mxu0 %v283
      %v332 = vpop.f32.mrf.mxu0
      %v333 = vadd.f32 0.0, %v332
      %v334 = vpop.f32.mrf.mxu0
      %v335 = vpop.f32.mrf.mxu0
      %v336 = vadd.f32 0.0, %v335
      %v337 = vpop.f32.mrf.mxu0
      %338 = vmatprep.mubr.bf16.mxu0 0
      %339 = vmatmul.mubr.bf16.gmra.mxu0 %v286
      %v340 = vpop.f32.mrf.mxu0
      %v341 = vadd.f32 0.0, %v340
      %v342 = vpop.f32.mrf.mxu0
      %v343 = vpop.f32.mrf.mxu0
      %v344 = vadd.f32 0.0, %v343
      %v345 = vpop.f32.mrf.mxu0
      %346 = vmatprep.mubr.bf16.mxu0 0
      %347 = vmatmul.mubr.bf16.gmra.mxu0 %v289
      %v348 = vpop.f32.mrf.mxu0
      %v349 = vadd.f32 0.0, %v348
      %v350 = vpop.f32.mrf.mxu0
      %v351 = vpop.f32.mrf.mxu0
      %v352 = vpop.f32.mrf.mxu0
      %353 = vdwg.mxu0
      %v354 = vmax.f32 %v333, 0.0
      %v355 = vmax.f32 %v336, 0.0
      %v356 = vmax.f32 %v341, 0.0
      %v357 = vmax.f32 %v344, 0.0
      %v358 = vmax.f32 %v349, 0.0
      %vm359 = vcmask 64512
      %360 = vst.msk [vmem:[#allocation2] sm:$0xff] %vm359, %v354
      %361 = vst.msk [vmem:[#allocation2 + $0x8] sm:$0xff] %vm359, %v355
      %362 = vst.msk [vmem:[#allocation2 + $0x10] sm:$0xff] %vm359, %v356
      %363 = vst.msk [vmem:[#allocation2 + $0x18] sm:$0xff] %vm359, %v357
      %364 = vst.msk [vmem:[#allocation2 + $0x20] sm:$0xff] %vm359, %v358
      %v365 = vld [vmem:[#allocation2] sm:$0xff]
      %v366 = vld [vmem:[#allocation2 + $0x8] sm:$0xff]
      %v367 = vld [vmem:[#allocation2 + $0x10] sm:$0x3f]
      %v368 = vld [vmem:[%s2] sm:$0x1]
      %v369 = vlaneseq
      %v370 = vshrl.u32 %v369, 7
      %v371 = vsub.s32 0, %v370
      %v372 = vrot.slane %v368, %v371
      %v373 = vmul.f32 %v365, %v372
      %v374 = vmul.f32 %v366, %v372
      %v375 = vmul.f32 %v367, %v372
      %v376 = vld [vmem:[#allocation2 + $0x1] sm:$0xff]
      %v377 = vld [vmem:[#allocation2 + $0x9] sm:$0xff]
      %v378 = vld [vmem:[#allocation2 + $0x11] sm:$0x3f]
      %v379 = vld [vmem:[%s2 + $0x1] sm:$0x1]
      %v380 = vlaneseq
      %v381 = vshrl.u32 %v380, 7
      %v382 = vsub.s32 0, %v381
      %v383 = vrot.slane %v379, %v382
      %v384 = vmul.f32 %v376, %v383
      %v385 = vmul.f32 %v377, %v383
      %v386 = vmul.f32 %v378, %v383
      %v387 = vadd.f32 %v373, %v384
      %v388 = vadd.f32 %v374, %v385
      %v389 = vadd.f32 %v375, %v386
      %v390 = vld [vmem:[#allocation2 + $0x2] sm:$0xff]
      %v391 = vld [vmem:[#allocation2 + $0xa] sm:$0xff]
      %v392 = vld [vmem:[#allocation2 + $0x12] sm:$0x3f]
      %v393 = vld [vmem:[%s2 + $0x2] sm:$0x1]
      %v394 = vlaneseq
      %v395 = vshrl.u32 %v394, 7
      %v396 = vsub.s32 0, %v395
      %v397 = vrot.slane %v393, %v396
      %v398 = vmul.f32 %v390, %v397
      %v399 = vmul.f32 %v391, %v397
      %v400 = vmul.f32 %v392, %v397
      %v401 = vadd.f32 %v387, %v398
      %v402 = vadd.f32 %v388, %v399
      %v403 = vadd.f32 %v389, %v400
      %v404 = vld [vmem:[#allocation2 + $0x6] sm:$0xff]
      %v405 = vld [vmem:[#allocation2 + $0xe] sm:$0xff]
      %v406 = vld [vmem:[#allocation2 + $0x16] sm:$0x3f]
      %v407 = vld [vmem:[%s2 + $0x3] sm:$0x1]
      %v408 = vlaneseq
      %v409 = vshrl.u32 %v408, 7
      %v410 = vsub.s32 0, %v409
      %v411 = vrot.slane %v407, %v410
      %v412 = vmul.f32 %v404, %v411
      %v413 = vmul.f32 %v405, %v411
      %v414 = vmul.f32 %v406, %v411
      %v415 = vadd.f32 %v401, %v412
      %v416 = vadd.f32 %v402, %v413
      %v417 = vadd.f32 %v403, %v414
      %v418 = vld [vmem:[#allocation2 + $0x7] sm:$0xff]
      %v419 = vld [vmem:[#allocation2 + $0xf] sm:$0xff]
      %v420 = vld [vmem:[#allocation2 + $0x17] sm:$0x3f]
      %v421 = vld [vmem:[%s2 + $0x4] sm:$0x1]
      %v422 = vlaneseq
      %v423 = vshrl.u32 %v422, 7
      %v424 = vsub.s32 0, %v423
      %v425 = vrot.slane %v421, %v424
      %v426 = vmul.f32 %v418, %v425
      %v427 = vmul.f32 %v419, %v425
      %v428 = vmul.f32 %v420, %v425
      %v429 = vadd.f32 %v415, %v426
      %v430 = vadd.f32 %v416, %v427
      %v431 = vadd.f32 %v417, %v428
      %v432 = vld [vmem:[#allocation2 + $0x10] sm:$0xff]
      %v433 = vld [vmem:[#allocation2 + $0x18] sm:$0x3f]
      %v434 = vld [vmem:[%s2 + $0x5] sm:$0x1]
      %v435 = vlaneseq
      %v436 = vshrl.u32 %v435, 7
      %v437 = vsub.s32 0, %v436
      %v438 = vrot.slane %v434, %v437
      %v439 = vmul.f32 %v366, %v438
      %v440 = vmul.f32 %v432, %v438
      %v441 = vmul.f32 %v433, %v438
      %v442 = vadd.f32 %v429, %v439
      %v443 = vadd.f32 %v430, %v440
      %v444 = vadd.f32 %v431, %v441
      %v445 = vld [vmem:[#allocation2 + $0xc] sm:$0xff]
      %v446 = vld [vmem:[#allocation2 + $0x14] sm:$0xff]
      %v447 = vld [vmem:[#allocation2 + $0x1c] sm:$0x3f]
      %v448 = vld [vmem:[%s2 + $0x6] sm:$0x1]
      %v449 = vlaneseq
      %v450 = vshrl.u32 %v449, 7
      %v451 = vsub.s32 0, %v450
      %v452 = vrot.slane %v448, %v451
      %v453 = vmul.f32 %v445, %v452
      %v454 = vmul.f32 %v446, %v452
      %v455 = vmul.f32 %v447, %v452
      %v456 = vadd.f32 %v442, %v453
      %v457 = vadd.f32 %v443, %v454
      %v458 = vadd.f32 %v444, %v455
      %v459 = vld [vmem:[#allocation2 + $0xd] sm:$0xff]
      %v460 = vld [vmem:[#allocation2 + $0x15] sm:$0xff]
      %v461 = vld [vmem:[#allocation2 + $0x1d] sm:$0x3f]
      %v462 = vld [vmem:[%s2 + $0x7] sm:$0x1]
      %v463 = vlaneseq
      %v464 = vshrl.u32 %v463, 7
      %v465 = vsub.s32 0, %v464
      %v466 = vrot.slane %v462, %v465
      %v467 = vmul.f32 %v459, %v466
      %v468 = vmul.f32 %v460, %v466
      %v469 = vmul.f32 %v461, %v466
      %v470 = vadd.f32 %v456, %v467
      %v471 = vadd.f32 %v457, %v468
      %v472 = vadd.f32 %v458, %v469
      %v473 = vld [vmem:[#allocation2 + $0x16] sm:$0xff]
      %v474 = vld [vmem:[#allocation2 + $0x1e] sm:$0x3f]
      %v475 = vld [vmem:[%s2 + $0x8] sm:$0x1]
      %v476 = vlaneseq
      %v477 = vshrl.u32 %v476, 7
      %v478 = vsub.s32 0, %v477
      %v479 = vrot.slane %v475, %v478
      %v480 = vmul.f32 %v405, %v479
      %v481 = vmul.f32 %v473, %v479
      %v482 = vmul.f32 %v474, %v479
      %v483 = vadd.f32 %v470, %v480
      %v484 = vadd.f32 %v471, %v481
      %v485 = vadd.f32 %v472, %v482
      %v486 = vld [vmem:[%s3] sm:$0x1]
      %v488 = vlaneseq
      %v489 = vshrl.u32 %v488, 7
      %v490 = vsub.s32 0, %v489
      %v491 = vrot.slane %v486, %v490
      %v493 = vadd.f32 %v483, %v491
      %v494 = vadd.f32 %v484, %v491
      %v495 = vadd.f32 %v485, %v491
      %v496 = vld [vmem:[%s4] sm:$0xf]
      %v497 = vpack.c.bf16 %v494, %v493
      %v498 = vpack.c.bf16 %v495, %v495
      %v499 = vld [vmem:[%s5] sm:$0x1]
      %v501 = vlaneseq
      %v502 = vshrl.u32 %v501, 7
      %v503 = vsub.s32 0, %v502
      %v504 = vrot.slane %v499, %v503
      %v507 = vsel %vm359, %v497, 0
      %v510 = vsel %vm359, %v498, 0
      %v513 = vsel %vm291, %v496, 0
      %515 = vmatprep.subr.bf16.mxu0 0
      %516 = vmatpush1.bf16.msra.mxu0 0
      %517 = vmatprep.subr.bf16.mxu0 0
      %518 = vmatpush1.bf16.msra.mxu0 0
      %519 = vmatprep.subr.bf16.mxu0 0
      %520 = vmatpush1.bf16.msra.mxu0 0
      %521 = vmatprep.subr.bf16.mxu0 0
      %522 = vmatpush1.bf16.msra.mxu0 0
      %523 = vmatprep.subr.bf16.mxu0 0
      %524 = vmatpush1.bf16.msra.mxu0 0
      %525 = vmatprep.subr.bf16.mxu0 0
      %526 = vmatpush1.bf16.msra.mxu0 0
      %527 = vmatprep.subr.bf16.mxu0 0
      %528 = vmatpush1.bf16.msra.mxu0 0
      %529 = vmatprep.subr.bf16.mxu0 0
      %530 = vmatpush1.bf16.msra.mxu0 %v513
      %531 = vmatprep.subr.bf16.mxu0 0
      %532 = vmatpush2.bf16.msra.mxu0 0
      %533 = vmatprep.subr.bf16.mxu0 0
      %534 = vmatpush2.bf16.msra.mxu0 0
      %535 = vmatprep.subr.bf16.mxu0 0
      %536 = vmatpush2.bf16.msra.mxu0 0
      %537 = vmatprep.subr.bf16.mxu0 0
      %538 = vmatpush2.bf16.msra.mxu0 0
      %539 = vmatprep.subr.bf16.mxu0 0
      %540 = vmatpush2.bf16.msra.mxu0 0
      %541 = vmatprep.subr.bf16.mxu0 0
      %542 = vmatpush2.bf16.msra.mxu0 0
      %543 = vmatprep.subr.bf16.mxu0 0
      %544 = vmatpush2.bf16.msra.mxu0 0
      %545 = vmatprep.subr.bf16.mxu0 0
      %546 = vmatpush2.bf16.msra.mxu0 0
      %547 = vmatprep.mubr.bf16.mxu0 0
      %548 = vmatmul.mubr.bf16.gmra.mxu0 %v507
      %v549 = vpop.f32.mrf.mxu0
      %v550 = vadd.f32 %v504, %v549
      %v551 = vpop.f32.mrf.mxu0
      %v552 = vpop.f32.mrf.mxu0
      %v553 = vadd.f32 %v504, %v552
      %v554 = vpop.f32.mrf.mxu0
      %555 = vmatprep.mubr.bf16.mxu0 0
      %556 = vmatmul.mubr.bf16.gmra.mxu0 %v510
      %v557 = vpop.f32.mrf.mxu0
      %v558 = vadd.f32 %v504, %v557
      %v559 = vpop.f32.mrf.mxu0
      %v560 = vpop.f32.mrf.mxu0
      %v561 = vpop.f32.mrf.mxu0
      %562 = vdwg.mxu0
      %v563 = vmax.f32 %v550, 0.0
      %v564 = vmax.f32 %v553, 0.0
      %v565 = vmax.f32 %v558, 0.0
      %v566 = vpack.c.bf16 %v564, %v563
      %v567 = vpack.c.bf16 %v565, %v565
      %v570 = vunpack.c.l.b16 %v566
      %v571 = vunpack.c.h.b16 %v566
      %v572 = vunpack.c.l.b16 %v567
      %v573 = vpack.c.b16 %v570, %v570
      %v574 = vpack.c.b16 %v571, %v571
      %v575 = vpack.c.b16 %v572, %v572
      %vm576 = vsmask.f32 3328
      %vm577 = vsmask.f32 7440
      %vm578 = vmor %vm576, %vm577
      %v580 = vshll.u32 %v573, 16
      %v582 = vrot.slane %v580, 5
      %v583 = vshrl.u32 %v573, 16
      %v585 = vrot.slane %v583, 4
      %v586 = vor.u32 %v585, %v582
      %v587 = vrot.slane %v586, 4
      %v589 = vshll.u32 %v574, 16
      %v591 = vrot.slane %v589, 5
      %v592 = vsel %vm578, %v587, %v591
      %v593 = vshrl.u32 %v574, 16
      %v595 = vrot.slane %v593, 4
      %v596 = vor.u32 %v595, %v591
      %v597 = vrot.slane %v596, 4
      %v599 = vshll.u32 %v575, 16
      %v601 = vrot.slane %v599, 5
      %v602 = vsel %vm578, %v597, %v601
      %v603 = vshrl.u32 %v575, 16
      %v605 = vrot.slane %v603, 4
      %v606 = vor.u32 %v605, %v601
      %v607 = vrot.slane %v606, 4
      %vm612 = vcmask 60419
      %vm613 = vsmask.f32 7950
      %vm614 = vmand %vm612, %vm613
      %v615 = vld [vmem:[%s253] sm:$0x8]
      %v616 = vsel %vm614, %v582, %v615
      %617 = vst [vmem:[%s253] sm:$0x8] %v616
      %vm618 = vcmask 60416
      %619 = vst.msk [vmem:[%s253 + $0x4] sm:$0xf] %vm618, %v592
      %620 = vst.msk [vmem:[%s253 + $0x8] sm:$0xf] %vm618, %v602
      %vm621 = vcmask 59392
      %vm622 = vsmask.f32 2304
      %vm623 = vmand %vm621, %vm622
      %v624 = vld [vmem:[%s253 + $0xc] sm:$0x7]
      %v625 = vsel %vm623, %v607, %v624
      %626 = vst [vmem:[%s253 + $0xc] sm:$0x7] %v625
      %s627 = smul.u32 5, %s17
      %p628 = scmp.lt.s32.totalorder %s627, 9
      %s629 = scalar_select %p628, %s627, 9
      %s630 = smul.addr %s629, 4
      %s631 = scalar_lea.vmem %s6, %s630
      // Predicated region
      $region45: #{_lambda_.12} parent=43 // pred_check
        %p632 = pneg %p166
      $region46: #{_lambda_.12} parent=43 // pred_check_branch
        %634 = sbr.rel (%p632) target = $region48
      $region47: #{_lambda_.12} parent=43 // pred_region
        %s635 = smul.u32 5, %s17
      $region48: #{_lambda_.12} parent=43 // pred_fallthru
        _
    $region44: #{_lambda_.12} parent=5 // pred_fallthru
      _
    %p636 = scmp.le.s32.totalorder 2, %s12
    // Predicated region
    $region49: #{_lambda_.12} parent=5 // pred_check
      %p637 = pneg %p636
    $region50: #{_lambda_.12} parent=5 // pred_check_branch
      %639 = sbr.rel (%p637) target = $region52
    $region51: #{_lambda_.12} parent=5 // pred_region
      %s640 = ssub.s32 %s12, 2
      // Predicated region
      $region53: #{_lambda_.12} parent=51 // pred_check
        %p641 = pneg %p172
      $region54: #{_lambda_.12} parent=51 // pred_check_branch
        %643 = sbr.rel (%p641) target = $region56
      $region55: #{_lambda_.12} parent=51 // pred_region
        %s644 = smul.u32 5, %s18
        %p645 = scmp.lt.s32.totalorder %s644, 9
        %s646 = scalar_select %p645, %s644, 9
        %s647 = smul.addr %s646, 4
        %s648 = scalar_lea.vmem %s6, %s647
      $region56: #{_lambda_.12} parent=51 // pred_fallthru
        _
    $region52: #{_lambda_.12} parent=5 // pred_fallthru
      _
  $region6: #{_lambda_.12} parent=0 // loop_footer
    %s16 = sadd.s32 1, %s12
  $region7: #{_lambda_.12} parent=0 // loop_footer_branch
    %11 = sbr.rel target = $region3
  $region8: #{_lambda_.12} parent=0 // loop_exit
    _

// kernel: _lambda_.13
$region0: #{_lambda_.13}
  #allocation0 [shape = 'u32[]', space=smem, size = 0x4, offset = 0x4, fixed_abs, tag = 'smem constant byte address 0x4 - core index']
  #allocation1 [shape = 'u32[144,128]{1,0:T(1,128)}', space=vmem, size = 0x12000, scoped, tag = 'internal scratch']
  #allocation2 [shape = 'f32[40,16]{1,0:T(8,128)}', space=vmem, size = 0x5000, scoped, tag = 'scratch operand']
  %s0 = inlined_call_operand.vmem [shape: bf16[80,17], index: 0, kind: input, shape index: {}]
  %s1 = inlined_call_operand.vmem [shape: f32[9,17], index: 1, kind: input, shape index: {}]
  %s2 = inlined_call_operand.vmem [shape: f32[1,17], index: 2, kind: input, shape index: {}]
  %s3 = inlined_call_operand.vmem [shape: bf16[17,16], index: 3, kind: input, shape index: {}]
  %s4 = inlined_call_operand.vmem [shape: f32[1,16], index: 4, kind: input, shape index: {}]
  %s5 = inlined_call_operand.vmem [shape: bf16[17,16], index: 5, kind: input, shape index: {}]
  %s6 = inlined_call_operand.vmem [shape: f32[9,16], index: 6, kind: input, shape index: {}]
  %s7 = inlined_call_operand.vmem [shape: f32[1,16], index: 7, kind: input, shape index: {}]
  %s8 = inlined_call_operand.vmem [shape: bf16[16,16], index: 8, kind: input, shape index: {}]
  %s9 = inlined_call_operand.vmem [shape: f32[1,16], index: 9, kind: input, shape index: {}]
  %s10 = inlined_call_operand.vmem [shape: bf16[32,32], index: 10, kind: output, shape index: {}]
  %s11 = sld [smem:[#allocation0]]
  $region73: #{_lambda_.13} parent=0
    _
  %s13 = ssub.s32 1, %s11
  %s14 = scalar_select 0, %s13, %s11
  loop: start=0, step=1, limit=4
  $region2: #{_lambda_.13} parent=0 // loop_pre_header
    _
  $region3: #{_lambda_.13} parent=0 // loop_header
    %s16 = sphi 0, %s20
    %p17 = scmp.ge.s32.totalorder %s16, 4
    %s26 = sphi 0, %s28
    %s29 = sphi 0, %s26
    %s30 = sphi 0, %s29
    %s46 = sphi 0, %s30
    %s50 = sphi 0, %s50
    %s52 = sphi 0, %s50
    %s53 = sphi 0, %s52
    %s67 = sphi 0, %s53
    %s71 = sphi 0, %s71
    %s73 = sphi 0, %s71
    %s74 = sphi 0, %s73
    %s88 = sphi 0, %s74
    %s92 = sphi 0, %s92
    %s94 = sphi 0, %s92
    %s95 = sphi 0, %s94
    %s109 = sphi 0, %s95
    %s113 = sphi 0, %s113
    %s115 = sphi 0, %s113
    %s116 = sphi 0, %s115
    %s130 = sphi 0, %s116
    %s134 = sphi 0, %s134
    %s136 = sphi 0, %s134
    %s137 = sphi 0, %s136
    %s151 = sphi 0, %s137
    %s155 = sphi 0, %s155
    %s157 = sphi 0, %s155
    %s158 = sphi 0, %s157
    %s172 = sphi 0, %s158
    %s176 = sphi 0, %s176
    %s178 = sphi 0, %s176
    %s179 = sphi 0, %s178
    %s193 = sphi 0, %s179
    %s197 = sphi 0, %s197
    %s199 = sphi 0, %s197
    %s200 = sphi 0, %s199
    %s214 = sphi 0, %s200
    %s218 = sphi 0, %s218
    %s220 = sphi 0, %s218
    %s221 = sphi 0, %s220
    %s235 = sphi 0, %s221
    %s241 = sphi 0, %s243
    %s244 = sphi 0, %s241
    %s245 = sphi 0, %s244
    %s261 = sphi 0, %s245
  $region4: #{_lambda_.13} parent=0 // loop_header_branch
    %19 = sbr.rel (%p17) target = $region8
  $region5: #{_lambda_.13} parent=0 // loop_body
    %s21 = ssub.s32 %s16, 1
    %s22 = ssub.s32 %s16, 2
    %s23 = sadd.s32 %s16, 1
    %s24 = ssub.s32 %s16, %s23
    %p25 = scmp.eq.s32.totalorder %s24, 0
    %s27 = sadd.s32 %s26, 1
    %s28 = scalar_select %p25, %s26, %s27
    %p31 = pneg %p25
    %p32 = scmp.eq.s32.totalorder %s16, 1
    %p33 = por %p31, %p32
    %p34 = scmp.ne.s32.totalorder %s26, %s29
    %p35 = scmp.eq.s32.totalorder %s16, 0
    %p36 = por %p34, %p35
    %p37 = scmp.ne.s32.totalorder %s26, %s29
    %p38 = scmp.eq.s32.totalorder %s21, 1
    %p39 = por %p37, %p38
    %p40 = scmp.ne.s32.totalorder %s29, %s30
    %p41 = scmp.eq.s32.totalorder %s21, 0
    %p42 = por %p40, %p41
    %p43 = scmp.ne.s32.totalorder %s29, %s30
    %p44 = scmp.eq.s32.totalorder %s22, 1
    %p45 = por %p43, %p44
    %p47 = scmp.ne.s32.totalorder %s30, %s46
    %p48 = scmp.eq.s32.totalorder %s22, 0
    %p49 = por %p47, %p48
    %s51 = sadd.s32 %s50, 1
    %p54 = scmp.eq.s32.totalorder %s16, 1
    %p55 = scmp.ne.s32.totalorder %s50, %s52
    %p56 = scmp.eq.s32.totalorder %s16, 0
    %p57 = por %p55, %p56
    %p58 = scmp.ne.s32.totalorder %s50, %s52
    %p59 = scmp.eq.s32.totalorder %s21, 1
    %p60 = por %p58, %p59
    %p61 = scmp.ne.s32.totalorder %s52, %s53
    %p62 = scmp.eq.s32.totalorder %s21, 0
    %p63 = por %p61, %p62
    %p64 = scmp.ne.s32.totalorder %s52, %s53
    %p65 = scmp.eq.s32.totalorder %s22, 1
    %p66 = por %p64, %p65
    %p68 = scmp.ne.s32.totalorder %s53, %s67
    %p69 = scmp.eq.s32.totalorder %s22, 0
    %p70 = por %p68, %p69
    %s72 = sadd.s32 %s71, 1
    %p75 = scmp.eq.s32.totalorder %s16, 1
    %p76 = scmp.ne.s32.totalorder %s71, %s73
    %p77 = scmp.eq.s32.totalorder %s16, 0
    %p78 = por %p76, %p77
    %p79 = scmp.ne.s32.totalorder %s71, %s73
    %p80 = scmp.eq.s32.totalorder %s21, 1
    %p81 = por %p79, %p80
    %p82 = scmp.ne.s32.totalorder %s73, %s74
    %p83 = scmp.eq.s32.totalorder %s21, 0
    %p84 = por %p82, %p83
    %p85 = scmp.ne.s32.totalorder %s73, %s74
    %p86 = scmp.eq.s32.totalorder %s22, 1
    %p87 = por %p85, %p86
    %p89 = scmp.ne.s32.totalorder %s74, %s88
    %p90 = scmp.eq.s32.totalorder %s22, 0
    %p91 = por %p89, %p90
    %s93 = sadd.s32 %s92, 1
    %p96 = scmp.eq.s32.totalorder %s16, 1
    %p97 = scmp.ne.s32.totalorder %s92, %s94
    %p98 = scmp.eq.s32.totalorder %s16, 0
    %p99 = por %p97, %p98
    %p100 = scmp.ne.s32.totalorder %s92, %s94
    %p101 = scmp.eq.s32.totalorder %s21, 1
    %p102 = por %p100, %p101
    %p103 = scmp.ne.s32.totalorder %s94, %s95
    %p104 = scmp.eq.s32.totalorder %s21, 0
    %p105 = por %p103, %p104
    %p106 = scmp.ne.s32.totalorder %s94, %s95
    %p107 = scmp.eq.s32.totalorder %s22, 1
    %p108 = por %p106, %p107
    %p110 = scmp.ne.s32.totalorder %s95, %s109
    %p111 = scmp.eq.s32.totalorder %s22, 0
    %p112 = por %p110, %p111
    %s114 = sadd.s32 %s113, 1
    %p117 = scmp.eq.s32.totalorder %s16, 1
    %p118 = scmp.ne.s32.totalorder %s113, %s115
    %p119 = scmp.eq.s32.totalorder %s16, 0
    %p120 = por %p118, %p119
    %p121 = scmp.ne.s32.totalorder %s113, %s115
    %p122 = scmp.eq.s32.totalorder %s21, 1
    %p123 = por %p121, %p122
    %p124 = scmp.ne.s32.totalorder %s115, %s116
    %p125 = scmp.eq.s32.totalorder %s21, 0
    %p126 = por %p124, %p125
    %p127 = scmp.ne.s32.totalorder %s115, %s116
    %p128 = scmp.eq.s32.totalorder %s22, 1
    %p129 = por %p127, %p128
    %p131 = scmp.ne.s32.totalorder %s116, %s130
    %p132 = scmp.eq.s32.totalorder %s22, 0
    %p133 = por %p131, %p132
    %s135 = sadd.s32 %s134, 1
    %p138 = scmp.eq.s32.totalorder %s16, 1
    %p139 = scmp.ne.s32.totalorder %s134, %s136
    %p140 = scmp.eq.s32.totalorder %s16, 0
    %p141 = por %p139, %p140
    %p142 = scmp.ne.s32.totalorder %s134, %s136
    %p143 = scmp.eq.s32.totalorder %s21, 1
    %p144 = por %p142, %p143
    %p145 = scmp.ne.s32.totalorder %s136, %s137
    %p146 = scmp.eq.s32.totalorder %s21, 0
    %p147 = por %p145, %p146
    %p148 = scmp.ne.s32.totalorder %s136, %s137
    %p149 = scmp.eq.s32.totalorder %s22, 1
    %p150 = por %p148, %p149
    %p152 = scmp.ne.s32.totalorder %s137, %s151
    %p153 = scmp.eq.s32.totalorder %s22, 0
    %p154 = por %p152, %p153
    %s156 = sadd.s32 %s155, 1
    %p159 = scmp.eq.s32.totalorder %s16, 1
    %p160 = scmp.ne.s32.totalorder %s155, %s157
    %p161 = scmp.eq.s32.totalorder %s16, 0
    %p162 = por %p160, %p161
    %p163 = scmp.ne.s32.totalorder %s155, %s157
    %p164 = scmp.eq.s32.totalorder %s21, 1
    %p165 = por %p163, %p164
    %p166 = scmp.ne.s32.totalorder %s157, %s158
    %p167 = scmp.eq.s32.totalorder %s21, 0
    %p168 = por %p166, %p167
    %p169 = scmp.ne.s32.totalorder %s157, %s158
    %p170 = scmp.eq.s32.totalorder %s22, 1
    %p171 = por %p169, %p170
    %p173 = scmp.ne.s32.totalorder %s158, %s172
    %p174 = scmp.eq.s32.totalorder %s22, 0
    %p175 = por %p173, %p174
    %s177 = sadd.s32 %s176, 1
    %p180 = scmp.eq.s32.totalorder %s16, 1
    %p181 = scmp.ne.s32.totalorder %s176, %s178
    %p182 = scmp.eq.s32.totalorder %s16, 0
    %p183 = por %p181, %p182
    %p184 = scmp.ne.s32.totalorder %s176, %s178
    %p185 = scmp.eq.s32.totalorder %s21, 1
    %p186 = por %p184, %p185
    %p187 = scmp.ne.s32.totalorder %s178, %s179
    %p188 = scmp.eq.s32.totalorder %s21, 0
    %p189 = por %p187, %p188
    %p190 = scmp.ne.s32.totalorder %s178, %s179
    %p191 = scmp.eq.s32.totalorder %s22, 1
    %p192 = por %p190, %p191
    %p194 = scmp.ne.s32.totalorder %s179, %s193
    %p195 = scmp.eq.s32.totalorder %s22, 0
    %p196 = por %p194, %p195
    %s198 = sadd.s32 %s197, 1
    %p201 = scmp.eq.s32.totalorder %s16, 1
    %p202 = scmp.ne.s32.totalorder %s197, %s199
    %p203 = scmp.eq.s32.totalorder %s16, 0
    %p204 = por %p202, %p203
    %p205 = scmp.ne.s32.totalorder %s197, %s199
    %p206 = scmp.eq.s32.totalorder %s21, 1
    %p207 = por %p205, %p206
    %p208 = scmp.ne.s32.totalorder %s199, %s200
    %p209 = scmp.eq.s32.totalorder %s21, 0
    %p210 = por %p208, %p209
    %p211 = scmp.ne.s32.totalorder %s199, %s200
    %p212 = scmp.eq.s32.totalorder %s22, 1
    %p213 = por %p211, %p212
    %p215 = scmp.ne.s32.totalorder %s200, %s214
    %p216 = scmp.eq.s32.totalorder %s22, 0
    %p217 = por %p215, %p216
    %s219 = sadd.s32 %s218, 1
    %p222 = scmp.eq.s32.totalorder %s16, 1
    %p223 = scmp.ne.s32.totalorder %s218, %s220
    %p224 = scmp.eq.s32.totalorder %s16, 0
    %p225 = por %p223, %p224
    %p226 = scmp.ne.s32.totalorder %s218, %s220
    %p227 = scmp.eq.s32.totalorder %s21, 1
    %p228 = por %p226, %p227
    %p229 = scmp.ne.s32.totalorder %s220, %s221
    %p230 = scmp.eq.s32.totalorder %s21, 0
    %p231 = por %p229, %p230
    %p232 = scmp.ne.s32.totalorder %s220, %s221
    %p233 = scmp.eq.s32.totalorder %s22, 1
    %p234 = por %p232, %p233
    %p236 = scmp.ne.s32.totalorder %s221, %s235
    %p237 = scmp.eq.s32.totalorder %s22, 0
    %p238 = por %p236, %p237
    %s239 = ssub.s32 %s16, %s23
    %p240 = scmp.eq.s32.totalorder %s239, 0
    %s242 = sadd.s32 %s241, 1
    %s243 = scalar_select %p240, %s241, %s242
    %p246 = pneg %p240
    %p247 = scmp.eq.s32.totalorder %s16, 1
    %p248 = por %p246, %p247
    %p249 = scmp.ne.s32.totalorder %s241, %s244
    %p250 = scmp.eq.s32.totalorder %s16, 0
    %p251 = por %p249, %p250
    %p252 = scmp.ne.s32.totalorder %s241, %s244
    %p253 = scmp.eq.s32.totalorder %s21, 1
    %p254 = por %p252, %p253
    %p255 = scmp.ne.s32.totalorder %s244, %s245
    %p256 = scmp.eq.s32.totalorder %s21, 0
    %p257 = por %p255, %p256
    %p258 = scmp.ne.s32.totalorder %s244, %s245
    %p259 = scmp.eq.s32.totalorder %s22, 1
    %p260 = por %p258, %p259
    %p262 = scmp.ne.s32.totalorder %s245, %s261
    %p263 = scmp.eq.s32.totalorder %s22, 0
    %p264 = por %p262, %p263
    %p265 = scmp.le.s32.totalorder 1, %s16
    %p266 = scmp.lt.s32.totalorder %s16, 3
    %p267 = pnand %p265, %p266
    %p268 = pneg %p267
    // Predicated region
    $region9: #{_lambda_.13} parent=5 // pred_check
      _
    $region10: #{_lambda_.13} parent=5 // pred_check_branch
      %270 = sbr.rel (%p267) target = $region12
    $region11: #{_lambda_.13} parent=5 // pred_region
      %s271 = ssub.s32 %s16, 1
      // Predicated region
      $region13: #{_lambda_.13} parent=11 // pred_check
        %p272 = pneg %p63
      $region14: #{_lambda_.13} parent=11 // pred_check_branch
        %274 = sbr.rel (%p272) target = $region16
      $region15: #{_lambda_.13} parent=11 // pred_region
        _
      $region16: #{_lambda_.13} parent=11 // pred_fallthru
        _
      // Predicated region
      $region17: #{_lambda_.13} parent=11 // pred_check
        %p275 = pneg %p84
      $region18: #{_lambda_.13} parent=11 // pred_check_branch
        %277 = sbr.rel (%p275) target = $region20
      $region19: #{_lambda_.13} parent=11 // pred_region
        _
      $region20: #{_lambda_.13} parent=11 // pred_fallthru
        _
      // Predicated region
      $region21: #{_lambda_.13} parent=11 // pred_check
        %p278 = pneg %p105
      $region22: #{_lambda_.13} parent=11 // pred_check_branch
        %280 = sbr.rel (%p278) target = $region24
      $region23: #{_lambda_.13} parent=11 // pred_region
        _
      $region24: #{_lambda_.13} parent=11 // pred_fallthru
        _
      // Predicated region
      $region25: #{_lambda_.13} parent=11 // pred_check
        %p281 = pneg %p126
      $region26: #{_lambda_.13} parent=11 // pred_check_branch
        %283 = sbr.rel (%p281) target = $region28
      $region27: #{_lambda_.13} parent=11 // pred_region
        _
      $region28: #{_lambda_.13} parent=11 // pred_fallthru
        _
      // Predicated region
      $region29: #{_lambda_.13} parent=11 // pred_check
        %p284 = pneg %p147
      $region30: #{_lambda_.13} parent=11 // pred_check_branch
        %286 = sbr.rel (%p284) target = $region32
      $region31: #{_lambda_.13} parent=11 // pred_region
        _
      $region32: #{_lambda_.13} parent=11 // pred_fallthru
        _
      // Predicated region
      $region33: #{_lambda_.13} parent=11 // pred_check
        %p287 = pneg %p168
      $region34: #{_lambda_.13} parent=11 // pred_check_branch
        %289 = sbr.rel (%p287) target = $region36
      $region35: #{_lambda_.13} parent=11 // pred_region
        _
      $region36: #{_lambda_.13} parent=11 // pred_fallthru
        _
      // Predicated region
      $region37: #{_lambda_.13} parent=11 // pred_check
        %p290 = pneg %p189
      $region38: #{_lambda_.13} parent=11 // pred_check_branch
        %292 = sbr.rel (%p290) target = $region40
      $region39: #{_lambda_.13} parent=11 // pred_region
        _
      $region40: #{_lambda_.13} parent=11 // pred_fallthru
        _
      // Predicated region
      $region41: #{_lambda_.13} parent=11 // pred_check
        %p293 = pneg %p210
      $region42: #{_lambda_.13} parent=11 // pred_check_branch
        %295 = sbr.rel (%p293) target = $region44
      $region43: #{_lambda_.13} parent=11 // pred_region
        _
      $region44: #{_lambda_.13} parent=11 // pred_fallthru
        _
      // Predicated region
      $region45: #{_lambda_.13} parent=11 // pred_check
        %p296 = pneg %p231
      $region46: #{_lambda_.13} parent=11 // pred_check_branch
        %298 = sbr.rel (%p296) target = $region48
      $region47: #{_lambda_.13} parent=11 // pred_region
        _
      $region48: #{_lambda_.13} parent=11 // pred_fallthru
        _
    $region12: #{_lambda_.13} parent=5 // pred_fallthru
      _
    %p299 = scmp.lt.s32.totalorder %s16, 2
    // Predicated region
    $region49: #{_lambda_.13} parent=5 // pred_check
      %p300 = pneg %p299
    $region50: #{_lambda_.13} parent=5 // pred_check_branch
      %302 = sbr.rel (%p300) target = $region52
    $region51: #{_lambda_.13} parent=5 // pred_region
      // Predicated region
      $region53: #{_lambda_.13} parent=51 // pred_check
        %p303 = pneg %p36
      $region54: #{_lambda_.13} parent=51 // pred_check_branch
        %305 = sbr.rel (%p303) target = $region56
      $region55: #{_lambda_.13} parent=51 // pred_region
        %s306 = smul.u32 5, %s16
        %p307 = scmp.lt.s32.totalorder %s306, 9
        %s308 = scalar_select %p307, %s306, 9
        %s309 = smul.addr %s308, 4
        %s310 = scalar_lea.vmem %s0, %s309
        %s311 = smul.u32 5, %s16
      $region56: #{_lambda_.13} parent=51 // pred_fallthru
        _
    $region52: #{_lambda_.13} parent=5 // pred_fallthru
      _
    %p312 = scmp.le.s32.totalorder 1, %s16
    %p313 = scmp.lt.s32.totalorder %s16, 3
    %p314 = pnand %p312, %p313
    %p315 = pneg %p314
    // Predicated region
    $region57: #{_lambda_.13} parent=5 // pred_check
      _
    $region58: #{_lambda_.13} parent=5 // pred_check_branch
      %317 = sbr.rel (%p314) target = $region60
    $region59: #{_lambda_.13} parent=5 // pred_region
      %s318 = ssub.s32 %s16, 1
      %s319 = smul.u32 5, %s21
      %p320 = scmp.lt.s32.totalorder %s319, 9
      %s321 = scalar_select %p320, %s319, 9
      %s322 = smul.addr %s321, 4
      %s323 = scalar_lea.vmem %s0, %s322
      %p324 = pneg %p42
      %p325 = pneg %p39
      %p326 = pneg %p63
      %p327 = pneg %p60
      %p328 = pneg %p84
      %p329 = pneg %p81
      %p330 = pneg %p105
      %p331 = pneg %p102
      %p332 = pneg %p126
      %p333 = pneg %p123
      %p334 = pneg %p147
      %p335 = pneg %p144
      %p336 = pneg %p168
      %p337 = pneg %p165
      %p338 = pneg %p189
      %p339 = pneg %p186
      %p340 = pneg %p210
      %p341 = pneg %p207
      %p342 = pneg %p231
      %p343 = pneg %p228
      %p344 = pneg %p257
      %p345 = pneg %p254
      %s346 = smul.u32 2, %s21
      %p347 = scmp.lt.s32.totalorder %s346, 3
      %s348 = scalar_select %p347, %s346, 3
      %s349 = smul.addr %s348, 4
      %s350 = scalar_lea.vmem %s10, %s349
      %s351 = smul.u32 5, %s21
      %p352 = scmp.lt.s32.totalorder %s351, 9
      %s353 = scalar_select %p352, %s351, 9
      %s354 = smul.addr %s353, 4
      %s355 = scalar_lea.vmem %s0, %s354
      %s356 = smul.u32 5, %s21
      %s357 = smul.u32 2, %s21
      %p358 = scmp.lt.s32.totalorder %s357, 3
      %s359 = scalar_select %p358, %s357, 3
      %s360 = smul.addr %s359, 4
      %s361 = scalar_lea.vmem %s10, %s360
      %s362 = smul.u32 2, %s21
      %v364 = vld [vmem:[%s355] sm:$0x7]
      %v365 = vunpack.c.l.bf16 %v364
      %v366 = vld [vmem:[%s1] sm:$0x1]
      %v367 = vlaneseq
      %v368 = vshrl.u32 %v367, 7
      %v369 = vsub.s32 0, %v368
      %v370 = vrot.slane %v366, %v369
      %v371 = vmul.f32 %v365, %v370
      %v372 = vld [vmem:[%s355 + $0x4] sm:$0x7]
      %v373 = vunpack.c.l.bf16 %v372
      %v374 = vld [vmem:[%s1 + $0x1] sm:$0x1]
      %v375 = vlaneseq
      %v376 = vshrl.u32 %v375, 7
      %v377 = vsub.s32 0, %v376
      %v378 = vrot.slane %v374, %v377
      %v379 = vmul.f32 %v373, %v378
      %v381 = vrot.slane %v379, 1
      %v383 = vadd.f32 %v371, %v381
      %v384 = vld [vmem:[%s1 + $0x2] sm:$0x1]
      %v385 = vlaneseq
      %v386 = vshrl.u32 %v385, 7
      %v387 = vsub.s32 0, %v386
      %v388 = vrot.slane %v384, %v387
      %v389 = vmul.f32 %v365, %v388
      %v391 = vrot.slane %v389, 1
      %v393 = vadd.f32 %v383, %v391
      %v394 = vld [vmem:[%s355 + $0x8] sm:$0xe]
      %v395 = vunpack.c.l.bf16 %v394
      %v396 = vld [vmem:[%s1 + $0x3] sm:$0x1]
      %v397 = vlaneseq
      %v398 = vshrl.u32 %v397, 7
      %v399 = vsub.s32 0, %v398
      %v400 = vrot.slane %v396, %v399
      %v401 = vmul.f32 %v395, %v400
      %v403 = vrot.slane %v401, 2
      %v405 = vadd.f32 %v393, %v403
      %v406 = vld [vmem:[%s355 + $0xc] sm:$0xe]
      %v407 = vunpack.c.l.bf16 %v406
      %v408 = vld [vmem:[%s1 + $0x4] sm:$0x1]
      %v409 = vlaneseq
      %v410 = vshrl.u32 %v409, 7
      %v411 = vsub.s32 0, %v410
      %v412 = vrot.slane %v408, %v411
      %v413 = vmul.f32 %v407, %v412
      %v415 = vrot.slane %v413, 3
      %v417 = vadd.f32 %v405, %v415
      %v418 = vld [vmem:[%s1 + $0x5] sm:$0x1]
      %v419 = vlaneseq
      %v420 = vshrl.u32 %v419, 7
      %v421 = vsub.s32 0, %v420
      %v422 = vrot.slane %v418, %v421
      %v423 = vmul.f32 %v395, %v422
      %v425 = vrot.slane %v423, 3
      %v427 = vadd.f32 %v417, %v425
      %v428 = vld [vmem:[%s355] sm:$0xe]
      %v429 = vunpack.c.l.bf16 %v428
      %v430 = vld [vmem:[%s1 + $0x6] sm:$0x1]
      %v431 = vlaneseq
      %v432 = vshrl.u32 %v431, 7
      %v433 = vsub.s32 0, %v432
      %v434 = vrot.slane %v430, %v433
      %v435 = vmul.f32 %v429, %v434
      %v437 = vrot.slane %v435, 3
      %v439 = vadd.f32 %v427, %v437
      %v440 = vld [vmem:[%s355 + $0x4] sm:$0xc]
      %v441 = vld [vmem:[%s355 + $0x8] sm:$0x1]
      %v442 = vunpack.c.l.bf16 %v440
      %v443 = vunpack.c.l.bf16 %v441
      %v444 = vld [vmem:[%s1 + $0x7] sm:$0x1]
      %v445 = vlaneseq
      %v446 = vshrl.u32 %v445, 7
      %v447 = vsub.s32 0, %v446
      %v448 = vrot.slane %v444, %v447
      %v449 = vmul.f32 %v442, %v448
      %v450 = vmul.f32 %v443, %v448
      %vm453 = vcmask 1043456
      %v454 = vrot.slane %v449, 4
      %v455 = vrot.slane %v450, 4
      %v456 = vsel %vm453, %v454, %v455
      %v458 = vadd.f32 %v439, %v456
      %v459 = vld [vmem:[%s355] sm:$0xc]
      %v460 = vld [vmem:[%s355 + $0x4] sm:$0x1]
      %v461 = vunpack.c.l.bf16 %v459
      %v462 = vunpack.c.l.bf16 %v460
      %v463 = vld [vmem:[%s1 + $0x8] sm:$0x1]
      %v464 = vlaneseq
      %v465 = vshrl.u32 %v464, 7
      %v466 = vsub.s32 0, %v465
      %v467 = vrot.slane %v463, %v466
      %v468 = vmul.f32 %v461, %v467
      %v469 = vmul.f32 %v462, %v467
      %v472 = vrot.slane %v468, 4
      %v473 = vrot.slane %v469, 4
      %v474 = vsel %vm453, %v472, %v473
      %v476 = vadd.f32 %v458, %v474
      %v477 = vld [vmem:[%s2] sm:$0x1]
      %v479 = vlaneseq
      %v480 = vshrl.u32 %v479, 7
      %v481 = vsub.s32 0, %v480
      %v482 = vrot.slane %v477, %v481
      %v484 = vadd.f32 %v476, %v482
      %v485 = vld [vmem:[%s3] sm:$0xf]
      %v486 = vld [vmem:[%s3 + $0x4] sm:$0xf]
      %v487 = vld [vmem:[%s3 + $0x8] sm:$0x1]
      %v488 = vpack.c.bf16 %v484, %v484
      %v489 = vld [vmem:[%s4] sm:$0x1]
      %v491 = vlaneseq
      %v492 = vshrl.u32 %v491, 7
      %v493 = vsub.s32 0, %v492
      %v494 = vrot.slane %v489, %v493
      %v499 = vunpack.c.l.b16 %v485
      %v500 = vunpack.c.l.b16 %v486
      %v501 = vunpack.c.l.b16 %v487
      %v502 = vpack.c.b16 %v500, %v499
      %v503 = vpack.c.b16 %v501, %v501
      %vm505 = vcmask 138240
      %v507 = vsel %vm505, %v488, 0
      %vm509 = vcmask 1040384
      %v510 = vsel 0, 4294967295, 65535
      %v511 = vsel %vm509, %v510, 0
      %v513 = vand.u32 %v503, %v511
      %515 = vmatprep.subr.bf16.mxu0 0
      %516 = vmatpush1.bf16.msra.mxu0 0
      %517 = vmatprep.subr.bf16.mxu0 0
      %518 = vmatpush1.bf16.msra.mxu0 0
      %519 = vmatprep.subr.bf16.mxu0 0
      %520 = vmatpush1.bf16.msra.mxu0 0
      %521 = vmatprep.subr.bf16.mxu0 0
      %522 = vmatpush1.bf16.msra.mxu0 0
      %523 = vmatprep.subr.bf16.mxu0 0
      %524 = vmatpush1.bf16.msra.mxu0 0
      %525 = vmatprep.subr.bf16.mxu0 0
      %526 = vmatpush1.bf16.msra.mxu0 0
      %527 = vmatprep.subr.bf16.mxu0 0
      %528 = vmatpush1.bf16.msra.mxu0 %v513
      %529 = vmatprep.subr.bf16.mxu0 0
      %530 = vmatpush1.bf16.msra.mxu0 %v502
      %531 = vmatprep.subr.bf16.mxu0 0
      %532 = vmatpush2.bf16.msra.mxu0 0
      %533 = vmatprep.subr.bf16.mxu0 0
      %534 = vmatpush2.bf16.msra.mxu0 0
      %535 = vmatprep.subr.bf16.mxu0 0
      %536 = vmatpush2.bf16.msra.mxu0 0
      %537 = vmatprep.subr.bf16.mxu0 0
      %538 = vmatpush2.bf16.msra.mxu0 0
      %539 = vmatprep.subr.bf16.mxu0 0
      %540 = vmatpush2.bf16.msra.mxu0 0
      %541 = vmatprep.subr.bf16.mxu0 0
      %542 = vmatpush2.bf16.msra.mxu0 0
      %543 = vmatprep.subr.bf16.mxu0 0
      %544 = vmatpush2.bf16.msra.mxu0 0
      %545 = vmatprep.subr.bf16.mxu0 0
      %546 = vmatpush2.bf16.msra.mxu0 0
      %547 = vmatprep.mubr.bf16.mxu0 0
      %548 = vmatmul.mubr.bf16.gmra.mxu0 %v507
      %v549 = vpop.f32.mrf.mxu0
      %v550 = vadd.f32 %v494, %v549
      %v551 = vpop.f32.mrf.mxu0
      %v552 = vpop.f32.mrf.mxu0
      %v553 = vpop.f32.mrf.mxu0
      %554 = vdwg.mxu0
      %v555 = vmax.f32 %v550, 0.0
      %v556 = vld [vmem:[%s355] sm:$0xf]
      %v557 = vld [vmem:[%s355 + $0x4] sm:$0xf]
      %v558 = vld [vmem:[%s355 + $0x8] sm:$0xf]
      %v559 = vld [vmem:[%s355 + $0xc] sm:$0xf]
      %v560 = vld [vmem:[%s355 + $0x10] sm:$0xf]
      %v561 = vld [vmem:[%s5] sm:$0xf]
      %v562 = vld [vmem:[%s5 + $0x4] sm:$0xf]
      %v563 = vld [vmem:[%s5 + $0x8] sm:$0x1]
      %v569 = vunpack.c.l.b16 %v556
      %v570 = vunpack.c.l.b16 %v557
      %v571 = vunpack.c.l.b16 %v558
      %v572 = vunpack.c.l.b16 %v559
      %v573 = vunpack.c.l.b16 %v560
      %v574 = vpack.c.b16 %v570, %v569
      %v575 = vpack.c.b16 %v572, %v571
      %v576 = vpack.c.b16 %v573, %v573
      %v580 = vunpack.c.l.b16 %v561
      %v581 = vunpack.c.l.b16 %v562
      %v582 = vunpack.c.l.b16 %v563
      %v583 = vpack.c.b16 %v581, %v580
      %v584 = vpack.c.b16 %v582, %v582
      %v587 = vsel %vm505, %v574, 0
      %v590 = vsel %vm505, %v575, 0
      %v593 = vsel %vm505, %v576, 0
      %v596 = vand.u32 %v584, %v511
      %598 = vmatprep.subr.bf16.mxu0 0
      %599 = vmatpush1.bf16.msra.mxu0 0
      %600 = vmatprep.subr.bf16.mxu0 0
      %601 = vmatpush1.bf16.msra.mxu0 0
      %602 = vmatprep.subr.bf16.mxu0 0
      %603 = vmatpush1.bf16.msra.mxu0 0
      %604 = vmatprep.subr.bf16.mxu0 0
      %605 = vmatpush1.bf16.msra.mxu0 0
      %606 = vmatprep.subr.bf16.mxu0 0
      %607 = vmatpush1.bf16.msra.mxu0 0
      %608 = vmatprep.subr.bf16.mxu0 0
      %609 = vmatpush1.bf16.msra.mxu0 0
      %610 = vmatprep.subr.bf16.mxu0 0
      %611 = vmatpush1.bf16.msra.mxu0 %v596
      %612 = vmatprep.subr.bf16.mxu0 0
      %613 = vmatpush1.bf16.msra.mxu0 %v583
      %614 = vmatprep.subr.bf16.mxu0 0
      %615 = vmatpush2.bf16.msra.mxu0 0
      %616 = vmatprep.subr.bf16.mxu0 0
      %617 = vmatpush2.bf16.msra.mxu0 0
      %618 = vmatprep.subr.bf16.mxu0 0
      %619 = vmatpush2.bf16.msra.mxu0 0
      %620 = vmatprep.subr.bf16.mxu0 0
      %621 = vmatpush2.bf16.msra.mxu0 0
      %622 = vmatprep.subr.bf16.mxu0 0
      %623 = vmatpush2.bf16.msra.mxu0 0
      %624 = vmatprep.subr.bf16.mxu0 0
      %625 = vmatpush2.bf16.msra.mxu0 0
      %626 = vmatprep.subr.bf16.mxu0 0
      %627 = vmatpush2.bf16.msra.mxu0 0
      %628 = vmatprep.subr.bf16.mxu0 0
      %629 = vmatpush2.bf16.msra.mxu0 0
      %630 = vmatprep.mubr.bf16.mxu0 0
      %631 = vmatmul.mubr.bf16.gmra.mxu0 %v587
      %v632 = vpop.f32.mrf.mxu0
      %v633 = vadd.f32 0.0, %v632
      %v634 = vpop.f32.mrf.mxu0
      %v635 = vpop.f32.mrf.mxu0
      %v636 = vadd.f32 0.0, %v635
      %v637 = vpop.f32.mrf.mxu0
      %638 = vmatprep.mubr.bf16.mxu0 0
      %639 = vmatmul.mubr.bf16.gmra.mxu0 %v590
      %v640 = vpop.f32.mrf.mxu0
      %v641 = vadd.f32 0.0, %v640
      %v642 = vpop.f32.mrf.mxu0
      %v643 = vpop.f32.mrf.mxu0
      %v644 = vadd.f32 0.0, %v643
      %v645 = vpop.f32.mrf.mxu0
      %646 = vmatprep.mubr.bf16.mxu0 0
      %647 = vmatmul.mubr.bf16.gmra.mxu0 %v593
      %v648 = vpop.f32.mrf.mxu0
      %v649 = vadd.f32 0.0, %v648
      %v650 = vpop.f32.mrf.mxu0
      %v651 = vpop.f32.mrf.mxu0
      %v652 = vpop.f32.mrf.mxu0
      %653 = vdwg.mxu0
      %v654 = vmax.f32 %v633, 0.0
      %v655 = vmax.f32 %v636, 0.0
      %v656 = vmax.f32 %v641, 0.0
      %v657 = vmax.f32 %v644, 0.0
      %v658 = vmax.f32 %v649, 0.0
      %vm659 = vcmask 130048
      %660 = vst.msk [vmem:[#allocation2] sm:$0xff] %vm659, %v654
      %661 = vst.msk [vmem:[#allocation2 + $0x8] sm:$0xff] %vm659, %v655
      %662 = vst.msk [vmem:[#allocation2 + $0x10] sm:$0xff] %vm659, %v656
      %663 = vst.msk [vmem:[#allocation2 + $0x18] sm:$0xff] %vm659, %v657
      %664 = vst.msk [vmem:[#allocation2 + $0x20] sm:$0xff] %vm659, %v658
      %v665 = vld [vmem:[#allocation2] sm:$0x1f]
      %v666 = vld [vmem:[%s6] sm:$0x1]
      %v667 = vlaneseq
      %v668 = vshrl.u32 %v667, 7
      %v669 = vsub.s32 0, %v668
      %v670 = vrot.slane %v666, %v669
      %v671 = vmul.f32 %v665, %v670
      %v672 = vld [vmem:[#allocation2 + $0x9] sm:$0x1f]
      %v673 = vld [vmem:[%s6 + $0x1] sm:$0x1]
      %v674 = vlaneseq
      %v675 = vshrl.u32 %v674, 7
      %v676 = vsub.s32 0, %v675
      %v677 = vrot.slane %v673, %v676
      %v678 = vmul.f32 %v672, %v677
      %v679 = vadd.f32 %v671, %v678
      %v680 = vld [vmem:[#allocation2 + $0x1] sm:$0x1f]
      %v681 = vld [vmem:[%s6 + $0x2] sm:$0x1]
      %v682 = vlaneseq
      %v683 = vshrl.u32 %v682, 7
      %v684 = vsub.s32 0, %v683
      %v685 = vrot.slane %v681, %v684
      %v686 = vmul.f32 %v680, %v685
      %v687 = vadd.f32 %v679, %v686
      %v688 = vld [vmem:[#allocation2 + $0x12] sm:$0x1f]
      %v689 = vld [vmem:[%s6 + $0x3] sm:$0x1]
      %v690 = vlaneseq
      %v691 = vshrl.u32 %v690, 7
      %v692 = vsub.s32 0, %v691
      %v693 = vrot.slane %v689, %v692
      %v694 = vmul.f32 %v688, %v693
      %v695 = vadd.f32 %v687, %v694
      %v696 = vld [vmem:[#allocation2 + $0x1b] sm:$0x1f]
      %v697 = vld [vmem:[%s6 + $0x4] sm:$0x1]
      %v698 = vlaneseq
      %v699 = vshrl.u32 %v698, 7
      %v700 = vsub.s32 0, %v699
      %v701 = vrot.slane %v697, %v700
      %v702 = vmul.f32 %v696, %v701
      %v703 = vadd.f32 %v695, %v702
      %v704 = vld [vmem:[#allocation2 + $0x13] sm:$0x1f]
      %v705 = vld [vmem:[%s6 + $0x5] sm:$0x1]
      %v706 = vlaneseq
      %v707 = vshrl.u32 %v706, 7
      %v708 = vsub.s32 0, %v707
      %v709 = vrot.slane %v705, %v708
      %v710 = vmul.f32 %v704, %v709
      %v711 = vadd.f32 %v703, %v710
      %v712 = vld [vmem:[#allocation2 + $0x3] sm:$0x1f]
      %v713 = vld [vmem:[%s6 + $0x6] sm:$0x1]
      %v714 = vlaneseq
      %v715 = vshrl.u32 %v714, 7
      %v716 = vsub.s32 0, %v715
      %v717 = vrot.slane %v713, %v716
      %v718 = vmul.f32 %v712, %v717
      %v719 = vadd.f32 %v711, %v718
      %v720 = vld [vmem:[#allocation2 + $0xc] sm:$0x1f]
      %v721 = vld [vmem:[%s6 + $0x7] sm:$0x1]
      %v722 = vlaneseq
      %v723 = vshrl.u32 %v722, 7
      %v724 = vsub.s32 0, %v723
      %v725 = vrot.slane %v721, %v724
      %v726 = vmul.f32 %v720, %v725
      %v727 = vadd.f32 %v719, %v726
      %v728 = vld [vmem:[#allocation2 + $0x4] sm:$0x1f]
      %v729 = vld [vmem:[%s6 + $0x8] sm:$0x1]
      %v730 = vlaneseq
      %v731 = vshrl.u32 %v730, 7
      %v732 = vsub.s32 0, %v731
      %v733 = vrot.slane %v729, %v732
      %v734 = vmul.f32 %v728, %v733
      %v735 = vadd.f32 %v727, %v734
      %v736 = vld [vmem:[%s7] sm:$0x1]
      %v738 = vlaneseq
      %v739 = vshrl.u32 %v738, 7
      %v740 = vsub.s32 0, %v739
      %v741 = vrot.slane %v736, %v740
      %v743 = vadd.f32 %v735, %v741
      %v744 = vld [vmem:[%s8] sm:$0xf]
      %v745 = vld [vmem:[%s8 + $0x4] sm:$0xf]
      %v746 = vpack.c.bf16 %v743, %v743
      %v747 = vld [vmem:[%s9] sm:$0x1]
      %v749 = vlaneseq
      %v750 = vshrl.u32 %v749, 7
      %v751 = vsub.s32 0, %v750
      %v752 = vrot.slane %v747, %v751
      %v756 = vunpack.c.l.b16 %v744
      %v757 = vunpack.c.l.b16 %v745
      %v758 = vpack.c.b16 %v757, %v756
      %v761 = vsel %vm659, %v746, 0
      %763 = vmatprep.subr.bf16.mxu0 0
      %764 = vmatpush1.bf16.msra.mxu0 0
      %765 = vmatprep.subr.bf16.mxu0 0
      %766 = vmatpush1.bf16.msra.mxu0 0
      %767 = vmatprep.subr.bf16.mxu0 0
      %768 = vmatpush1.bf16.msra.mxu0 0
      %769 = vmatprep.subr.bf16.mxu0 0
      %770 = vmatpush1.bf16.msra.mxu0 0
      %771 = vmatprep.subr.bf16.mxu0 0
      %772 = vmatpush1.bf16.msra.mxu0 0
      %773 = vmatprep.subr.bf16.mxu0 0
      %774 = vmatpush1.bf16.msra.mxu0 0
      %775 = vmatprep.subr.bf16.mxu0 0
      %776 = vmatpush1.bf16.msra.mxu0 0
      %777 = vmatprep.subr.bf16.mxu0 0
      %778 = vmatpush1.bf16.msra.mxu0 %v758
      %779 = vmatprep.subr.bf16.mxu0 0
      %780 = vmatpush2.bf16.msra.mxu0 0
      %781 = vmatprep.subr.bf16.mxu0 0
      %782 = vmatpush2.bf16.msra.mxu0 0
      %783 = vmatprep.subr.bf16.mxu0 0
      %784 = vmatpush2.bf16.msra.mxu0 0
      %785 = vmatprep.subr.bf16.mxu0 0
      %786 = vmatpush2.bf16.msra.mxu0 0
      %787 = vmatprep.subr.bf16.mxu0 0
      %788 = vmatpush2.bf16.msra.mxu0 0
      %789 = vmatprep.subr.bf16.mxu0 0
      %790 = vmatpush2.bf16.msra.mxu0 0
      %791 = vmatprep.subr.bf16.mxu0 0
      %792 = vmatpush2.bf16.msra.mxu0 0
      %793 = vmatprep.subr.bf16.mxu0 0
      %794 = vmatpush2.bf16.msra.mxu0 0
      %795 = vmatprep.mubr.bf16.mxu0 0
      %796 = vmatmul.mubr.bf16.gmra.mxu0 %v761
      %v797 = vpop.f32.mrf.mxu0
      %v798 = vadd.f32 %v752, %v797
      %v799 = vpop.f32.mrf.mxu0
      %v800 = vpop.f32.mrf.mxu0
      %v801 = vpop.f32.mrf.mxu0
      %802 = vdwg.mxu0
      %v803 = vmax.f32 %v798, 0.0
      %805 = vrot.lane.b32.xlu0 %v803, 16
      %v806 = vpop.permute.xlu0 %805
      %v808 = vsel %vm659, %v555, %v806
      %v809 = vpack.c.bf16 %v808, %v808
      %vm810 = vcmask 256000
      %vm811 = vsmask.f32 2304
      %vm812 = vmand %vm810, %vm811
      %v813 = vld [vmem:[%s361] sm:$0x7]
      %v814 = vsel %vm812, %v809, %v813
      %815 = vst [vmem:[%s361] sm:$0x7] %v814
      %s816 = smul.u32 2, %s21
      %p817 = scmp.lt.s32.totalorder %s816, 3
      %s818 = scalar_select %p817, %s816, 3
      %s819 = smul.addr %s818, 4
      %s820 = scalar_lea.vmem %s10, %s819
      // Predicated region
      $region61: #{_lambda_.13} parent=59 // pred_check
        %p821 = pneg %p254
      $region62: #{_lambda_.13} parent=59 // pred_check_branch
        %823 = sbr.rel (%p821) target = $region64
      $region63: #{_lambda_.13} parent=59 // pred_region
        %s824 = smul.u32 2, %s21
      $region64: #{_lambda_.13} parent=59 // pred_fallthru
        _
    $region60: #{_lambda_.13} parent=5 // pred_fallthru
      _
    %p825 = scmp.le.s32.totalorder 2, %s16
    // Predicated region
    $region65: #{_lambda_.13} parent=5 // pred_check
      %p826 = pneg %p825
    $region66: #{_lambda_.13} parent=5 // pred_check_branch
      %828 = sbr.rel (%p826) target = $region68
    $region67: #{_lambda_.13} parent=5 // pred_region
      %s829 = ssub.s32 %s16, 2
      // Predicated region
      $region69: #{_lambda_.13} parent=67 // pred_check
        %p830 = pneg %p260
      $region70: #{_lambda_.13} parent=67 // pred_check_branch
        %832 = sbr.rel (%p830) target = $region72
      $region71: #{_lambda_.13} parent=67 // pred_region
        %s833 = smul.u32 2, %s22
        %p834 = scmp.lt.s32.totalorder %s833, 3
        %s835 = scalar_select %p834, %s833, 3
        %s836 = smul.addr %s835, 4
        %s837 = scalar_lea.vmem %s10, %s836
      $region72: #{_lambda_.13} parent=67 // pred_fallthru
        _
    $region68: #{_lambda_.13} parent=5 // pred_fallthru
      _
  $region6: #{_lambda_.13} parent=0 // loop_footer
    %s20 = sadd.s32 1, %s16
  $region7: #{_lambda_.13} parent=0 // loop_footer_branch
    %15 = sbr.rel target = $region3
  $region8: #{_lambda_.13} parent=0 // loop_exit
    _

// kernel: _lambda_.14
$region0: #{_lambda_.14}
  #allocation0 [shape = 'u32[]', space=smem, size = 0x4, offset = 0x4, fixed_abs, tag = 'smem constant byte address 0x4 - core index']
  #allocation1 [shape = 'u32[144,128]{1,0:T(1,128)}', space=vmem, size = 0x12000, scoped, tag = 'internal scratch']
  #allocation2 [shape = 'f32[16,16]{1,0:T(8,128)}', space=vmem, size = 0x2000, scoped, tag = 'scratch operand']
  %s0 = inlined_call_operand.vmem [shape: bf16[32,17], index: 0, kind: input, shape index: {}]
  %s1 = inlined_call_operand.vmem [shape: bf16[17,16], index: 1, kind: input, shape index: {}]
  %s2 = inlined_call_operand.vmem [shape: f32[9,16], index: 2, kind: input, shape index: {}]
  %s3 = inlined_call_operand.vmem [shape: f32[1,16], index: 3, kind: input, shape index: {}]
  %s4 = inlined_call_operand.vmem [shape: bf16[16,16], index: 4, kind: input, shape index: {}]
  %s5 = inlined_call_operand.vmem [shape: f32[1,16], index: 5, kind: input, shape index: {}]
  %s6 = inlined_call_operand.vmem [shape: bf16[32,16], index: 6, kind: output, shape index: {}]
  %s7 = sld [smem:[#allocation0]]
  $region57: #{_lambda_.14} parent=0
    _
  %s9 = ssub.s32 1, %s7
  %s10 = scalar_select 0, %s9, %s7
  loop: start=0, step=1, limit=4
  $region2: #{_lambda_.14} parent=0 // loop_pre_header
    _
  $region3: #{_lambda_.14} parent=0 // loop_header
    %s12 = sphi 0, %s16
    %p13 = scmp.ge.s32.totalorder %s12, 4
    %s22 = sphi 0, %s24
    %s25 = sphi 0, %s22
    %s26 = sphi 0, %s25
    %s42 = sphi 0, %s26
    %s46 = sphi 0, %s46
    %s48 = sphi 0, %s46
    %s49 = sphi 0, %s48
    %s63 = sphi 0, %s49
    %s67 = sphi 0, %s67
    %s69 = sphi 0, %s67
    %s70 = sphi 0, %s69
    %s84 = sphi 0, %s70
    %s88 = sphi 0, %s88
    %s90 = sphi 0, %s88
    %s91 = sphi 0, %s90
    %s105 = sphi 0, %s91
    %s109 = sphi 0, %s109
    %s111 = sphi 0, %s109
    %s112 = sphi 0, %s111
    %s126 = sphi 0, %s112
    %s130 = sphi 0, %s130
    %s132 = sphi 0, %s130
    %s133 = sphi 0, %s132
    %s147 = sphi 0, %s133
    %s153 = sphi 0, %s155
    %s156 = sphi 0, %s153
    %s157 = sphi 0, %s156
    %s173 = sphi 0, %s157
  $region4: #{_lambda_.14} parent=0 // loop_header_branch
    %15 = sbr.rel (%p13) target = $region8
  $region5: #{_lambda_.14} parent=0 // loop_body
    %s17 = ssub.s32 %s12, 1
    %s18 = ssub.s32 %s12, 2
    %s19 = sadd.s32 %s12, 1
    %s20 = ssub.s32 %s12, %s19
    %p21 = scmp.eq.s32.totalorder %s20, 0
    %s23 = sadd.s32 %s22, 1
    %s24 = scalar_select %p21, %s22, %s23
    %p27 = pneg %p21
    %p28 = scmp.eq.s32.totalorder %s12, 1
    %p29 = por %p27, %p28
    %p30 = scmp.ne.s32.totalorder %s22, %s25
    %p31 = scmp.eq.s32.totalorder %s12, 0
    %p32 = por %p30, %p31
    %p33 = scmp.ne.s32.totalorder %s22, %s25
    %p34 = scmp.eq.s32.totalorder %s17, 1
    %p35 = por %p33, %p34
    %p36 = scmp.ne.s32.totalorder %s25, %s26
    %p37 = scmp.eq.s32.totalorder %s17, 0
    %p38 = por %p36, %p37
    %p39 = scmp.ne.s32.totalorder %s25, %s26
    %p40 = scmp.eq.s32.totalorder %s18, 1
    %p41 = por %p39, %p40
    %p43 = scmp.ne.s32.totalorder %s26, %s42
    %p44 = scmp.eq.s32.totalorder %s18, 0
    %p45 = por %p43, %p44
    %s47 = sadd.s32 %s46, 1
    %p50 = scmp.eq.s32.totalorder %s12, 1
    %p51 = scmp.ne.s32.totalorder %s46, %s48
    %p52 = scmp.eq.s32.totalorder %s12, 0
    %p53 = por %p51, %p52
    %p54 = scmp.ne.s32.totalorder %s46, %s48
    %p55 = scmp.eq.s32.totalorder %s17, 1
    %p56 = por %p54, %p55
    %p57 = scmp.ne.s32.totalorder %s48, %s49
    %p58 = scmp.eq.s32.totalorder %s17, 0
    %p59 = por %p57, %p58
    %p60 = scmp.ne.s32.totalorder %s48, %s49
    %p61 = scmp.eq.s32.totalorder %s18, 1
    %p62 = por %p60, %p61
    %p64 = scmp.ne.s32.totalorder %s49, %s63
    %p65 = scmp.eq.s32.totalorder %s18, 0
    %p66 = por %p64, %p65
    %s68 = sadd.s32 %s67, 1
    %p71 = scmp.eq.s32.totalorder %s12, 1
    %p72 = scmp.ne.s32.totalorder %s67, %s69
    %p73 = scmp.eq.s32.totalorder %s12, 0
    %p74 = por %p72, %p73
    %p75 = scmp.ne.s32.totalorder %s67, %s69
    %p76 = scmp.eq.s32.totalorder %s17, 1
    %p77 = por %p75, %p76
    %p78 = scmp.ne.s32.totalorder %s69, %s70
    %p79 = scmp.eq.s32.totalorder %s17, 0
    %p80 = por %p78, %p79
    %p81 = scmp.ne.s32.totalorder %s69, %s70
    %p82 = scmp.eq.s32.totalorder %s18, 1
    %p83 = por %p81, %p82
    %p85 = scmp.ne.s32.totalorder %s70, %s84
    %p86 = scmp.eq.s32.totalorder %s18, 0
    %p87 = por %p85, %p86
    %s89 = sadd.s32 %s88, 1
    %p92 = scmp.eq.s32.totalorder %s12, 1
    %p93 = scmp.ne.s32.totalorder %s88, %s90
    %p94 = scmp.eq.s32.totalorder %s12, 0
    %p95 = por %p93, %p94
    %p96 = scmp.ne.s32.totalorder %s88, %s90
    %p97 = scmp.eq.s32.totalorder %s17, 1
    %p98 = por %p96, %p97
    %p99 = scmp.ne.s32.totalorder %s90, %s91
    %p100 = scmp.eq.s32.totalorder %s17, 0
    %p101 = por %p99, %p100
    %p102 = scmp.ne.s32.totalorder %s90, %s91
    %p103 = scmp.eq.s32.totalorder %s18, 1
    %p104 = por %p102, %p103
    %p106 = scmp.ne.s32.totalorder %s91, %s105
    %p107 = scmp.eq.s32.totalorder %s18, 0
    %p108 = por %p106, %p107
    %s110 = sadd.s32 %s109, 1
    %p113 = scmp.eq.s32.totalorder %s12, 1
    %p114 = scmp.ne.s32.totalorder %s109, %s111
    %p115 = scmp.eq.s32.totalorder %s12, 0
    %p116 = por %p114, %p115
    %p117 = scmp.ne.s32.totalorder %s109, %s111
    %p118 = scmp.eq.s32.totalorder %s17, 1
    %p119 = por %p117, %p118
    %p120 = scmp.ne.s32.totalorder %s111, %s112
    %p121 = scmp.eq.s32.totalorder %s17, 0
    %p122 = por %p120, %p121
    %p123 = scmp.ne.s32.totalorder %s111, %s112
    %p124 = scmp.eq.s32.totalorder %s18, 1
    %p125 = por %p123, %p124
    %p127 = scmp.ne.s32.totalorder %s112, %s126
    %p128 = scmp.eq.s32.totalorder %s18, 0
    %p129 = por %p127, %p128
    %s131 = sadd.s32 %s130, 1
    %p134 = scmp.eq.s32.totalorder %s12, 1
    %p135 = scmp.ne.s32.totalorder %s130, %s132
    %p136 = scmp.eq.s32.totalorder %s12, 0
    %p137 = por %p135, %p136
    %p138 = scmp.ne.s32.totalorder %s130, %s132
    %p139 = scmp.eq.s32.totalorder %s17, 1
    %p140 = por %p138, %p139
    %p141 = scmp.ne.s32.totalorder %s132, %s133
    %p142 = scmp.eq.s32.totalorder %s17, 0
    %p143 = por %p141, %p142
    %p144 = scmp.ne.s32.totalorder %s132, %s133
    %p145 = scmp.eq.s32.totalorder %s18, 1
    %p146 = por %p144, %p145
    %p148 = scmp.ne.s32.totalorder %s133, %s147
    %p149 = scmp.eq.s32.totalorder %s18, 0
    %p150 = por %p148, %p149
    %s151 = ssub.s32 %s12, %s19
    %p152 = scmp.eq.s32.totalorder %s151, 0
    %s154 = sadd.s32 %s153, 1
    %s155 = scalar_select %p152, %s153, %s154
    %p158 = pneg %p152
    %p159 = scmp.eq.s32.totalorder %s12, 1
    %p160 = por %p158, %p159
    %p161 = scmp.ne.s32.totalorder %s153, %s156
    %p162 = scmp.eq.s32.totalorder %s12, 0
    %p163 = por %p161, %p162
    %p164 = scmp.ne.s32.totalorder %s153, %s156
    %p165 = scmp.eq.s32.totalorder %s17, 1
    %p166 = por %p164, %p165
    %p167 = scmp.ne.s32.totalorder %s156, %s157
    %p168 = scmp.eq.s32.totalorder %s17, 0
    %p169 = por %p167, %p168
    %p170 = scmp.ne.s32.totalorder %s156, %s157
    %p171 = scmp.eq.s32.totalorder %s18, 1
    %p172 = por %p170, %p171
    %p174 = scmp.ne.s32.totalorder %s157, %s173
    %p175 = scmp.eq.s32.totalorder %s18, 0
    %p176 = por %p174, %p175
    %p177 = scmp.le.s32.totalorder 1, %s12
    %p178 = scmp.lt.s32.totalorder %s12, 3
    %p179 = pnand %p177, %p178
    %p180 = pneg %p179
    // Predicated region
    $region9: #{_lambda_.14} parent=5 // pred_check
      _
    $region10: #{_lambda_.14} parent=5 // pred_check_branch
      %182 = sbr.rel (%p179) target = $region12
    $region11: #{_lambda_.14} parent=5 // pred_region
      %s183 = ssub.s32 %s12, 1
      // Predicated region
      $region13: #{_lambda_.14} parent=11 // pred_check
        %p184 = pneg %p59
      $region14: #{_lambda_.14} parent=11 // pred_check_branch
        %186 = sbr.rel (%p184) target = $region16
      $region15: #{_lambda_.14} parent=11 // pred_region
        _
      $region16: #{_lambda_.14} parent=11 // pred_fallthru
        _
      // Predicated region
      $region17: #{_lambda_.14} parent=11 // pred_check
        %p187 = pneg %p80
      $region18: #{_lambda_.14} parent=11 // pred_check_branch
        %189 = sbr.rel (%p187) target = $region20
      $region19: #{_lambda_.14} parent=11 // pred_region
        _
      $region20: #{_lambda_.14} parent=11 // pred_fallthru
        _
      // Predicated region
      $region21: #{_lambda_.14} parent=11 // pred_check
        %p190 = pneg %p101
      $region22: #{_lambda_.14} parent=11 // pred_check_branch
        %192 = sbr.rel (%p190) target = $region24
      $region23: #{_lambda_.14} parent=11 // pred_region
        _
      $region24: #{_lambda_.14} parent=11 // pred_fallthru
        _
      // Predicated region
      $region25: #{_lambda_.14} parent=11 // pred_check
        %p193 = pneg %p122
      $region26: #{_lambda_.14} parent=11 // pred_check_branch
        %195 = sbr.rel (%p193) target = $region28
      $region27: #{_lambda_.14} parent=11 // pred_region
        _
      $region28: #{_lambda_.14} parent=11 // pred_fallthru
        _
      // Predicated region
      $region29: #{_lambda_.14} parent=11 // pred_check
        %p196 = pneg %p143
      $region30: #{_lambda_.14} parent=11 // pred_check_branch
        %198 = sbr.rel (%p196) target = $region32
      $region31: #{_lambda_.14} parent=11 // pred_region
        _
      $region32: #{_lambda_.14} parent=11 // pred_fallthru
        _
    $region12: #{_lambda_.14} parent=5 // pred_fallthru
      _
    %p199 = scmp.lt.s32.totalorder %s12, 2
    // Predicated region
    $region33: #{_lambda_.14} parent=5 // pred_check
      %p200 = pneg %p199
    $region34: #{_lambda_.14} parent=5 // pred_check_branch
      %202 = sbr.rel (%p200) target = $region36
    $region35: #{_lambda_.14} parent=5 // pred_region
      // Predicated region
      $region37: #{_lambda_.14} parent=35 // pred_check
        %p203 = pneg %p32
      $region38: #{_lambda_.14} parent=35 // pred_check_branch
        %205 = sbr.rel (%p203) target = $region40
      $region39: #{_lambda_.14} parent=35 // pred_region
        %s206 = smul.u32 2, %s12
        %p207 = scmp.lt.s32.totalorder %s206, 3
        %s208 = scalar_select %p207, %s206, 3
        %s209 = smul.addr %s208, 4
        %s210 = scalar_lea.vmem %s0, %s209
        %s211 = smul.u32 2, %s12
      $region40: #{_lambda_.14} parent=35 // pred_fallthru
        _
    $region36: #{_lambda_.14} parent=5 // pred_fallthru
      _
    %p212 = scmp.le.s32.totalorder 1, %s12
    %p213 = scmp.lt.s32.totalorder %s12, 3
    %p214 = pnand %p212, %p213
    %p215 = pneg %p214
    // Predicated region
    $region41: #{_lambda_.14} parent=5 // pred_check
      _
    $region42: #{_lambda_.14} parent=5 // pred_check_branch
      %217 = sbr.rel (%p214) target = $region44
    $region43: #{_lambda_.14} parent=5 // pred_region
      %s218 = ssub.s32 %s12, 1
      %s219 = smul.u32 2, %s17
      %p220 = scmp.lt.s32.totalorder %s219, 3
      %s221 = scalar_select %p220, %s219, 3
      %s222 = smul.addr %s221, 4
      %s223 = scalar_lea.vmem %s0, %s222
      %p224 = pneg %p38
      %p225 = pneg %p35
      %p226 = pneg %p59
      %p227 = pneg %p56
      %p228 = pneg %p80
      %p229 = pneg %p77
      %p230 = pneg %p101
      %p231 = pneg %p98
      %p232 = pneg %p122
      %p233 = pneg %p119
      %p234 = pneg %p143
      %p235 = pneg %p140
      %p236 = pneg %p169
      %p237 = pneg %p166
      %s238 = smul.u32 2, %s17
      %p239 = scmp.lt.s32.totalorder %s238, 3
      %s240 = scalar_select %p239, %s238, 3
      %s241 = smul.addr %s240, 4
      %s242 = scalar_lea.vmem %s6, %s241
      %s243 = smul.u32 2, %s17
      %p244 = scmp.lt.s32.totalorder %s243, 3
      %s245 = scalar_select %p244, %s243, 3
      %s246 = smul.addr %s245, 4
      %s247 = scalar_lea.vmem %s0, %s246
      %s248 = smul.u32 2, %s17
      %s249 = smul.u32 2, %s17
      %p250 = scmp.lt.s32.totalorder %s249, 3
      %s251 = scalar_select %p250, %s249, 3
      %s252 = smul.addr %s251, 4
      %s253 = scalar_lea.vmem %s6, %s252
      %s254 = smul.u32 2, %s17
      %v256 = vld [vmem:[%s247] sm:$0xf]
      %v257 = vld [vmem:[%s247 + $0x4] sm:$0xf]
      %v258 = vld [vmem:[%s1] sm:$0xf]
      %v259 = vld [vmem:[%s1 + $0x4] sm:$0xf]
      %v260 = vld [vmem:[%s1 + $0x8] sm:$0x1]
      %v263 = vunpack.c.l.b16 %v256
      %v264 = vunpack.c.l.b16 %v257
      %v265 = vpack.c.b16 %v264, %v263
      %v269 = vunpack.c.l.b16 %v258
      %v270 = vunpack.c.l.b16 %v259
      %v271 = vunpack.c.l.b16 %v260
      %v272 = vpack.c.b16 %v270, %v269
      %v273 = vpack.c.b16 %v271, %v271
      %vm275 = vcmask 138240
      %v277 = vsel %vm275, %v265, 0
      %vm279 = vcmask 1040384
      %v280 = vsel 0, 4294967295, 65535
      %v281 = vsel %vm279, %v280, 0
      %v283 = vand.u32 %v273, %v281
      %285 = vmatprep.subr.bf16.mxu0 0
      %286 = vmatpush1.bf16.msra.mxu0 0
      %287 = vmatprep.subr.bf16.mxu0 0
      %288 = vmatpush1.bf16.msra.mxu0 0
      %289 = vmatprep.subr.bf16.mxu0 0
      %290 = vmatpush1.bf16.msra.mxu0 0
      %291 = vmatprep.subr.bf16.mxu0 0
      %292 = vmatpush1.bf16.msra.mxu0 0
      %293 = vmatprep.subr.bf16.mxu0 0
      %294 = vmatpush1.bf16.msra.mxu0 0
      %295 = vmatprep.subr.bf16.mxu0 0
      %296 = vmatpush1.bf16.msra.mxu0 0
      %297 = vmatprep.subr.bf16.mxu0 0
      %298 = vmatpush1.bf16.msra.mxu0 %v283
      %299 = vmatprep.subr.bf16.mxu0 0
      %300 = vmatpush1.bf16.msra.mxu0 %v272
      %301 = vmatprep.subr.bf16.mxu0 0
      %302 = vmatpush2.bf16.msra.mxu0 0
      %303 = vmatprep.subr.bf16.mxu0 0
      %304 = vmatpush2.bf16.msra.mxu0 0
      %305 = vmatprep.subr.bf16.mxu0 0
      %306 = vmatpush2.bf16.msra.mxu0 0
      %307 = vmatprep.subr.bf16.mxu0 0
      %308 = vmatpush2.bf16.msra.mxu0 0
      %309 = vmatprep.subr.bf16.mxu0 0
      %310 = vmatpush2.bf16.msra.mxu0 0
      %311 = vmatprep.subr.bf16.mxu0 0
      %312 = vmatpush2.bf16.msra.mxu0 0
      %313 = vmatprep.subr.bf16.mxu0 0
      %314 = vmatpush2.bf16.msra.mxu0 0
      %315 = vmatprep.subr.bf16.mxu0 0
      %316 = vmatpush2.bf16.msra.mxu0 0
      %317 = vmatprep.mubr.bf16.mxu0 0
      %318 = vmatmul.mubr.bf16.gmra.mxu0 %v277
      %v319 = vpop.f32.mrf.mxu0
      %v320 = vadd.f32 0.0, %v319
      %v321 = vpop.f32.mrf.mxu0
      %v322 = vpop.f32.mrf.mxu0
      %v323 = vadd.f32 0.0, %v322
      %v324 = vpop.f32.mrf.mxu0
      %325 = vdwg.mxu0
      %v326 = vmax.f32 %v320, 0.0
      %v327 = vmax.f32 %v323, 0.0
      %vm328 = vcmask 130048
      %329 = vst.msk [vmem:[#allocation2] sm:$0xff] %vm328, %v326
      %330 = vst.msk [vmem:[#allocation2 + $0x8] sm:$0xff] %vm328, %v327
      %v331 = vld [vmem:[#allocation2] sm:$0x3f]
      %v332 = vld [vmem:[%s2] sm:$0x1]
      %v333 = vlaneseq
      %v334 = vshrl.u32 %v333, 7
      %v335 = vsub.s32 0, %v334
      %v336 = vrot.slane %v332, %v335
      %v337 = vmul.f32 %v331, %v336
      %v338 = vld [vmem:[#allocation2 + $0x1] sm:$0x3f]
      %v339 = vld [vmem:[%s2 + $0x1] sm:$0x1]
      %v340 = vlaneseq
      %v341 = vshrl.u32 %v340, 7
      %v342 = vsub.s32 0, %v341
      %v343 = vrot.slane %v339, %v342
      %v344 = vmul.f32 %v338, %v343
      %v345 = vadd.f32 %v337, %v344
      %v346 = vld [vmem:[#allocation2 + $0x2] sm:$0x3f]
      %v347 = vld [vmem:[%s2 + $0x2] sm:$0x1]
      %v348 = vlaneseq
      %v349 = vshrl.u32 %v348, 7
      %v350 = vsub.s32 0, %v349
      %v351 = vrot.slane %v347, %v350
      %v352 = vmul.f32 %v346, %v351
      %v353 = vadd.f32 %v345, %v352
      %v354 = vld [vmem:[#allocation2 + $0x4] sm:$0x3f]
      %v355 = vld [vmem:[%s2 + $0x3] sm:$0x1]
      %v356 = vlaneseq
      %v357 = vshrl.u32 %v356, 7
      %v358 = vsub.s32 0, %v357
      %v359 = vrot.slane %v355, %v358
      %v360 = vmul.f32 %v354, %v359
      %v361 = vadd.f32 %v353, %v360
      %v362 = vld [vmem:[#allocation2 + $0x5] sm:$0x3f]
      %v363 = vld [vmem:[%s2 + $0x4] sm:$0x1]
      %v364 = vlaneseq
      %v365 = vshrl.u32 %v364, 7
      %v366 = vsub.s32 0, %v365
      %v367 = vrot.slane %v363, %v366
      %v368 = vmul.f32 %v362, %v367
      %v369 = vadd.f32 %v361, %v368
      %v370 = vld [vmem:[#allocation2 + $0x6] sm:$0x3f]
      %v371 = vld [vmem:[%s2 + $0x5] sm:$0x1]
      %v372 = vlaneseq
      %v373 = vshrl.u32 %v372, 7
      %v374 = vsub.s32 0, %v373
      %v375 = vrot.slane %v371, %v374
      %v376 = vmul.f32 %v370, %v375
      %v377 = vadd.f32 %v369, %v376
      %v378 = vld [vmem:[#allocation2 + $0x8] sm:$0x3f]
      %v379 = vld [vmem:[%s2 + $0x6] sm:$0x1]
      %v380 = vlaneseq
      %v381 = vshrl.u32 %v380, 7
      %v382 = vsub.s32 0, %v381
      %v383 = vrot.slane %v379, %v382
      %v384 = vmul.f32 %v378, %v383
      %v385 = vadd.f32 %v377, %v384
      %v386 = vld [vmem:[#allocation2 + $0x9] sm:$0x3f]
      %v387 = vld [vmem:[%s2 + $0x7] sm:$0x1]
      %v388 = vlaneseq
      %v389 = vshrl.u32 %v388, 7
      %v390 = vsub.s32 0, %v389
      %v391 = vrot.slane %v387, %v390
      %v392 = vmul.f32 %v386, %v391
      %v393 = vadd.f32 %v385, %v392
      %v394 = vld [vmem:[#allocation2 + $0xa] sm:$0x3f]
      %v395 = vld [vmem:[%s2 + $0x8] sm:$0x1]
      %v396 = vlaneseq
      %v397 = vshrl.u32 %v396, 7
      %v398 = vsub.s32 0, %v397
      %v399 = vrot.slane %v395, %v398
      %v400 = vmul.f32 %v394, %v399
      %v401 = vadd.f32 %v393, %v400
      %v402 = vld [vmem:[%s3] sm:$0x1]
      %v404 = vlaneseq
      %v405 = vshrl.u32 %v404, 7
      %v406 = vsub.s32 0, %v405
      %v407 = vrot.slane %v402, %v406
      %v409 = vadd.f32 %v401, %v407
      %v410 = vld [vmem:[%s4] sm:$0xf]
      %v411 = vld [vmem:[%s4 + $0x4] sm:$0xf]
      %v412 = vpack.c.bf16 %v409, %v409
      %v413 = vld [vmem:[%s5] sm:$0x1]
      %v415 = vlaneseq
      %v416 = vshrl.u32 %v415, 7
      %v417 = vsub.s32 0, %v416
      %v418 = vrot.slane %v413, %v417
      %v422 = vunpack.c.l.b16 %v410
      %v423 = vunpack.c.l.b16 %v411
      %v424 = vpack.c.b16 %v423, %v422
      %v427 = vsel %vm328, %v412, 0
      %429 = vmatprep.subr.bf16.mxu0 0
      %430 = vmatpush1.bf16.msra.mxu0 0
      %431 = vmatprep.subr.bf16.mxu0 0
      %432 = vmatpush1.bf16.msra.mxu0 0
      %433 = vmatprep.subr.bf16.mxu0 0
      %434 = vmatpush1.bf16.msra.mxu0 0
      %435 = vmatprep.subr.bf16.mxu0 0
      %436 = vmatpush1.bf16.msra.mxu0 0
      %437 = vmatprep.subr.bf16.mxu0 0
      %438 = vmatpush1.bf16.msra.mxu0 0
      %439 = vmatprep.subr.bf16.mxu0 0
      %440 = vmatpush1.bf16.msra.mxu0 0
      %441 = vmatprep.subr.bf16.mxu0 0
      %442 = vmatpush1.bf16.msra.mxu0 0
      %443 = vmatprep.subr.bf16.mxu0 0
      %444 = vmatpush1.bf16.msra.mxu0 %v424
      %445 = vmatprep.subr.bf16.mxu0 0
      %446 = vmatpush2.bf16.msra.mxu0 0
      %447 = vmatprep.subr.bf16.mxu0 0
      %448 = vmatpush2.bf16.msra.mxu0 0
      %449 = vmatprep.subr.bf16.mxu0 0
      %450 = vmatpush2.bf16.msra.mxu0 0
      %451 = vmatprep.subr.bf16.mxu0 0
      %452 = vmatpush2.bf16.msra.mxu0 0
      %453 = vmatprep.subr.bf16.mxu0 0
      %454 = vmatpush2.bf16.msra.mxu0 0
      %455 = vmatprep.subr.bf16.mxu0 0
      %456 = vmatpush2.bf16.msra.mxu0 0
      %457 = vmatprep.subr.bf16.mxu0 0
      %458 = vmatpush2.bf16.msra.mxu0 0
      %459 = vmatprep.subr.bf16.mxu0 0
      %460 = vmatpush2.bf16.msra.mxu0 0
      %461 = vmatprep.mubr.bf16.mxu0 0
      %462 = vmatmul.mubr.bf16.gmra.mxu0 %v427
      %v463 = vpop.f32.mrf.mxu0
      %v464 = vadd.f32 %v418, %v463
      %v465 = vpop.f32.mrf.mxu0
      %v466 = vpop.f32.mrf.mxu0
      %v467 = vpop.f32.mrf.mxu0
      %468 = vdwg.mxu0
      %v469 = vmax.f32 %v464, 0.0
      %v470 = vpack.c.bf16 %v469, %v469
      %v472 = vunpack.c.l.b16 %v470
      %v473 = vpack.c.b16 %v472, %v472
      %v475 = vshrl.u32 %v473, 16
      %v477 = vrot.slane %v475, 5
      %v478 = vshll.u32 %v473, 16
      %v480 = vrot.slane %v478, 6
      %v481 = vor.u32 %v477, %v480
      %v482 = vrot.slane %v481, 4
      %vm485 = vcmask 125954
      %vm486 = vsmask.f32 7946
      %vm487 = vmand %vm485, %vm486
      %v488 = vld [vmem:[%s253] sm:$0xc]
      %v489 = vsel %vm487, %v481, %v488
      %490 = vst [vmem:[%s253] sm:$0xc] %v489
      %vm491 = vcmask 123904
      %vm492 = vsmask.f32 1280
      %vm493 = vmand %vm491, %vm492
      %v494 = vld [vmem:[%s253 + $0x4] sm:$0x3]
      %v495 = vsel %vm493, %v482, %v494
      %496 = vst [vmem:[%s253 + $0x4] sm:$0x3] %v495
      %s497 = smul.u32 2, %s17
      %p498 = scmp.lt.s32.totalorder %s497, 3
      %s499 = scalar_select %p498, %s497, 3
      %s500 = smul.addr %s499, 4
      %s501 = scalar_lea.vmem %s6, %s500
      // Predicated region
      $region45: #{_lambda_.14} parent=43 // pred_check
        %p502 = pneg %p166
      $region46: #{_lambda_.14} parent=43 // pred_check_branch
        %504 = sbr.rel (%p502) target = $region48
      $region47: #{_lambda_.14} parent=43 // pred_region
        %s505 = smul.u32 2, %s17
      $region48: #{_lambda_.14} parent=43 // pred_fallthru
        _
    $region44: #{_lambda_.14} parent=5 // pred_fallthru
      _
    %p506 = scmp.le.s32.totalorder 2, %s12
    // Predicated region
    $region49: #{_lambda_.14} parent=5 // pred_check
      %p507 = pneg %p506
    $region50: #{_lambda_.14} parent=5 // pred_check_branch
      %509 = sbr.rel (%p507) target = $region52
    $region51: #{_lambda_.14} parent=5 // pred_region
      %s510 = ssub.s32 %s12, 2
      // Predicated region
      $region53: #{_lambda_.14} parent=51 // pred_check
        %p511 = pneg %p172
      $region54: #{_lambda_.14} parent=51 // pred_check_branch
        %513 = sbr.rel (%p511) target = $region56
      $region55: #{_lambda_.14} parent=51 // pred_region
        %s514 = smul.u32 2, %s18
        %p515 = scmp.lt.s32.totalorder %s514, 3
        %s516 = scalar_select %p515, %s514, 3
        %s517 = smul.addr %s516, 4
        %s518 = scalar_lea.vmem %s6, %s517
      $region56: #{_lambda_.14} parent=51 // pred_fallthru
        _
    $region52: #{_lambda_.14} parent=5 // pred_fallthru
      _
  $region6: #{_lambda_.14} parent=0 // loop_footer
    %s16 = sadd.s32 1, %s12
  $region7: #{_lambda_.14} parent=0 // loop_footer_branch
    %11 = sbr.rel target = $region3
  $region8: #{_lambda_.14} parent=0 // loop_exit
    _

// kernel: _lambda_.16
$region0: #{_lambda_.16}
  #allocation0 [shape = 'u32[]', space=smem, size = 0x4, offset = 0x4, fixed_abs, tag = 'smem constant byte address 0x4 - core index']
  #allocation1 [shape = 'u32[144,128]{1,0:T(1,128)}', space=vmem, size = 0x12000, scoped, tag = 'internal scratch']
  #allocation2 [shape = 'f32[16,32]{1,0:T(8,128)}', space=vmem, size = 0x2000, scoped, tag = 'scratch operand']
  %s0 = inlined_call_operand.vmem [shape: bf16[32,33], index: 0, kind: input, shape index: {}]
  %s1 = inlined_call_operand.vmem [shape: bf16[33,32], index: 1, kind: input, shape index: {}]
  %s2 = inlined_call_operand.vmem [shape: f32[9,32], index: 2, kind: input, shape index: {}]
  %s3 = inlined_call_operand.vmem [shape: f32[1,32], index: 3, kind: input, shape index: {}]
  %s4 = inlined_call_operand.vmem [shape: bf16[32,32], index: 4, kind: input, shape index: {}]
  %s5 = inlined_call_operand.vmem [shape: f32[1,32], index: 5, kind: input, shape index: {}]
  %s6 = inlined_call_operand.vmem [shape: bf16[32,32], index: 6, kind: output, shape index: {}]
  %s7 = sld [smem:[#allocation0]]
  $region57: #{_lambda_.16} parent=0
    _
  %s9 = ssub.s32 1, %s7
  %s10 = scalar_select 0, %s9, %s7
  loop: start=0, step=1, limit=4
  $region2: #{_lambda_.16} parent=0 // loop_pre_header
    _
  $region3: #{_lambda_.16} parent=0 // loop_header
    %s12 = sphi 0, %s16
    %p13 = scmp.ge.s32.totalorder %s12, 4
    %s22 = sphi 0, %s24
    %s25 = sphi 0, %s22
    %s26 = sphi 0, %s25
    %s42 = sphi 0, %s26
    %s46 = sphi 0, %s46
    %s48 = sphi 0, %s46
    %s49 = sphi 0, %s48
    %s63 = sphi 0, %s49
    %s67 = sphi 0, %s67
    %s69 = sphi 0, %s67
    %s70 = sphi 0, %s69
    %s84 = sphi 0, %s70
    %s88 = sphi 0, %s88
    %s90 = sphi 0, %s88
    %s91 = sphi 0, %s90
    %s105 = sphi 0, %s91
    %s109 = sphi 0, %s109
    %s111 = sphi 0, %s109
    %s112 = sphi 0, %s111
    %s126 = sphi 0, %s112
    %s130 = sphi 0, %s130
    %s132 = sphi 0, %s130
    %s133 = sphi 0, %s132
    %s147 = sphi 0, %s133
    %s153 = sphi 0, %s155
    %s156 = sphi 0, %s153
    %s157 = sphi 0, %s156
    %s173 = sphi 0, %s157
  $region4: #{_lambda_.16} parent=0 // loop_header_branch
    %15 = sbr.rel (%p13) target = $region8
  $region5: #{_lambda_.16} parent=0 // loop_body
    %s17 = ssub.s32 %s12, 1
    %s18 = ssub.s32 %s12, 2
    %s19 = sadd.s32 %s12, 1
    %s20 = ssub.s32 %s12, %s19
    %p21 = scmp.eq.s32.totalorder %s20, 0
    %s23 = sadd.s32 %s22, 1
    %s24 = scalar_select %p21, %s22, %s23
    %p27 = pneg %p21
    %p28 = scmp.eq.s32.totalorder %s12, 1
    %p29 = por %p27, %p28
    %p30 = scmp.ne.s32.totalorder %s22, %s25
    %p31 = scmp.eq.s32.totalorder %s12, 0
    %p32 = por %p30, %p31
    %p33 = scmp.ne.s32.totalorder %s22, %s25
    %p34 = scmp.eq.s32.totalorder %s17, 1
    %p35 = por %p33, %p34
    %p36 = scmp.ne.s32.totalorder %s25, %s26
    %p37 = scmp.eq.s32.totalorder %s17, 0
    %p38 = por %p36, %p37
    %p39 = scmp.ne.s32.totalorder %s25, %s26
    %p40 = scmp.eq.s32.totalorder %s18, 1
    %p41 = por %p39, %p40
    %p43 = scmp.ne.s32.totalorder %s26, %s42
    %p44 = scmp.eq.s32.totalorder %s18, 0
    %p45 = por %p43, %p44
    %s47 = sadd.s32 %s46, 1
    %p50 = scmp.eq.s32.totalorder %s12, 1
    %p51 = scmp.ne.s32.totalorder %s46, %s48
    %p52 = scmp.eq.s32.totalorder %s12, 0
    %p53 = por %p51, %p52
    %p54 = scmp.ne.s32.totalorder %s46, %s48
    %p55 = scmp.eq.s32.totalorder %s17, 1
    %p56 = por %p54, %p55
    %p57 = scmp.ne.s32.totalorder %s48, %s49
    %p58 = scmp.eq.s32.totalorder %s17, 0
    %p59 = por %p57, %p58
    %p60 = scmp.ne.s32.totalorder %s48, %s49
    %p61 = scmp.eq.s32.totalorder %s18, 1
    %p62 = por %p60, %p61
    %p64 = scmp.ne.s32.totalorder %s49, %s63
    %p65 = scmp.eq.s32.totalorder %s18, 0
    %p66 = por %p64, %p65
    %s68 = sadd.s32 %s67, 1
    %p71 = scmp.eq.s32.totalorder %s12, 1
    %p72 = scmp.ne.s32.totalorder %s67, %s69
    %p73 = scmp.eq.s32.totalorder %s12, 0
    %p74 = por %p72, %p73
    %p75 = scmp.ne.s32.totalorder %s67, %s69
    %p76 = scmp.eq.s32.totalorder %s17, 1
    %p77 = por %p75, %p76
    %p78 = scmp.ne.s32.totalorder %s69, %s70
    %p79 = scmp.eq.s32.totalorder %s17, 0
    %p80 = por %p78, %p79
    %p81 = scmp.ne.s32.totalorder %s69, %s70
    %p82 = scmp.eq.s32.totalorder %s18, 1
    %p83 = por %p81, %p82
    %p85 = scmp.ne.s32.totalorder %s70, %s84
    %p86 = scmp.eq.s32.totalorder %s18, 0
    %p87 = por %p85, %p86
    %s89 = sadd.s32 %s88, 1
    %p92 = scmp.eq.s32.totalorder %s12, 1
    %p93 = scmp.ne.s32.totalorder %s88, %s90
    %p94 = scmp.eq.s32.totalorder %s12, 0
    %p95 = por %p93, %p94
    %p96 = scmp.ne.s32.totalorder %s88, %s90
    %p97 = scmp.eq.s32.totalorder %s17, 1
    %p98 = por %p96, %p97
    %p99 = scmp.ne.s32.totalorder %s90, %s91
    %p100 = scmp.eq.s32.totalorder %s17, 0
    %p101 = por %p99, %p100
    %p102 = scmp.ne.s32.totalorder %s90, %s91
    %p103 = scmp.eq.s32.totalorder %s18, 1
    %p104 = por %p102, %p103
    %p106 = scmp.ne.s32.totalorder %s91, %s105
    %p107 = scmp.eq.s32.totalorder %s18, 0
    %p108 = por %p106, %p107
    %s110 = sadd.s32 %s109, 1
    %p113 = scmp.eq.s32.totalorder %s12, 1
    %p114 = scmp.ne.s32.totalorder %s109, %s111
    %p115 = scmp.eq.s32.totalorder %s12, 0
    %p116 = por %p114, %p115
    %p117 = scmp.ne.s32.totalorder %s109, %s111
    %p118 = scmp.eq.s32.totalorder %s17, 1
    %p119 = por %p117, %p118
    %p120 = scmp.ne.s32.totalorder %s111, %s112
    %p121 = scmp.eq.s32.totalorder %s17, 0
    %p122 = por %p120, %p121
    %p123 = scmp.ne.s32.totalorder %s111, %s112
    %p124 = scmp.eq.s32.totalorder %s18, 1
    %p125 = por %p123, %p124
    %p127 = scmp.ne.s32.totalorder %s112, %s126
    %p128 = scmp.eq.s32.totalorder %s18, 0
    %p129 = por %p127, %p128
    %s131 = sadd.s32 %s130, 1
    %p134 = scmp.eq.s32.totalorder %s12, 1
    %p135 = scmp.ne.s32.totalorder %s130, %s132
    %p136 = scmp.eq.s32.totalorder %s12, 0
    %p137 = por %p135, %p136
    %p138 = scmp.ne.s32.totalorder %s130, %s132
    %p139 = scmp.eq.s32.totalorder %s17, 1
    %p140 = por %p138, %p139
    %p141 = scmp.ne.s32.totalorder %s132, %s133
    %p142 = scmp.eq.s32.totalorder %s17, 0
    %p143 = por %p141, %p142
    %p144 = scmp.ne.s32.totalorder %s132, %s133
    %p145 = scmp.eq.s32.totalorder %s18, 1
    %p146 = por %p144, %p145
    %p148 = scmp.ne.s32.totalorder %s133, %s147
    %p149 = scmp.eq.s32.totalorder %s18, 0
    %p150 = por %p148, %p149
    %s151 = ssub.s32 %s12, %s19
    %p152 = scmp.eq.s32.totalorder %s151, 0
    %s154 = sadd.s32 %s153, 1
    %s155 = scalar_select %p152, %s153, %s154
    %p158 = pneg %p152
    %p159 = scmp.eq.s32.totalorder %s12, 1
    %p160 = por %p158, %p159
    %p161 = scmp.ne.s32.totalorder %s153, %s156
    %p162 = scmp.eq.s32.totalorder %s12, 0
    %p163 = por %p161, %p162
    %p164 = scmp.ne.s32.totalorder %s153, %s156
    %p165 = scmp.eq.s32.totalorder %s17, 1
    %p166 = por %p164, %p165
    %p167 = scmp.ne.s32.totalorder %s156, %s157
    %p168 = scmp.eq.s32.totalorder %s17, 0
    %p169 = por %p167, %p168
    %p170 = scmp.ne.s32.totalorder %s156, %s157
    %p171 = scmp.eq.s32.totalorder %s18, 1
    %p172 = por %p170, %p171
    %p174 = scmp.ne.s32.totalorder %s157, %s173
    %p175 = scmp.eq.s32.totalorder %s18, 0
    %p176 = por %p174, %p175
    %p177 = scmp.le.s32.totalorder 1, %s12
    %p178 = scmp.lt.s32.totalorder %s12, 3
    %p179 = pnand %p177, %p178
    %p180 = pneg %p179
    // Predicated region
    $region9: #{_lambda_.16} parent=5 // pred_check
      _
    $region10: #{_lambda_.16} parent=5 // pred_check_branch
      %182 = sbr.rel (%p179) target = $region12
    $region11: #{_lambda_.16} parent=5 // pred_region
      %s183 = ssub.s32 %s12, 1
      // Predicated region
      $region13: #{_lambda_.16} parent=11 // pred_check
        %p184 = pneg %p59
      $region14: #{_lambda_.16} parent=11 // pred_check_branch
        %186 = sbr.rel (%p184) target = $region16
      $region15: #{_lambda_.16} parent=11 // pred_region
        _
      $region16: #{_lambda_.16} parent=11 // pred_fallthru
        _
      // Predicated region
      $region17: #{_lambda_.16} parent=11 // pred_check
        %p187 = pneg %p80
      $region18: #{_lambda_.16} parent=11 // pred_check_branch
        %189 = sbr.rel (%p187) target = $region20
      $region19: #{_lambda_.16} parent=11 // pred_region
        _
      $region20: #{_lambda_.16} parent=11 // pred_fallthru
        _
      // Predicated region
      $region21: #{_lambda_.16} parent=11 // pred_check
        %p190 = pneg %p101
      $region22: #{_lambda_.16} parent=11 // pred_check_branch
        %192 = sbr.rel (%p190) target = $region24
      $region23: #{_lambda_.16} parent=11 // pred_region
        _
      $region24: #{_lambda_.16} parent=11 // pred_fallthru
        _
      // Predicated region
      $region25: #{_lambda_.16} parent=11 // pred_check
        %p193 = pneg %p122
      $region26: #{_lambda_.16} parent=11 // pred_check_branch
        %195 = sbr.rel (%p193) target = $region28
      $region27: #{_lambda_.16} parent=11 // pred_region
        _
      $region28: #{_lambda_.16} parent=11 // pred_fallthru
        _
      // Predicated region
      $region29: #{_lambda_.16} parent=11 // pred_check
        %p196 = pneg %p143
      $region30: #{_lambda_.16} parent=11 // pred_check_branch
        %198 = sbr.rel (%p196) target = $region32
      $region31: #{_lambda_.16} parent=11 // pred_region
        _
      $region32: #{_lambda_.16} parent=11 // pred_fallthru
        _
    $region12: #{_lambda_.16} parent=5 // pred_fallthru
      _
    %p199 = scmp.lt.s32.totalorder %s12, 2
    // Predicated region
    $region33: #{_lambda_.16} parent=5 // pred_check
      %p200 = pneg %p199
    $region34: #{_lambda_.16} parent=5 // pred_check_branch
      %202 = sbr.rel (%p200) target = $region36
    $region35: #{_lambda_.16} parent=5 // pred_region
      // Predicated region
      $region37: #{_lambda_.16} parent=35 // pred_check
        %p203 = pneg %p32
      $region38: #{_lambda_.16} parent=35 // pred_check_branch
        %205 = sbr.rel (%p203) target = $region40
      $region39: #{_lambda_.16} parent=35 // pred_region
        %s206 = smul.u32 2, %s12
        %p207 = scmp.lt.s32.totalorder %s206, 3
        %s208 = scalar_select %p207, %s206, 3
        %s209 = smul.addr %s208, 4
        %s210 = scalar_lea.vmem %s0, %s209
        %s211 = smul.u32 2, %s12
      $region40: #{_lambda_.16} parent=35 // pred_fallthru
        _
    $region36: #{_lambda_.16} parent=5 // pred_fallthru
      _
    %p212 = scmp.le.s32.totalorder 1, %s12
    %p213 = scmp.lt.s32.totalorder %s12, 3
    %p214 = pnand %p212, %p213
    %p215 = pneg %p214
    // Predicated region
    $region41: #{_lambda_.16} parent=5 // pred_check
      _
    $region42: #{_lambda_.16} parent=5 // pred_check_branch
      %217 = sbr.rel (%p214) target = $region44
    $region43: #{_lambda_.16} parent=5 // pred_region
      %s218 = ssub.s32 %s12, 1
      %s219 = smul.u32 2, %s17
      %p220 = scmp.lt.s32.totalorder %s219, 3
      %s221 = scalar_select %p220, %s219, 3
      %s222 = smul.addr %s221, 4
      %s223 = scalar_lea.vmem %s0, %s222
      %p224 = pneg %p38
      %p225 = pneg %p35
      %p226 = pneg %p59
      %p227 = pneg %p56
      %p228 = pneg %p80
      %p229 = pneg %p77
      %p230 = pneg %p101
      %p231 = pneg %p98
      %p232 = pneg %p122
      %p233 = pneg %p119
      %p234 = pneg %p143
      %p235 = pneg %p140
      %p236 = pneg %p169
      %p237 = pneg %p166
      %s238 = smul.u32 2, %s17
      %p239 = scmp.lt.s32.totalorder %s238, 3
      %s240 = scalar_select %p239, %s238, 3
      %s241 = smul.addr %s240, 4
      %s242 = scalar_lea.vmem %s6, %s241
      %s243 = smul.u32 2, %s17
      %p244 = scmp.lt.s32.totalorder %s243, 3
      %s245 = scalar_select %p244, %s243, 3
      %s246 = smul.addr %s245, 4
      %s247 = scalar_lea.vmem %s0, %s246
      %s248 = smul.u32 2, %s17
      %s249 = smul.u32 2, %s17
      %p250 = scmp.lt.s32.totalorder %s249, 3
      %s251 = scalar_select %p250, %s249, 3
      %s252 = smul.addr %s251, 4
      %s253 = scalar_lea.vmem %s6, %s252
      %s254 = smul.u32 2, %s17
      %v256 = vld [vmem:[%s247] sm:$0xf]
      %v257 = vld [vmem:[%s247 + $0x4] sm:$0xf]
      %v258 = vld [vmem:[%s1] sm:$0xf]
      %v259 = vld [vmem:[%s1 + $0x4] sm:$0xf]
      %v260 = vld [vmem:[%s1 + $0x8] sm:$0xf]
      %v261 = vld [vmem:[%s1 + $0xc] sm:$0xf]
      %v262 = vld [vmem:[%s1 + $0x10] sm:$0x1]
      %v265 = vunpack.c.l.b16 %v256
      %v266 = vunpack.c.l.b16 %v257
      %v267 = vpack.c.b16 %v266, %v265
      %v273 = vunpack.c.l.b16 %v258
      %v274 = vunpack.c.l.b16 %v259
      %v275 = vunpack.c.l.b16 %v260
      %v276 = vunpack.c.l.b16 %v261
      %v277 = vunpack.c.l.b16 %v262
      %v278 = vpack.c.b16 %v274, %v273
      %v279 = vpack.c.b16 %v276, %v275
      %v280 = vpack.c.b16 %v277, %v277
      %vm283 = vcmask 269312
      %v285 = vsel %vm283, %v267, 0
      %vm287 = vcmask 1040384
      %v288 = vsel 0, 4294967295, 65535
      %v289 = vsel %vm287, %v288, 0
      %v291 = vand.u32 %v280, %v289
      %293 = vmatprep.subr.bf16.mxu0 0
      %294 = vmatpush1.bf16.msra.mxu0 0
      %295 = vmatprep.subr.bf16.mxu0 0
      %296 = vmatpush1.bf16.msra.mxu0 0
      %297 = vmatprep.subr.bf16.mxu0 0
      %298 = vmatpush1.bf16.msra.mxu0 0
      %299 = vmatprep.subr.bf16.mxu0 0
      %300 = vmatpush1.bf16.msra.mxu0 0
      %301 = vmatprep.subr.bf16.mxu0 0
      %302 = vmatpush1.bf16.msra.mxu0 0
      %303 = vmatprep.subr.bf16.mxu0 0
      %304 = vmatpush1.bf16.msra.mxu0 %v291
      %305 = vmatprep.subr.bf16.mxu0 0
      %306 = vmatpush1.bf16.msra.mxu0 %v279
      %307 = vmatprep.subr.bf16.mxu0 0
      %308 = vmatpush1.bf16.msra.mxu0 %v278
      %309 = vmatprep.subr.bf16.mxu0 0
      %310 = vmatpush2.bf16.msra.mxu0 0
      %311 = vmatprep.subr.bf16.mxu0 0
      %312 = vmatpush2.bf16.msra.mxu0 0
      %313 = vmatprep.subr.bf16.mxu0 0
      %314 = vmatpush2.bf16.msra.mxu0 0
      %315 = vmatprep.subr.bf16.mxu0 0
      %316 = vmatpush2.bf16.msra.mxu0 0
      %317 = vmatprep.subr.bf16.mxu0 0
      %318 = vmatpush2.bf16.msra.mxu0 0
      %319 = vmatprep.subr.bf16.mxu0 0
      %320 = vmatpush2.bf16.msra.mxu0 0
      %321 = vmatprep.subr.bf16.mxu0 0
      %322 = vmatpush2.bf16.msra.mxu0 0
      %323 = vmatprep.subr.bf16.mxu0 0
      %324 = vmatpush2.bf16.msra.mxu0 0
      %325 = vmatprep.mubr.bf16.mxu0 0
      %326 = vmatmul.mubr.bf16.gmra.mxu0 %v285
      %v327 = vpop.f32.mrf.mxu0
      %v328 = vadd.f32 0.0, %v327
      %v329 = vpop.f32.mrf.mxu0
      %v330 = vpop.f32.mrf.mxu0
      %v331 = vadd.f32 0.0, %v330
      %v332 = vpop.f32.mrf.mxu0
      %333 = vdwg.mxu0
      %v334 = vmax.f32 %v328, 0.0
      %v335 = vmax.f32 %v331, 0.0
      %vm336 = vcmask 261120
      %337 = vst.msk [vmem:[#allocation2] sm:$0xff] %vm336, %v334
      %338 = vst.msk [vmem:[#allocation2 + $0x8] sm:$0xff] %vm336, %v335
      %v339 = vld [vmem:[#allocation2] sm:$0x1]
      %v340 = vld [vmem:[%s2] sm:$0x1]
      %v341 = vmul.f32 %v339, %v340
      %v342 = vld [vmem:[#allocation2 + $0x1] sm:$0x1]
      %v343 = vld [vmem:[%s2 + $0x1] sm:$0x1]
      %v344 = vmul.f32 %v342, %v343
      %v345 = vadd.f32 %v341, %v344
      %v346 = vld [vmem:[#allocation2 + $0x2] sm:$0x1]
      %v347 = vld [vmem:[%s2 + $0x2] sm:$0x1]
      %v348 = vmul.f32 %v346, %v347
      %v349 = vadd.f32 %v345, %v348
      %v350 = vld [vmem:[#allocation2 + $0x3] sm:$0x1]
      %v351 = vld [vmem:[%s2 + $0x3] sm:$0x1]
      %v352 = vmul.f32 %v350, %v351
      %v353 = vadd.f32 %v349, %v352
      %v354 = vld [vmem:[#allocation2 + $0x4] sm:$0x1]
      %v355 = vld [vmem:[%s2 + $0x4] sm:$0x1]
      %v356 = vmul.f32 %v354, %v355
      %v357 = vadd.f32 %v353, %v356
      %v358 = vld [vmem:[#allocation2 + $0x5] sm:$0x1]
      %v359 = vld [vmem:[%s2 + $0x5] sm:$0x1]
      %v360 = vmul.f32 %v358, %v359
      %v361 = vadd.f32 %v357, %v360
      %v362 = vld [vmem:[#allocation2 + $0x6] sm:$0x1]
      %v363 = vld [vmem:[%s2 + $0x6] sm:$0x1]
      %v364 = vmul.f32 %v362, %v363
      %v365 = vadd.f32 %v361, %v364
      %v366 = vld [vmem:[#allocation2 + $0x7] sm:$0x1]
      %v367 = vld [vmem:[%s2 + $0x7] sm:$0x1]
      %v368 = vmul.f32 %v366, %v367
      %v369 = vadd.f32 %v365, %v368
      %v370 = vld [vmem:[#allocation2 + $0x8] sm:$0x1]
      %v371 = vld [vmem:[%s2 + $0x8] sm:$0x1]
      %v372 = vmul.f32 %v370, %v371
      %v373 = vadd.f32 %v369, %v372
      %v374 = vld [vmem:[%s3] sm:$0x1]
      %v375 = vadd.f32 %v373, %v374
      %v376 = vld [vmem:[%s4] sm:$0xf]
      %v377 = vld [vmem:[%s4 + $0x4] sm:$0xf]
      %v378 = vld [vmem:[%s4 + $0x8] sm:$0xf]
      %v379 = vld [vmem:[%s4 + $0xc] sm:$0xf]
      %v380 = vpack.c.bf16 %v375, %v375
      %v381 = vld [vmem:[%s5] sm:$0x1]
      %v386 = vunpack.c.l.b16 %v376
      %v387 = vunpack.c.l.b16 %v377
      %v388 = vunpack.c.l.b16 %v378
      %v389 = vunpack.c.l.b16 %v379
      %v390 = vpack.c.b16 %v387, %v386
      %v391 = vpack.c.b16 %v389, %v388
      %v395 = vsel %vm336, %v380, 0
      %397 = vmatprep.subr.bf16.mxu0 0
      %398 = vmatpush1.bf16.msra.mxu0 0
      %399 = vmatprep.subr.bf16.mxu0 0
      %400 = vmatpush1.bf16.msra.mxu0 0
      %401 = vmatprep.subr.bf16.mxu0 0
      %402 = vmatpush1.bf16.msra.mxu0 0
      %403 = vmatprep.subr.bf16.mxu0 0
      %404 = vmatpush1.bf16.msra.mxu0 0
      %405 = vmatprep.subr.bf16.mxu0 0
      %406 = vmatpush1.bf16.msra.mxu0 0
      %407 = vmatprep.subr.bf16.mxu0 0
      %408 = vmatpush1.bf16.msra.mxu0 0
      %409 = vmatprep.subr.bf16.mxu0 0
      %410 = vmatpush1.bf16.msra.mxu0 %v391
      %411 = vmatprep.subr.bf16.mxu0 0
      %412 = vmatpush1.bf16.msra.mxu0 %v390
      %413 = vmatprep.subr.bf16.mxu0 0
      %414 = vmatpush2.bf16.msra.mxu0 0
      %415 = vmatprep.subr.bf16.mxu0 0
      %416 = vmatpush2.bf16.msra.mxu0 0
      %417 = vmatprep.subr.bf16.mxu0 0
      %418 = vmatpush2.bf16.msra.mxu0 0
      %419 = vmatprep.subr.bf16.mxu0 0
      %420 = vmatpush2.bf16.msra.mxu0 0
      %421 = vmatprep.subr.bf16.mxu0 0
      %422 = vmatpush2.bf16.msra.mxu0 0
      %423 = vmatprep.subr.bf16.mxu0 0
      %424 = vmatpush2.bf16.msra.mxu0 0
      %425 = vmatprep.subr.bf16.mxu0 0
      %426 = vmatpush2.bf16.msra.mxu0 0
      %427 = vmatprep.subr.bf16.mxu0 0
      %428 = vmatpush2.bf16.msra.mxu0 0
      %429 = vmatprep.mubr.bf16.mxu0 0
      %430 = vmatmul.mubr.bf16.gmra.mxu0 %v395
      %v431 = vpop.f32.mrf.mxu0
      %v432 = vadd.f32 %v381, %v431
      %v433 = vpop.f32.mrf.mxu0
      %v434 = vpop.f32.mrf.mxu0
      %v435 = vpop.f32.mrf.mxu0
      %436 = vdwg.mxu0
      %v437 = vmax.f32 %v432, 0.0
      %v438 = vpack.c.bf16 %v437, %v437
      %v440 = vunpack.c.l.b16 %v438
      %v441 = vpack.c.b16 %v440, %v440
      %v442 = vrot.slane %v441, 6
      %vm444 = vcmask 256002
      %vm445 = vsmask.f32 2304
      %vm446 = vmand %vm444, %vm445
      %v447 = vld [vmem:[%s253] sm:$0x4]
      %v448 = vsel %vm446, %v442, %v447
      %449 = vst [vmem:[%s253] sm:$0x4] %v448
      %s450 = smul.u32 2, %s17
      %p451 = scmp.lt.s32.totalorder %s450, 3
      %s452 = scalar_select %p451, %s450, 3
      %s453 = smul.addr %s452, 4
      %s454 = scalar_lea.vmem %s6, %s453
      // Predicated region
      $region45: #{_lambda_.16} parent=43 // pred_check
        %p455 = pneg %p166
      $region46: #{_lambda_.16} parent=43 // pred_check_branch
        %457 = sbr.rel (%p455) target = $region48
      $region47: #{_lambda_.16} parent=43 // pred_region
        %s458 = smul.u32 2, %s17
      $region48: #{_lambda_.16} parent=43 // pred_fallthru
        _
    $region44: #{_lambda_.16} parent=5 // pred_fallthru
      _
    %p459 = scmp.le.s32.totalorder 2, %s12
    // Predicated region
    $region49: #{_lambda_.16} parent=5 // pred_check
      %p460 = pneg %p459
    $region50: #{_lambda_.16} parent=5 // pred_check_branch
      %462 = sbr.rel (%p460) target = $region52
    $region51: #{_lambda_.16} parent=5 // pred_region
      %s463 = ssub.s32 %s12, 2
      // Predicated region
      $region53: #{_lambda_.16} parent=51 // pred_check
        %p464 = pneg %p172
      $region54: #{_lambda_.16} parent=51 // pred_check_branch
        %466 = sbr.rel (%p464) target = $region56
      $region55: #{_lambda_.16} parent=51 // pred_region
        %s467 = smul.u32 2, %s18
        %p468 = scmp.lt.s32.totalorder %s467, 3
        %s469 = scalar_select %p468, %s467, 3
        %s470 = smul.addr %s469, 4
        %s471 = scalar_lea.vmem %s6, %s470
      $region56: #{_lambda_.16} parent=51 // pred_fallthru
        _
    $region52: #{_lambda_.16} parent=5 // pred_fallthru
      _
  $region6: #{_lambda_.16} parent=0 // loop_footer
    %s16 = sadd.s32 1, %s12
  $region7: #{_lambda_.16} parent=0 // loop_footer_branch
    %11 = sbr.rel target = $region3
  $region8: #{_lambda_.16} parent=0 // loop_exit
    _

// kernel: _lambda_.15
$region0: #{_lambda_.15}
  #allocation0 [shape = 'u32[]', space=smem, size = 0x4, offset = 0x4, fixed_abs, tag = 'smem constant byte address 0x4 - core index']
  #allocation1 [shape = 'u32[144,128]{1,0:T(1,128)}', space=vmem, size = 0x12000, scoped, tag = 'internal scratch']
  #allocation2 [shape = 'f32[16,32]{1,0:T(8,128)}', space=vmem, size = 0x2000, scoped, tag = 'scratch operand']
  %s0 = inlined_call_operand.vmem [shape: bf16[32,33], index: 0, kind: input, shape index: {}]
  %s1 = inlined_call_operand.vmem [shape: f32[9,33], index: 1, kind: input, shape index: {}]
  %s2 = inlined_call_operand.vmem [shape: f32[1,33], index: 2, kind: input, shape index: {}]
  %s3 = inlined_call_operand.vmem [shape: bf16[33,32], index: 3, kind: input, shape index: {}]
  %s4 = inlined_call_operand.vmem [shape: f32[1,32], index: 4, kind: input, shape index: {}]
  %s5 = inlined_call_operand.vmem [shape: bf16[33,32], index: 5, kind: input, shape index: {}]
  %s6 = inlined_call_operand.vmem [shape: f32[9,32], index: 6, kind: input, shape index: {}]
  %s7 = inlined_call_operand.vmem [shape: f32[1,32], index: 7, kind: input, shape index: {}]
  %s8 = inlined_call_operand.vmem [shape: bf16[32,32], index: 8, kind: input, shape index: {}]
  %s9 = inlined_call_operand.vmem [shape: f32[1,32], index: 9, kind: input, shape index: {}]
  %s10 = inlined_call_operand.vmem [shape: bf16[16,64], index: 10, kind: output, shape index: {}]
  %s11 = sld [smem:[#allocation0]]
  $region73: #{_lambda_.15} parent=0
    _
  %s13 = ssub.s32 1, %s11
  %s14 = scalar_select 0, %s13, %s11
  loop: start=0, step=1, limit=4
  $region2: #{_lambda_.15} parent=0 // loop_pre_header
    _
  $region3: #{_lambda_.15} parent=0 // loop_header
    %s16 = sphi 0, %s20
    %p17 = scmp.ge.s32.totalorder %s16, 4
    %s26 = sphi 0, %s28
    %s29 = sphi 0, %s26
    %s30 = sphi 0, %s29
    %s46 = sphi 0, %s30
    %s50 = sphi 0, %s50
    %s52 = sphi 0, %s50
    %s53 = sphi 0, %s52
    %s67 = sphi 0, %s53
    %s71 = sphi 0, %s71
    %s73 = sphi 0, %s71
    %s74 = sphi 0, %s73
    %s88 = sphi 0, %s74
    %s92 = sphi 0, %s92
    %s94 = sphi 0, %s92
    %s95 = sphi 0, %s94
    %s109 = sphi 0, %s95
    %s113 = sphi 0, %s113
    %s115 = sphi 0, %s113
    %s116 = sphi 0, %s115
    %s130 = sphi 0, %s116
    %s134 = sphi 0, %s134
    %s136 = sphi 0, %s134
    %s137 = sphi 0, %s136
    %s151 = sphi 0, %s137
    %s155 = sphi 0, %s155
    %s157 = sphi 0, %s155
    %s158 = sphi 0, %s157
    %s172 = sphi 0, %s158
    %s176 = sphi 0, %s176
    %s178 = sphi 0, %s176
    %s179 = sphi 0, %s178
    %s193 = sphi 0, %s179
    %s197 = sphi 0, %s197
    %s199 = sphi 0, %s197
    %s200 = sphi 0, %s199
    %s214 = sphi 0, %s200
    %s218 = sphi 0, %s218
    %s220 = sphi 0, %s218
    %s221 = sphi 0, %s220
    %s235 = sphi 0, %s221
    %s241 = sphi 0, %s243
    %s244 = sphi 0, %s241
    %s245 = sphi 0, %s244
    %s261 = sphi 0, %s245
  $region4: #{_lambda_.15} parent=0 // loop_header_branch
    %19 = sbr.rel (%p17) target = $region8
  $region5: #{_lambda_.15} parent=0 // loop_body
    %s21 = ssub.s32 %s16, 1
    %s22 = ssub.s32 %s16, 2
    %s23 = sadd.s32 %s16, 1
    %s24 = ssub.s32 %s16, %s23
    %p25 = scmp.eq.s32.totalorder %s24, 0
    %s27 = sadd.s32 %s26, 1
    %s28 = scalar_select %p25, %s26, %s27
    %p31 = pneg %p25
    %p32 = scmp.eq.s32.totalorder %s16, 1
    %p33 = por %p31, %p32
    %p34 = scmp.ne.s32.totalorder %s26, %s29
    %p35 = scmp.eq.s32.totalorder %s16, 0
    %p36 = por %p34, %p35
    %p37 = scmp.ne.s32.totalorder %s26, %s29
    %p38 = scmp.eq.s32.totalorder %s21, 1
    %p39 = por %p37, %p38
    %p40 = scmp.ne.s32.totalorder %s29, %s30
    %p41 = scmp.eq.s32.totalorder %s21, 0
    %p42 = por %p40, %p41
    %p43 = scmp.ne.s32.totalorder %s29, %s30
    %p44 = scmp.eq.s32.totalorder %s22, 1
    %p45 = por %p43, %p44
    %p47 = scmp.ne.s32.totalorder %s30, %s46
    %p48 = scmp.eq.s32.totalorder %s22, 0
    %p49 = por %p47, %p48
    %s51 = sadd.s32 %s50, 1
    %p54 = scmp.eq.s32.totalorder %s16, 1
    %p55 = scmp.ne.s32.totalorder %s50, %s52
    %p56 = scmp.eq.s32.totalorder %s16, 0
    %p57 = por %p55, %p56
    %p58 = scmp.ne.s32.totalorder %s50, %s52
    %p59 = scmp.eq.s32.totalorder %s21, 1
    %p60 = por %p58, %p59
    %p61 = scmp.ne.s32.totalorder %s52, %s53
    %p62 = scmp.eq.s32.totalorder %s21, 0
    %p63 = por %p61, %p62
    %p64 = scmp.ne.s32.totalorder %s52, %s53
    %p65 = scmp.eq.s32.totalorder %s22, 1
    %p66 = por %p64, %p65
    %p68 = scmp.ne.s32.totalorder %s53, %s67
    %p69 = scmp.eq.s32.totalorder %s22, 0
    %p70 = por %p68, %p69
    %s72 = sadd.s32 %s71, 1
    %p75 = scmp.eq.s32.totalorder %s16, 1
    %p76 = scmp.ne.s32.totalorder %s71, %s73
    %p77 = scmp.eq.s32.totalorder %s16, 0
    %p78 = por %p76, %p77
    %p79 = scmp.ne.s32.totalorder %s71, %s73
    %p80 = scmp.eq.s32.totalorder %s21, 1
    %p81 = por %p79, %p80
    %p82 = scmp.ne.s32.totalorder %s73, %s74
    %p83 = scmp.eq.s32.totalorder %s21, 0
    %p84 = por %p82, %p83
    %p85 = scmp.ne.s32.totalorder %s73, %s74
    %p86 = scmp.eq.s32.totalorder %s22, 1
    %p87 = por %p85, %p86
    %p89 = scmp.ne.s32.totalorder %s74, %s88
    %p90 = scmp.eq.s32.totalorder %s22, 0
    %p91 = por %p89, %p90
    %s93 = sadd.s32 %s92, 1
    %p96 = scmp.eq.s32.totalorder %s16, 1
    %p97 = scmp.ne.s32.totalorder %s92, %s94
    %p98 = scmp.eq.s32.totalorder %s16, 0
    %p99 = por %p97, %p98
    %p100 = scmp.ne.s32.totalorder %s92, %s94
    %p101 = scmp.eq.s32.totalorder %s21, 1
    %p102 = por %p100, %p101
    %p103 = scmp.ne.s32.totalorder %s94, %s95
    %p104 = scmp.eq.s32.totalorder %s21, 0
    %p105 = por %p103, %p104
    %p106 = scmp.ne.s32.totalorder %s94, %s95
    %p107 = scmp.eq.s32.totalorder %s22, 1
    %p108 = por %p106, %p107
    %p110 = scmp.ne.s32.totalorder %s95, %s109
    %p111 = scmp.eq.s32.totalorder %s22, 0
    %p112 = por %p110, %p111
    %s114 = sadd.s32 %s113, 1
    %p117 = scmp.eq.s32.totalorder %s16, 1
    %p118 = scmp.ne.s32.totalorder %s113, %s115
    %p119 = scmp.eq.s32.totalorder %s16, 0
    %p120 = por %p118, %p119
    %p121 = scmp.ne.s32.totalorder %s113, %s115
    %p122 = scmp.eq.s32.totalorder %s21, 1
    %p123 = por %p121, %p122
    %p124 = scmp.ne.s32.totalorder %s115, %s116
    %p125 = scmp.eq.s32.totalorder %s21, 0
    %p126 = por %p124, %p125
    %p127 = scmp.ne.s32.totalorder %s115, %s116
    %p128 = scmp.eq.s32.totalorder %s22, 1
    %p129 = por %p127, %p128
    %p131 = scmp.ne.s32.totalorder %s116, %s130
    %p132 = scmp.eq.s32.totalorder %s22, 0
    %p133 = por %p131, %p132
    %s135 = sadd.s32 %s134, 1
    %p138 = scmp.eq.s32.totalorder %s16, 1
    %p139 = scmp.ne.s32.totalorder %s134, %s136
    %p140 = scmp.eq.s32.totalorder %s16, 0
    %p141 = por %p139, %p140
    %p142 = scmp.ne.s32.totalorder %s134, %s136
    %p143 = scmp.eq.s32.totalorder %s21, 1
    %p144 = por %p142, %p143
    %p145 = scmp.ne.s32.totalorder %s136, %s137
    %p146 = scmp.eq.s32.totalorder %s21, 0
    %p147 = por %p145, %p146
    %p148 = scmp.ne.s32.totalorder %s136, %s137
    %p149 = scmp.eq.s32.totalorder %s22, 1
    %p150 = por %p148, %p149
    %p152 = scmp.ne.s32.totalorder %s137, %s151
    %p153 = scmp.eq.s32.totalorder %s22, 0
    %p154 = por %p152, %p153
    %s156 = sadd.s32 %s155, 1
    %p159 = scmp.eq.s32.totalorder %s16, 1
    %p160 = scmp.ne.s32.totalorder %s155, %s157
    %p161 = scmp.eq.s32.totalorder %s16, 0
    %p162 = por %p160, %p161
    %p163 = scmp.ne.s32.totalorder %s155, %s157
    %p164 = scmp.eq.s32.totalorder %s21, 1
    %p165 = por %p163, %p164
    %p166 = scmp.ne.s32.totalorder %s157, %s158
    %p167 = scmp.eq.s32.totalorder %s21, 0
    %p168 = por %p166, %p167
    %p169 = scmp.ne.s32.totalorder %s157, %s158
    %p170 = scmp.eq.s32.totalorder %s22, 1
    %p171 = por %p169, %p170
    %p173 = scmp.ne.s32.totalorder %s158, %s172
    %p174 = scmp.eq.s32.totalorder %s22, 0
    %p175 = por %p173, %p174
    %s177 = sadd.s32 %s176, 1
    %p180 = scmp.eq.s32.totalorder %s16, 1
    %p181 = scmp.ne.s32.totalorder %s176, %s178
    %p182 = scmp.eq.s32.totalorder %s16, 0
    %p183 = por %p181, %p182
    %p184 = scmp.ne.s32.totalorder %s176, %s178
    %p185 = scmp.eq.s32.totalorder %s21, 1
    %p186 = por %p184, %p185
    %p187 = scmp.ne.s32.totalorder %s178, %s179
    %p188 = scmp.eq.s32.totalorder %s21, 0
    %p189 = por %p187, %p188
    %p190 = scmp.ne.s32.totalorder %s178, %s179
    %p191 = scmp.eq.s32.totalorder %s22, 1
    %p192 = por %p190, %p191
    %p194 = scmp.ne.s32.totalorder %s179, %s193
    %p195 = scmp.eq.s32.totalorder %s22, 0
    %p196 = por %p194, %p195
    %s198 = sadd.s32 %s197, 1
    %p201 = scmp.eq.s32.totalorder %s16, 1
    %p202 = scmp.ne.s32.totalorder %s197, %s199
    %p203 = scmp.eq.s32.totalorder %s16, 0
    %p204 = por %p202, %p203
    %p205 = scmp.ne.s32.totalorder %s197, %s199
    %p206 = scmp.eq.s32.totalorder %s21, 1
    %p207 = por %p205, %p206
    %p208 = scmp.ne.s32.totalorder %s199, %s200
    %p209 = scmp.eq.s32.totalorder %s21, 0
    %p210 = por %p208, %p209
    %p211 = scmp.ne.s32.totalorder %s199, %s200
    %p212 = scmp.eq.s32.totalorder %s22, 1
    %p213 = por %p211, %p212
    %p215 = scmp.ne.s32.totalorder %s200, %s214
    %p216 = scmp.eq.s32.totalorder %s22, 0
    %p217 = por %p215, %p216
    %s219 = sadd.s32 %s218, 1
    %p222 = scmp.eq.s32.totalorder %s16, 1
    %p223 = scmp.ne.s32.totalorder %s218, %s220
    %p224 = scmp.eq.s32.totalorder %s16, 0
    %p225 = por %p223, %p224
    %p226 = scmp.ne.s32.totalorder %s218, %s220
    %p227 = scmp.eq.s32.totalorder %s21, 1
    %p228 = por %p226, %p227
    %p229 = scmp.ne.s32.totalorder %s220, %s221
    %p230 = scmp.eq.s32.totalorder %s21, 0
    %p231 = por %p229, %p230
    %p232 = scmp.ne.s32.totalorder %s220, %s221
    %p233 = scmp.eq.s32.totalorder %s22, 1
    %p234 = por %p232, %p233
    %p236 = scmp.ne.s32.totalorder %s221, %s235
    %p237 = scmp.eq.s32.totalorder %s22, 0
    %p238 = por %p236, %p237
    %s239 = ssub.s32 %s16, %s23
    %p240 = scmp.eq.s32.totalorder %s239, 0
    %s242 = sadd.s32 %s241, 1
    %s243 = scalar_select %p240, %s241, %s242
    %p246 = pneg %p240
    %p247 = scmp.eq.s32.totalorder %s16, 1
    %p248 = por %p246, %p247
    %p249 = scmp.ne.s32.totalorder %s241, %s244
    %p250 = scmp.eq.s32.totalorder %s16, 0
    %p251 = por %p249, %p250
    %p252 = scmp.ne.s32.totalorder %s241, %s244
    %p253 = scmp.eq.s32.totalorder %s21, 1
    %p254 = por %p252, %p253
    %p255 = scmp.ne.s32.totalorder %s244, %s245
    %p256 = scmp.eq.s32.totalorder %s21, 0
    %p257 = por %p255, %p256
    %p258 = scmp.ne.s32.totalorder %s244, %s245
    %p259 = scmp.eq.s32.totalorder %s22, 1
    %p260 = por %p258, %p259
    %p262 = scmp.ne.s32.totalorder %s245, %s261
    %p263 = scmp.eq.s32.totalorder %s22, 0
    %p264 = por %p262, %p263
    %p265 = scmp.le.s32.totalorder 1, %s16
    %p266 = scmp.lt.s32.totalorder %s16, 3
    %p267 = pnand %p265, %p266
    %p268 = pneg %p267
    // Predicated region
    $region9: #{_lambda_.15} parent=5 // pred_check
      _
    $region10: #{_lambda_.15} parent=5 // pred_check_branch
      %270 = sbr.rel (%p267) target = $region12
    $region11: #{_lambda_.15} parent=5 // pred_region
      %s271 = ssub.s32 %s16, 1
      // Predicated region
      $region13: #{_lambda_.15} parent=11 // pred_check
        %p272 = pneg %p63
      $region14: #{_lambda_.15} parent=11 // pred_check_branch
        %274 = sbr.rel (%p272) target = $region16
      $region15: #{_lambda_.15} parent=11 // pred_region
        _
      $region16: #{_lambda_.15} parent=11 // pred_fallthru
        _
      // Predicated region
      $region17: #{_lambda_.15} parent=11 // pred_check
        %p275 = pneg %p84
      $region18: #{_lambda_.15} parent=11 // pred_check_branch
        %277 = sbr.rel (%p275) target = $region20
      $region19: #{_lambda_.15} parent=11 // pred_region
        _
      $region20: #{_lambda_.15} parent=11 // pred_fallthru
        _
      // Predicated region
      $region21: #{_lambda_.15} parent=11 // pred_check
        %p278 = pneg %p105
      $region22: #{_lambda_.15} parent=11 // pred_check_branch
        %280 = sbr.rel (%p278) target = $region24
      $region23: #{_lambda_.15} parent=11 // pred_region
        _
      $region24: #{_lambda_.15} parent=11 // pred_fallthru
        _
      // Predicated region
      $region25: #{_lambda_.15} parent=11 // pred_check
        %p281 = pneg %p126
      $region26: #{_lambda_.15} parent=11 // pred_check_branch
        %283 = sbr.rel (%p281) target = $region28
      $region27: #{_lambda_.15} parent=11 // pred_region
        _
      $region28: #{_lambda_.15} parent=11 // pred_fallthru
        _
      // Predicated region
      $region29: #{_lambda_.15} parent=11 // pred_check
        %p284 = pneg %p147
      $region30: #{_lambda_.15} parent=11 // pred_check_branch
        %286 = sbr.rel (%p284) target = $region32
      $region31: #{_lambda_.15} parent=11 // pred_region
        _
      $region32: #{_lambda_.15} parent=11 // pred_fallthru
        _
      // Predicated region
      $region33: #{_lambda_.15} parent=11 // pred_check
        %p287 = pneg %p168
      $region34: #{_lambda_.15} parent=11 // pred_check_branch
        %289 = sbr.rel (%p287) target = $region36
      $region35: #{_lambda_.15} parent=11 // pred_region
        _
      $region36: #{_lambda_.15} parent=11 // pred_fallthru
        _
      // Predicated region
      $region37: #{_lambda_.15} parent=11 // pred_check
        %p290 = pneg %p189
      $region38: #{_lambda_.15} parent=11 // pred_check_branch
        %292 = sbr.rel (%p290) target = $region40
      $region39: #{_lambda_.15} parent=11 // pred_region
        _
      $region40: #{_lambda_.15} parent=11 // pred_fallthru
        _
      // Predicated region
      $region41: #{_lambda_.15} parent=11 // pred_check
        %p293 = pneg %p210
      $region42: #{_lambda_.15} parent=11 // pred_check_branch
        %295 = sbr.rel (%p293) target = $region44
      $region43: #{_lambda_.15} parent=11 // pred_region
        _
      $region44: #{_lambda_.15} parent=11 // pred_fallthru
        _
      // Predicated region
      $region45: #{_lambda_.15} parent=11 // pred_check
        %p296 = pneg %p231
      $region46: #{_lambda_.15} parent=11 // pred_check_branch
        %298 = sbr.rel (%p296) target = $region48
      $region47: #{_lambda_.15} parent=11 // pred_region
        _
      $region48: #{_lambda_.15} parent=11 // pred_fallthru
        _
    $region12: #{_lambda_.15} parent=5 // pred_fallthru
      _
    %p299 = scmp.lt.s32.totalorder %s16, 2
    // Predicated region
    $region49: #{_lambda_.15} parent=5 // pred_check
      %p300 = pneg %p299
    $region50: #{_lambda_.15} parent=5 // pred_check_branch
      %302 = sbr.rel (%p300) target = $region52
    $region51: #{_lambda_.15} parent=5 // pred_region
      // Predicated region
      $region53: #{_lambda_.15} parent=51 // pred_check
        %p303 = pneg %p36
      $region54: #{_lambda_.15} parent=51 // pred_check_branch
        %305 = sbr.rel (%p303) target = $region56
      $region55: #{_lambda_.15} parent=51 // pred_region
        %s306 = smul.u32 2, %s16
        %p307 = scmp.lt.s32.totalorder %s306, 3
        %s308 = scalar_select %p307, %s306, 3
        %s309 = smul.addr %s308, 4
        %s310 = scalar_lea.vmem %s0, %s309
        %s311 = smul.u32 2, %s16
      $region56: #{_lambda_.15} parent=51 // pred_fallthru
        _
    $region52: #{_lambda_.15} parent=5 // pred_fallthru
      _
    %p312 = scmp.le.s32.totalorder 1, %s16
    %p313 = scmp.lt.s32.totalorder %s16, 3
    %p314 = pnand %p312, %p313
    %p315 = pneg %p314
    // Predicated region
    $region57: #{_lambda_.15} parent=5 // pred_check
      _
    $region58: #{_lambda_.15} parent=5 // pred_check_branch
      %317 = sbr.rel (%p314) target = $region60
    $region59: #{_lambda_.15} parent=5 // pred_region
      %s318 = ssub.s32 %s16, 1
      %s319 = smul.u32 2, %s21
      %p320 = scmp.lt.s32.totalorder %s319, 3
      %s321 = scalar_select %p320, %s319, 3
      %s322 = smul.addr %s321, 4
      %s323 = scalar_lea.vmem %s0, %s322
      %p324 = pneg %p42
      %p325 = pneg %p39
      %p326 = pneg %p63
      %p327 = pneg %p60
      %p328 = pneg %p84
      %p329 = pneg %p81
      %p330 = pneg %p105
      %p331 = pneg %p102
      %p332 = pneg %p126
      %p333 = pneg %p123
      %p334 = pneg %p147
      %p335 = pneg %p144
      %p336 = pneg %p168
      %p337 = pneg %p165
      %p338 = pneg %p189
      %p339 = pneg %p186
      %p340 = pneg %p210
      %p341 = pneg %p207
      %p342 = pneg %p231
      %p343 = pneg %p228
      %p344 = pneg %p257
      %p345 = pneg %p254
      %p346 = scmp.lt.s32.totalorder %s21, 1
      %s347 = scalar_select %p346, %s21, 1
      %s348 = smul.addr %s347, 4
      %s349 = scalar_lea.vmem %s10, %s348
      %s350 = smul.u32 2, %s21
      %p351 = scmp.lt.s32.totalorder %s350, 3
      %s352 = scalar_select %p351, %s350, 3
      %s353 = smul.addr %s352, 4
      %s354 = scalar_lea.vmem %s0, %s353
      %s355 = smul.u32 2, %s21
      %p356 = scmp.lt.s32.totalorder %s21, 1
      %s357 = scalar_select %p356, %s21, 1
      %s358 = smul.addr %s357, 4
      %s359 = scalar_lea.vmem %s10, %s358
      %v361 = vld [vmem:[%s354] sm:$0x1]
      %v362 = vunpack.c.l.bf16 %v361
      %v363 = vld [vmem:[%s1] sm:$0x1]
      %v364 = vmul.f32 %v362, %v363
      %v365 = vld [vmem:[%s354] sm:$0x4]
      %v366 = vunpack.c.l.bf16 %v365
      %v367 = vld [vmem:[%s1 + $0x1] sm:$0x1]
      %v369 = vrot.slane %v367, 4
      %v371 = vmul.f32 %v366, %v369
      %v373 = vrot.slane %v371, 4
      %v375 = vadd.f32 %v364, %v373
      %v376 = vld [vmem:[%s1 + $0x2] sm:$0x1]
      %v378 = vrot.slane %v376, 7
      %v380 = vmul.f32 %v362, %v378
      %v382 = vrot.slane %v380, 1
      %v384 = vadd.f32 %v375, %v382
      %v385 = vld [vmem:[%s354 + $0x4] sm:$0x1]
      %v386 = vunpack.c.l.bf16 %v385
      %v387 = vld [vmem:[%s1 + $0x3] sm:$0x1]
      %v388 = vmul.f32 %v386, %v387
      %v389 = vadd.f32 %v384, %v388
      %v390 = vld [vmem:[%s354 + $0x4] sm:$0x4]
      %v391 = vunpack.c.l.bf16 %v390
      %v392 = vld [vmem:[%s1 + $0x4] sm:$0x1]
      %v394 = vrot.slane %v392, 4
      %v396 = vmul.f32 %v391, %v394
      %v398 = vrot.slane %v396, 4
      %v400 = vadd.f32 %v389, %v398
      %v401 = vld [vmem:[%s1 + $0x5] sm:$0x1]
      %v403 = vrot.slane %v401, 7
      %v405 = vmul.f32 %v386, %v403
      %v407 = vrot.slane %v405, 1
      %v409 = vadd.f32 %v400, %v407
      %v410 = vld [vmem:[%s354] sm:$0x2]
      %v411 = vunpack.c.l.bf16 %v410
      %v412 = vld [vmem:[%s1 + $0x6] sm:$0x1]
      %v414 = vrot.slane %v412, 6
      %v416 = vmul.f32 %v411, %v414
      %v418 = vrot.slane %v416, 2
      %v420 = vadd.f32 %v409, %v418
      %v421 = vld [vmem:[%s354] sm:$0x8]
      %v422 = vunpack.c.l.bf16 %v421
      %v423 = vld [vmem:[%s1 + $0x7] sm:$0x1]
      %v425 = vrot.slane %v423, 2
      %v427 = vmul.f32 %v422, %v425
      %v429 = vrot.slane %v427, 6
      %v431 = vadd.f32 %v420, %v429
      %v432 = vld [vmem:[%s1 + $0x8] sm:$0x1]
      %v434 = vrot.slane %v432, 5
      %v436 = vmul.f32 %v411, %v434
      %v438 = vrot.slane %v436, 3
      %v440 = vadd.f32 %v431, %v438
      %v441 = vld [vmem:[%s2] sm:$0x1]
      %v442 = vadd.f32 %v440, %v441
      %v443 = vld [vmem:[%s3] sm:$0xf]
      %v444 = vld [vmem:[%s3 + $0x4] sm:$0xf]
      %v445 = vld [vmem:[%s3 + $0x8] sm:$0xf]
      %v446 = vld [vmem:[%s3 + $0xc] sm:$0xf]
      %v447 = vld [vmem:[%s3 + $0x10] sm:$0x1]
      %v448 = vpack.c.bf16 %v442, %v442
      %v449 = vld [vmem:[%s4] sm:$0x1]
      %v455 = vunpack.c.l.b16 %v443
      %v456 = vunpack.c.l.b16 %v444
      %v457 = vunpack.c.l.b16 %v445
      %v458 = vunpack.c.l.b16 %v446
      %v459 = vunpack.c.l.b16 %v447
      %v460 = vpack.c.b16 %v456, %v455
      %v461 = vpack.c.b16 %v458, %v457
      %v462 = vpack.c.b16 %v459, %v459
      %vm465 = vcmask 269312
      %v467 = vsel %vm465, %v448, 0
      %vm469 = vcmask 1040384
      %v470 = vsel 0, 4294967295, 65535
      %v471 = vsel %vm469, %v470, 0
      %v473 = vand.u32 %v462, %v471
      %475 = vmatprep.subr.bf16.mxu0 0
      %476 = vmatpush1.bf16.msra.mxu0 0
      %477 = vmatprep.subr.bf16.mxu0 0
      %478 = vmatpush1.bf16.msra.mxu0 0
      %479 = vmatprep.subr.bf16.mxu0 0
      %480 = vmatpush1.bf16.msra.mxu0 0
      %481 = vmatprep.subr.bf16.mxu0 0
      %482 = vmatpush1.bf16.msra.mxu0 0
      %483 = vmatprep.subr.bf16.mxu0 0
      %484 = vmatpush1.bf16.msra.mxu0 0
      %485 = vmatprep.subr.bf16.mxu0 0
      %486 = vmatpush1.bf16.msra.mxu0 %v473
      %487 = vmatprep.subr.bf16.mxu0 0
      %488 = vmatpush1.bf16.msra.mxu0 %v461
      %489 = vmatprep.subr.bf16.mxu0 0
      %490 = vmatpush1.bf16.msra.mxu0 %v460
      %491 = vmatprep.subr.bf16.mxu0 0
      %492 = vmatpush2.bf16.msra.mxu0 0
      %493 = vmatprep.subr.bf16.mxu0 0
      %494 = vmatpush2.bf16.msra.mxu0 0
      %495 = vmatprep.subr.bf16.mxu0 0
      %496 = vmatpush2.bf16.msra.mxu0 0
      %497 = vmatprep.subr.bf16.mxu0 0
      %498 = vmatpush2.bf16.msra.mxu0 0
      %499 = vmatprep.subr.bf16.mxu0 0
      %500 = vmatpush2.bf16.msra.mxu0 0
      %501 = vmatprep.subr.bf16.mxu0 0
      %502 = vmatpush2.bf16.msra.mxu0 0
      %503 = vmatprep.subr.bf16.mxu0 0
      %504 = vmatpush2.bf16.msra.mxu0 0
      %505 = vmatprep.subr.bf16.mxu0 0
      %506 = vmatpush2.bf16.msra.mxu0 0
      %507 = vmatprep.mubr.bf16.mxu0 0
      %508 = vmatmul.mubr.bf16.gmra.mxu0 %v467
      %v509 = vpop.f32.mrf.mxu0
      %v510 = vadd.f32 %v449, %v509
      %v511 = vpop.f32.mrf.mxu0
      %v512 = vpop.f32.mrf.mxu0
      %v513 = vpop.f32.mrf.mxu0
      %514 = vdwg.mxu0
      %v515 = vmax.f32 %v510, 0.0
      %v516 = vld [vmem:[%s354] sm:$0xf]
      %v517 = vld [vmem:[%s354 + $0x4] sm:$0xf]
      %v518 = vld [vmem:[%s5] sm:$0xf]
      %v519 = vld [vmem:[%s5 + $0x4] sm:$0xf]
      %v520 = vld [vmem:[%s5 + $0x8] sm:$0xf]
      %v521 = vld [vmem:[%s5 + $0xc] sm:$0xf]
      %v522 = vld [vmem:[%s5 + $0x10] sm:$0x1]
      %v525 = vunpack.c.l.b16 %v516
      %v526 = vunpack.c.l.b16 %v517
      %v527 = vpack.c.b16 %v526, %v525
      %v533 = vunpack.c.l.b16 %v518
      %v534 = vunpack.c.l.b16 %v519
      %v535 = vunpack.c.l.b16 %v520
      %v536 = vunpack.c.l.b16 %v521
      %v537 = vunpack.c.l.b16 %v522
      %v538 = vpack.c.b16 %v534, %v533
      %v539 = vpack.c.b16 %v536, %v535
      %v540 = vpack.c.b16 %v537, %v537
      %v544 = vsel %vm465, %v527, 0
      %v547 = vand.u32 %v540, %v471
      %549 = vmatprep.subr.bf16.mxu0 0
      %550 = vmatpush1.bf16.msra.mxu0 0
      %551 = vmatprep.subr.bf16.mxu0 0
      %552 = vmatpush1.bf16.msra.mxu0 0
      %553 = vmatprep.subr.bf16.mxu0 0
      %554 = vmatpush1.bf16.msra.mxu0 0
      %555 = vmatprep.subr.bf16.mxu0 0
      %556 = vmatpush1.bf16.msra.mxu0 0
      %557 = vmatprep.subr.bf16.mxu0 0
      %558 = vmatpush1.bf16.msra.mxu0 0
      %559 = vmatprep.subr.bf16.mxu0 0
      %560 = vmatpush1.bf16.msra.mxu0 %v547
      %561 = vmatprep.subr.bf16.mxu0 0
      %562 = vmatpush1.bf16.msra.mxu0 %v539
      %563 = vmatprep.subr.bf16.mxu0 0
      %564 = vmatpush1.bf16.msra.mxu0 %v538
      %565 = vmatprep.subr.bf16.mxu0 0
      %566 = vmatpush2.bf16.msra.mxu0 0
      %567 = vmatprep.subr.bf16.mxu0 0
      %568 = vmatpush2.bf16.msra.mxu0 0
      %569 = vmatprep.subr.bf16.mxu0 0
      %570 = vmatpush2.bf16.msra.mxu0 0
      %571 = vmatprep.subr.bf16.mxu0 0
      %572 = vmatpush2.bf16.msra.mxu0 0
      %573 = vmatprep.subr.bf16.mxu0 0
      %574 = vmatpush2.bf16.msra.mxu0 0
      %575 = vmatprep.subr.bf16.mxu0 0
      %576 = vmatpush2.bf16.msra.mxu0 0
      %577 = vmatprep.subr.bf16.mxu0 0
      %578 = vmatpush2.bf16.msra.mxu0 0
      %579 = vmatprep.subr.bf16.mxu0 0
      %580 = vmatpush2.bf16.msra.mxu0 0
      %581 = vmatprep.mubr.bf16.mxu0 0
      %582 = vmatmul.mubr.bf16.gmra.mxu0 %v544
      %v583 = vpop.f32.mrf.mxu0
      %v584 = vadd.f32 0.0, %v583
      %v585 = vpop.f32.mrf.mxu0
      %v586 = vpop.f32.mrf.mxu0
      %v587 = vadd.f32 0.0, %v586
      %v588 = vpop.f32.mrf.mxu0
      %589 = vdwg.mxu0
      %v590 = vmax.f32 %v584, 0.0
      %v591 = vmax.f32 %v587, 0.0
      %vm592 = vcmask 261120
      %593 = vst.msk [vmem:[#allocation2] sm:$0xff] %vm592, %v590
      %594 = vst.msk [vmem:[#allocation2 + $0x8] sm:$0xff] %vm592, %v591
      %v595 = vld [vmem:[#allocation2] sm:$0x1]
      %v596 = vld [vmem:[%s6] sm:$0x1]
      %v597 = vmul.f32 %v595, %v596
      %v598 = vld [vmem:[#allocation2 + $0x4] sm:$0x1]
      %v599 = vld [vmem:[%s6 + $0x1] sm:$0x1]
      %v600 = vmul.f32 %v598, %v599
      %v601 = vadd.f32 %v597, %v600
      %v602 = vld [vmem:[#allocation2 + $0x1] sm:$0x1]
      %v603 = vld [vmem:[%s6 + $0x2] sm:$0x1]
      %v604 = vmul.f32 %v602, %v603
      %v605 = vadd.f32 %v601, %v604
      %v606 = vld [vmem:[#allocation2 + $0x8] sm:$0x1]
      %v607 = vld [vmem:[%s6 + $0x3] sm:$0x1]
      %v608 = vmul.f32 %v606, %v607
      %v609 = vadd.f32 %v605, %v608
      %v610 = vld [vmem:[#allocation2 + $0xc] sm:$0x1]
      %v611 = vld [vmem:[%s6 + $0x4] sm:$0x1]
      %v612 = vmul.f32 %v610, %v611
      %v613 = vadd.f32 %v609, %v612
      %v614 = vld [vmem:[#allocation2 + $0x9] sm:$0x1]
      %v615 = vld [vmem:[%s6 + $0x5] sm:$0x1]
      %v616 = vmul.f32 %v614, %v615
      %v617 = vadd.f32 %v613, %v616
      %v618 = vld [vmem:[#allocation2 + $0x2] sm:$0x1]
      %v619 = vld [vmem:[%s6 + $0x6] sm:$0x1]
      %v620 = vmul.f32 %v618, %v619
      %v621 = vadd.f32 %v617, %v620
      %v622 = vld [vmem:[#allocation2 + $0x6] sm:$0x1]
      %v623 = vld [vmem:[%s6 + $0x7] sm:$0x1]
      %v624 = vmul.f32 %v622, %v623
      %v625 = vadd.f32 %v621, %v624
      %v626 = vld [vmem:[#allocation2 + $0x3] sm:$0x1]
      %v627 = vld [vmem:[%s6 + $0x8] sm:$0x1]
      %v628 = vmul.f32 %v626, %v627
      %v629 = vadd.f32 %v625, %v628
      %v630 = vld [vmem:[%s7] sm:$0x1]
      %v631 = vadd.f32 %v629, %v630
      %v632 = vld [vmem:[%s8] sm:$0xf]
      %v633 = vld [vmem:[%s8 + $0x4] sm:$0xf]
      %v634 = vld [vmem:[%s8 + $0x8] sm:$0xf]
      %v635 = vld [vmem:[%s8 + $0xc] sm:$0xf]
      %v636 = vpack.c.bf16 %v631, %v631
      %v637 = vld [vmem:[%s9] sm:$0x1]
      %v642 = vunpack.c.l.b16 %v632
      %v643 = vunpack.c.l.b16 %v633
      %v644 = vunpack.c.l.b16 %v634
      %v645 = vunpack.c.l.b16 %v635
      %v646 = vpack.c.b16 %v643, %v642
      %v647 = vpack.c.b16 %v645, %v644
      %v651 = vsel %vm592, %v636, 0
      %653 = vmatprep.subr.bf16.mxu0 0
      %654 = vmatpush1.bf16.msra.mxu0 0
      %655 = vmatprep.subr.bf16.mxu0 0
      %656 = vmatpush1.bf16.msra.mxu0 0
      %657 = vmatprep.subr.bf16.mxu0 0
      %658 = vmatpush1.bf16.msra.mxu0 0
      %659 = vmatprep.subr.bf16.mxu0 0
      %660 = vmatpush1.bf16.msra.mxu0 0
      %661 = vmatprep.subr.bf16.mxu0 0
      %662 = vmatpush1.bf16.msra.mxu0 0
      %663 = vmatprep.subr.bf16.mxu0 0
      %664 = vmatpush1.bf16.msra.mxu0 0
      %665 = vmatprep.subr.bf16.mxu0 0
      %666 = vmatpush1.bf16.msra.mxu0 %v647
      %667 = vmatprep.subr.bf16.mxu0 0
      %668 = vmatpush1.bf16.msra.mxu0 %v646
      %669 = vmatprep.subr.bf16.mxu0 0
      %670 = vmatpush2.bf16.msra.mxu0 0
      %671 = vmatprep.subr.bf16.mxu0 0
      %672 = vmatpush2.bf16.msra.mxu0 0
      %673 = vmatprep.subr.bf16.mxu0 0
      %674 = vmatpush2.bf16.msra.mxu0 0
      %675 = vmatprep.subr.bf16.mxu0 0
      %676 = vmatpush2.bf16.msra.mxu0 0
      %677 = vmatprep.subr.bf16.mxu0 0
      %678 = vmatpush2.bf16.msra.mxu0 0
      %679 = vmatprep.subr.bf16.mxu0 0
      %680 = vmatpush2.bf16.msra.mxu0 0
      %681 = vmatprep.subr.bf16.mxu0 0
      %682 = vmatpush2.bf16.msra.mxu0 0
      %683 = vmatprep.subr.bf16.mxu0 0
      %684 = vmatpush2.bf16.msra.mxu0 0
      %685 = vmatprep.mubr.bf16.mxu0 0
      %686 = vmatmul.mubr.bf16.gmra.mxu0 %v651
      %v687 = vpop.f32.mrf.mxu0
      %v688 = vadd.f32 %v637, %v687
      %v689 = vpop.f32.mrf.mxu0
      %v690 = vpop.f32.mrf.mxu0
      %v691 = vpop.f32.mrf.mxu0
      %692 = vdwg.mxu0
      %v693 = vmax.f32 %v688, 0.0
      %695 = vrot.lane.b32.xlu0 %v693, 32
      %v696 = vpop.permute.xlu0 %695
      %v698 = vsel %vm592, %v515, %v696
      %v699 = vpack.c.bf16 %v698, %v698
      %vm700 = vcmask 516096
      %vm701 = vsmask.f32 256
      %vm702 = vmand %vm700, %vm701
      %v703 = vld [vmem:[%s359] sm:$0x1]
      %v704 = vsel %vm702, %v699, %v703
      %705 = vst [vmem:[%s359] sm:$0x1] %v704
      %p706 = scmp.lt.s32.totalorder %s21, 1
      %s707 = scalar_select %p706, %s21, 1
      %s708 = smul.addr %s707, 4
      %s709 = scalar_lea.vmem %s10, %s708
      // Predicated region
      $region61: #{_lambda_.15} parent=59 // pred_check
        %p710 = pneg %p254
      $region62: #{_lambda_.15} parent=59 // pred_check_branch
        %712 = sbr.rel (%p710) target = $region64
      $region63: #{_lambda_.15} parent=59 // pred_region
        _
      $region64: #{_lambda_.15} parent=59 // pred_fallthru
        _
    $region60: #{_lambda_.15} parent=5 // pred_fallthru
      _
    %p713 = scmp.le.s32.totalorder 2, %s16
    // Predicated region
    $region65: #{_lambda_.15} parent=5 // pred_check
      %p714 = pneg %p713
    $region66: #{_lambda_.15} parent=5 // pred_check_branch
      %716 = sbr.rel (%p714) target = $region68
    $region67: #{_lambda_.15} parent=5 // pred_region
      %s717 = ssub.s32 %s16, 2
      // Predicated region
      $region69: #{_lambda_.15} parent=67 // pred_check
        %p718 = pneg %p260
      $region70: #{_lambda_.15} parent=67 // pred_check_branch
        %720 = sbr.rel (%p718) target = $region72
      $region71: #{_lambda_.15} parent=67 // pred_region
        %p721 = scmp.lt.s32.totalorder %s22, 1
        %s722 = scalar_select %p721, %s22, 1
        %s723 = smul.addr %s722, 4
        %s724 = scalar_lea.vmem %s10, %s723
      $region72: #{_lambda_.15} parent=67 // pred_fallthru
        _
    $region68: #{_lambda_.15} parent=5 // pred_fallthru
      _
  $region6: #{_lambda_.15} parent=0 // loop_footer
    %s20 = sadd.s32 1, %s16
  $region7: #{_lambda_.15} parent=0 // loop_footer_branch
    %15 = sbr.rel target = $region3
  $region8: #{_lambda_.15} parent=0 // loop_exit
    _

// kernel: _lambda_.17
$region0: #{_lambda_.17}
  #allocation0 [shape = 'u32[]', space=smem, size = 0x4, offset = 0x4, fixed_abs, tag = 'smem constant byte address 0x4 - core index']
  #allocation1 [shape = 'u32[144,128]{1,0:T(1,128)}', space=vmem, size = 0x12000, scoped, tag = 'internal scratch']
  %s0 = inlined_call_operand.vmem [shape: bf16[2,64], index: 0, kind: input, shape index: {}]
  %s1 = inlined_call_operand.vmem [shape: bf16[64,128], index: 1, kind: input, shape index: {}]
  %s2 = inlined_call_operand.vmem [shape: f32[1,128], index: 2, kind: input, shape index: {}]
  %s3 = inlined_call_operand.vmem [shape: bf16[128,10], index: 3, kind: input, shape index: {}]
  %s4 = inlined_call_operand.vmem [shape: f32[1,10], index: 4, kind: input, shape index: {}]
  %s5 = inlined_call_operand.hbm [shape: f32[2,10], index: 5, kind: output, shape index: {}]
  %s6 = sld [smem:[#allocation0]]
  $region30: #{_lambda_.17} parent=0
    _
  %s8 = ssub.s32 1, %s6
  %s9 = scalar_select 0, %s8, %s6
  $region1: #{_lambda_.17} parent=0
    #allocation2 [shape = 'u8[1024]{0}', space=vmem, size = 0x400, scoped, tag = 'output window, operand 0, single buffered']
    #allocation3 [shape = 's32[1]{0}', space=sflag, size = 0x4, scoped, tag = 'scoped memory for _lambda_.17']
    %10 = vsyncpa [#allocation3], 0
    // Predicated region
    $region2: #{_lambda_.17} parent=1 // pred_check
      _
    $region3: #{_lambda_.17} parent=1 // pred_check_branch
      %12 = sbr.rel (0) target = $region5
    $region4: #{_lambda_.17} parent=1 // pred_region
      _
    $region5: #{_lambda_.17} parent=1 // pred_fallthru
      _
    // Predicated region
    $region6: #{_lambda_.17} parent=1 // pred_check
      _
    $region7: #{_lambda_.17} parent=1 // pred_check_branch
      %14 = sbr.rel (0) target = $region9
    $region8: #{_lambda_.17} parent=1 // pred_region
      _
    $region9: #{_lambda_.17} parent=1 // pred_fallthru
      _
    // Predicated region
    $region10: #{_lambda_.17} parent=1 // pred_check
      _
    $region11: #{_lambda_.17} parent=1 // pred_check_branch
      %16 = sbr.rel (0) target = $region13
    $region12: #{_lambda_.17} parent=1 // pred_region
      _
    $region13: #{_lambda_.17} parent=1 // pred_fallthru
      _
    // Predicated region
    $region14: #{_lambda_.17} parent=1 // pred_check
      _
    $region15: #{_lambda_.17} parent=1 // pred_check_branch
      %18 = sbr.rel (0) target = $region17
    $region16: #{_lambda_.17} parent=1 // pred_region
      _
    $region17: #{_lambda_.17} parent=1 // pred_fallthru
      _
    // Predicated region
    $region18: #{_lambda_.17} parent=1 // pred_check
      _
    $region19: #{_lambda_.17} parent=1 // pred_check_branch
      %20 = sbr.rel (0) target = $region21
    $region20: #{_lambda_.17} parent=1 // pred_region
      _
    $region21: #{_lambda_.17} parent=1 // pred_fallthru
      _
    %v22 = vld [vmem:[%s0] sm:$0x1]
    %v23 = vld [vmem:[%s1] sm:$0xf]
    %v24 = vld [vmem:[%s1 + $0x4] sm:$0xf]
    %v25 = vld [vmem:[%s1 + $0x8] sm:$0xf]
    %v26 = vld [vmem:[%s1 + $0xc] sm:$0xf]
    %v27 = vld [vmem:[%s1 + $0x10] sm:$0xf]
    %v28 = vld [vmem:[%s1 + $0x14] sm:$0xf]
    %v29 = vld [vmem:[%s1 + $0x18] sm:$0xf]
    %v30 = vld [vmem:[%s1 + $0x1c] sm:$0xf]
    %v31 = vld [vmem:[%s2] sm:$0x1]
    %v33 = vlaneseq
    %v34 = vshrl.u32 %v33, 7
    %v35 = vsub.s32 0, %v34
    %v36 = vrot.slane %v31, %v35
    %v46 = vunpack.c.l.b16 %v23
    %v47 = vunpack.c.l.b16 %v24
    %v48 = vunpack.c.l.b16 %v25
    %v49 = vunpack.c.l.b16 %v26
    %v50 = vunpack.c.l.b16 %v27
    %v51 = vunpack.c.l.b16 %v28
    %v52 = vunpack.c.l.b16 %v29
    %v53 = vunpack.c.l.b16 %v30
    %v54 = vpack.c.b16 %v47, %v46
    %v55 = vpack.c.b16 %v49, %v48
    %v56 = vpack.c.b16 %v51, %v50
    %v57 = vpack.c.b16 %v53, %v52
    %vm62 = vcmask 523264
    %v64 = vsel %vm62, %v22, 0
    %66 = vmatprep.subr.bf16.mxu0 0
    %67 = vmatpush1.bf16.msra.mxu0 0
    %68 = vmatprep.subr.bf16.mxu0 0
    %69 = vmatpush1.bf16.msra.mxu0 0
    %70 = vmatprep.subr.bf16.mxu0 0
    %71 = vmatpush1.bf16.msra.mxu0 0
    %72 = vmatprep.subr.bf16.mxu0 0
    %73 = vmatpush1.bf16.msra.mxu0 0
    %74 = vmatprep.subr.bf16.mxu0 0
    %75 = vmatpush1.bf16.msra.mxu0 %v57
    %76 = vmatprep.subr.bf16.mxu0 0
    %77 = vmatpush1.bf16.msra.mxu0 %v56
    %78 = vmatprep.subr.bf16.mxu0 0
    %79 = vmatpush1.bf16.msra.mxu0 %v55
    %80 = vmatprep.subr.bf16.mxu0 0
    %81 = vmatpush1.bf16.msra.mxu0 %v54
    %82 = vmatprep.subr.bf16.mxu0 0
    %83 = vmatpush2.bf16.msra.mxu0 0
    %84 = vmatprep.subr.bf16.mxu0 0
    %85 = vmatpush2.bf16.msra.mxu0 0
    %86 = vmatprep.subr.bf16.mxu0 0
    %87 = vmatpush2.bf16.msra.mxu0 0
    %88 = vmatprep.subr.bf16.mxu0 0
    %89 = vmatpush2.bf16.msra.mxu0 0
    %90 = vmatprep.subr.bf16.mxu0 0
    %91 = vmatpush2.bf16.msra.mxu0 0
    %92 = vmatprep.subr.bf16.mxu0 0
    %93 = vmatpush2.bf16.msra.mxu0 0
    %94 = vmatprep.subr.bf16.mxu0 0
    %95 = vmatpush2.bf16.msra.mxu0 0
    %96 = vmatprep.subr.bf16.mxu0 0
    %97 = vmatpush2.bf16.msra.mxu0 0
    %98 = vmatprep.mubr.bf16.mxu0 0
    %99 = vmatmul.mubr.bf16.gmra.mxu0 %v64
    %v100 = vpop.f32.mrf.mxu0
    %v101 = vadd.f32 %v36, %v100
    %v102 = vpop.f32.mrf.mxu0
    %v103 = vpop.f32.mrf.mxu0
    %v104 = vpop.f32.mrf.mxu0
    %105 = vdwg.mxu0
    %v106 = vmax.f32 %v101, 0.0
    %v107 = vadd.f32 %v106, 0.0
    %v108 = vld [vmem:[%s3] sm:$0xf]
    %v109 = vld [vmem:[%s3 + $0x4] sm:$0xf]
    %v110 = vld [vmem:[%s3 + $0x8] sm:$0xf]
    %v111 = vld [vmem:[%s3 + $0xc] sm:$0xf]
    %v112 = vld [vmem:[%s3 + $0x10] sm:$0xf]
    %v113 = vld [vmem:[%s3 + $0x14] sm:$0xf]
    %v114 = vld [vmem:[%s3 + $0x18] sm:$0xf]
    %v115 = vld [vmem:[%s3 + $0x1c] sm:$0xf]
    %v116 = vld [vmem:[%s3 + $0x20] sm:$0xf]
    %v117 = vld [vmem:[%s3 + $0x24] sm:$0xf]
    %v118 = vld [vmem:[%s3 + $0x28] sm:$0xf]
    %v119 = vld [vmem:[%s3 + $0x2c] sm:$0xf]
    %v120 = vld [vmem:[%s3 + $0x30] sm:$0xf]
    %v121 = vld [vmem:[%s3 + $0x34] sm:$0xf]
    %v122 = vld [vmem:[%s3 + $0x38] sm:$0xf]
    %v123 = vld [vmem:[%s3 + $0x3c] sm:$0xf]
    %v124 = vpack.c.bf16 %v107, %v107
    %v125 = vld [vmem:[%s4] sm:$0x1]
    %v127 = vlaneseq
    %v128 = vshrl.u32 %v127, 7
    %v129 = vsub.s32 0, %v128
    %v130 = vrot.slane %v125, %v129
    %v148 = vunpack.c.l.b16 %v108
    %v149 = vunpack.c.l.b16 %v109
    %v150 = vunpack.c.l.b16 %v110
    %v151 = vunpack.c.l.b16 %v111
    %v152 = vunpack.c.l.b16 %v112
    %v153 = vunpack.c.l.b16 %v113
    %v154 = vunpack.c.l.b16 %v114
    %v155 = vunpack.c.l.b16 %v115
    %v156 = vunpack.c.l.b16 %v116
    %v157 = vunpack.c.l.b16 %v117
    %v158 = vunpack.c.l.b16 %v118
    %v159 = vunpack.c.l.b16 %v119
    %v160 = vunpack.c.l.b16 %v120
    %v161 = vunpack.c.l.b16 %v121
    %v162 = vunpack.c.l.b16 %v122
    %v163 = vunpack.c.l.b16 %v123
    %v164 = vpack.c.b16 %v149, %v148
    %v165 = vpack.c.b16 %v151, %v150
    %v166 = vpack.c.b16 %v153, %v152
    %v167 = vpack.c.b16 %v155, %v154
    %v168 = vpack.c.b16 %v157, %v156
    %v169 = vpack.c.b16 %v159, %v158
    %v170 = vpack.c.b16 %v161, %v160
    %v171 = vpack.c.b16 %v163, %v162
    %180 = vmatprep.subr.bf16.mxu0 0
    %181 = vmatpush1.bf16.msra.mxu0 %v171
    %182 = vmatprep.subr.bf16.mxu0 0
    %183 = vmatpush1.bf16.msra.mxu0 %v170
    %184 = vmatprep.subr.bf16.mxu0 0
    %185 = vmatpush1.bf16.msra.mxu0 %v169
    %186 = vmatprep.subr.bf16.mxu0 0
    %187 = vmatpush1.bf16.msra.mxu0 %v168
    %188 = vmatprep.subr.bf16.mxu0 0
    %189 = vmatpush1.bf16.msra.mxu0 %v167
    %190 = vmatprep.subr.bf16.mxu0 0
    %191 = vmatpush1.bf16.msra.mxu0 %v166
    %192 = vmatprep.subr.bf16.mxu0 0
    %193 = vmatpush1.bf16.msra.mxu0 %v165
    %194 = vmatprep.subr.bf16.mxu0 0
    %195 = vmatpush1.bf16.msra.mxu0 %v164
    %196 = vmatprep.subr.bf16.mxu0 0
    %197 = vmatpush2.bf16.msra.mxu0 0
    %198 = vmatprep.subr.bf16.mxu0 0
    %199 = vmatpush2.bf16.msra.mxu0 0
    %200 = vmatprep.subr.bf16.mxu0 0
    %201 = vmatpush2.bf16.msra.mxu0 0
    %202 = vmatprep.subr.bf16.mxu0 0
    %203 = vmatpush2.bf16.msra.mxu0 0
    %204 = vmatprep.subr.bf16.mxu0 0
    %205 = vmatpush2.bf16.msra.mxu0 0
    %206 = vmatprep.subr.bf16.mxu0 0
    %207 = vmatpush2.bf16.msra.mxu0 0
    %208 = vmatprep.subr.bf16.mxu0 0
    %209 = vmatpush2.bf16.msra.mxu0 0
    %210 = vmatprep.subr.bf16.mxu0 0
    %211 = vmatpush2.bf16.msra.mxu0 0
    %212 = vmatprep.mubr.bf16.mxu0 0
    %213 = vmatmul.mubr.bf16.gmra.mxu0 %v124
    %v214 = vpop.f32.mrf.mxu0
    %v215 = vadd.f32 %v130, %v214
    %v216 = vpop.f32.mrf.mxu0
    %v217 = vpop.f32.mrf.mxu0
    %v218 = vpop.f32.mrf.mxu0
    %219 = vdwg.mxu0
    %vm220 = vcmask 74752
    %221 = vst.msk [vmem:[#allocation2] sm:$0x3] %vm220, %v215
    // Predicated region
    $region22: #{_lambda_.17} parent=1 // pred_check
      _
    $region23: #{_lambda_.17} parent=1 // pred_check_branch
      %223 = sbr.rel (0) target = $region25
    $region24: #{_lambda_.17} parent=1 // pred_region
      %s225 = ssub.s32 32, 32
      %226 = vsyncadd [#allocation3], %s225
      %s228 = sshll.u32 [#allocation2], 4
      %s229 = int_to_ptr.vmem [resolvable:$true] %s228
      %231 = dma.vmem_to_hbm [thread:$0]  %s229, 32, %s5, [#allocation3]
    $region25: #{_lambda_.17} parent=1 // pred_fallthru
      _
    // Predicated region
    $region26: #{_lambda_.17} parent=1 // pred_check
      _
    $region27: #{_lambda_.17} parent=1 // pred_check_branch
      %233 = sbr.rel (0) target = $region29
    $region28: #{_lambda_.17} parent=1 // pred_region
      %234 = dma.done [#allocation3], 32
    $region29: #{_lambda_.17} parent=1 // pred_fallthru
      _
    %235 = vsyncpa [#allocation3], 1

</llo_original>
